<compile_context>
chip_gen: v5e
topology: v5e:2x2
jax: 0.10.0
libtpu: 0.0.40
codegen_flags: <defaults>
</compile_context>

<pallas_src>
import functools
import math

import jax
import jax.numpy as jnp
from jax.experimental import pallas as pl
from jax.experimental.pallas import tpu as pltpu


_NEG_INF = -1e30                      # finite mask sentinel (no NaN rows)
_VMEM_LIMIT = 48 * 1024 * 1024        # safe on v5e/v6e (128 MiB) and v7x (64 MiB)


def _round_up(a, b):
    return (a + b - 1) // b * b


# ----------------------------------------------------------------------------
# Shared GEMM kernel (backs every conv and the linear layer)
# ----------------------------------------------------------------------------

def _gemm_kernel(x_ref, w_ref, b_ref, o_ref, *, apply_relu):
    acc = jnp.dot(x_ref[...], w_ref[...], preferred_element_type=jnp.float32)
    acc = acc + b_ref[...]
    if apply_relu:
        acc = jnp.maximum(acc, 0.0)
    o_ref[...] = acc.astype(o_ref.dtype)


def gemm_bias_act(x, w, b, *, relu=False):
    """(M,K) @ (K,N) + b, optional ReLU.  bf16 MXU inputs, f32 accumulate."""
    m, k = x.shape
    n = w.shape[1]
    xb = x.astype(jnp.bfloat16)
    wb = w.astype(jnp.bfloat16)
    bf = b.astype(jnp.float32).reshape(1, n)

    # One block when small; tile M (and large lane-aligned Cout) otherwise.
    tm = 256 if m >= 256 else _round_up(m, 8)
    mp = _round_up(m, tm)
    if mp != m:
        xb = jnp.pad(xb, ((0, mp - m), (0, 0)))
    tn = 256 if (n >= 512 and n % 256 == 0) else n
    # TODO(synk): at the real 512-channel config also tile K with a VMEM f32
    # accumulator (pl.when init/flush) so weight blocks stay within v7x VMEM.

    out = pl.pallas_call(
        functools.partial(_gemm_kernel, apply_relu=relu),
        grid=(mp // tm, n // tn),
        in_specs=[
            pl.BlockSpec((tm, k), lambda i, j: (i, 0)),
            pl.BlockSpec((k, tn), lambda i, j: (0, j)),
            pl.BlockSpec((1, tn), lambda i, j: (0, j)),
        ],
        out_specs=pl.BlockSpec((tm, tn), lambda i, j: (i, j)),
        out_shape=jax.ShapeDtypeStruct((mp, n), jnp.float32),
        compiler_params=pltpu.CompilerParams(
            dimension_semantics=("parallel", "parallel"),
            vmem_limit_bytes=_VMEM_LIMIT),
    )(xb, wb, bf)
    return out[:m]


def conv3x3(x, w, b, *, padding, relu):
    """3x3 stride-1 conv, NHWC.  im2col (layout plumbing in XLA) feeds one
    MXU GEMM with batch folded into M and K = 9*Cin."""
    n, _, _, cin = x.shape
    cout = w.shape[-1]
    if padding:
        x = jnp.pad(x, ((0, 0), (padding, padding), (padding, padding), (0, 0)))
    hp, wp = x.shape[1], x.shape[2]
    ho, wo = hp - 2, wp - 2
    cols = [x[:, kh:kh + ho, kw:kw + wo, :] for kh in range(3) for kw in range(3)]
    patches = jnp.concatenate(cols, axis=-1).reshape(n * ho * wo, 9 * cin)
    y = gemm_bias_act(patches, w.reshape(9 * cin, cout), b, relu=relu)
    return y.reshape(n, ho, wo, cout)


def dense(x, w, b, *, relu=False):
    return gemm_bias_act(x, w, b, relu=relu)


# ----------------------------------------------------------------------------
# Attention kernels
# ----------------------------------------------------------------------------

def _graph_attn_kernel(q_ref, k_ref, v_ref, mask_ref, o_ref, *, scale):
    """Block-masked self attention over edges (all graphs in one call)."""
    logits = jax.lax.dot_general(
        q_ref[...].astype(jnp.bfloat16), k_ref[...].astype(jnp.bfloat16),
        dimension_numbers=(((1,), (1,)), ((), ())),
        preferred_element_type=jnp.float32) * scale
    logits = jnp.where(mask_ref[...] > 0.5, logits, _NEG_INF)
    m = jnp.max(logits, axis=-1, keepdims=True)
    p = jnp.exp(logits - m)
    p = p * pl.reciprocal(jnp.sum(p, axis=-1, keepdims=True), approx=True)
    o_ref[...] = jnp.dot(p.astype(jnp.bfloat16), v_ref[...].astype(jnp.bfloat16),
                         preferred_element_type=jnp.float32)


def graph_self_attention(q, k, v, mask, scale):
    # TODO(synk): tile over query rows with an online-softmax accumulator for
    # large edge counts; a single resident block is fine at these sizes.
    return pl.pallas_call(
        functools.partial(_graph_attn_kernel, scale=scale),
        out_shape=jax.ShapeDtypeStruct(v.shape, jnp.float32),
    )(q, k, v, mask)


def _graph_pool_kernel(logit_ref, mask_ref, feat_ref, o_ref):
    """softmax(masked logits) @ features; one output row per graph."""
    logits = jnp.broadcast_to(logit_ref[...], mask_ref.shape)
    logits = jnp.where(mask_ref[...] > 0.5, logits, _NEG_INF)
    m = jnp.max(logits, axis=-1, keepdims=True)
    p = jnp.exp(logits - m)
    p = p * pl.reciprocal(jnp.sum(p, axis=-1, keepdims=True), approx=True)
    o_ref[...] = jnp.dot(p.astype(jnp.bfloat16), feat_ref[...].astype(jnp.bfloat16),
                         preferred_element_type=jnp.float32)


def graph_softmax_pool(logits, mask, feat):
    g = mask.shape[0]
    d = feat.shape[1]
    return pl.pallas_call(
        _graph_pool_kernel,
        out_shape=jax.ShapeDtypeStruct((g, d), jnp.float32),
    )(logits, mask, feat)


def _nonlocal_kernel(tm_ref, pm_ref, t_ref, o_ref):
    """Core of AttentionBlock: outer product of pooled theta/phi means,
    softmax over channels, channel mix of t.

    tm_ref: (1, Cn, 1)   pooled theta mean (column)
    pm_ref: (1, 1, Cn)   pooled phi mean (row)
    t_ref:  (1, H*W, Cn)
    o_ref:  (1, H*W, Cn)
    """
    logits = tm_ref[0] * pm_ref[0]                                   # (Cn, Cn)
    m = jnp.max(logits, axis=-1, keepdims=True)
    p = jnp.exp(logits - m)
    wji = p * pl.reciprocal(jnp.sum(p, axis=-1, keepdims=True), approx=True)
    # out[hw, co] = sum_ci t[hw, ci] * W_ji[co, ci]
    o_ref[0] = jax.lax.dot_general(
        t_ref[0].astype(jnp.bfloat16), wji.astype(jnp.bfloat16),
        dimension_numbers=(((1,), (1,)), ((), ())),
        preferred_element_type=jnp.float32)


def nonlocal_attention(theta_mean, phi_mean, t):
    b, cn = theta_mean.shape
    hw = t.shape[1]
    return pl.pallas_call(
        _nonlocal_kernel,
        grid=(b,),
        in_specs=[
            pl.BlockSpec((1, cn, 1), lambda i: (i, 0, 0)),
            pl.BlockSpec((1, 1, cn), lambda i: (i, 0, 0)),
            pl.BlockSpec((1, hw, cn), lambda i: (i, 0, 0)),
        ],
        out_specs=pl.BlockSpec((1, hw, cn), lambda i: (i, 0, 0)),
        out_shape=jax.ShapeDtypeStruct((b, hw, cn), jnp.float32),
        compiler_params=pltpu.CompilerParams(
            dimension_semantics=("parallel",)),
    )(theta_mean[:, :, None], phi_mean[:, None, :], t)


# ----------------------------------------------------------------------------
# Model pieces (glue in plain JAX, hot paths in the kernels above)
# ----------------------------------------------------------------------------

def attention_block(p, x):
    """Non-local AttentionBlock (N=8)."""
    theta = conv3x3(x, *p['theta'], padding=0, relu=False)   # (B, H-2, W-2, C/N)
    phi = conv3x3(x, *p['phi'], padding=0, relu=False)
    t = conv3x3(x, *p['f'], padding=1, relu=False)            # (B, H, W, C/N)
    b, hh, ww, cn = t.shape
    theta_mean = jnp.mean(theta, axis=(1, 2))                  # adaptive_avg_pool2d(.,1)
    phi_mean = jnp.mean(phi, axis=(1, 2))
    out = nonlocal_attention(theta_mean, phi_mean, t.reshape(b, hh * ww, cn))
    a = conv3x3(out.reshape(b, hh, ww, cn), *p['g'], padding=1, relu=False)
    return x + a


def gnn_layer(p, x, row, col, edge_attr, inv_deg):
    """SimpleConvEdgeUpdate (mean aggregation, with attention)."""
    num_nodes = x.shape[0]
    x_src = jnp.take(x, row, axis=0)   # x_j (source)
    x_dst = jnp.take(x, col, axis=0)   # x_i (target)

    # edge update: cat([edge_attr, source, target])
    e_in = jnp.concatenate([edge_attr, x_src, x_dst], axis=-1)
    e = conv3x3(e_in, *p['edge_cnn1'], padding=1, relu=True)
    e = conv3x3(e, *p['edge_cnn2'], padding=1, relu=False)

    # message: cat([x_j, edge_attr_new])
    m_in = jnp.concatenate([x_src, e], axis=-1)
    m = conv3x3(m_in, *p['msg1'], padding=1, relu=True)
    m = conv3x3(m, *p['msg2'], padding=1, relu=False)
    m = attention_block(p['att'], m)

    # scatter-mean at target nodes (segment_sum; avoids degenerate MXU shapes)
    ne, hh, ww, cc = m.shape
    aggr = jax.ops.segment_sum(m.reshape(ne, -1), col, num_segments=num_nodes)
    aggr = (aggr * inv_deg).reshape(num_nodes, hh, ww, cc)

    # node update: cat([x, aggr])
    u_in = jnp.concatenate([x, aggr], axis=-1)
    u = conv3x3(u_in, *p['upd1'], padding=1, relu=True)
    u = conv3x3(u, *p['upd2'], padding=1, relu=False)
    return u, e


def _fuse_cout(p_list):
    """Concatenate conv (w, b) pairs along Cout so several heads become one
    lane-denser conv/GEMM."""
    ws = jnp.concatenate([w for w, _ in p_list], axis=-1)
    bs = jnp.concatenate([b for _, b in p_list], axis=0)
    return ws, bs


def gcnet_forward(params, x_feat, edge_index, edge_attr, batch, *,
                  num_graphs, gnn_recursion, edge_feat_dim):
    row, col = edge_index[0], edge_index[1]
    num_edges = edge_attr.shape[0]
    num_nodes = x_feat.shape[0]
    h, w = x_feat.shape[1], x_feat.shape[2]

    # process_feat (no ReLU in the reference)
    x = conv3x3(x_feat, *params['process_feat'], padding=1, relu=False)

    # relative displacement projection + spatial broadcast (hoisted, reused)
    rel_disp = dense(edge_attr, *params['proj_rel_disp'], relu=True)
    rel_disp_map = jnp.broadcast_to(
        rel_disp[:, None, None, :], (num_edges, h, w, rel_disp.shape[-1]))
    # TODO(synk): fold the spatially-constant rel_disp channels into the GEMM
    # (tap-summed weights) instead of materializing the broadcast map.

    # loop-invariant graph structure
    deg = jax.ops.segment_sum(jnp.ones((num_edges,), jnp.float32), col,
                              num_segments=num_nodes)
    inv_deg = (1.0 / jnp.maximum(deg, 1.0))[:, None]

    def join(node_feat, extras):
        return jnp.concatenate(
            [jnp.take(node_feat, row, axis=0),
             jnp.take(node_feat, col, axis=0)] + extras, axis=-1)

    edge_node_feat = join(x, [rel_disp_map])
    edge_feat = conv3x3(edge_node_feat, *params['proj_init_edge'],
                        padding=1, relu=True)

    for _ in range(gnn_recursion):
        ef = jnp.concatenate([edge_feat, rel_disp_map], axis=-1)
        x, edge_feat = gnn_layer(params['gnn'], x, row, col, ef, inv_deg)
        x = jnp.maximum(x, 0.0)
        edge_feat = jnp.maximum(edge_feat, 0.0)

    # droprate == 0.0 -> dropout is a no-op

    # relative pose head (xyz_R and wpqr_R fused into one conv, Cout=6)
    er = conv3x3(edge_feat, *params['edge_R1'], padding=0, relu=True)
    er = conv3x3(er, *params['edge_R2'], padding=0, relu=True)
    rel_pose_out = conv3x3(
        er, *_fuse_cout([params['xyz_R'], params['wpqr_R']]),
        padding=0, relu=False).reshape(num_edges, 6)

    # hand-eye head
    edge_he_feat = join(x, [edge_feat, rel_disp_map])
    edge_graph_ids = jnp.take(batch, row)

    # fused first QKV conv (shared input); per-branch second conv
    w1, b1 = _fuse_cout([params['attn_query'][0], params['attn_key'][0],
                         params['attn_value'][0]])
    qkv1 = conv3x3(edge_he_feat, w1, b1, padding=0, relu=True)
    q1, k1, v1 = jnp.split(qkv1, 3, axis=-1)
    q = conv3x3(q1, *params['attn_query'][1], padding=0, relu=True)
    k = conv3x3(k1, *params['attn_key'][1], padding=0, relu=True)
    v = conv3x3(v1, *params['attn_value'][1], padding=0, relu=True)

    e_, hh, ww, fd = q.shape
    same_graph = (edge_graph_ids[:, None] == edge_graph_ids[None, :]).astype(jnp.float32)
    scale = 1.0 / math.sqrt(2 * (edge_feat_dim // 2))
    attn_out = graph_self_attention(
        q.reshape(e_, -1), k.reshape(e_, -1), v.reshape(e_, -1), same_graph, scale)
    edge_he = attn_out.reshape(e_, hh, ww, fd)

    logits = conv3x3(edge_he, *params['edge_attn_he'], padding=0,
                     relu=False).reshape(1, e_)
    graph_mask = (jnp.arange(num_graphs)[:, None]
                  == edge_graph_ids[None, :]).astype(jnp.float32)
    aggr = graph_softmax_pool(logits, graph_mask, edge_he.reshape(e_, -1))
    aggr = aggr.reshape(num_graphs, hh, ww, fd)

    # hand-eye pose head (xyz_he and wpqr_he fused, Cout=6)
    he_out = conv3x3(
        aggr, *_fuse_cout([params['xyz_he'], params['wpqr_he']]),
        padding=0, relu=False).reshape(num_graphs, 6)
    return he_out, rel_pose_out, edge_index


# ----------------------------------------------------------------------------
# Deterministic parameter initialization (kaiming-normal weights, zero bias)
# ----------------------------------------------------------------------------

def init_params(key, *, feat_in, nf, ef, pp, n_heads=8):
    keys = iter(jax.random.split(key, 64))

    def conv_p(cin, cout):
        k = next(keys)
        std = math.sqrt(2.0 / (cin * 9))
        return (jax.random.normal(k, (3, 3, cin, cout), jnp.float32) * std,
                jnp.zeros((cout,), jnp.float32))

    def lin_p(cin, cout):
        k = next(keys)
        std = math.sqrt(2.0 / cin)
        return (jax.random.normal(k, (cin, cout), jnp.float32) * std,
                jnp.zeros((cout,), jnp.float32))

    fd = ef // 2
    cn = nf // n_heads
    attn_in = ef + pp + 2 * nf
    return {
        'process_feat': conv_p(feat_in, nf),
        'proj_rel_disp': lin_p(6, pp),
        'proj_init_edge': conv_p(2 * nf + pp, ef),
        'gnn': {
            'edge_cnn1': conv_p(2 * nf + ef + pp, ef),
            'edge_cnn2': conv_p(ef, ef),
            'msg1': conv_p(nf + ef, nf),
            'msg2': conv_p(nf, nf),
            'att': {
                'theta': conv_p(nf, cn),
                'phi': conv_p(nf, cn),
                'f': conv_p(nf, cn),
                'g': conv_p(cn, nf),
            },
            'upd1': conv_p(2 * nf, nf),
            'upd2': conv_p(nf, nf),
        },
        'edge_R1': conv_p(ef, fd),
        'edge_R2': conv_p(fd, fd),
        'xyz_R': conv_p(fd, 3),
        'wpqr_R': conv_p(fd, 3),
        'attn_query': [conv_p(attn_in, fd), conv_p(fd, fd)],
        'attn_key': [conv_p(attn_in, fd), conv_p(fd, fd)],
        'attn_value': [conv_p(attn_in, fd), conv_p(fd, fd)],
        'edge_attn_he': conv_p(fd, 1),
        'xyz_he': conv_p(fd, 3),
        'wpqr_he': conv_p(fd, 3),
    }


# ----------------------------------------------------------------------------
# Main
# ----------------------------------------------------------------------------

if __name__ == "__main__":
    # small config (PyTorch defaults: node_feat=edge_feat=512, pose_proj=32)
    node_feat_dim = 32
    edge_feat_dim = 32
    pose_proj_dim = 8
    feat_in = 16          # stands in for the 512-channel resnet34 output
    H = W = 7
    num_nodes, num_graphs, num_edges = 4, 2, 4

    root = jax.random.PRNGKey(0)
    k_params, k_x, k_e = jax.random.split(root, 3)

    params = init_params(k_params, feat_in=feat_in, nf=node_feat_dim,
                         ef=edge_feat_dim, pp=pose_proj_dim)

    x_feat = jax.random.normal(k_x, (num_nodes, H, W, feat_in), jnp.float32)
    edge_index = jnp.array([[0, 1, 2, 3],
                            [1, 0, 3, 2]], dtype=jnp.int32)
    edge_attr = jax.random.normal(k_e, (num_edges, 6), jnp.float32)
    batch = jnp.array([0, 0, 1, 1], dtype=jnp.int32)

    fwd = jax.jit(functools.partial(
        gcnet_forward, num_graphs=num_graphs, gnn_recursion=2,
        edge_feat_dim=edge_feat_dim))

    he_pose, rel_pose, ei = fwd(params, x_feat, edge_index, edge_attr, batch)
    jax.block_until_ready((he_pose, rel_pose, ei))

    assert he_pose.shape == (num_graphs, 6)
    assert rel_pose.shape == (num_edges, 6)
    assert bool(jnp.all(jnp.isfinite(he_pose))) and bool(jnp.all(jnp.isfinite(rel_pose)))
    print("KERNEL_OK")
</pallas_src>

<mosaic_0001>
module attributes {stable_mosaic.version = 11 : i64} {
  func.func @_gemm_kernel(%arg0: i32, %arg1: i32, %arg2: memref<200x144xbf16, #tpu.memory_space<vmem>>, %arg3: memref<144x32xbf16, #tpu.memory_space<vmem>>, %arg4: memref<1x32xf32, #tpu.memory_space<vmem>>, %arg5: memref<200x32xf32, #tpu.memory_space<vmem>>) attributes {dimension_semantics = [#tpu.dimension_semantics<parallel>, #tpu.dimension_semantics<parallel>], iteration_bounds = array<i64: 1, 1>, scalar_prefetch = 0 : i64, scratch_operands = 0 : i64, tpu.core_type = #tpu.core_type<tc>, window_params = [{transform_indices = @transform_0, window_bounds = array<i64: 200, 144>}, {transform_indices = @transform_1, window_bounds = array<i64: 144, 32>}, {transform_indices = @transform_2, window_bounds = array<i64: 1, 32>}, {transform_indices = @transform_3, window_bounds = array<i64: 200, 32>}]} {
    %c0 = arith.constant 0 : index
    %c0_0 = arith.constant 0 : index
    %0 = vector.load %arg2[%c0, %c0_0] : memref<200x144xbf16, #tpu.memory_space<vmem>>, vector<200x144xbf16>
    %c0_1 = arith.constant 0 : index
    %c0_2 = arith.constant 0 : index
    %1 = vector.load %arg3[%c0_1, %c0_2] : memref<144x32xbf16, #tpu.memory_space<vmem>>, vector<144x32xbf16>
    %cst = arith.constant dense<0.000000e+00> : vector<200x32xf32>
    %2 = tpu.matmul %0, %1, %cst {dimension_numbers = #tpu.dot_dimension_numbers<[1], [0], [0], [1], [0, 0, 1, 1], [], []>} : vector<200x144xbf16>, vector<144x32xbf16>, vector<200x32xf32> -> vector<200x32xf32>
    %c0_3 = arith.constant 0 : index
    %c0_4 = arith.constant 0 : index
    %3 = vector.load %arg4[%c0_3, %c0_4] : memref<1x32xf32, #tpu.memory_space<vmem>>, vector<1x32xf32>
    %4 = vector.broadcast %3 : vector<1x32xf32> to vector<200x32xf32>
    %5 = arith.addf %2, %4 : vector<200x32xf32>
    %c0_5 = arith.constant 0 : index
    %c0_6 = arith.constant 0 : index
    %6 = vector.load %arg5[%c0_5, %c0_6] : memref<200x32xf32, #tpu.memory_space<vmem>>, vector<200x32xf32>
    tpu.vector_store %arg5[%c0_5, %c0_6], %5 {strides = array<i32>} : memref<200x32xf32, #tpu.memory_space<vmem>>, vector<200x32xf32>,
    return
  }
  func.func @transform_0(%arg0: i32, %arg1: i32) -> (i32, i32) {
    %c0_i32 = arith.constant 0 : i32
    %c0_i32_0 = arith.constant 0 : i32
    return %arg0, %c0_i32 : i32, i32
  }
  func.func @transform_1(%arg0: i32, %arg1: i32) -> (i32, i32) {
    %c0_i32 = arith.constant 0 : i32
    %c0_i32_0 = arith.constant 0 : i32
    return %c0_i32, %arg1 : i32, i32
  }
  func.func @transform_2(%arg0: i32, %arg1: i32) -> (i32, i32) {
    %c0_i32 = arith.constant 0 : i32
    %c0_i32_0 = arith.constant 0 : i32
    return %c0_i32, %arg1 : i32, i32
  }
  func.func @transform_3(%arg0: i32, %arg1: i32) -> (i32, i32) {
    %c0_i32 = arith.constant 0 : i32
    return %arg0, %arg1 : i32, i32
  }
}

module attributes {stable_mosaic.version = 11 : i64} {
  func.func @_gemm_kernel(%arg0: i32, %arg1: i32, %arg2: memref<8x6xbf16, #tpu.memory_space<vmem>>, %arg3: memref<6x8xbf16, #tpu.memory_space<vmem>>, %arg4: memref<1x8xf32, #tpu.memory_space<vmem>>, %arg5: memref<8x8xf32, #tpu.memory_space<vmem>>) attributes {dimension_semantics = [#tpu.dimension_semantics<parallel>, #tpu.dimension_semantics<parallel>], iteration_bounds = array<i64: 1, 1>, scalar_prefetch = 0 : i64, scratch_operands = 0 : i64, tpu.core_type = #tpu.core_type<tc>, window_params = [{transform_indices = @transform_0, window_bounds = array<i64: 8, 6>}, {transform_indices = @transform_1, window_bounds = array<i64: 6, 8>}, {transform_indices = @transform_2, window_bounds = array<i64: 1, 8>}, {transform_indices = @transform_3, window_bounds = array<i64: 8, 8>}]} {
    %c0 = arith.constant 0 : index
    %c0_0 = arith.constant 0 : index
    %0 = vector.load %arg2[%c0, %c0_0] : memref<8x6xbf16, #tpu.memory_space<vmem>>, vector<8x6xbf16>
    %c0_1 = arith.constant 0 : index
    %c0_2 = arith.constant 0 : index
    %1 = vector.load %arg3[%c0_1, %c0_2] : memref<6x8xbf16, #tpu.memory_space<vmem>>, vector<6x8xbf16>
    %cst = arith.constant dense<0.000000e+00> : vector<8x8xf32>
    %2 = tpu.matmul %0, %1, %cst {dimension_numbers = #tpu.dot_dimension_numbers<[1], [0], [0], [1], [0, 0, 1, 1], [], []>} : vector<8x6xbf16>, vector<6x8xbf16>, vector<8x8xf32> -> vector<8x8xf32>
    %c0_3 = arith.constant 0 : index
    %c0_4 = arith.constant 0 : index
    %3 = vector.load %arg4[%c0_3, %c0_4] : memref<1x8xf32, #tpu.memory_space<vmem>>, vector<1x8xf32>
    %4 = vector.broadcast %3 : vector<1x8xf32> to vector<8x8xf32>
    %5 = arith.addf %2, %4 : vector<8x8xf32>
    %cst_5 = arith.constant 0.000000e+00 : f32
    %6 = vector.broadcast %cst_5 : f32 to vector<8x8xf32>
    %7 = arith.maximumf %5, %6 : vector<8x8xf32>
    %c0_6 = arith.constant 0 : index
    %c0_7 = arith.constant 0 : index
    %8 = vector.load %arg5[%c0_6, %c0_7] : memref<8x8xf32, #tpu.memory_space<vmem>>, vector<8x8xf32>
    tpu.vector_store %arg5[%c0_6, %c0_7], %7 {strides = array<i32>} : memref<8x8xf32, #tpu.memory_space<vmem>>, vector<8x8xf32>,
    return
  }
  func.func @transform_0(%arg0: i32, %arg1: i32) -> (i32, i32) {
    %c0_i32 = arith.constant 0 : i32
    %c0_i32_0 = arith.constant 0 : i32
    return %arg0, %c0_i32 : i32, i32
  }
  func.func @transform_1(%arg0: i32, %arg1: i32) -> (i32, i32) {
    %c0_i32 = arith.constant 0 : i32
    %c0_i32_0 = arith.constant 0 : i32
    return %c0_i32, %arg1 : i32, i32
  }
  func.func @transform_2(%arg0: i32, %arg1: i32) -> (i32, i32) {
    %c0_i32 = arith.constant 0 : i32
    %c0_i32_0 = arith.constant 0 : i32
    return %c0_i32, %arg1 : i32, i32
  }
  func.func @transform_3(%arg0: i32, %arg1: i32) -> (i32, i32) {
    %c0_i32 = arith.constant 0 : i32
    return %arg0, %arg1 : i32, i32
  }
}

module attributes {stable_mosaic.version = 11 : i64} {
  func.func @_gemm_kernel(%arg0: i32, %arg1: i32, %arg2: memref<200x648xbf16, #tpu.memory_space<vmem>>, %arg3: memref<648x32xbf16, #tpu.memory_space<vmem>>, %arg4: memref<1x32xf32, #tpu.memory_space<vmem>>, %arg5: memref<200x32xf32, #tpu.memory_space<vmem>>) attributes {dimension_semantics = [#tpu.dimension_semantics<parallel>, #tpu.dimension_semantics<parallel>], iteration_bounds = array<i64: 1, 1>, scalar_prefetch = 0 : i64, scratch_operands = 0 : i64, tpu.core_type = #tpu.core_type<tc>, window_params = [{transform_indices = @transform_0, window_bounds = array<i64: 200, 648>}, {transform_indices = @transform_1, window_bounds = array<i64: 648, 32>}, {transform_indices = @transform_2, window_bounds = array<i64: 1, 32>}, {transform_indices = @transform_3, window_bounds = array<i64: 200, 32>}]} {
    %c0 = arith.constant 0 : index
    %c0_0 = arith.constant 0 : index
    %0 = vector.load %arg2[%c0, %c0_0] : memref<200x648xbf16, #tpu.memory_space<vmem>>, vector<200x648xbf16>
    %c0_1 = arith.constant 0 : index
    %c0_2 = arith.constant 0 : index
    %1 = vector.load %arg3[%c0_1, %c0_2] : memref<648x32xbf16, #tpu.memory_space<vmem>>, vector<648x32xbf16>
    %cst = arith.constant dense<0.000000e+00> : vector<200x32xf32>
    %2 = tpu.matmul %0, %1, %cst {dimension_numbers = #tpu.dot_dimension_numbers<[1], [0], [0], [1], [0, 0, 1, 1], [], []>} : vector<200x648xbf16>, vector<648x32xbf16>, vector<200x32xf32> -> vector<200x32xf32>
    %c0_3 = arith.constant 0 : index
    %c0_4 = arith.constant 0 : index
    %3 = vector.load %arg4[%c0_3, %c0_4] : memref<1x32xf32, #tpu.memory_space<vmem>>, vector<1x32xf32>
    %4 = vector.broadcast %3 : vector<1x32xf32> to vector<200x32xf32>
    %5 = arith.addf %2, %4 : vector<200x32xf32>
    %cst_5 = arith.constant 0.000000e+00 : f32
    %6 = vector.broadcast %cst_5 : f32 to vector<200x32xf32>
    %7 = arith.maximumf %5, %6 : vector<200x32xf32>
    %c0_6 = arith.constant 0 : index
    %c0_7 = arith.constant 0 : index
    %8 = vector.load %arg5[%c0_6, %c0_7] : memref<200x32xf32, #tpu.memory_space<vmem>>, vector<200x32xf32>
    tpu.vector_store %arg5[%c0_6, %c0_7], %7 {strides = array<i32>} : memref<200x32xf32, #tpu.memory_space<vmem>>, vector<200x32xf32>,
    return
  }
  func.func @transform_0(%arg0: i32, %arg1: i32) -> (i32, i32) {
    %c0_i32 = arith.constant 0 : i32
    %c0_i32_0 = arith.constant 0 : i32
    return %arg0, %c0_i32 : i32, i32
  }
  func.func @transform_1(%arg0: i32, %arg1: i32) -> (i32, i32) {
    %c0_i32 = arith.constant 0 : i32
    %c0_i32_0 = arith.constant 0 : i32
    return %c0_i32, %arg1 : i32, i32
  }
  func.func @transform_2(%arg0: i32, %arg1: i32) -> (i32, i32) {
    %c0_i32 = arith.constant 0 : i32
    %c0_i32_0 = arith.constant 0 : i32
    return %c0_i32, %arg1 : i32, i32
  }
  func.func @transform_3(%arg0: i32, %arg1: i32) -> (i32, i32) {
    %c0_i32 = arith.constant 0 : i32
    return %arg0, %arg1 : i32, i32
  }
}

module attributes {stable_mosaic.version = 11 : i64} {
  func.func @_gemm_kernel(%arg0: i32, %arg1: i32, %arg2: memref<200x936xbf16, #tpu.memory_space<vmem>>, %arg3: memref<936x32xbf16, #tpu.memory_space<vmem>>, %arg4: memref<1x32xf32, #tpu.memory_space<vmem>>, %arg5: memref<200x32xf32, #tpu.memory_space<vmem>>) attributes {dimension_semantics = [#tpu.dimension_semantics<parallel>, #tpu.dimension_semantics<parallel>], iteration_bounds = array<i64: 1, 1>, scalar_prefetch = 0 : i64, scratch_operands = 0 : i64, tpu.core_type = #tpu.core_type<tc>, window_params = [{transform_indices = @transform_0, window_bounds = array<i64: 200, 936>}, {transform_indices = @transform_1, window_bounds = array<i64: 936, 32>}, {transform_indices = @transform_2, window_bounds = array<i64: 1, 32>}, {transform_indices = @transform_3, window_bounds = array<i64: 200, 32>}]} {
    %c0 = arith.constant 0 : index
    %c0_0 = arith.constant 0 : index
    %0 = vector.load %arg2[%c0, %c0_0] : memref<200x936xbf16, #tpu.memory_space<vmem>>, vector<200x936xbf16>
    %c0_1 = arith.constant 0 : index
    %c0_2 = arith.constant 0 : index
    %1 = vector.load %arg3[%c0_1, %c0_2] : memref<936x32xbf16, #tpu.memory_space<vmem>>, vector<936x32xbf16>
    %cst = arith.constant dense<0.000000e+00> : vector<200x32xf32>
    %2 = tpu.matmul %0, %1, %cst {dimension_numbers = #tpu.dot_dimension_numbers<[1], [0], [0], [1], [0, 0, 1, 1], [], []>} : vector<200x936xbf16>, vector<936x32xbf16>, vector<200x32xf32> -> vector<200x32xf32>
    %c0_3 = arith.constant 0 : index
    %c0_4 = arith.constant 0 : index
    %3 = vector.load %arg4[%c0_3, %c0_4] : memref<1x32xf32, #tpu.memory_space<vmem>>, vector<1x32xf32>
    %4 = vector.broadcast %3 : vector<1x32xf32> to vector<200x32xf32>
    %5 = arith.addf %2, %4 : vector<200x32xf32>
    %cst_5 = arith.constant 0.000000e+00 : f32
    %6 = vector.broadcast %cst_5 : f32 to vector<200x32xf32>
    %7 = arith.maximumf %5, %6 : vector<200x32xf32>
    %c0_6 = arith.constant 0 : index
    %c0_7 = arith.constant 0 : index
    %8 = vector.load %arg5[%c0_6, %c0_7] : memref<200x32xf32, #tpu.memory_space<vmem>>, vector<200x32xf32>
    tpu.vector_store %arg5[%c0_6, %c0_7], %7 {strides = array<i32>} : memref<200x32xf32, #tpu.memory_space<vmem>>, vector<200x32xf32>,
    return
  }
  func.func @transform_0(%arg0: i32, %arg1: i32) -> (i32, i32) {
    %c0_i32 = arith.constant 0 : i32
    %c0_i32_0 = arith.constant 0 : i32
    return %arg0, %c0_i32 : i32, i32
  }
  func.func @transform_1(%arg0: i32, %arg1: i32) -> (i32, i32) {
    %c0_i32 = arith.constant 0 : i32
    %c0_i32_0 = arith.constant 0 : i32
    return %c0_i32, %arg1 : i32, i32
  }
  func.func @transform_2(%arg0: i32, %arg1: i32) -> (i32, i32) {
    %c0_i32 = arith.constant 0 : i32
    %c0_i32_0 = arith.constant 0 : i32
    return %c0_i32, %arg1 : i32, i32
  }
  func.func @transform_3(%arg0: i32, %arg1: i32) -> (i32, i32) {
    %c0_i32 = arith.constant 0 : i32
    return %arg0, %arg1 : i32, i32
  }
}

module attributes {stable_mosaic.version = 11 : i64} {
  func.func @_gemm_kernel(%arg0: i32, %arg1: i32, %arg2: memref<200x288xbf16, #tpu.memory_space<vmem>>, %arg3: memref<288x32xbf16, #tpu.memory_space<vmem>>, %arg4: memref<1x32xf32, #tpu.memory_space<vmem>>, %arg5: memref<200x32xf32, #tpu.memory_space<vmem>>) attributes {dimension_semantics = [#tpu.dimension_semantics<parallel>, #tpu.dimension_semantics<parallel>], iteration_bounds = array<i64: 1, 1>, scalar_prefetch = 0 : i64, scratch_operands = 0 : i64, tpu.core_type = #tpu.core_type<tc>, window_params = [{transform_indices = @transform_0, window_bounds = array<i64: 200, 288>}, {transform_indices = @transform_1, window_bounds = array<i64: 288, 32>}, {transform_indices = @transform_2, window_bounds = array<i64: 1, 32>}, {transform_indices = @transform_3, window_bounds = array<i64: 200, 32>}]} {
    %c0 = arith.constant 0 : index
    %c0_0 = arith.constant 0 : index
    %0 = vector.load %arg2[%c0, %c0_0] : memref<200x288xbf16, #tpu.memory_space<vmem>>, vector<200x288xbf16>
    %c0_1 = arith.constant 0 : index
    %c0_2 = arith.constant 0 : index
    %1 = vector.load %arg3[%c0_1, %c0_2] : memref<288x32xbf16, #tpu.memory_space<vmem>>, vector<288x32xbf16>
    %cst = arith.constant dense<0.000000e+00> : vector<200x32xf32>
    %2 = tpu.matmul %0, %1, %cst {dimension_numbers = #tpu.dot_dimension_numbers<[1], [0], [0], [1], [0, 0, 1, 1], [], []>} : vector<200x288xbf16>, vector<288x32xbf16>, vector<200x32xf32> -> vector<200x32xf32>
    %c0_3 = arith.constant 0 : index
    %c0_4 = arith.constant 0 : index
    %3 = vector.load %arg4[%c0_3, %c0_4] : memref<1x32xf32, #tpu.memory_space<vmem>>, vector<1x32xf32>
    %4 = vector.broadcast %3 : vector<1x32xf32> to vector<200x32xf32>
    %5 = arith.addf %2, %4 : vector<200x32xf32>
    %c0_5 = arith.constant 0 : index
    %c0_6 = arith.constant 0 : index
    %6 = vector.load %arg5[%c0_5, %c0_6] : memref<200x32xf32, #tpu.memory_space<vmem>>, vector<200x32xf32>
    tpu.vector_store %arg5[%c0_5, %c0_6], %5 {strides = array<i32>} : memref<200x32xf32, #tpu.memory_space<vmem>>, vector<200x32xf32>,
    return
  }
  func.func @transform_0(%arg0: i32, %arg1: i32) -> (i32, i32) {
    %c0_i32 = arith.constant 0 : i32
    %c0_i32_0 = arith.constant 0 : i32
    return %arg0, %c0_i32 : i32, i32
  }
  func.func @transform_1(%arg0: i32, %arg1: i32) -> (i32, i32) {
    %c0_i32 = arith.constant 0 : i32
    %c0_i32_0 = arith.constant 0 : i32
    return %c0_i32, %arg1 : i32, i32
  }
  func.func @transform_2(%arg0: i32, %arg1: i32) -> (i32, i32) {
    %c0_i32 = arith.constant 0 : i32
    %c0_i32_0 = arith.constant 0 : i32
    return %c0_i32, %arg1 : i32, i32
  }
  func.func @transform_3(%arg0: i32, %arg1: i32) -> (i32, i32) {
    %c0_i32 = arith.constant 0 : i32
    return %arg0, %arg1 : i32, i32
  }
}

module attributes {stable_mosaic.version = 11 : i64} {
  func.func @_gemm_kernel(%arg0: i32, %arg1: i32, %arg2: memref<200x576xbf16, #tpu.memory_space<vmem>>, %arg3: memref<576x32xbf16, #tpu.memory_space<vmem>>, %arg4: memref<1x32xf32, #tpu.memory_space<vmem>>, %arg5: memref<200x32xf32, #tpu.memory_space<vmem>>) attributes {dimension_semantics = [#tpu.dimension_semantics<parallel>, #tpu.dimension_semantics<parallel>], iteration_bounds = array<i64: 1, 1>, scalar_prefetch = 0 : i64, scratch_operands = 0 : i64, tpu.core_type = #tpu.core_type<tc>, window_params = [{transform_indices = @transform_0, window_bounds = array<i64: 200, 576>}, {transform_indices = @transform_1, window_bounds = array<i64: 576, 32>}, {transform_indices = @transform_2, window_bounds = array<i64: 1, 32>}, {transform_indices = @transform_3, window_bounds = array<i64: 200, 32>}]} {
    %c0 = arith.constant 0 : index
    %c0_0 = arith.constant 0 : index
    %0 = vector.load %arg2[%c0, %c0_0] : memref<200x576xbf16, #tpu.memory_space<vmem>>, vector<200x576xbf16>
    %c0_1 = arith.constant 0 : index
    %c0_2 = arith.constant 0 : index
    %1 = vector.load %arg3[%c0_1, %c0_2] : memref<576x32xbf16, #tpu.memory_space<vmem>>, vector<576x32xbf16>
    %cst = arith.constant dense<0.000000e+00> : vector<200x32xf32>
    %2 = tpu.matmul %0, %1, %cst {dimension_numbers = #tpu.dot_dimension_numbers<[1], [0], [0], [1], [0, 0, 1, 1], [], []>} : vector<200x576xbf16>, vector<576x32xbf16>, vector<200x32xf32> -> vector<200x32xf32>
    %c0_3 = arith.constant 0 : index
    %c0_4 = arith.constant 0 : index
    %3 = vector.load %arg4[%c0_3, %c0_4] : memref<1x32xf32, #tpu.memory_space<vmem>>, vector<1x32xf32>
    %4 = vector.broadcast %3 : vector<1x32xf32> to vector<200x32xf32>
    %5 = arith.addf %2, %4 : vector<200x32xf32>
    %cst_5 = arith.constant 0.000000e+00 : f32
    %6 = vector.broadcast %cst_5 : f32 to vector<200x32xf32>
    %7 = arith.maximumf %5, %6 : vector<200x32xf32>
    %c0_6 = arith.constant 0 : index
    %c0_7 = arith.constant 0 : index
    %8 = vector.load %arg5[%c0_6, %c0_7] : memref<200x32xf32, #tpu.memory_space<vmem>>, vector<200x32xf32>
    tpu.vector_store %arg5[%c0_6, %c0_7], %7 {strides = array<i32>} : memref<200x32xf32, #tpu.memory_space<vmem>>, vector<200x32xf32>,
    return
  }
  func.func @transform_0(%arg0: i32, %arg1: i32) -> (i32, i32) {
    %c0_i32 = arith.constant 0 : i32
    %c0_i32_0 = arith.constant 0 : i32
    return %arg0, %c0_i32 : i32, i32
  }
  func.func @transform_1(%arg0: i32, %arg1: i32) -> (i32, i32) {
    %c0_i32 = arith.constant 0 : i32
    %c0_i32_0 = arith.constant 0 : i32
    return %c0_i32, %arg1 : i32, i32
  }
  func.func @transform_2(%arg0: i32, %arg1: i32) -> (i32, i32) {
    %c0_i32 = arith.constant 0 : i32
    %c0_i32_0 = arith.constant 0 : i32
    return %c0_i32, %arg1 : i32, i32
  }
  func.func @transform_3(%arg0: i32, %arg1: i32) -> (i32, i32) {
    %c0_i32 = arith.constant 0 : i32
    return %arg0, %arg1 : i32, i32
  }
}

module attributes {stable_mosaic.version = 11 : i64} {
  func.func @_gemm_kernel(%arg0: i32, %arg1: i32, %arg2: memref<200x288xbf16, #tpu.memory_space<vmem>>, %arg3: memref<288x4xbf16, #tpu.memory_space<vmem>>, %arg4: memref<1x4xf32, #tpu.memory_space<vmem>>, %arg5: memref<200x4xf32, #tpu.memory_space<vmem>>) attributes {dimension_semantics = [#tpu.dimension_semantics<parallel>, #tpu.dimension_semantics<parallel>], iteration_bounds = array<i64: 1, 1>, scalar_prefetch = 0 : i64, scratch_operands = 0 : i64, tpu.core_type = #tpu.core_type<tc>, window_params = [{transform_indices = @transform_0, window_bounds = array<i64: 200, 288>}, {transform_indices = @transform_1, window_bounds = array<i64: 288, 4>}, {transform_indices = @transform_2, window_bounds = array<i64: 1, 4>}, {transform_indices = @transform_3, window_bounds = array<i64: 200, 4>}]} {
    %c0 = arith.constant 0 : index
    %c0_0 = arith.constant 0 : index
    %0 = vector.load %arg2[%c0, %c0_0] : memref<200x288xbf16, #tpu.memory_space<vmem>>, vector<200x288xbf16>
    %c0_1 = arith.constant 0 : index
    %c0_2 = arith.constant 0 : index
    %1 = vector.load %arg3[%c0_1, %c0_2] : memref<288x4xbf16, #tpu.memory_space<vmem>>, vector<288x4xbf16>
    %cst = arith.constant dense<0.000000e+00> : vector<200x4xf32>
    %2 = tpu.matmul %0, %1, %cst {dimension_numbers = #tpu.dot_dimension_numbers<[1], [0], [0], [1], [0, 0, 1, 1], [], []>} : vector<200x288xbf16>, vector<288x4xbf16>, vector<200x4xf32> -> vector<200x4xf32>
    %c0_3 = arith.constant 0 : index
    %c0_4 = arith.constant 0 : index
    %3 = vector.load %arg4[%c0_3, %c0_4] : memref<1x4xf32, #tpu.memory_space<vmem>>, vector<1x4xf32>
    %4 = vector.broadcast %3 : vector<1x4xf32> to vector<200x4xf32>
    %5 = arith.addf %2, %4 : vector<200x4xf32>
    %c0_5 = arith.constant 0 : index
    %c0_6 = arith.constant 0 : index
    %6 = vector.load %arg5[%c0_5, %c0_6] : memref<200x4xf32, #tpu.memory_space<vmem>>, vector<200x4xf32>
    tpu.vector_store %arg5[%c0_5, %c0_6], %5 {strides = array<i32>} : memref<200x4xf32, #tpu.memory_space<vmem>>, vector<200x4xf32>,
    return
  }
  func.func @transform_0(%arg0: i32, %arg1: i32) -> (i32, i32) {
    %c0_i32 = arith.constant 0 : i32
    %c0_i32_0 = arith.constant 0 : i32
    return %arg0, %c0_i32 : i32, i32
  }
  func.func @transform_1(%arg0: i32, %arg1: i32) -> (i32, i32) {
    %c0_i32 = arith.constant 0 : i32
    %c0_i32_0 = arith.constant 0 : i32
    return %c0_i32, %arg1 : i32, i32
  }
  func.func @transform_2(%arg0: i32, %arg1: i32) -> (i32, i32) {
    %c0_i32 = arith.constant 0 : i32
    %c0_i32_0 = arith.constant 0 : i32
    return %c0_i32, %arg1 : i32, i32
  }
  func.func @transform_3(%arg0: i32, %arg1: i32) -> (i32, i32) {
    %c0_i32 = arith.constant 0 : i32
    return %arg0, %arg1 : i32, i32
  }
}

module attributes {stable_mosaic.version = 11 : i64} {
  func.func @_gemm_kernel(%arg0: i32, %arg1: i32, %arg2: memref<104x288xbf16, #tpu.memory_space<vmem>>, %arg3: memref<288x4xbf16, #tpu.memory_space<vmem>>, %arg4: memref<1x4xf32, #tpu.memory_space<vmem>>, %arg5: memref<104x4xf32, #tpu.memory_space<vmem>>) attributes {dimension_semantics = [#tpu.dimension_semantics<parallel>, #tpu.dimension_semantics<parallel>], iteration_bounds = array<i64: 1, 1>, scalar_prefetch = 0 : i64, scratch_operands = 0 : i64, tpu.core_type = #tpu.core_type<tc>, window_params = [{transform_indices = @transform_0, window_bounds = array<i64: 104, 288>}, {transform_indices = @transform_1, window_bounds = array<i64: 288, 4>}, {transform_indices = @transform_2, window_bounds = array<i64: 1, 4>}, {transform_indices = @transform_3, window_bounds = array<i64: 104, 4>}]} {
    %c0 = arith.constant 0 : index
    %c0_0 = arith.constant 0 : index
    %0 = vector.load %arg2[%c0, %c0_0] : memref<104x288xbf16, #tpu.memory_space<vmem>>, vector<104x288xbf16>
    %c0_1 = arith.constant 0 : index
    %c0_2 = arith.constant 0 : index
    %1 = vector.load %arg3[%c0_1, %c0_2] : memref<288x4xbf16, #tpu.memory_space<vmem>>, vector<288x4xbf16>
    %cst = arith.constant dense<0.000000e+00> : vector<104x4xf32>
    %2 = tpu.matmul %0, %1, %cst {dimension_numbers = #tpu.dot_dimension_numbers<[1], [0], [0], [1], [0, 0, 1, 1], [], []>} : vector<104x288xbf16>, vector<288x4xbf16>, vector<104x4xf32> -> vector<104x4xf32>
    %c0_3 = arith.constant 0 : index
    %c0_4 = arith.constant 0 : index
    %3 = vector.load %arg4[%c0_3, %c0_4] : memref<1x4xf32, #tpu.memory_space<vmem>>, vector<1x4xf32>
    %4 = vector.broadcast %3 : vector<1x4xf32> to vector<104x4xf32>
    %5 = arith.addf %2, %4 : vector<104x4xf32>
    %c0_5 = arith.constant 0 : index
    %c0_6 = arith.constant 0 : index
    %6 = vector.load %arg5[%c0_5, %c0_6] : memref<104x4xf32, #tpu.memory_space<vmem>>, vector<104x4xf32>
    tpu.vector_store %arg5[%c0_5, %c0_6], %5 {strides = array<i32>} : memref<104x4xf32, #tpu.memory_space<vmem>>, vector<104x4xf32>,
    return
  }
  func.func @transform_0(%arg0: i32, %arg1: i32) -> (i32, i32) {
    %c0_i32 = arith.constant 0 : i32
    %c0_i32_0 = arith.constant 0 : i32
    return %arg0, %c0_i32 : i32, i32
  }
  func.func @transform_1(%arg0: i32, %arg1: i32) -> (i32, i32) {
    %c0_i32 = arith.constant 0 : i32
    %c0_i32_0 = arith.constant 0 : i32
    return %c0_i32, %arg1 : i32, i32
  }
  func.func @transform_2(%arg0: i32, %arg1: i32) -> (i32, i32) {
    %c0_i32 = arith.constant 0 : i32
    %c0_i32_0 = arith.constant 0 : i32
    return %c0_i32, %arg1 : i32, i32
  }
  func.func @transform_3(%arg0: i32, %arg1: i32) -> (i32, i32) {
    %c0_i32 = arith.constant 0 : i32
    return %arg0, %arg1 : i32, i32
  }
}

module attributes {stable_mosaic.version = 11 : i64} {
  func.func @_nonlocal_kernel(%arg0: i32, %arg1: memref<1x4x1xf32, #tpu.memory_space<vmem>>, %arg2: memref<1x1x4xf32, #tpu.memory_space<vmem>>, %arg3: memref<1x49x4xf32, #tpu.memory_space<vmem>>, %arg4: memref<1x49x4xf32, #tpu.memory_space<vmem>>) attributes {dimension_semantics = [#tpu.dimension_semantics<parallel>], iteration_bounds = array<i64: 4>, scalar_prefetch = 0 : i64, scratch_operands = 0 : i64, tpu.core_type = #tpu.core_type<tc>, window_params = [{transform_indices = @transform_0, window_bounds = array<i64: 1, 4, 1>}, {transform_indices = @transform_1, window_bounds = array<i64: 1, 1, 4>}, {transform_indices = @transform_2, window_bounds = array<i64: 1, 49, 4>}, {transform_indices = @transform_3, window_bounds = array<i64: 1, 49, 4>}]} {
    %c0 = arith.constant 0 : index
    %c0_0 = arith.constant 0 : index
    %c0_1 = arith.constant 0 : index
    %0 = vector.load %arg1[%c0, %c0_0, %c0_1] : memref<1x4x1xf32, #tpu.memory_space<vmem>>, vector<1x4x1xf32>
    %1 = vector.shape_cast %0 : vector<1x4x1xf32> to vector<4x1xf32>
    %c0_2 = arith.constant 0 : index
    %c0_3 = arith.constant 0 : index
    %c0_4 = arith.constant 0 : index
    %2 = vector.load %arg2[%c0_2, %c0_3, %c0_4] : memref<1x1x4xf32, #tpu.memory_space<vmem>>, vector<1x1x4xf32>
    %3 = vector.shape_cast %2 : vector<1x1x4xf32> to vector<1x4xf32>
    %4 = vector.broadcast %1 : vector<4x1xf32> to vector<4x4xf32>
    %5 = vector.broadcast %3 : vector<1x4xf32> to vector<4x4xf32>
    %6 = arith.mulf %4, %5 : vector<4x4xf32>
    %cst = arith.constant dense<0xFF800000> : vector<4xf32>
    %7 = vector.multi_reduction <maximumf>, %6, %cst [1] : vector<4x4xf32> to vector<4xf32>
    %8 = vector.shape_cast %7 : vector<4xf32> to vector<4x1xf32>
    %9 = vector.broadcast %8 : vector<4x1xf32> to vector<4x4xf32>
    %10 = arith.subf %6, %9 : vector<4x4xf32>
    %11 = math.exp %10 : vector<4x4xf32>
    %cst_5 = arith.constant dense<0.000000e+00> : vector<4xf32>
    %12 = vector.multi_reduction <add>, %11, %cst_5 [1] : vector<4x4xf32> to vector<4xf32>
    %13 = vector.shape_cast %12 : vector<4xf32> to vector<4x1xf32>
    %14 = tpu.reciprocal %13 {approx = true} : vector<4x1xf32> -> vector<4x1xf32>
    %15 = vector.broadcast %14 : vector<4x1xf32> to vector<4x4xf32>
    %16 = arith.mulf %11, %15 : vector<4x4xf32>
    %c0_6 = arith.constant 0 : index
    %c0_7 = arith.constant 0 : index
    %c0_8 = arith.constant 0 : index
    %17 = vector.load %arg3[%c0_6, %c0_7, %c0_8] : memref<1x49x4xf32, #tpu.memory_space<vmem>>, vector<1x49x4xf32>
    %18 = vector.shape_cast %17 : vector<1x49x4xf32> to vector<49x4xf32>
    %19 = arith.truncf %18 : vector<49x4xf32> to vector<49x4xbf16>
    %20 = arith.truncf %16 : vector<4x4xf32> to vector<4x4xbf16>
    %cst_9 = arith.constant dense<0.000000e+00> : vector<49x4xf32>
    %21 = tpu.matmul %19, %20, %cst_9 {dimension_numbers = #tpu.dot_dimension_numbers<[1], [1], [0], [0], [0, 0, 1, 0], [], []>} : vector<49x4xbf16>, vector<4x4xbf16>, vector<49x4xf32> -> vector<49x4xf32>
    %c0_10 = arith.constant 0 : index
    %c0_11 = arith.constant 0 : index
    %c0_12 = arith.constant 0 : index
    %22 = vector.load %arg4[%c0_10, %c0_11, %c0_12] : memref<1x49x4xf32, #tpu.memory_space<vmem>>, vector<1x49x4xf32>
    %23 = vector.shape_cast %22 : vector<1x49x4xf32> to vector<49x4xf32>
    %24 = vector.shape_cast %21 : vector<49x4xf32> to vector<1x49x4xf32>
    tpu.vector_store %arg4[%c0_10, %c0_11, %c0_12], %24 {strides = array<i32>} : memref<1x49x4xf32, #tpu.memory_space<vmem>>, vector<1x49x4xf32>,
    return
  }
  func.func @transform_0(%arg0: i32) -> (i32, i32, i32) {
    %c0_i32 = arith.constant 0 : i32
    %c0_i32_0 = arith.constant 0 : i32
    %c0_i32_1 = arith.constant 0 : i32
    return %arg0, %c0_i32, %c0_i32_0 : i32, i32, i32
  }
  func.func @transform_1(%arg0: i32) -> (i32, i32, i32) {
    %c0_i32 = arith.constant 0 : i32
    %c0_i32_0 = arith.constant 0 : i32
    %c0_i32_1 = arith.constant 0 : i32
    return %arg0, %c0_i32, %c0_i32_0 : i32, i32, i32
  }
  func.func @transform_2(%arg0: i32) -> (i32, i32, i32) {
    %c0_i32 = arith.constant 0 : i32
    %c0_i32_0 = arith.constant 0 : i32
    %c0_i32_1 = arith.constant 0 : i32
    return %arg0, %c0_i32, %c0_i32_0 : i32, i32, i32
  }
  func.func @transform_3(%arg0: i32) -> (i32, i32, i32) {
    %c0_i32 = arith.constant 0 : i32
    %c0_i32_0 = arith.constant 0 : i32
    %c0_i32_1 = arith.constant 0 : i32
    return %arg0, %c0_i32, %c0_i32_0 : i32, i32, i32
  }
}

module attributes {stable_mosaic.version = 11 : i64} {
  func.func @_gemm_kernel(%arg0: i32, %arg1: i32, %arg2: memref<200x36xbf16, #tpu.memory_space<vmem>>, %arg3: memref<36x32xbf16, #tpu.memory_space<vmem>>, %arg4: memref<1x32xf32, #tpu.memory_space<vmem>>, %arg5: memref<200x32xf32, #tpu.memory_space<vmem>>) attributes {dimension_semantics = [#tpu.dimension_semantics<parallel>, #tpu.dimension_semantics<parallel>], iteration_bounds = array<i64: 1, 1>, scalar_prefetch = 0 : i64, scratch_operands = 0 : i64, tpu.core_type = #tpu.core_type<tc>, window_params = [{transform_indices = @transform_0, window_bounds = array<i64: 200, 36>}, {transform_indices = @transform_1, window_bounds = array<i64: 36, 32>}, {transform_indices = @transform_2, window_bounds = array<i64: 1, 32>}, {transform_indices = @transform_3, window_bounds = array<i64: 200, 32>}]} {
    %c0 = arith.constant 0 : index
    %c0_0 = arith.constant 0 : index
    %0 = vector.load %arg2[%c0, %c0_0] : memref<200x36xbf16, #tpu.memory_space<vmem>>, vector<200x36xbf16>
    %c0_1 = arith.constant 0 : index
    %c0_2 = arith.constant 0 : index
    %1 = vector.load %arg3[%c0_1, %c0_2] : memref<36x32xbf16, #tpu.memory_space<vmem>>, vector<36x32xbf16>
    %cst = arith.constant dense<0.000000e+00> : vector<200x32xf32>
    %2 = tpu.matmul %0, %1, %cst {dimension_numbers = #tpu.dot_dimension_numbers<[1], [0], [0], [1], [0, 0, 1, 1], [], []>} : vector<200x36xbf16>, vector<36x32xbf16>, vector<200x32xf32> -> vector<200x32xf32>
    %c0_3 = arith.constant 0 : index
    %c0_4 = arith.constant 0 : index
    %3 = vector.load %arg4[%c0_3, %c0_4] : memref<1x32xf32, #tpu.memory_space<vmem>>, vector<1x32xf32>
    %4 = vector.broadcast %3 : vector<1x32xf32> to vector<200x32xf32>
    %5 = arith.addf %2, %4 : vector<200x32xf32>
    %c0_5 = arith.constant 0 : index
    %c0_6 = arith.constant 0 : index
    %6 = vector.load %arg5[%c0_5, %c0_6] : memref<200x32xf32, #tpu.memory_space<vmem>>, vector<200x32xf32>
    tpu.vector_store %arg5[%c0_5, %c0_6], %5 {strides = array<i32>} : memref<200x32xf32, #tpu.memory_space<vmem>>, vector<200x32xf32>,
    return
  }
  func.func @transform_0(%arg0: i32, %arg1: i32) -> (i32, i32) {
    %c0_i32 = arith.constant 0 : i32
    %c0_i32_0 = arith.constant 0 : i32
    return %arg0, %c0_i32 : i32, i32
  }
  func.func @transform_1(%arg0: i32, %arg1: i32) -> (i32, i32) {
    %c0_i32 = arith.constant 0 : i32
    %c0_i32_0 = arith.constant 0 : i32
    return %c0_i32, %arg1 : i32, i32
  }
  func.func @transform_2(%arg0: i32, %arg1: i32) -> (i32, i32) {
    %c0_i32 = arith.constant 0 : i32
    %c0_i32_0 = arith.constant 0 : i32
    return %c0_i32, %arg1 : i32, i32
  }
  func.func @transform_3(%arg0: i32, %arg1: i32) -> (i32, i32) {
    %c0_i32 = arith.constant 0 : i32
    return %arg0, %arg1 : i32, i32
  }
}

module attributes {stable_mosaic.version = 11 : i64} {
  func.func @_gemm_kernel(%arg0: i32, %arg1: i32, %arg2: memref<104x288xbf16, #tpu.memory_space<vmem>>, %arg3: memref<288x16xbf16, #tpu.memory_space<vmem>>, %arg4: memref<1x16xf32, #tpu.memory_space<vmem>>, %arg5: memref<104x16xf32, #tpu.memory_space<vmem>>) attributes {dimension_semantics = [#tpu.dimension_semantics<parallel>, #tpu.dimension_semantics<parallel>], iteration_bounds = array<i64: 1, 1>, scalar_prefetch = 0 : i64, scratch_operands = 0 : i64, tpu.core_type = #tpu.core_type<tc>, window_params = [{transform_indices = @transform_0, window_bounds = array<i64: 104, 288>}, {transform_indices = @transform_1, window_bounds = array<i64: 288, 16>}, {transform_indices = @transform_2, window_bounds = array<i64: 1, 16>}, {transform_indices = @transform_3, window_bounds = array<i64: 104, 16>}]} {
    %c0 = arith.constant 0 : index
    %c0_0 = arith.constant 0 : index
    %0 = vector.load %arg2[%c0, %c0_0] : memref<104x288xbf16, #tpu.memory_space<vmem>>, vector<104x288xbf16>
    %c0_1 = arith.constant 0 : index
    %c0_2 = arith.constant 0 : index
    %1 = vector.load %arg3[%c0_1, %c0_2] : memref<288x16xbf16, #tpu.memory_space<vmem>>, vector<288x16xbf16>
    %cst = arith.constant dense<0.000000e+00> : vector<104x16xf32>
    %2 = tpu.matmul %0, %1, %cst {dimension_numbers = #tpu.dot_dimension_numbers<[1], [0], [0], [1], [0, 0, 1, 1], [], []>} : vector<104x288xbf16>, vector<288x16xbf16>, vector<104x16xf32> -> vector<104x16xf32>
    %c0_3 = arith.constant 0 : index
    %c0_4 = arith.constant 0 : index
    %3 = vector.load %arg4[%c0_3, %c0_4] : memref<1x16xf32, #tpu.memory_space<vmem>>, vector<1x16xf32>
    %4 = vector.broadcast %3 : vector<1x16xf32> to vector<104x16xf32>
    %5 = arith.addf %2, %4 : vector<104x16xf32>
    %cst_5 = arith.constant 0.000000e+00 : f32
    %6 = vector.broadcast %cst_5 : f32 to vector<104x16xf32>
    %7 = arith.maximumf %5, %6 : vector<104x16xf32>
    %c0_6 = arith.constant 0 : index
    %c0_7 = arith.constant 0 : index
    %8 = vector.load %arg5[%c0_6, %c0_7] : memref<104x16xf32, #tpu.memory_space<vmem>>, vector<104x16xf32>
    tpu.vector_store %arg5[%c0_6, %c0_7], %7 {strides = array<i32>} : memref<104x16xf32, #tpu.memory_space<vmem>>, vector<104x16xf32>,
    return
  }
  func.func @transform_0(%arg0: i32, %arg1: i32) -> (i32, i32) {
    %c0_i32 = arith.constant 0 : i32
    %c0_i32_0 = arith.constant 0 : i32
    return %arg0, %c0_i32 : i32, i32
  }
  func.func @transform_1(%arg0: i32, %arg1: i32) -> (i32, i32) {
    %c0_i32 = arith.constant 0 : i32
    %c0_i32_0 = arith.constant 0 : i32
    return %c0_i32, %arg1 : i32, i32
  }
  func.func @transform_2(%arg0: i32, %arg1: i32) -> (i32, i32) {
    %c0_i32 = arith.constant 0 : i32
    %c0_i32_0 = arith.constant 0 : i32
    return %c0_i32, %arg1 : i32, i32
  }
  func.func @transform_3(%arg0: i32, %arg1: i32) -> (i32, i32) {
    %c0_i32 = arith.constant 0 : i32
    return %arg0, %arg1 : i32, i32
  }
}

module attributes {stable_mosaic.version = 11 : i64} {
  func.func @_gemm_kernel(%arg0: i32, %arg1: i32, %arg2: memref<40x144xbf16, #tpu.memory_space<vmem>>, %arg3: memref<144x16xbf16, #tpu.memory_space<vmem>>, %arg4: memref<1x16xf32, #tpu.memory_space<vmem>>, %arg5: memref<40x16xf32, #tpu.memory_space<vmem>>) attributes {dimension_semantics = [#tpu.dimension_semantics<parallel>, #tpu.dimension_semantics<parallel>], iteration_bounds = array<i64: 1, 1>, scalar_prefetch = 0 : i64, scratch_operands = 0 : i64, tpu.core_type = #tpu.core_type<tc>, window_params = [{transform_indices = @transform_0, window_bounds = array<i64: 40, 144>}, {transform_indices = @transform_1, window_bounds = array<i64: 144, 16>}, {transform_indices = @transform_2, window_bounds = array<i64: 1, 16>}, {transform_indices = @transform_3, window_bounds = array<i64: 40, 16>}]} {
    %c0 = arith.constant 0 : index
    %c0_0 = arith.constant 0 : index
    %0 = vector.load %arg2[%c0, %c0_0] : memref<40x144xbf16, #tpu.memory_space<vmem>>, vector<40x144xbf16>
    %c0_1 = arith.constant 0 : index
    %c0_2 = arith.constant 0 : index
    %1 = vector.load %arg3[%c0_1, %c0_2] : memref<144x16xbf16, #tpu.memory_space<vmem>>, vector<144x16xbf16>
    %cst = arith.constant dense<0.000000e+00> : vector<40x16xf32>
    %2 = tpu.matmul %0, %1, %cst {dimension_numbers = #tpu.dot_dimension_numbers<[1], [0], [0], [1], [0, 0, 1, 1], [], []>} : vector<40x144xbf16>, vector<144x16xbf16>, vector<40x16xf32> -> vector<40x16xf32>
    %c0_3 = arith.constant 0 : index
    %c0_4 = arith.constant 0 : index
    %3 = vector.load %arg4[%c0_3, %c0_4] : memref<1x16xf32, #tpu.memory_space<vmem>>, vector<1x16xf32>
    %4 = vector.broadcast %3 : vector<1x16xf32> to vector<40x16xf32>
    %5 = arith.addf %2, %4 : vector<40x16xf32>
    %cst_5 = arith.constant 0.000000e+00 : f32
    %6 = vector.broadcast %cst_5 : f32 to vector<40x16xf32>
    %7 = arith.maximumf %5, %6 : vector<40x16xf32>
    %c0_6 = arith.constant 0 : index
    %c0_7 = arith.constant 0 : index
    %8 = vector.load %arg5[%c0_6, %c0_7] : memref<40x16xf32, #tpu.memory_space<vmem>>, vector<40x16xf32>
    tpu.vector_store %arg5[%c0_6, %c0_7], %7 {strides = array<i32>} : memref<40x16xf32, #tpu.memory_space<vmem>>, vector<40x16xf32>,
    return
  }
  func.func @transform_0(%arg0: i32, %arg1: i32) -> (i32, i32) {
    %c0_i32 = arith.constant 0 : i32
    %c0_i32_0 = arith.constant 0 : i32
    return %arg0, %c0_i32 : i32, i32
  }
  func.func @transform_1(%arg0: i32, %arg1: i32) -> (i32, i32) {
    %c0_i32 = arith.constant 0 : i32
    %c0_i32_0 = arith.constant 0 : i32
    return %c0_i32, %arg1 : i32, i32
  }
  func.func @transform_2(%arg0: i32, %arg1: i32) -> (i32, i32) {
    %c0_i32 = arith.constant 0 : i32
    %c0_i32_0 = arith.constant 0 : i32
    return %c0_i32, %arg1 : i32, i32
  }
  func.func @transform_3(%arg0: i32, %arg1: i32) -> (i32, i32) {
    %c0_i32 = arith.constant 0 : i32
    return %arg0, %arg1 : i32, i32
  }
}

module attributes {stable_mosaic.version = 11 : i64} {
  func.func @_gemm_kernel(%arg0: i32, %arg1: i32, %arg2: memref<8x144xbf16, #tpu.memory_space<vmem>>, %arg3: memref<144x6xbf16, #tpu.memory_space<vmem>>, %arg4: memref<1x6xf32, #tpu.memory_space<vmem>>, %arg5: memref<8x6xf32, #tpu.memory_space<vmem>>) attributes {dimension_semantics = [#tpu.dimension_semantics<parallel>, #tpu.dimension_semantics<parallel>], iteration_bounds = array<i64: 1, 1>, scalar_prefetch = 0 : i64, scratch_operands = 0 : i64, tpu.core_type = #tpu.core_type<tc>, window_params = [{transform_indices = @transform_0, window_bounds = array<i64: 8, 144>}, {transform_indices = @transform_1, window_bounds = array<i64: 144, 6>}, {transform_indices = @transform_2, window_bounds = array<i64: 1, 6>}, {transform_indices = @transform_3, window_bounds = array<i64: 8, 6>}]} {
    %c0 = arith.constant 0 : index
    %c0_0 = arith.constant 0 : index
    %0 = vector.load %arg2[%c0, %c0_0] : memref<8x144xbf16, #tpu.memory_space<vmem>>, vector<8x144xbf16>
    %c0_1 = arith.constant 0 : index
    %c0_2 = arith.constant 0 : index
    %1 = vector.load %arg3[%c0_1, %c0_2] : memref<144x6xbf16, #tpu.memory_space<vmem>>, vector<144x6xbf16>
    %cst = arith.constant dense<0.000000e+00> : vector<8x6xf32>
    %2 = tpu.matmul %0, %1, %cst {dimension_numbers = #tpu.dot_dimension_numbers<[1], [0], [0], [1], [0, 0, 1, 1], [], []>} : vector<8x144xbf16>, vector<144x6xbf16>, vector<8x6xf32> -> vector<8x6xf32>
    %c0_3 = arith.constant 0 : index
    %c0_4 = arith.constant 0 : index
    %3 = vector.load %arg4[%c0_3, %c0_4] : memref<1x6xf32, #tpu.memory_space<vmem>>, vector<1x6xf32>
    %4 = vector.broadcast %3 : vector<1x6xf32> to vector<8x6xf32>
    %5 = arith.addf %2, %4 : vector<8x6xf32>
    %c0_5 = arith.constant 0 : index
    %c0_6 = arith.constant 0 : index
    %6 = vector.load %arg5[%c0_5, %c0_6] : memref<8x6xf32, #tpu.memory_space<vmem>>, vector<8x6xf32>
    tpu.vector_store %arg5[%c0_5, %c0_6], %5 {strides = array<i32>} : memref<8x6xf32, #tpu.memory_space<vmem>>, vector<8x6xf32>,
    return
  }
  func.func @transform_0(%arg0: i32, %arg1: i32) -> (i32, i32) {
    %c0_i32 = arith.constant 0 : i32
    %c0_i32_0 = arith.constant 0 : i32
    return %arg0, %c0_i32 : i32, i32
  }
  func.func @transform_1(%arg0: i32, %arg1: i32) -> (i32, i32) {
    %c0_i32 = arith.constant 0 : i32
    %c0_i32_0 = arith.constant 0 : i32
    return %c0_i32, %arg1 : i32, i32
  }
  func.func @transform_2(%arg0: i32, %arg1: i32) -> (i32, i32) {
    %c0_i32 = arith.constant 0 : i32
    %c0_i32_0 = arith.constant 0 : i32
    return %c0_i32, %arg1 : i32, i32
  }
  func.func @transform_3(%arg0: i32, %arg1: i32) -> (i32, i32) {
    %c0_i32 = arith.constant 0 : i32
    return %arg0, %arg1 : i32, i32
  }
}

module attributes {stable_mosaic.version = 11 : i64} {
  func.func @_gemm_kernel(%arg0: i32, %arg1: i32, %arg2: memref<104x936xbf16, #tpu.memory_space<vmem>>, %arg3: memref<936x48xbf16, #tpu.memory_space<vmem>>, %arg4: memref<1x48xf32, #tpu.memory_space<vmem>>, %arg5: memref<104x48xf32, #tpu.memory_space<vmem>>) attributes {dimension_semantics = [#tpu.dimension_semantics<parallel>, #tpu.dimension_semantics<parallel>], iteration_bounds = array<i64: 1, 1>, scalar_prefetch = 0 : i64, scratch_operands = 0 : i64, tpu.core_type = #tpu.core_type<tc>, window_params = [{transform_indices = @transform_0, window_bounds = array<i64: 104, 936>}, {transform_indices = @transform_1, window_bounds = array<i64: 936, 48>}, {transform_indices = @transform_2, window_bounds = array<i64: 1, 48>}, {transform_indices = @transform_3, window_bounds = array<i64: 104, 48>}]} {
    %c0 = arith.constant 0 : index
    %c0_0 = arith.constant 0 : index
    %0 = vector.load %arg2[%c0, %c0_0] : memref<104x936xbf16, #tpu.memory_space<vmem>>, vector<104x936xbf16>
    %c0_1 = arith.constant 0 : index
    %c0_2 = arith.constant 0 : index
    %1 = vector.load %arg3[%c0_1, %c0_2] : memref<936x48xbf16, #tpu.memory_space<vmem>>, vector<936x48xbf16>
    %cst = arith.constant dense<0.000000e+00> : vector<104x48xf32>
    %2 = tpu.matmul %0, %1, %cst {dimension_numbers = #tpu.dot_dimension_numbers<[1], [0], [0], [1], [0, 0, 1, 1], [], []>} : vector<104x936xbf16>, vector<936x48xbf16>, vector<104x48xf32> -> vector<104x48xf32>
    %c0_3 = arith.constant 0 : index
    %c0_4 = arith.constant 0 : index
    %3 = vector.load %arg4[%c0_3, %c0_4] : memref<1x48xf32, #tpu.memory_space<vmem>>, vector<1x48xf32>
    %4 = vector.broadcast %3 : vector<1x48xf32> to vector<104x48xf32>
    %5 = arith.addf %2, %4 : vector<104x48xf32>
    %cst_5 = arith.constant 0.000000e+00 : f32
    %6 = vector.broadcast %cst_5 : f32 to vector<104x48xf32>
    %7 = arith.maximumf %5, %6 : vector<104x48xf32>
    %c0_6 = arith.constant 0 : index
    %c0_7 = arith.constant 0 : index
    %8 = vector.load %arg5[%c0_6, %c0_7] : memref<104x48xf32, #tpu.memory_space<vmem>>, vector<104x48xf32>
    tpu.vector_store %arg5[%c0_6, %c0_7], %7 {strides = array<i32>} : memref<104x48xf32, #tpu.memory_space<vmem>>, vector<104x48xf32>,
    return
  }
  func.func @transform_0(%arg0: i32, %arg1: i32) -> (i32, i32) {
    %c0_i32 = arith.constant 0 : i32
    %c0_i32_0 = arith.constant 0 : i32
    return %arg0, %c0_i32 : i32, i32
  }
  func.func @transform_1(%arg0: i32, %arg1: i32) -> (i32, i32) {
    %c0_i32 = arith.constant 0 : i32
    %c0_i32_0 = arith.constant 0 : i32
    return %c0_i32, %arg1 : i32, i32
  }
  func.func @transform_2(%arg0: i32, %arg1: i32) -> (i32, i32) {
    %c0_i32 = arith.constant 0 : i32
    %c0_i32_0 = arith.constant 0 : i32
    return %c0_i32, %arg1 : i32, i32
  }
  func.func @transform_3(%arg0: i32, %arg1: i32) -> (i32, i32) {
    %c0_i32 = arith.constant 0 : i32
    return %arg0, %arg1 : i32, i32
  }
}

module attributes {stable_mosaic.version = 11 : i64} {
  func.func @_graph_attn_kernel(%arg0: memref<4x144xf32, #tpu.memory_space<vmem>>, %arg1: memref<4x144xf32, #tpu.memory_space<vmem>>, %arg2: memref<4x144xf32, #tpu.memory_space<vmem>>, %arg3: memref<4x4xf32, #tpu.memory_space<vmem>>, %arg4: memref<4x144xf32, #tpu.memory_space<vmem>>) attributes {dimension_semantics = [], scalar_prefetch = 0 : i64, scratch_operands = 0 : i64, tpu.core_type = #tpu.core_type<tc>} {
    %c0 = arith.constant 0 : index
    %c0_0 = arith.constant 0 : index
    %0 = vector.load %arg0[%c0, %c0_0] : memref<4x144xf32, #tpu.memory_space<vmem>>, vector<4x144xf32>
    %1 = arith.truncf %0 : vector<4x144xf32> to vector<4x144xbf16>
    %c0_1 = arith.constant 0 : index
    %c0_2 = arith.constant 0 : index
    %2 = vector.load %arg1[%c0_1, %c0_2] : memref<4x144xf32, #tpu.memory_space<vmem>>, vector<4x144xf32>
    %3 = arith.truncf %2 : vector<4x144xf32> to vector<4x144xbf16>
    %cst = arith.constant dense<0.000000e+00> : vector<4x4xf32>
    %4 = tpu.matmul %1, %3, %cst {dimension_numbers = #tpu.dot_dimension_numbers<[1], [1], [0], [0], [0, 0, 1, 0], [], []>} : vector<4x144xbf16>, vector<4x144xbf16>, vector<4x4xf32> -> vector<4x4xf32>
    %cst_3 = arith.constant 0.176776692 : f32
    %5 = vector.broadcast %cst_3 : f32 to vector<4x4xf32>
    %6 = arith.mulf %4, %5 : vector<4x4xf32>
    %c0_4 = arith.constant 0 : index
    %c0_5 = arith.constant 0 : index
    %7 = vector.load %arg3[%c0_4, %c0_5] : memref<4x4xf32, #tpu.memory_space<vmem>>, vector<4x4xf32>
    %cst_6 = arith.constant 5.000000e-01 : f32
    %8 = vector.broadcast %cst_6 : f32 to vector<4x4xf32>
    %9 = arith.cmpf ogt, %7, %8 : vector<4x4xf32>
    %cst_7 = arith.constant -1.000000e+30 : f32
    %10 = vector.broadcast %cst_7 : f32 to vector<4x4xf32>
    %11 = arith.select %9, %6, %10 : vector<4x4xi1>, vector<4x4xf32>
    %cst_8 = arith.constant dense<0xFF800000> : vector<4xf32>
    %12 = vector.multi_reduction <maximumf>, %11, %cst_8 [1] : vector<4x4xf32> to vector<4xf32>
    %13 = vector.shape_cast %12 : vector<4xf32> to vector<4x1xf32>
    %14 = vector.broadcast %13 : vector<4x1xf32> to vector<4x4xf32>
    %15 = arith.subf %11, %14 : vector<4x4xf32>
    %16 = math.exp %15 : vector<4x4xf32>
    %cst_9 = arith.constant dense<0.000000e+00> : vector<4xf32>
    %17 = vector.multi_reduction <add>, %16, %cst_9 [1] : vector<4x4xf32> to vector<4xf32>
    %18 = vector.shape_cast %17 : vector<4xf32> to vector<4x1xf32>
    %19 = tpu.reciprocal %18 {approx = true} : vector<4x1xf32> -> vector<4x1xf32>
    %20 = vector.broadcast %19 : vector<4x1xf32> to vector<4x4xf32>
    %21 = arith.mulf %16, %20 : vector<4x4xf32>
    %22 = arith.truncf %21 : vector<4x4xf32> to vector<4x4xbf16>
    %c0_10 = arith.constant 0 : index
    %c0_11 = arith.constant 0 : index
    %23 = vector.load %arg2[%c0_10, %c0_11] : memref<4x144xf32, #tpu.memory_space<vmem>>, vector<4x144xf32>
    %24 = arith.truncf %23 : vector<4x144xf32> to vector<4x144xbf16>
    %cst_12 = arith.constant dense<0.000000e+00> : vector<4x144xf32>
    %25 = tpu.matmul %22, %24, %cst_12 {dimension_numbers = #tpu.dot_dimension_numbers<[1], [0], [0], [1], [0, 0, 1, 1], [], []>} : vector<4x4xbf16>, vector<4x144xbf16>, vector<4x144xf32> -> vector<4x144xf32>
    %c0_13 = arith.constant 0 : index
    %c0_14 = arith.constant 0 : index
    %26 = vector.load %arg4[%c0_13, %c0_14] : memref<4x144xf32, #tpu.memory_space<vmem>>, vector<4x144xf32>
    tpu.vector_store %arg4[%c0_13, %c0_14], %25 {strides = array<i32>} : memref<4x144xf32, #tpu.memory_space<vmem>>, vector<4x144xf32>,
    return
  }
}

module attributes {stable_mosaic.version = 11 : i64} {
  func.func @_graph_pool_kernel(%arg0: memref<1x4xf32, #tpu.memory_space<vmem>>, %arg1: memref<2x4xf32, #tpu.memory_space<vmem>>, %arg2: memref<4x144xf32, #tpu.memory_space<vmem>>, %arg3: memref<2x144xf32, #tpu.memory_space<vmem>>) attributes {dimension_semantics = [], scalar_prefetch = 0 : i64, scratch_operands = 0 : i64, tpu.core_type = #tpu.core_type<tc>} {
    %c0 = arith.constant 0 : index
    %c0_0 = arith.constant 0 : index
    %0 = vector.load %arg0[%c0, %c0_0] : memref<1x4xf32, #tpu.memory_space<vmem>>, vector<1x4xf32>
    %1 = vector.shape_cast %0 : vector<1x4xf32> to vector<1x4xf32>
    %2 = vector.broadcast %1 : vector<1x4xf32> to vector<2x4xf32>
    %c0_1 = arith.constant 0 : index
    %c0_2 = arith.constant 0 : index
    %3 = vector.load %arg1[%c0_1, %c0_2] : memref<2x4xf32, #tpu.memory_space<vmem>>, vector<2x4xf32>
    %cst = arith.constant 5.000000e-01 : f32
    %4 = vector.broadcast %cst : f32 to vector<2x4xf32>
    %5 = arith.cmpf ogt, %3, %4 : vector<2x4xf32>
    %cst_3 = arith.constant -1.000000e+30 : f32
    %6 = vector.broadcast %cst_3 : f32 to vector<2x4xf32>
    %7 = arith.select %5, %2, %6 : vector<2x4xi1>, vector<2x4xf32>
    %cst_4 = arith.constant dense<0xFF800000> : vector<2xf32>
    %8 = vector.multi_reduction <maximumf>, %7, %cst_4 [1] : vector<2x4xf32> to vector<2xf32>
    %9 = vector.shape_cast %8 : vector<2xf32> to vector<2x1xf32>
    %10 = vector.broadcast %9 : vector<2x1xf32> to vector<2x4xf32>
    %11 = arith.subf %7, %10 : vector<2x4xf32>
    %12 = math.exp %11 : vector<2x4xf32>
    %cst_5 = arith.constant dense<0.000000e+00> : vector<2xf32>
    %13 = vector.multi_reduction <add>, %12, %cst_5 [1] : vector<2x4xf32> to vector<2xf32>
    %14 = vector.shape_cast %13 : vector<2xf32> to vector<2x1xf32>
    %15 = tpu.reciprocal %14 {approx = true} : vector<2x1xf32> -> vector<2x1xf32>
    %16 = vector.broadcast %15 : vector<2x1xf32> to vector<2x4xf32>
    %17 = arith.mulf %12, %16 : vector<2x4xf32>
    %18 = arith.truncf %17 : vector<2x4xf32> to vector<2x4xbf16>
    %c0_6 = arith.constant 0 : index
    %c0_7 = arith.constant 0 : index
    %19 = vector.load %arg2[%c0_6, %c0_7] : memref<4x144xf32, #tpu.memory_space<vmem>>, vector<4x144xf32>
    %20 = arith.truncf %19 : vector<4x144xf32> to vector<4x144xbf16>
    %cst_8 = arith.constant dense<0.000000e+00> : vector<2x144xf32>
    %21 = tpu.matmul %18, %20, %cst_8 {dimension_numbers = #tpu.dot_dimension_numbers<[1], [0], [0], [1], [0, 0, 1, 1], [], []>} : vector<2x4xbf16>, vector<4x144xbf16>, vector<2x144xf32> -> vector<2x144xf32>
    %c0_9 = arith.constant 0 : index
    %c0_10 = arith.constant 0 : index
    %22 = vector.load %arg3[%c0_9, %c0_10] : memref<2x144xf32, #tpu.memory_space<vmem>>, vector<2x144xf32>
    tpu.vector_store %arg3[%c0_9, %c0_10], %21 {strides = array<i32>} : memref<2x144xf32, #tpu.memory_space<vmem>>, vector<2x144xf32>,
    return
  }
}

module attributes {stable_mosaic.version = 11 : i64} {
  func.func @_gemm_kernel(%arg0: i32, %arg1: i32, %arg2: memref<8x144xbf16, #tpu.memory_space<vmem>>, %arg3: memref<144x1xbf16, #tpu.memory_space<vmem>>, %arg4: memref<1x1xf32, #tpu.memory_space<vmem>>, %arg5: memref<8x1xf32, #tpu.memory_space<vmem>>) attributes {dimension_semantics = [#tpu.dimension_semantics<parallel>, #tpu.dimension_semantics<parallel>], iteration_bounds = array<i64: 1, 1>, scalar_prefetch = 0 : i64, scratch_operands = 0 : i64, tpu.core_type = #tpu.core_type<tc>, window_params = [{transform_indices = @transform_0, window_bounds = array<i64: 8, 144>}, {transform_indices = @transform_1, window_bounds = array<i64: 144, 1>}, {transform_indices = @transform_2, window_bounds = array<i64: 1, 1>}, {transform_indices = @transform_3, window_bounds = array<i64: 8, 1>}]} {
    %c0 = arith.constant 0 : index
    %c0_0 = arith.constant 0 : index
    %0 = vector.load %arg2[%c0, %c0_0] : memref<8x144xbf16, #tpu.memory_space<vmem>>, vector<8x144xbf16>
    %c0_1 = arith.constant 0 : index
    %c0_2 = arith.constant 0 : index
    %1 = vector.load %arg3[%c0_1, %c0_2] : memref<144x1xbf16, #tpu.memory_space<vmem>>, vector<144x1xbf16>
    %cst = arith.constant dense<0.000000e+00> : vector<8x1xf32>
    %2 = tpu.matmul %0, %1, %cst {dimension_numbers = #tpu.dot_dimension_numbers<[1], [0], [0], [1], [0, 0, 1, 1], [], []>} : vector<8x144xbf16>, vector<144x1xbf16>, vector<8x1xf32> -> vector<8x1xf32>
    %c0_3 = arith.constant 0 : index
    %c0_4 = arith.constant 0 : index
    %3 = vector.load %arg4[%c0_3, %c0_4] : memref<1x1xf32, #tpu.memory_space<vmem>>, vector<1x1xf32>
    %4 = vector.broadcast %3 : vector<1x1xf32> to vector<8x1xf32>
    %5 = arith.addf %2, %4 : vector<8x1xf32>
    %c0_5 = arith.constant 0 : index
    %c0_6 = arith.constant 0 : index
    %6 = vector.load %arg5[%c0_5, %c0_6] : memref<8x1xf32, #tpu.memory_space<vmem>>, vector<8x1xf32>
    tpu.vector_store %arg5[%c0_5, %c0_6], %5 {strides = array<i32>} : memref<8x1xf32, #tpu.memory_space<vmem>>, vector<8x1xf32>,
    return
  }
  func.func @transform_0(%arg0: i32, %arg1: i32) -> (i32, i32) {
    %c0_i32 = arith.constant 0 : i32
    %c0_i32_0 = arith.constant 0 : i32
    return %arg0, %c0_i32 : i32, i32
  }
  func.func @transform_1(%arg0: i32, %arg1: i32) -> (i32, i32) {
    %c0_i32 = arith.constant 0 : i32
    %c0_i32_0 = arith.constant 0 : i32
    return %c0_i32, %arg1 : i32, i32
  }
  func.func @transform_2(%arg0: i32, %arg1: i32) -> (i32, i32) {
    %c0_i32 = arith.constant 0 : i32
    %c0_i32_0 = arith.constant 0 : i32
    return %c0_i32, %arg1 : i32, i32
  }
  func.func @transform_3(%arg0: i32, %arg1: i32) -> (i32, i32) {
    %c0_i32 = arith.constant 0 : i32
    return %arg0, %arg1 : i32, i32
  }
}

</mosaic_0001>

<llo_original>
// kernel: gcnet_forward.36
$region0: #{gcnet_forward.36}
  #allocation0 [shape = 'u32[]', space=smem, size = 0x4, offset = 0x4, fixed_abs, tag = 'smem constant byte address 0x4 - core index']
  #allocation1 [shape = 'u32[72,128]{1,0:T(1,128)}', space=vmem, size = 0x9000, scoped, tag = 'internal scratch']
  %s0 = inlined_call_operand.vmem [shape: bf16[200,144], index: 0, kind: input, shape index: {}]
  %s1 = inlined_call_operand.vmem [shape: bf16[144,32], index: 1, kind: input, shape index: {}]
  %s2 = inlined_call_operand.vmem [shape: f32[1,32], index: 2, kind: input, shape index: {}]
  %s3 = inlined_call_operand.vmem [shape: f32[200,32], index: 3, kind: output, shape index: {}]
  %s4 = sld [smem:[#allocation0]]
  $region22: #{gcnet_forward.36} parent=0
    _
  %s6 = ssub.s32 1, %s4
  %s7 = scalar_select 0, %s6, %s4
  // Predicated region
  $region2: #{gcnet_forward.36} parent=0 // pred_check
    _
  $region3: #{gcnet_forward.36} parent=0 // pred_check_branch
    %9 = sbr.rel (0) target = $region5
  $region4: #{gcnet_forward.36} parent=0 // pred_region
    _
  $region5: #{gcnet_forward.36} parent=0 // pred_fallthru
    _
  // Predicated region
  $region6: #{gcnet_forward.36} parent=0 // pred_check
    _
  $region7: #{gcnet_forward.36} parent=0 // pred_check_branch
    %11 = sbr.rel (0) target = $region9
  $region8: #{gcnet_forward.36} parent=0 // pred_region
    _
  $region9: #{gcnet_forward.36} parent=0 // pred_fallthru
    _
  // Predicated region
  $region10: #{gcnet_forward.36} parent=0 // pred_check
    _
  $region11: #{gcnet_forward.36} parent=0 // pred_check_branch
    %13 = sbr.rel (0) target = $region13
  $region12: #{gcnet_forward.36} parent=0 // pred_region
    _
  $region13: #{gcnet_forward.36} parent=0 // pred_fallthru
    _
  %v15 = vld [vmem:[%s0] sm:$0xff]
  %v16 = vld [vmem:[%s0 + $0x8] sm:$0xff]
  %v17 = vld [vmem:[%s0 + $0x10] sm:$0xff]
  %v18 = vld [vmem:[%s0 + $0x18] sm:$0xff]
  %v19 = vld [vmem:[%s0 + $0x20] sm:$0xff]
  %v20 = vld [vmem:[%s0 + $0x28] sm:$0xff]
  %v21 = vld [vmem:[%s0 + $0x30] sm:$0xff]
  %v22 = vld [vmem:[%s0 + $0x38] sm:$0xff]
  %v23 = vld [vmem:[%s0 + $0x40] sm:$0xff]
  %v24 = vld [vmem:[%s0 + $0x48] sm:$0xff]
  %v25 = vld [vmem:[%s0 + $0x50] sm:$0xff]
  %v26 = vld [vmem:[%s0 + $0x58] sm:$0xff]
  %v27 = vld [vmem:[%s0 + $0x60] sm:$0xff]
  %v28 = vld [vmem:[%s0 + $0x68] sm:$0xff]
  %v29 = vld [vmem:[%s0 + $0x70] sm:$0xff]
  %v30 = vld [vmem:[%s0 + $0x78] sm:$0xff]
  %v31 = vld [vmem:[%s0 + $0x80] sm:$0xff]
  %v32 = vld [vmem:[%s0 + $0x88] sm:$0xff]
  %v33 = vld [vmem:[%s0 + $0x90] sm:$0xff]
  %v34 = vld [vmem:[%s0 + $0x98] sm:$0xff]
  %v35 = vld [vmem:[%s0 + $0xa0] sm:$0xff]
  %v36 = vld [vmem:[%s0 + $0xa8] sm:$0xff]
  %v37 = vld [vmem:[%s0 + $0xb0] sm:$0xff]
  %v38 = vld [vmem:[%s0 + $0xb8] sm:$0xff]
  %v39 = vld [vmem:[%s0 + $0xc0] sm:$0xff]
  %v40 = vld [vmem:[%s1] sm:$0xf]
  %v41 = vld [vmem:[%s1 + $0x4] sm:$0xf]
  %v42 = vld [vmem:[%s1 + $0x8] sm:$0xf]
  %v43 = vld [vmem:[%s1 + $0xc] sm:$0xf]
  %v44 = vld [vmem:[%s1 + $0x10] sm:$0xf]
  %v45 = vld [vmem:[%s1 + $0x14] sm:$0xf]
  %v46 = vld [vmem:[%s1 + $0x18] sm:$0xf]
  %v47 = vld [vmem:[%s1 + $0x1c] sm:$0xf]
  %v48 = vld [vmem:[%s1 + $0x20] sm:$0xf]
  %v49 = vld [vmem:[%s1 + $0x24] sm:$0xf]
  %v50 = vld [vmem:[%s1 + $0x28] sm:$0xf]
  %v51 = vld [vmem:[%s1 + $0x2c] sm:$0xf]
  %v52 = vld [vmem:[%s1 + $0x30] sm:$0xf]
  %v53 = vld [vmem:[%s1 + $0x34] sm:$0xf]
  %v54 = vld [vmem:[%s1 + $0x38] sm:$0xf]
  %v55 = vld [vmem:[%s1 + $0x3c] sm:$0xf]
  %v56 = vld [vmem:[%s1 + $0x40] sm:$0xf]
  %v57 = vld [vmem:[%s1 + $0x44] sm:$0xf]
  %v58 = vld [vmem:[%s2] sm:$0x1]
  %v60 = vperm.slane %v58, 0
  %v87 = vunpack.c.l.b16 %v15
  %v88 = vunpack.c.h.b16 %v15
  %v89 = vunpack.c.l.b16 %v16
  %v90 = vunpack.c.h.b16 %v16
  %v91 = vunpack.c.l.b16 %v17
  %v92 = vunpack.c.h.b16 %v17
  %v93 = vunpack.c.l.b16 %v18
  %v94 = vunpack.c.h.b16 %v18
  %v95 = vunpack.c.l.b16 %v19
  %v96 = vunpack.c.h.b16 %v19
  %v97 = vunpack.c.l.b16 %v20
  %v98 = vunpack.c.h.b16 %v20
  %v99 = vunpack.c.l.b16 %v21
  %v100 = vunpack.c.h.b16 %v21
  %v101 = vunpack.c.l.b16 %v22
  %v102 = vunpack.c.h.b16 %v22
  %v103 = vunpack.c.l.b16 %v23
  %v104 = vunpack.c.h.b16 %v23
  %v105 = vunpack.c.l.b16 %v24
  %v106 = vunpack.c.h.b16 %v24
  %v107 = vunpack.c.l.b16 %v25
  %v108 = vunpack.c.h.b16 %v25
  %v109 = vunpack.c.l.b16 %v26
  %v110 = vunpack.c.h.b16 %v26
  %v111 = vunpack.c.l.b16 %v27
  %v112 = vunpack.c.h.b16 %v27
  %v113 = vunpack.c.l.b16 %v28
  %v114 = vunpack.c.h.b16 %v28
  %v115 = vunpack.c.l.b16 %v29
  %v116 = vunpack.c.h.b16 %v29
  %v117 = vunpack.c.l.b16 %v30
  %v118 = vunpack.c.h.b16 %v30
  %v119 = vunpack.c.l.b16 %v31
  %v120 = vunpack.c.h.b16 %v31
  %v121 = vunpack.c.l.b16 %v32
  %v122 = vunpack.c.h.b16 %v32
  %v123 = vunpack.c.l.b16 %v33
  %v124 = vunpack.c.h.b16 %v33
  %v125 = vunpack.c.l.b16 %v34
  %v126 = vunpack.c.h.b16 %v34
  %v127 = vunpack.c.l.b16 %v35
  %v128 = vunpack.c.h.b16 %v35
  %v129 = vunpack.c.l.b16 %v36
  %v130 = vunpack.c.h.b16 %v36
  %v131 = vunpack.c.l.b16 %v37
  %v132 = vunpack.c.h.b16 %v37
  %v133 = vunpack.c.l.b16 %v38
  %v134 = vunpack.c.h.b16 %v38
  %v135 = vunpack.c.l.b16 %v39
  %v136 = vunpack.c.h.b16 %v39
  %v137 = vpack.c.b16 %v89, %v87
  %v138 = vpack.c.b16 %v90, %v88
  %v139 = vpack.c.b16 %v93, %v91
  %v140 = vpack.c.b16 %v94, %v92
  %v141 = vpack.c.b16 %v97, %v95
  %v142 = vpack.c.b16 %v98, %v96
  %v143 = vpack.c.b16 %v101, %v99
  %v144 = vpack.c.b16 %v102, %v100
  %v145 = vpack.c.b16 %v105, %v103
  %v146 = vpack.c.b16 %v106, %v104
  %v147 = vpack.c.b16 %v109, %v107
  %v148 = vpack.c.b16 %v110, %v108
  %v149 = vpack.c.b16 %v113, %v111
  %v150 = vpack.c.b16 %v114, %v112
  %v151 = vpack.c.b16 %v117, %v115
  %v152 = vpack.c.b16 %v118, %v116
  %v153 = vpack.c.b16 %v121, %v119
  %v154 = vpack.c.b16 %v122, %v120
  %v155 = vpack.c.b16 %v125, %v123
  %v156 = vpack.c.b16 %v126, %v124
  %v157 = vpack.c.b16 %v129, %v127
  %v158 = vpack.c.b16 %v130, %v128
  %v159 = vpack.c.b16 %v133, %v131
  %v160 = vpack.c.b16 %v134, %v132
  %v161 = vpack.c.b16 %v135, %v135
  %v162 = vpack.c.b16 %v136, %v136
  %v194 = vunpack.c.l.b16 %v40
  %v195 = vunpack.c.l.b16 %v41
  %v196 = vunpack.c.l.b16 %v42
  %v197 = vunpack.c.l.b16 %v43
  %v198 = vunpack.c.l.b16 %v44
  %v199 = vunpack.c.l.b16 %v45
  %v200 = vunpack.c.l.b16 %v46
  %v201 = vunpack.c.l.b16 %v47
  %v202 = vunpack.c.l.b16 %v48
  %v203 = vunpack.c.l.b16 %v49
  %v204 = vunpack.c.l.b16 %v50
  %v205 = vunpack.c.l.b16 %v51
  %v206 = vunpack.c.l.b16 %v52
  %v207 = vunpack.c.l.b16 %v53
  %v208 = vunpack.c.l.b16 %v54
  %v209 = vunpack.c.l.b16 %v55
  %v210 = vunpack.c.l.b16 %v56
  %v211 = vunpack.c.l.b16 %v57
  %v212 = vpack.c.b16 %v195, %v194
  %v213 = vpack.c.b16 %v197, %v196
  %v214 = vpack.c.b16 %v199, %v198
  %v215 = vpack.c.b16 %v201, %v200
  %v216 = vpack.c.b16 %v203, %v202
  %v217 = vpack.c.b16 %v205, %v204
  %v218 = vpack.c.b16 %v207, %v206
  %v219 = vpack.c.b16 %v209, %v208
  %v220 = vpack.c.b16 %v211, %v210
  %vm230 = vcmask 130048
  %v232 = vsel %vm230, %v138, 0
  %v235 = vsel %vm230, %v140, 0
  %v238 = vsel %vm230, %v142, 0
  %v241 = vsel %vm230, %v144, 0
  %v244 = vsel %vm230, %v146, 0
  %v247 = vsel %vm230, %v148, 0
  %v250 = vsel %vm230, %v150, 0
  %v253 = vsel %vm230, %v152, 0
  %v256 = vsel %vm230, %v154, 0
  %v259 = vsel %vm230, %v156, 0
  %v262 = vsel %vm230, %v158, 0
  %v265 = vsel %vm230, %v160, 0
  %v268 = vsel %vm230, %v162, 0
  %270 = vmatpush.bf16.msra.mxu0 %v219
  %271 = vmatpush.bf16.msra.mxu0 %v218
  %272 = vmatpush.bf16.msra.mxu0 %v217
  %273 = vmatpush.bf16.msra.mxu0 %v216
  %274 = vmatpush.bf16.msra.mxu0 %v215
  %275 = vmatpush.bf16.msra.mxu0 %v214
  %276 = vmatpush.bf16.msra.mxu0 %v213
  %277 = vmatpush.bf16.msra.mxu0 %v212
  %278 = vmatmul.bf16.gmra.mxu0 %v137
  %v279 = vpop.f32.mrf.mxu0
  %v280 = vadd.f32 %v60, %v279
  %v281 = vpop.f32.mrf.mxu0
  %v282 = vadd.f32 %v60, %v281
  %283 = vmatmul.bf16.gmra.mxu0 %v139
  %v284 = vpop.f32.mrf.mxu0
  %v285 = vadd.f32 %v60, %v284
  %v286 = vpop.f32.mrf.mxu0
  %v287 = vadd.f32 %v60, %v286
  %288 = vmatmul.bf16.gmra.mxu0 %v141
  %v289 = vpop.f32.mrf.mxu0
  %v290 = vadd.f32 %v60, %v289
  %v291 = vpop.f32.mrf.mxu0
  %v292 = vadd.f32 %v60, %v291
  %293 = vmatmul.bf16.gmra.mxu0 %v143
  %v294 = vpop.f32.mrf.mxu0
  %v295 = vadd.f32 %v60, %v294
  %v296 = vpop.f32.mrf.mxu0
  %v297 = vadd.f32 %v60, %v296
  %298 = vmatmul.bf16.gmra.mxu0 %v145
  %v299 = vpop.f32.mrf.mxu0
  %v300 = vadd.f32 %v60, %v299
  %v301 = vpop.f32.mrf.mxu0
  %v302 = vadd.f32 %v60, %v301
  %303 = vmatmul.bf16.gmra.mxu0 %v147
  %v304 = vpop.f32.mrf.mxu0
  %v305 = vadd.f32 %v60, %v304
  %v306 = vpop.f32.mrf.mxu0
  %v307 = vadd.f32 %v60, %v306
  %308 = vmatmul.bf16.gmra.mxu0 %v149
  %v309 = vpop.f32.mrf.mxu0
  %v310 = vadd.f32 %v60, %v309
  %v311 = vpop.f32.mrf.mxu0
  %v312 = vadd.f32 %v60, %v311
  %313 = vmatmul.bf16.gmra.mxu0 %v151
  %v314 = vpop.f32.mrf.mxu0
  %v315 = vadd.f32 %v60, %v314
  %v316 = vpop.f32.mrf.mxu0
  %v317 = vadd.f32 %v60, %v316
  %318 = vmatmul.bf16.gmra.mxu0 %v153
  %v319 = vpop.f32.mrf.mxu0
  %v320 = vadd.f32 %v60, %v319
  %v321 = vpop.f32.mrf.mxu0
  %v322 = vadd.f32 %v60, %v321
  %323 = vmatmul.bf16.gmra.mxu0 %v155
  %v324 = vpop.f32.mrf.mxu0
  %v325 = vadd.f32 %v60, %v324
  %v326 = vpop.f32.mrf.mxu0
  %v327 = vadd.f32 %v60, %v326
  %328 = vmatmul.bf16.gmra.mxu0 %v157
  %v329 = vpop.f32.mrf.mxu0
  %v330 = vadd.f32 %v60, %v329
  %v331 = vpop.f32.mrf.mxu0
  %v332 = vadd.f32 %v60, %v331
  %333 = vmatmul.bf16.gmra.mxu0 %v159
  %v334 = vpop.f32.mrf.mxu0
  %v335 = vadd.f32 %v60, %v334
  %v336 = vpop.f32.mrf.mxu0
  %v337 = vadd.f32 %v60, %v336
  %338 = vmatmul.bf16.gmra.mxu0 %v161
  %v339 = vpop.f32.mrf.mxu0
  %v340 = vadd.f32 %v60, %v339
  %v341 = vpop.f32.mrf.mxu0
  %342 = vdwg.mxu0
  %343 = vmatpush.bf16.msra.mxu0 0
  %344 = vmatpush.bf16.msra.mxu0 0
  %345 = vmatpush.bf16.msra.mxu0 0
  %346 = vmatpush.bf16.msra.mxu0 0
  %347 = vmatpush.bf16.msra.mxu0 0
  %348 = vmatpush.bf16.msra.mxu0 0
  %349 = vmatpush.bf16.msra.mxu0 0
  %350 = vmatpush.bf16.msra.mxu0 %v220
  %351 = vmatmul.bf16.gmra.mxu0 %v232
  %v352 = vpop.f32.mrf.mxu0
  %v353 = vadd.f32 %v280, %v352
  %v354 = vpop.f32.mrf.mxu0
  %v355 = vadd.f32 %v282, %v354
  %356 = vmatmul.bf16.gmra.mxu0 %v235
  %v357 = vpop.f32.mrf.mxu0
  %v358 = vadd.f32 %v285, %v357
  %v359 = vpop.f32.mrf.mxu0
  %v360 = vadd.f32 %v287, %v359
  %361 = vmatmul.bf16.gmra.mxu0 %v238
  %v362 = vpop.f32.mrf.mxu0
  %v363 = vadd.f32 %v290, %v362
  %v364 = vpop.f32.mrf.mxu0
  %v365 = vadd.f32 %v292, %v364
  %366 = vmatmul.bf16.gmra.mxu0 %v241
  %v367 = vpop.f32.mrf.mxu0
  %v368 = vadd.f32 %v295, %v367
  %v369 = vpop.f32.mrf.mxu0
  %v370 = vadd.f32 %v297, %v369
  %371 = vmatmul.bf16.gmra.mxu0 %v244
  %v372 = vpop.f32.mrf.mxu0
  %v373 = vadd.f32 %v300, %v372
  %v374 = vpop.f32.mrf.mxu0
  %v375 = vadd.f32 %v302, %v374
  %376 = vmatmul.bf16.gmra.mxu0 %v247
  %v377 = vpop.f32.mrf.mxu0
  %v378 = vadd.f32 %v305, %v377
  %v379 = vpop.f32.mrf.mxu0
  %v380 = vadd.f32 %v307, %v379
  %381 = vmatmul.bf16.gmra.mxu0 %v250
  %v382 = vpop.f32.mrf.mxu0
  %v383 = vadd.f32 %v310, %v382
  %v384 = vpop.f32.mrf.mxu0
  %v385 = vadd.f32 %v312, %v384
  %386 = vmatmul.bf16.gmra.mxu0 %v253
  %v387 = vpop.f32.mrf.mxu0
  %v388 = vadd.f32 %v315, %v387
  %v389 = vpop.f32.mrf.mxu0
  %v390 = vadd.f32 %v317, %v389
  %391 = vmatmul.bf16.gmra.mxu0 %v256
  %v392 = vpop.f32.mrf.mxu0
  %v393 = vadd.f32 %v320, %v392
  %v394 = vpop.f32.mrf.mxu0
  %v395 = vadd.f32 %v322, %v394
  %396 = vmatmul.bf16.gmra.mxu0 %v259
  %v397 = vpop.f32.mrf.mxu0
  %v398 = vadd.f32 %v325, %v397
  %v399 = vpop.f32.mrf.mxu0
  %v400 = vadd.f32 %v327, %v399
  %401 = vmatmul.bf16.gmra.mxu0 %v262
  %v402 = vpop.f32.mrf.mxu0
  %v403 = vadd.f32 %v330, %v402
  %v404 = vpop.f32.mrf.mxu0
  %v405 = vadd.f32 %v332, %v404
  %406 = vmatmul.bf16.gmra.mxu0 %v265
  %v407 = vpop.f32.mrf.mxu0
  %v408 = vadd.f32 %v335, %v407
  %v409 = vpop.f32.mrf.mxu0
  %v410 = vadd.f32 %v337, %v409
  %411 = vmatmul.bf16.gmra.mxu0 %v268
  %v412 = vpop.f32.mrf.mxu0
  %v413 = vadd.f32 %v340, %v412
  %v414 = vpop.f32.mrf.mxu0
  %415 = vdwg.mxu0
  %vm416 = vcmask 261120
  %417 = vst.msk [vmem:[%s3] sm:$0xff] %vm416, %v353
  %418 = vst.msk [vmem:[%s3 + $0x8] sm:$0xff] %vm416, %v355
  %419 = vst.msk [vmem:[%s3 + $0x10] sm:$0xff] %vm416, %v358
  %420 = vst.msk [vmem:[%s3 + $0x18] sm:$0xff] %vm416, %v360
  %421 = vst.msk [vmem:[%s3 + $0x20] sm:$0xff] %vm416, %v363
  %422 = vst.msk [vmem:[%s3 + $0x28] sm:$0xff] %vm416, %v365
  %423 = vst.msk [vmem:[%s3 + $0x30] sm:$0xff] %vm416, %v368
  %424 = vst.msk [vmem:[%s3 + $0x38] sm:$0xff] %vm416, %v370
  %425 = vst.msk [vmem:[%s3 + $0x40] sm:$0xff] %vm416, %v373
  %426 = vst.msk [vmem:[%s3 + $0x48] sm:$0xff] %vm416, %v375
  %427 = vst.msk [vmem:[%s3 + $0x50] sm:$0xff] %vm416, %v378
  %428 = vst.msk [vmem:[%s3 + $0x58] sm:$0xff] %vm416, %v380
  %429 = vst.msk [vmem:[%s3 + $0x60] sm:$0xff] %vm416, %v383
  %430 = vst.msk [vmem:[%s3 + $0x68] sm:$0xff] %vm416, %v385
  %431 = vst.msk [vmem:[%s3 + $0x70] sm:$0xff] %vm416, %v388
  %432 = vst.msk [vmem:[%s3 + $0x78] sm:$0xff] %vm416, %v390
  %433 = vst.msk [vmem:[%s3 + $0x80] sm:$0xff] %vm416, %v393
  %434 = vst.msk [vmem:[%s3 + $0x88] sm:$0xff] %vm416, %v395
  %435 = vst.msk [vmem:[%s3 + $0x90] sm:$0xff] %vm416, %v398
  %436 = vst.msk [vmem:[%s3 + $0x98] sm:$0xff] %vm416, %v400
  %437 = vst.msk [vmem:[%s3 + $0xa0] sm:$0xff] %vm416, %v403
  %438 = vst.msk [vmem:[%s3 + $0xa8] sm:$0xff] %vm416, %v405
  %439 = vst.msk [vmem:[%s3 + $0xb0] sm:$0xff] %vm416, %v408
  %440 = vst.msk [vmem:[%s3 + $0xb8] sm:$0xff] %vm416, %v410
  %441 = vst.msk [vmem:[%s3 + $0xc0] sm:$0xff] %vm416, %v413
  // Predicated region
  $region14: #{gcnet_forward.36} parent=0 // pred_check
    _
  $region15: #{gcnet_forward.36} parent=0 // pred_check_branch
    %443 = sbr.rel (0) target = $region17
  $region16: #{gcnet_forward.36} parent=0 // pred_region
    _
  $region17: #{gcnet_forward.36} parent=0 // pred_fallthru
    _
  // Predicated region
  $region18: #{gcnet_forward.36} parent=0 // pred_check
    _
  $region19: #{gcnet_forward.36} parent=0 // pred_check_branch
    %445 = sbr.rel (0) target = $region21
  $region20: #{gcnet_forward.36} parent=0 // pred_region
    _
  $region21: #{gcnet_forward.36} parent=0 // pred_fallthru
    _

// kernel: gcnet_forward.37
$region0: #{gcnet_forward.37}
  #allocation0 [shape = 'u32[]', space=smem, size = 0x4, offset = 0x4, fixed_abs, tag = 'smem constant byte address 0x4 - core index']
  #allocation1 [shape = 'u32[72,128]{1,0:T(1,128)}', space=vmem, size = 0x9000, scoped, tag = 'internal scratch']
  %s0 = inlined_call_operand.vmem [shape: bf16[8,6], index: 0, kind: input, shape index: {}]
  %s1 = inlined_call_operand.vmem [shape: bf16[6,8], index: 1, kind: input, shape index: {}]
  %s2 = inlined_call_operand.vmem [shape: f32[1,8], index: 2, kind: input, shape index: {}]
  %s3 = inlined_call_operand.vmem [shape: f32[8,8], index: 3, kind: output, shape index: {}]
  %s4 = sld [smem:[#allocation0]]
  $region22: #{gcnet_forward.37} parent=0
    _
  %s6 = ssub.s32 1, %s4
  %s7 = scalar_select 0, %s6, %s4
  // Predicated region
  $region2: #{gcnet_forward.37} parent=0 // pred_check
    _
  $region3: #{gcnet_forward.37} parent=0 // pred_check_branch
    %9 = sbr.rel (0) target = $region5
  $region4: #{gcnet_forward.37} parent=0 // pred_region
    _
  $region5: #{gcnet_forward.37} parent=0 // pred_fallthru
    _
  // Predicated region
  $region6: #{gcnet_forward.37} parent=0 // pred_check
    _
  $region7: #{gcnet_forward.37} parent=0 // pred_check_branch
    %11 = sbr.rel (0) target = $region9
  $region8: #{gcnet_forward.37} parent=0 // pred_region
    _
  $region9: #{gcnet_forward.37} parent=0 // pred_fallthru
    _
  // Predicated region
  $region10: #{gcnet_forward.37} parent=0 // pred_check
    _
  $region11: #{gcnet_forward.37} parent=0 // pred_check_branch
    %13 = sbr.rel (0) target = $region13
  $region12: #{gcnet_forward.37} parent=0 // pred_region
    _
  $region13: #{gcnet_forward.37} parent=0 // pred_fallthru
    _
  %v15 = vld [vmem:[%s0] sm:$0xf]
  %v16 = vld [vmem:[%s1] sm:$0x7]
  %v17 = vld [vmem:[%s2] sm:$0x1]
  %v19 = vperm.slane %v17, 0
  %vm21 = vcmask 48128
  %v23 = vsel %vm21, %v15, 0
  %vm25 = vcmask 1042432
  %v27 = vsel %vm25, %v16, 0
  %29 = vmatpush.bf16.msra.mxu0 0
  %30 = vmatpush.bf16.msra.mxu0 0
  %31 = vmatpush.bf16.msra.mxu0 0
  %32 = vmatpush.bf16.msra.mxu0 0
  %33 = vmatpush.bf16.msra.mxu0 0
  %34 = vmatpush.bf16.msra.mxu0 0
  %35 = vmatpush.bf16.msra.mxu0 0
  %36 = vmatpush.bf16.msra.mxu0 %v27
  %37 = vmatmul.bf16.gmra.mxu0 %v23
  %v38 = vpop.f32.mrf.mxu0
  %v39 = vadd.f32 %v19, %v38
  %v40 = vpop.f32.mrf.mxu0
  %41 = vdwg.mxu0
  %v42 = vmax.f32 %v39, 0.0
  %vm43 = vcmask 64512
  %44 = vst.msk [vmem:[%s3] sm:$0xff] %vm43, %v42
  // Predicated region
  $region14: #{gcnet_forward.37} parent=0 // pred_check
    _
  $region15: #{gcnet_forward.37} parent=0 // pred_check_branch
    %46 = sbr.rel (0) target = $region17
  $region16: #{gcnet_forward.37} parent=0 // pred_region
    _
  $region17: #{gcnet_forward.37} parent=0 // pred_fallthru
    _
  // Predicated region
  $region18: #{gcnet_forward.37} parent=0 // pred_check
    _
  $region19: #{gcnet_forward.37} parent=0 // pred_check_branch
    %48 = sbr.rel (0) target = $region21
  $region20: #{gcnet_forward.37} parent=0 // pred_region
    _
  $region21: #{gcnet_forward.37} parent=0 // pred_fallthru
    _

// kernel: gcnet_forward.38
$region0: #{gcnet_forward.38}
  #allocation0 [shape = 'u32[]', space=smem, size = 0x4, offset = 0x4, fixed_abs, tag = 'smem constant byte address 0x4 - core index']
  #allocation1 [shape = 'u32[72,128]{1,0:T(1,128)}', space=vmem, size = 0x9000, scoped, tag = 'internal scratch']
  %s0 = inlined_call_operand.vmem [shape: bf16[200,648], index: 0, kind: input, shape index: {}]
  %s1 = inlined_call_operand.vmem [shape: bf16[648,32], index: 1, kind: input, shape index: {}]
  %s2 = inlined_call_operand.vmem [shape: f32[1,32], index: 2, kind: input, shape index: {}]
  %s3 = inlined_call_operand.vmem [shape: f32[200,32], index: 3, kind: output, shape index: {}]
  %s4 = sld [smem:[#allocation0]]
  $region22: #{gcnet_forward.38} parent=0
    _
  %s6 = ssub.s32 1, %s4
  %s7 = scalar_select 0, %s6, %s4
  // Predicated region
  $region2: #{gcnet_forward.38} parent=0 // pred_check
    _
  $region3: #{gcnet_forward.38} parent=0 // pred_check_branch
    %9 = sbr.rel (0) target = $region5
  $region4: #{gcnet_forward.38} parent=0 // pred_region
    _
  $region5: #{gcnet_forward.38} parent=0 // pred_fallthru
    _
  // Predicated region
  $region6: #{gcnet_forward.38} parent=0 // pred_check
    _
  $region7: #{gcnet_forward.38} parent=0 // pred_check_branch
    %11 = sbr.rel (0) target = $region9
  $region8: #{gcnet_forward.38} parent=0 // pred_region
    _
  $region9: #{gcnet_forward.38} parent=0 // pred_fallthru
    _
  // Predicated region
  $region10: #{gcnet_forward.38} parent=0 // pred_check
    _
  $region11: #{gcnet_forward.38} parent=0 // pred_check_branch
    %13 = sbr.rel (0) target = $region13
  $region12: #{gcnet_forward.38} parent=0 // pred_region
    _
  $region13: #{gcnet_forward.38} parent=0 // pred_fallthru
    _
  %v15 = vld [vmem:[%s0] sm:$0xff]
  %v16 = vld [vmem:[%s0 + $0x8] sm:$0xff]
  %v17 = vld [vmem:[%s0 + $0x10] sm:$0xff]
  %v18 = vld [vmem:[%s0 + $0x18] sm:$0xff]
  %v19 = vld [vmem:[%s0 + $0x20] sm:$0xff]
  %v20 = vld [vmem:[%s0 + $0x28] sm:$0xff]
  %v21 = vld [vmem:[%s0 + $0x30] sm:$0xff]
  %v22 = vld [vmem:[%s0 + $0x38] sm:$0xff]
  %v23 = vld [vmem:[%s0 + $0x40] sm:$0xff]
  %v24 = vld [vmem:[%s0 + $0x48] sm:$0xff]
  %v25 = vld [vmem:[%s0 + $0x50] sm:$0xff]
  %v26 = vld [vmem:[%s0 + $0x58] sm:$0xff]
  %v27 = vld [vmem:[%s0 + $0x60] sm:$0xff]
  %v28 = vld [vmem:[%s0 + $0x68] sm:$0xff]
  %v29 = vld [vmem:[%s0 + $0x70] sm:$0xff]
  %v30 = vld [vmem:[%s0 + $0x78] sm:$0xff]
  %v31 = vld [vmem:[%s0 + $0x80] sm:$0xff]
  %v32 = vld [vmem:[%s0 + $0x88] sm:$0xff]
  %v33 = vld [vmem:[%s0 + $0x90] sm:$0xff]
  %v34 = vld [vmem:[%s0 + $0x98] sm:$0xff]
  %v35 = vld [vmem:[%s0 + $0xa0] sm:$0xff]
  %v36 = vld [vmem:[%s0 + $0xa8] sm:$0xff]
  %v37 = vld [vmem:[%s0 + $0xb0] sm:$0xff]
  %v38 = vld [vmem:[%s0 + $0xb8] sm:$0xff]
  %v39 = vld [vmem:[%s0 + $0xc0] sm:$0xff]
  %v40 = vld [vmem:[%s0 + $0xc8] sm:$0xff]
  %v41 = vld [vmem:[%s0 + $0xd0] sm:$0xff]
  %v42 = vld [vmem:[%s0 + $0xd8] sm:$0xff]
  %v43 = vld [vmem:[%s0 + $0xe0] sm:$0xff]
  %v44 = vld [vmem:[%s0 + $0xe8] sm:$0xff]
  %v45 = vld [vmem:[%s0 + $0xf0] sm:$0xff]
  %v46 = vld [vmem:[%s0 + $0xf8] sm:$0xff]
  %v47 = vld [vmem:[%s0 + $0x100] sm:$0xff]
  %v48 = vld [vmem:[%s0 + $0x108] sm:$0xff]
  %v49 = vld [vmem:[%s0 + $0x110] sm:$0xff]
  %v50 = vld [vmem:[%s0 + $0x118] sm:$0xff]
  %v51 = vld [vmem:[%s0 + $0x120] sm:$0xff]
  %v52 = vld [vmem:[%s0 + $0x128] sm:$0xff]
  %v53 = vld [vmem:[%s0 + $0x130] sm:$0xff]
  %v54 = vld [vmem:[%s0 + $0x138] sm:$0xff]
  %v55 = vld [vmem:[%s0 + $0x140] sm:$0xff]
  %v56 = vld [vmem:[%s0 + $0x148] sm:$0xff]
  %v57 = vld [vmem:[%s0 + $0x150] sm:$0xff]
  %v58 = vld [vmem:[%s0 + $0x158] sm:$0xff]
  %v59 = vld [vmem:[%s0 + $0x160] sm:$0xff]
  %v60 = vld [vmem:[%s0 + $0x168] sm:$0xff]
  %v61 = vld [vmem:[%s0 + $0x170] sm:$0xff]
  %v62 = vld [vmem:[%s0 + $0x178] sm:$0xff]
  %v63 = vld [vmem:[%s0 + $0x180] sm:$0xff]
  %v64 = vld [vmem:[%s0 + $0x188] sm:$0xff]
  %v65 = vld [vmem:[%s0 + $0x190] sm:$0xff]
  %v66 = vld [vmem:[%s0 + $0x198] sm:$0xff]
  %v67 = vld [vmem:[%s0 + $0x1a0] sm:$0xff]
  %v68 = vld [vmem:[%s0 + $0x1a8] sm:$0xff]
  %v69 = vld [vmem:[%s0 + $0x1b0] sm:$0xff]
  %v70 = vld [vmem:[%s0 + $0x1b8] sm:$0xff]
  %v71 = vld [vmem:[%s0 + $0x1c0] sm:$0xff]
  %v72 = vld [vmem:[%s0 + $0x1c8] sm:$0xff]
  %v73 = vld [vmem:[%s0 + $0x1d0] sm:$0xff]
  %v74 = vld [vmem:[%s0 + $0x1d8] sm:$0xff]
  %v75 = vld [vmem:[%s0 + $0x1e0] sm:$0xff]
  %v76 = vld [vmem:[%s0 + $0x1e8] sm:$0xff]
  %v77 = vld [vmem:[%s0 + $0x1f0] sm:$0xff]
  %v78 = vld [vmem:[%s0 + $0x1f8] sm:$0xff]
  %v79 = vld [vmem:[%s0 + $0x200] sm:$0xff]
  %v80 = vld [vmem:[%s0 + $0x208] sm:$0xff]
  %v81 = vld [vmem:[%s0 + $0x210] sm:$0xff]
  %v82 = vld [vmem:[%s0 + $0x218] sm:$0xff]
  %v83 = vld [vmem:[%s0 + $0x220] sm:$0xff]
  %v84 = vld [vmem:[%s0 + $0x228] sm:$0xff]
  %v85 = vld [vmem:[%s0 + $0x230] sm:$0xff]
  %v86 = vld [vmem:[%s0 + $0x238] sm:$0xff]
  %v87 = vld [vmem:[%s0 + $0x240] sm:$0xff]
  %v88 = vld [vmem:[%s0 + $0x248] sm:$0xff]
  %v89 = vld [vmem:[%s0 + $0x250] sm:$0xff]
  %v90 = vld [vmem:[%s1] sm:$0xf]
  %v91 = vld [vmem:[%s1 + $0x4] sm:$0xf]
  %v92 = vld [vmem:[%s1 + $0x8] sm:$0xf]
  %v93 = vld [vmem:[%s1 + $0xc] sm:$0xf]
  %v94 = vld [vmem:[%s1 + $0x10] sm:$0xf]
  %v95 = vld [vmem:[%s1 + $0x14] sm:$0xf]
  %v96 = vld [vmem:[%s1 + $0x18] sm:$0xf]
  %v97 = vld [vmem:[%s1 + $0x1c] sm:$0xf]
  %v98 = vld [vmem:[%s1 + $0x20] sm:$0xf]
  %v99 = vld [vmem:[%s1 + $0x24] sm:$0xf]
  %v100 = vld [vmem:[%s1 + $0x28] sm:$0xf]
  %v101 = vld [vmem:[%s1 + $0x2c] sm:$0xf]
  %v102 = vld [vmem:[%s1 + $0x30] sm:$0xf]
  %v103 = vld [vmem:[%s1 + $0x34] sm:$0xf]
  %v104 = vld [vmem:[%s1 + $0x38] sm:$0xf]
  %v105 = vld [vmem:[%s1 + $0x3c] sm:$0xf]
  %v106 = vld [vmem:[%s1 + $0x40] sm:$0xf]
  %v107 = vld [vmem:[%s1 + $0x44] sm:$0xf]
  %v108 = vld [vmem:[%s1 + $0x48] sm:$0xf]
  %v109 = vld [vmem:[%s1 + $0x4c] sm:$0xf]
  %v110 = vld [vmem:[%s1 + $0x50] sm:$0xf]
  %v111 = vld [vmem:[%s1 + $0x54] sm:$0xf]
  %v112 = vld [vmem:[%s1 + $0x58] sm:$0xf]
  %v113 = vld [vmem:[%s1 + $0x5c] sm:$0xf]
  %v114 = vld [vmem:[%s1 + $0x60] sm:$0xf]
  %v115 = vld [vmem:[%s1 + $0x64] sm:$0xf]
  %v116 = vld [vmem:[%s1 + $0x68] sm:$0xf]
  %v117 = vld [vmem:[%s1 + $0x6c] sm:$0xf]
  %v118 = vld [vmem:[%s1 + $0x70] sm:$0xf]
  %v119 = vld [vmem:[%s1 + $0x74] sm:$0xf]
  %v120 = vld [vmem:[%s1 + $0x78] sm:$0xf]
  %v121 = vld [vmem:[%s1 + $0x7c] sm:$0xf]
  %v122 = vld [vmem:[%s1 + $0x80] sm:$0xf]
  %v123 = vld [vmem:[%s1 + $0x84] sm:$0xf]
  %v124 = vld [vmem:[%s1 + $0x88] sm:$0xf]
  %v125 = vld [vmem:[%s1 + $0x8c] sm:$0xf]
  %v126 = vld [vmem:[%s1 + $0x90] sm:$0xf]
  %v127 = vld [vmem:[%s1 + $0x94] sm:$0xf]
  %v128 = vld [vmem:[%s1 + $0x98] sm:$0xf]
  %v129 = vld [vmem:[%s1 + $0x9c] sm:$0xf]
  %v130 = vld [vmem:[%s1 + $0xa0] sm:$0xf]
  %v131 = vld [vmem:[%s1 + $0xa4] sm:$0xf]
  %v132 = vld [vmem:[%s1 + $0xa8] sm:$0xf]
  %v133 = vld [vmem:[%s1 + $0xac] sm:$0xf]
  %v134 = vld [vmem:[%s1 + $0xb0] sm:$0xf]
  %v135 = vld [vmem:[%s1 + $0xb4] sm:$0xf]
  %v136 = vld [vmem:[%s1 + $0xb8] sm:$0xf]
  %v137 = vld [vmem:[%s1 + $0xbc] sm:$0xf]
  %v138 = vld [vmem:[%s1 + $0xc0] sm:$0xf]
  %v139 = vld [vmem:[%s1 + $0xc4] sm:$0xf]
  %v140 = vld [vmem:[%s1 + $0xc8] sm:$0xf]
  %v141 = vld [vmem:[%s1 + $0xcc] sm:$0xf]
  %v142 = vld [vmem:[%s1 + $0xd0] sm:$0xf]
  %v143 = vld [vmem:[%s1 + $0xd4] sm:$0xf]
  %v144 = vld [vmem:[%s1 + $0xd8] sm:$0xf]
  %v145 = vld [vmem:[%s1 + $0xdc] sm:$0xf]
  %v146 = vld [vmem:[%s1 + $0xe0] sm:$0xf]
  %v147 = vld [vmem:[%s1 + $0xe4] sm:$0xf]
  %v148 = vld [vmem:[%s1 + $0xe8] sm:$0xf]
  %v149 = vld [vmem:[%s1 + $0xec] sm:$0xf]
  %v150 = vld [vmem:[%s1 + $0xf0] sm:$0xf]
  %v151 = vld [vmem:[%s1 + $0xf4] sm:$0xf]
  %v152 = vld [vmem:[%s1 + $0xf8] sm:$0xf]
  %v153 = vld [vmem:[%s1 + $0xfc] sm:$0xf]
  %v154 = vld [vmem:[%s1 + $0x100] sm:$0xf]
  %v155 = vld [vmem:[%s1 + $0x104] sm:$0xf]
  %v156 = vld [vmem:[%s1 + $0x108] sm:$0xf]
  %v157 = vld [vmem:[%s1 + $0x10c] sm:$0xf]
  %v158 = vld [vmem:[%s1 + $0x110] sm:$0xf]
  %v159 = vld [vmem:[%s1 + $0x114] sm:$0xf]
  %v160 = vld [vmem:[%s1 + $0x118] sm:$0xf]
  %v161 = vld [vmem:[%s1 + $0x11c] sm:$0xf]
  %v162 = vld [vmem:[%s1 + $0x120] sm:$0xf]
  %v163 = vld [vmem:[%s1 + $0x124] sm:$0xf]
  %v164 = vld [vmem:[%s1 + $0x128] sm:$0xf]
  %v165 = vld [vmem:[%s1 + $0x12c] sm:$0xf]
  %v166 = vld [vmem:[%s1 + $0x130] sm:$0xf]
  %v167 = vld [vmem:[%s1 + $0x134] sm:$0xf]
  %v168 = vld [vmem:[%s1 + $0x138] sm:$0xf]
  %v169 = vld [vmem:[%s1 + $0x13c] sm:$0xf]
  %v170 = vld [vmem:[%s1 + $0x140] sm:$0xf]
  %v171 = vld [vmem:[%s2] sm:$0x1]
  %v173 = vperm.slane %v171, 0
  %v250 = vunpack.c.l.b16 %v15
  %v251 = vunpack.c.h.b16 %v15
  %v252 = vunpack.c.l.b16 %v16
  %v253 = vunpack.c.h.b16 %v16
  %v254 = vunpack.c.l.b16 %v17
  %v255 = vunpack.c.h.b16 %v17
  %v256 = vunpack.c.l.b16 %v18
  %v257 = vunpack.c.h.b16 %v18
  %v258 = vunpack.c.l.b16 %v19
  %v259 = vunpack.c.h.b16 %v19
  %v260 = vunpack.c.l.b16 %v20
  %v261 = vunpack.c.h.b16 %v20
  %v262 = vunpack.c.l.b16 %v21
  %v263 = vunpack.c.h.b16 %v21
  %v264 = vunpack.c.l.b16 %v22
  %v265 = vunpack.c.h.b16 %v22
  %v266 = vunpack.c.l.b16 %v23
  %v267 = vunpack.c.h.b16 %v23
  %v268 = vunpack.c.l.b16 %v24
  %v269 = vunpack.c.h.b16 %v24
  %v270 = vunpack.c.l.b16 %v25
  %v271 = vunpack.c.h.b16 %v25
  %v272 = vunpack.c.l.b16 %v26
  %v273 = vunpack.c.h.b16 %v26
  %v274 = vunpack.c.l.b16 %v27
  %v275 = vunpack.c.h.b16 %v27
  %v276 = vunpack.c.l.b16 %v28
  %v277 = vunpack.c.h.b16 %v28
  %v278 = vunpack.c.l.b16 %v29
  %v279 = vunpack.c.h.b16 %v29
  %v280 = vunpack.c.l.b16 %v30
  %v281 = vunpack.c.h.b16 %v30
  %v282 = vunpack.c.l.b16 %v31
  %v283 = vunpack.c.h.b16 %v31
  %v284 = vunpack.c.l.b16 %v32
  %v285 = vunpack.c.h.b16 %v32
  %v286 = vunpack.c.l.b16 %v33
  %v287 = vunpack.c.h.b16 %v33
  %v288 = vunpack.c.l.b16 %v34
  %v289 = vunpack.c.h.b16 %v34
  %v290 = vunpack.c.l.b16 %v35
  %v291 = vunpack.c.h.b16 %v35
  %v292 = vunpack.c.l.b16 %v36
  %v293 = vunpack.c.h.b16 %v36
  %v294 = vunpack.c.l.b16 %v37
  %v295 = vunpack.c.h.b16 %v37
  %v296 = vunpack.c.l.b16 %v38
  %v297 = vunpack.c.h.b16 %v38
  %v298 = vunpack.c.l.b16 %v39
  %v299 = vunpack.c.h.b16 %v39
  %v300 = vunpack.c.l.b16 %v40
  %v301 = vunpack.c.h.b16 %v40
  %v302 = vunpack.c.l.b16 %v41
  %v303 = vunpack.c.h.b16 %v41
  %v304 = vunpack.c.l.b16 %v42
  %v305 = vunpack.c.h.b16 %v42
  %v306 = vunpack.c.l.b16 %v43
  %v307 = vunpack.c.h.b16 %v43
  %v308 = vunpack.c.l.b16 %v44
  %v309 = vunpack.c.h.b16 %v44
  %v310 = vunpack.c.l.b16 %v45
  %v311 = vunpack.c.h.b16 %v45
  %v312 = vunpack.c.l.b16 %v46
  %v313 = vunpack.c.h.b16 %v46
  %v314 = vunpack.c.l.b16 %v47
  %v315 = vunpack.c.h.b16 %v47
  %v316 = vunpack.c.l.b16 %v48
  %v317 = vunpack.c.h.b16 %v48
  %v318 = vunpack.c.l.b16 %v49
  %v319 = vunpack.c.h.b16 %v49
  %v320 = vunpack.c.l.b16 %v50
  %v321 = vunpack.c.h.b16 %v50
  %v322 = vunpack.c.l.b16 %v51
  %v323 = vunpack.c.h.b16 %v51
  %v324 = vunpack.c.l.b16 %v52
  %v325 = vunpack.c.h.b16 %v52
  %v326 = vunpack.c.l.b16 %v53
  %v327 = vunpack.c.h.b16 %v53
  %v328 = vunpack.c.l.b16 %v54
  %v329 = vunpack.c.h.b16 %v54
  %v330 = vunpack.c.l.b16 %v55
  %v331 = vunpack.c.h.b16 %v55
  %v332 = vunpack.c.l.b16 %v56
  %v333 = vunpack.c.h.b16 %v56
  %v334 = vunpack.c.l.b16 %v57
  %v335 = vunpack.c.h.b16 %v57
  %v336 = vunpack.c.l.b16 %v58
  %v337 = vunpack.c.h.b16 %v58
  %v338 = vunpack.c.l.b16 %v59
  %v339 = vunpack.c.h.b16 %v59
  %v340 = vunpack.c.l.b16 %v60
  %v341 = vunpack.c.h.b16 %v60
  %v342 = vunpack.c.l.b16 %v61
  %v343 = vunpack.c.h.b16 %v61
  %v344 = vunpack.c.l.b16 %v62
  %v345 = vunpack.c.h.b16 %v62
  %v346 = vunpack.c.l.b16 %v63
  %v347 = vunpack.c.h.b16 %v63
  %v348 = vunpack.c.l.b16 %v64
  %v349 = vunpack.c.h.b16 %v64
  %v350 = vunpack.c.l.b16 %v65
  %v351 = vunpack.c.h.b16 %v65
  %v352 = vunpack.c.l.b16 %v66
  %v353 = vunpack.c.h.b16 %v66
  %v354 = vunpack.c.l.b16 %v67
  %v355 = vunpack.c.h.b16 %v67
  %v356 = vunpack.c.l.b16 %v68
  %v357 = vunpack.c.h.b16 %v68
  %v358 = vunpack.c.l.b16 %v69
  %v359 = vunpack.c.h.b16 %v69
  %v360 = vunpack.c.l.b16 %v70
  %v361 = vunpack.c.h.b16 %v70
  %v362 = vunpack.c.l.b16 %v71
  %v363 = vunpack.c.h.b16 %v71
  %v364 = vunpack.c.l.b16 %v72
  %v365 = vunpack.c.h.b16 %v72
  %v366 = vunpack.c.l.b16 %v73
  %v367 = vunpack.c.h.b16 %v73
  %v368 = vunpack.c.l.b16 %v74
  %v369 = vunpack.c.h.b16 %v74
  %v370 = vunpack.c.l.b16 %v75
  %v371 = vunpack.c.h.b16 %v75
  %v372 = vunpack.c.l.b16 %v76
  %v373 = vunpack.c.h.b16 %v76
  %v374 = vunpack.c.l.b16 %v77
  %v375 = vunpack.c.h.b16 %v77
  %v376 = vunpack.c.l.b16 %v78
  %v377 = vunpack.c.h.b16 %v78
  %v378 = vunpack.c.l.b16 %v79
  %v379 = vunpack.c.h.b16 %v79
  %v380 = vunpack.c.l.b16 %v80
  %v381 = vunpack.c.h.b16 %v80
  %v382 = vunpack.c.l.b16 %v81
  %v383 = vunpack.c.h.b16 %v81
  %v384 = vunpack.c.l.b16 %v82
  %v385 = vunpack.c.h.b16 %v82
  %v386 = vunpack.c.l.b16 %v83
  %v387 = vunpack.c.h.b16 %v83
  %v388 = vunpack.c.l.b16 %v84
  %v389 = vunpack.c.h.b16 %v84
  %v390 = vunpack.c.l.b16 %v85
  %v391 = vunpack.c.h.b16 %v85
  %v392 = vunpack.c.l.b16 %v86
  %v393 = vunpack.c.h.b16 %v86
  %v394 = vunpack.c.l.b16 %v87
  %v395 = vunpack.c.h.b16 %v87
  %v396 = vunpack.c.l.b16 %v88
  %v397 = vunpack.c.h.b16 %v88
  %v398 = vunpack.c.l.b16 %v89
  %v399 = vunpack.c.h.b16 %v89
  %v400 = vpack.c.b16 %v256, %v250
  %v401 = vpack.c.b16 %v257, %v251
  %v402 = vpack.c.b16 %v258, %v252
  %v403 = vpack.c.b16 %v259, %v253
  %v404 = vpack.c.b16 %v260, %v254
  %v405 = vpack.c.b16 %v261, %v255
  %v406 = vpack.c.b16 %v268, %v262
  %v407 = vpack.c.b16 %v269, %v263
  %v408 = vpack.c.b16 %v270, %v264
  %v409 = vpack.c.b16 %v271, %v265
  %v410 = vpack.c.b16 %v272, %v266
  %v411 = vpack.c.b16 %v273, %v267
  %v412 = vpack.c.b16 %v280, %v274
  %v413 = vpack.c.b16 %v281, %v275
  %v414 = vpack.c.b16 %v282, %v276
  %v415 = vpack.c.b16 %v283, %v277
  %v416 = vpack.c.b16 %v284, %v278
  %v417 = vpack.c.b16 %v285, %v279
  %v418 = vpack.c.b16 %v292, %v286
  %v419 = vpack.c.b16 %v293, %v287
  %v420 = vpack.c.b16 %v294, %v288
  %v421 = vpack.c.b16 %v295, %v289
  %v422 = vpack.c.b16 %v296, %v290
  %v423 = vpack.c.b16 %v297, %v291
  %v424 = vpack.c.b16 %v304, %v298
  %v425 = vpack.c.b16 %v305, %v299
  %v426 = vpack.c.b16 %v306, %v300
  %v427 = vpack.c.b16 %v307, %v301
  %v428 = vpack.c.b16 %v308, %v302
  %v429 = vpack.c.b16 %v309, %v303
  %v430 = vpack.c.b16 %v316, %v310
  %v431 = vpack.c.b16 %v317, %v311
  %v432 = vpack.c.b16 %v318, %v312
  %v433 = vpack.c.b16 %v319, %v313
  %v434 = vpack.c.b16 %v320, %v314
  %v435 = vpack.c.b16 %v321, %v315
  %v436 = vpack.c.b16 %v328, %v322
  %v437 = vpack.c.b16 %v329, %v323
  %v438 = vpack.c.b16 %v330, %v324
  %v439 = vpack.c.b16 %v331, %v325
  %v440 = vpack.c.b16 %v332, %v326
  %v441 = vpack.c.b16 %v333, %v327
  %v442 = vpack.c.b16 %v340, %v334
  %v443 = vpack.c.b16 %v341, %v335
  %v444 = vpack.c.b16 %v342, %v336
  %v445 = vpack.c.b16 %v343, %v337
  %v446 = vpack.c.b16 %v344, %v338
  %v447 = vpack.c.b16 %v345, %v339
  %v448 = vpack.c.b16 %v352, %v346
  %v449 = vpack.c.b16 %v353, %v347
  %v450 = vpack.c.b16 %v354, %v348
  %v451 = vpack.c.b16 %v355, %v349
  %v452 = vpack.c.b16 %v356, %v350
  %v453 = vpack.c.b16 %v357, %v351
  %v454 = vpack.c.b16 %v364, %v358
  %v455 = vpack.c.b16 %v365, %v359
  %v456 = vpack.c.b16 %v366, %v360
  %v457 = vpack.c.b16 %v367, %v361
  %v458 = vpack.c.b16 %v368, %v362
  %v459 = vpack.c.b16 %v369, %v363
  %v460 = vpack.c.b16 %v376, %v370
  %v461 = vpack.c.b16 %v377, %v371
  %v462 = vpack.c.b16 %v378, %v372
  %v463 = vpack.c.b16 %v379, %v373
  %v464 = vpack.c.b16 %v380, %v374
  %v465 = vpack.c.b16 %v381, %v375
  %v466 = vpack.c.b16 %v388, %v382
  %v467 = vpack.c.b16 %v389, %v383
  %v468 = vpack.c.b16 %v390, %v384
  %v469 = vpack.c.b16 %v391, %v385
  %v470 = vpack.c.b16 %v392, %v386
  %v471 = vpack.c.b16 %v393, %v387
  %v472 = vpack.c.b16 %v394, %v394
  %v473 = vpack.c.b16 %v395, %v395
  %v474 = vpack.c.b16 %v396, %v396
  %v475 = vpack.c.b16 %v397, %v397
  %v476 = vpack.c.b16 %v398, %v398
  %v477 = vpack.c.b16 %v399, %v399
  %v624 = vunpack.c.l.b16 %v90
  %v625 = vunpack.c.l.b16 %v91
  %v626 = vunpack.c.l.b16 %v92
  %v627 = vunpack.c.l.b16 %v93
  %v628 = vunpack.c.l.b16 %v94
  %v629 = vunpack.c.l.b16 %v95
  %v630 = vunpack.c.l.b16 %v96
  %v631 = vunpack.c.l.b16 %v97
  %v632 = vunpack.c.l.b16 %v98
  %v633 = vunpack.c.l.b16 %v99
  %v634 = vunpack.c.l.b16 %v100
  %v635 = vunpack.c.l.b16 %v101
  %v636 = vunpack.c.l.b16 %v102
  %v637 = vunpack.c.l.b16 %v103
  %v638 = vunpack.c.l.b16 %v104
  %v639 = vunpack.c.l.b16 %v105
  %v640 = vunpack.c.l.b16 %v106
  %v641 = vunpack.c.l.b16 %v107
  %v642 = vunpack.c.l.b16 %v108
  %v643 = vunpack.c.l.b16 %v109
  %v644 = vunpack.c.l.b16 %v110
  %v645 = vunpack.c.l.b16 %v111
  %v646 = vunpack.c.l.b16 %v112
  %v647 = vunpack.c.l.b16 %v113
  %v648 = vunpack.c.l.b16 %v114
  %v649 = vunpack.c.l.b16 %v115
  %v650 = vunpack.c.l.b16 %v116
  %v651 = vunpack.c.l.b16 %v117
  %v652 = vunpack.c.l.b16 %v118
  %v653 = vunpack.c.l.b16 %v119
  %v654 = vunpack.c.l.b16 %v120
  %v655 = vunpack.c.l.b16 %v121
  %v656 = vunpack.c.l.b16 %v122
  %v657 = vunpack.c.l.b16 %v123
  %v658 = vunpack.c.l.b16 %v124
  %v659 = vunpack.c.l.b16 %v125
  %v660 = vunpack.c.l.b16 %v126
  %v661 = vunpack.c.l.b16 %v127
  %v662 = vunpack.c.l.b16 %v128
  %v663 = vunpack.c.l.b16 %v129
  %v664 = vunpack.c.l.b16 %v130
  %v665 = vunpack.c.l.b16 %v131
  %v666 = vunpack.c.l.b16 %v132
  %v667 = vunpack.c.l.b16 %v133
  %v668 = vunpack.c.l.b16 %v134
  %v669 = vunpack.c.l.b16 %v135
  %v670 = vunpack.c.l.b16 %v136
  %v671 = vunpack.c.l.b16 %v137
  %v672 = vunpack.c.l.b16 %v138
  %v673 = vunpack.c.l.b16 %v139
  %v674 = vunpack.c.l.b16 %v140
  %v675 = vunpack.c.l.b16 %v141
  %v676 = vunpack.c.l.b16 %v142
  %v677 = vunpack.c.l.b16 %v143
  %v678 = vunpack.c.l.b16 %v144
  %v679 = vunpack.c.l.b16 %v145
  %v680 = vunpack.c.l.b16 %v146
  %v681 = vunpack.c.l.b16 %v147
  %v682 = vunpack.c.l.b16 %v148
  %v683 = vunpack.c.l.b16 %v149
  %v684 = vunpack.c.l.b16 %v150
  %v685 = vunpack.c.l.b16 %v151
  %v686 = vunpack.c.l.b16 %v152
  %v687 = vunpack.c.l.b16 %v153
  %v688 = vunpack.c.l.b16 %v154
  %v689 = vunpack.c.l.b16 %v155
  %v690 = vunpack.c.l.b16 %v156
  %v691 = vunpack.c.l.b16 %v157
  %v692 = vunpack.c.l.b16 %v158
  %v693 = vunpack.c.l.b16 %v159
  %v694 = vunpack.c.l.b16 %v160
  %v695 = vunpack.c.l.b16 %v161
  %v696 = vunpack.c.l.b16 %v162
  %v697 = vunpack.c.l.b16 %v163
  %v698 = vunpack.c.l.b16 %v164
  %v699 = vunpack.c.l.b16 %v165
  %v700 = vunpack.c.l.b16 %v166
  %v701 = vunpack.c.l.b16 %v167
  %v702 = vunpack.c.l.b16 %v168
  %v703 = vunpack.c.l.b16 %v169
  %v704 = vunpack.c.l.b16 %v170
  %v705 = vpack.c.b16 %v625, %v624
  %v706 = vpack.c.b16 %v627, %v626
  %v707 = vpack.c.b16 %v629, %v628
  %v708 = vpack.c.b16 %v631, %v630
  %v709 = vpack.c.b16 %v633, %v632
  %v710 = vpack.c.b16 %v635, %v634
  %v711 = vpack.c.b16 %v637, %v636
  %v712 = vpack.c.b16 %v639, %v638
  %v713 = vpack.c.b16 %v641, %v640
  %v714 = vpack.c.b16 %v643, %v642
  %v715 = vpack.c.b16 %v645, %v644
  %v716 = vpack.c.b16 %v647, %v646
  %v717 = vpack.c.b16 %v649, %v648
  %v718 = vpack.c.b16 %v651, %v650
  %v719 = vpack.c.b16 %v653, %v652
  %v720 = vpack.c.b16 %v655, %v654
  %v721 = vpack.c.b16 %v657, %v656
  %v722 = vpack.c.b16 %v659, %v658
  %v723 = vpack.c.b16 %v661, %v660
  %v724 = vpack.c.b16 %v663, %v662
  %v725 = vpack.c.b16 %v665, %v664
  %v726 = vpack.c.b16 %v667, %v666
  %v727 = vpack.c.b16 %v669, %v668
  %v728 = vpack.c.b16 %v671, %v670
  %v729 = vpack.c.b16 %v673, %v672
  %v730 = vpack.c.b16 %v675, %v674
  %v731 = vpack.c.b16 %v677, %v676
  %v732 = vpack.c.b16 %v679, %v678
  %v733 = vpack.c.b16 %v681, %v680
  %v734 = vpack.c.b16 %v683, %v682
  %v735 = vpack.c.b16 %v685, %v684
  %v736 = vpack.c.b16 %v687, %v686
  %v737 = vpack.c.b16 %v689, %v688
  %v738 = vpack.c.b16 %v691, %v690
  %v739 = vpack.c.b16 %v693, %v692
  %v740 = vpack.c.b16 %v695, %v694
  %v741 = vpack.c.b16 %v697, %v696
  %v742 = vpack.c.b16 %v699, %v698
  %v743 = vpack.c.b16 %v701, %v700
  %v744 = vpack.c.b16 %v703, %v702
  %v745 = vpack.c.b16 %v704, %v704
  %vm786 = vcmask 64512
  %v788 = vsel %vm786, %v405, 0
  %v791 = vsel %vm786, %v411, 0
  %v794 = vsel %vm786, %v417, 0
  %v797 = vsel %vm786, %v423, 0
  %v800 = vsel %vm786, %v429, 0
  %v803 = vsel %vm786, %v435, 0
  %v806 = vsel %vm786, %v441, 0
  %v809 = vsel %vm786, %v447, 0
  %v812 = vsel %vm786, %v453, 0
  %v815 = vsel %vm786, %v459, 0
  %v818 = vsel %vm786, %v465, 0
  %v821 = vsel %vm786, %v471, 0
  %v824 = vsel %vm786, %v477, 0
  %vm826 = vcmask 1043456
  %v828 = vsel %vm826, %v745, 0
  %830 = vmatpush.bf16.msra.mxu0 %v712
  %831 = vmatpush.bf16.msra.mxu0 %v711
  %832 = vmatpush.bf16.msra.mxu0 %v710
  %833 = vmatpush.bf16.msra.mxu0 %v709
  %834 = vmatpush.bf16.msra.mxu0 %v708
  %835 = vmatpush.bf16.msra.mxu0 %v707
  %836 = vmatpush.bf16.msra.mxu0 %v706
  %837 = vmatpush.bf16.msra.mxu0 %v705
  %838 = vmatmul.bf16.gmra.mxu0 %v400
  %v839 = vpop.f32.mrf.mxu0
  %v840 = vadd.f32 %v173, %v839
  %v841 = vpop.f32.mrf.mxu0
  %v842 = vadd.f32 %v173, %v841
  %843 = vmatmul.bf16.gmra.mxu0 %v406
  %v844 = vpop.f32.mrf.mxu0
  %v845 = vadd.f32 %v173, %v844
  %v846 = vpop.f32.mrf.mxu0
  %v847 = vadd.f32 %v173, %v846
  %848 = vmatmul.bf16.gmra.mxu0 %v412
  %v849 = vpop.f32.mrf.mxu0
  %v850 = vadd.f32 %v173, %v849
  %v851 = vpop.f32.mrf.mxu0
  %v852 = vadd.f32 %v173, %v851
  %853 = vmatmul.bf16.gmra.mxu0 %v418
  %v854 = vpop.f32.mrf.mxu0
  %v855 = vadd.f32 %v173, %v854
  %v856 = vpop.f32.mrf.mxu0
  %v857 = vadd.f32 %v173, %v856
  %858 = vmatmul.bf16.gmra.mxu0 %v424
  %v859 = vpop.f32.mrf.mxu0
  %v860 = vadd.f32 %v173, %v859
  %v861 = vpop.f32.mrf.mxu0
  %v862 = vadd.f32 %v173, %v861
  %863 = vmatmul.bf16.gmra.mxu0 %v430
  %v864 = vpop.f32.mrf.mxu0
  %v865 = vadd.f32 %v173, %v864
  %v866 = vpop.f32.mrf.mxu0
  %v867 = vadd.f32 %v173, %v866
  %868 = vmatmul.bf16.gmra.mxu0 %v436
  %v869 = vpop.f32.mrf.mxu0
  %v870 = vadd.f32 %v173, %v869
  %v871 = vpop.f32.mrf.mxu0
  %v872 = vadd.f32 %v173, %v871
  %873 = vmatmul.bf16.gmra.mxu0 %v442
  %v874 = vpop.f32.mrf.mxu0
  %v875 = vadd.f32 %v173, %v874
  %v876 = vpop.f32.mrf.mxu0
  %v877 = vadd.f32 %v173, %v876
  %878 = vmatmul.bf16.gmra.mxu0 %v448
  %v879 = vpop.f32.mrf.mxu0
  %v880 = vadd.f32 %v173, %v879
  %v881 = vpop.f32.mrf.mxu0
  %v882 = vadd.f32 %v173, %v881
  %883 = vmatmul.bf16.gmra.mxu0 %v454
  %v884 = vpop.f32.mrf.mxu0
  %v885 = vadd.f32 %v173, %v884
  %v886 = vpop.f32.mrf.mxu0
  %v887 = vadd.f32 %v173, %v886
  %888 = vmatmul.bf16.gmra.mxu0 %v460
  %v889 = vpop.f32.mrf.mxu0
  %v890 = vadd.f32 %v173, %v889
  %v891 = vpop.f32.mrf.mxu0
  %v892 = vadd.f32 %v173, %v891
  %893 = vmatmul.bf16.gmra.mxu0 %v466
  %v894 = vpop.f32.mrf.mxu0
  %v895 = vadd.f32 %v173, %v894
  %v896 = vpop.f32.mrf.mxu0
  %v897 = vadd.f32 %v173, %v896
  %898 = vmatmul.bf16.gmra.mxu0 %v472
  %v899 = vpop.f32.mrf.mxu0
  %v900 = vadd.f32 %v173, %v899
  %v901 = vpop.f32.mrf.mxu0
  %902 = vdwg.mxu0
  %903 = vmatpush.bf16.msra.mxu0 %v720
  %904 = vmatpush.bf16.msra.mxu0 %v719
  %905 = vmatpush.bf16.msra.mxu0 %v718
  %906 = vmatpush.bf16.msra.mxu0 %v717
  %907 = vmatpush.bf16.msra.mxu0 %v716
  %908 = vmatpush.bf16.msra.mxu0 %v715
  %909 = vmatpush.bf16.msra.mxu0 %v714
  %910 = vmatpush.bf16.msra.mxu0 %v713
  %911 = vmatmul.bf16.gmra.mxu0 %v401
  %v912 = vpop.f32.mrf.mxu0
  %v913 = vadd.f32 %v840, %v912
  %v914 = vpop.f32.mrf.mxu0
  %v915 = vadd.f32 %v842, %v914
  %916 = vmatmul.bf16.gmra.mxu0 %v407
  %v917 = vpop.f32.mrf.mxu0
  %v918 = vadd.f32 %v845, %v917
  %v919 = vpop.f32.mrf.mxu0
  %v920 = vadd.f32 %v847, %v919
  %921 = vmatmul.bf16.gmra.mxu0 %v413
  %v922 = vpop.f32.mrf.mxu0
  %v923 = vadd.f32 %v850, %v922
  %v924 = vpop.f32.mrf.mxu0
  %v925 = vadd.f32 %v852, %v924
  %926 = vmatmul.bf16.gmra.mxu0 %v419
  %v927 = vpop.f32.mrf.mxu0
  %v928 = vadd.f32 %v855, %v927
  %v929 = vpop.f32.mrf.mxu0
  %v930 = vadd.f32 %v857, %v929
  %931 = vmatmul.bf16.gmra.mxu0 %v425
  %v932 = vpop.f32.mrf.mxu0
  %v933 = vadd.f32 %v860, %v932
  %v934 = vpop.f32.mrf.mxu0
  %v935 = vadd.f32 %v862, %v934
  %936 = vmatmul.bf16.gmra.mxu0 %v431
  %v937 = vpop.f32.mrf.mxu0
  %v938 = vadd.f32 %v865, %v937
  %v939 = vpop.f32.mrf.mxu0
  %v940 = vadd.f32 %v867, %v939
  %941 = vmatmul.bf16.gmra.mxu0 %v437
  %v942 = vpop.f32.mrf.mxu0
  %v943 = vadd.f32 %v870, %v942
  %v944 = vpop.f32.mrf.mxu0
  %v945 = vadd.f32 %v872, %v944
  %946 = vmatmul.bf16.gmra.mxu0 %v443
  %v947 = vpop.f32.mrf.mxu0
  %v948 = vadd.f32 %v875, %v947
  %v949 = vpop.f32.mrf.mxu0
  %v950 = vadd.f32 %v877, %v949
  %951 = vmatmul.bf16.gmra.mxu0 %v449
  %v952 = vpop.f32.mrf.mxu0
  %v953 = vadd.f32 %v880, %v952
  %v954 = vpop.f32.mrf.mxu0
  %v955 = vadd.f32 %v882, %v954
  %956 = vmatmul.bf16.gmra.mxu0 %v455
  %v957 = vpop.f32.mrf.mxu0
  %v958 = vadd.f32 %v885, %v957
  %v959 = vpop.f32.mrf.mxu0
  %v960 = vadd.f32 %v887, %v959
  %961 = vmatmul.bf16.gmra.mxu0 %v461
  %v962 = vpop.f32.mrf.mxu0
  %v963 = vadd.f32 %v890, %v962
  %v964 = vpop.f32.mrf.mxu0
  %v965 = vadd.f32 %v892, %v964
  %966 = vmatmul.bf16.gmra.mxu0 %v467
  %v967 = vpop.f32.mrf.mxu0
  %v968 = vadd.f32 %v895, %v967
  %v969 = vpop.f32.mrf.mxu0
  %v970 = vadd.f32 %v897, %v969
  %971 = vmatmul.bf16.gmra.mxu0 %v473
  %v972 = vpop.f32.mrf.mxu0
  %v973 = vadd.f32 %v900, %v972
  %v974 = vpop.f32.mrf.mxu0
  %975 = vdwg.mxu0
  %976 = vmatpush.bf16.msra.mxu0 %v728
  %977 = vmatpush.bf16.msra.mxu0 %v727
  %978 = vmatpush.bf16.msra.mxu0 %v726
  %979 = vmatpush.bf16.msra.mxu0 %v725
  %980 = vmatpush.bf16.msra.mxu0 %v724
  %981 = vmatpush.bf16.msra.mxu0 %v723
  %982 = vmatpush.bf16.msra.mxu0 %v722
  %983 = vmatpush.bf16.msra.mxu0 %v721
  %984 = vmatmul.bf16.gmra.mxu0 %v402
  %v985 = vpop.f32.mrf.mxu0
  %v986 = vadd.f32 %v913, %v985
  %v987 = vpop.f32.mrf.mxu0
  %v988 = vadd.f32 %v915, %v987
  %989 = vmatmul.bf16.gmra.mxu0 %v408
  %v990 = vpop.f32.mrf.mxu0
  %v991 = vadd.f32 %v918, %v990
  %v992 = vpop.f32.mrf.mxu0
  %v993 = vadd.f32 %v920, %v992
  %994 = vmatmul.bf16.gmra.mxu0 %v414
  %v995 = vpop.f32.mrf.mxu0
  %v996 = vadd.f32 %v923, %v995
  %v997 = vpop.f32.mrf.mxu0
  %v998 = vadd.f32 %v925, %v997
  %999 = vmatmul.bf16.gmra.mxu0 %v420
  %v1000 = vpop.f32.mrf.mxu0
  %v1001 = vadd.f32 %v928, %v1000
  %v1002 = vpop.f32.mrf.mxu0
  %v1003 = vadd.f32 %v930, %v1002
  %1004 = vmatmul.bf16.gmra.mxu0 %v426
  %v1005 = vpop.f32.mrf.mxu0
  %v1006 = vadd.f32 %v933, %v1005
  %v1007 = vpop.f32.mrf.mxu0
  %v1008 = vadd.f32 %v935, %v1007
  %1009 = vmatmul.bf16.gmra.mxu0 %v432
  %v1010 = vpop.f32.mrf.mxu0
  %v1011 = vadd.f32 %v938, %v1010
  %v1012 = vpop.f32.mrf.mxu0
  %v1013 = vadd.f32 %v940, %v1012
  %1014 = vmatmul.bf16.gmra.mxu0 %v438
  %v1015 = vpop.f32.mrf.mxu0
  %v1016 = vadd.f32 %v943, %v1015
  %v1017 = vpop.f32.mrf.mxu0
  %v1018 = vadd.f32 %v945, %v1017
  %1019 = vmatmul.bf16.gmra.mxu0 %v444
  %v1020 = vpop.f32.mrf.mxu0
  %v1021 = vadd.f32 %v948, %v1020
  %v1022 = vpop.f32.mrf.mxu0
  %v1023 = vadd.f32 %v950, %v1022
  %1024 = vmatmul.bf16.gmra.mxu0 %v450
  %v1025 = vpop.f32.mrf.mxu0
  %v1026 = vadd.f32 %v953, %v1025
  %v1027 = vpop.f32.mrf.mxu0
  %v1028 = vadd.f32 %v955, %v1027
  %1029 = vmatmul.bf16.gmra.mxu0 %v456
  %v1030 = vpop.f32.mrf.mxu0
  %v1031 = vadd.f32 %v958, %v1030
  %v1032 = vpop.f32.mrf.mxu0
  %v1033 = vadd.f32 %v960, %v1032
  %1034 = vmatmul.bf16.gmra.mxu0 %v462
  %v1035 = vpop.f32.mrf.mxu0
  %v1036 = vadd.f32 %v963, %v1035
  %v1037 = vpop.f32.mrf.mxu0
  %v1038 = vadd.f32 %v965, %v1037
  %1039 = vmatmul.bf16.gmra.mxu0 %v468
  %v1040 = vpop.f32.mrf.mxu0
  %v1041 = vadd.f32 %v968, %v1040
  %v1042 = vpop.f32.mrf.mxu0
  %v1043 = vadd.f32 %v970, %v1042
  %1044 = vmatmul.bf16.gmra.mxu0 %v474
  %v1045 = vpop.f32.mrf.mxu0
  %v1046 = vadd.f32 %v973, %v1045
  %v1047 = vpop.f32.mrf.mxu0
  %1048 = vdwg.mxu0
  %1049 = vmatpush.bf16.msra.mxu0 %v736
  %1050 = vmatpush.bf16.msra.mxu0 %v735
  %1051 = vmatpush.bf16.msra.mxu0 %v734
  %1052 = vmatpush.bf16.msra.mxu0 %v733
  %1053 = vmatpush.bf16.msra.mxu0 %v732
  %1054 = vmatpush.bf16.msra.mxu0 %v731
  %1055 = vmatpush.bf16.msra.mxu0 %v730
  %1056 = vmatpush.bf16.msra.mxu0 %v729
  %1057 = vmatmul.bf16.gmra.mxu0 %v403
  %v1058 = vpop.f32.mrf.mxu0
  %v1059 = vadd.f32 %v986, %v1058
  %v1060 = vpop.f32.mrf.mxu0
  %v1061 = vadd.f32 %v988, %v1060
  %1062 = vmatmul.bf16.gmra.mxu0 %v409
  %v1063 = vpop.f32.mrf.mxu0
  %v1064 = vadd.f32 %v991, %v1063
  %v1065 = vpop.f32.mrf.mxu0
  %v1066 = vadd.f32 %v993, %v1065
  %1067 = vmatmul.bf16.gmra.mxu0 %v415
  %v1068 = vpop.f32.mrf.mxu0
  %v1069 = vadd.f32 %v996, %v1068
  %v1070 = vpop.f32.mrf.mxu0
  %v1071 = vadd.f32 %v998, %v1070
  %1072 = vmatmul.bf16.gmra.mxu0 %v421
  %v1073 = vpop.f32.mrf.mxu0
  %v1074 = vadd.f32 %v1001, %v1073
  %v1075 = vpop.f32.mrf.mxu0
  %v1076 = vadd.f32 %v1003, %v1075
  %1077 = vmatmul.bf16.gmra.mxu0 %v427
  %v1078 = vpop.f32.mrf.mxu0
  %v1079 = vadd.f32 %v1006, %v1078
  %v1080 = vpop.f32.mrf.mxu0
  %v1081 = vadd.f32 %v1008, %v1080
  %1082 = vmatmul.bf16.gmra.mxu0 %v433
  %v1083 = vpop.f32.mrf.mxu0
  %v1084 = vadd.f32 %v1011, %v1083
  %v1085 = vpop.f32.mrf.mxu0
  %v1086 = vadd.f32 %v1013, %v1085
  %1087 = vmatmul.bf16.gmra.mxu0 %v439
  %v1088 = vpop.f32.mrf.mxu0
  %v1089 = vadd.f32 %v1016, %v1088
  %v1090 = vpop.f32.mrf.mxu0
  %v1091 = vadd.f32 %v1018, %v1090
  %1092 = vmatmul.bf16.gmra.mxu0 %v445
  %v1093 = vpop.f32.mrf.mxu0
  %v1094 = vadd.f32 %v1021, %v1093
  %v1095 = vpop.f32.mrf.mxu0
  %v1096 = vadd.f32 %v1023, %v1095
  %1097 = vmatmul.bf16.gmra.mxu0 %v451
  %v1098 = vpop.f32.mrf.mxu0
  %v1099 = vadd.f32 %v1026, %v1098
  %v1100 = vpop.f32.mrf.mxu0
  %v1101 = vadd.f32 %v1028, %v1100
  %1102 = vmatmul.bf16.gmra.mxu0 %v457
  %v1103 = vpop.f32.mrf.mxu0
  %v1104 = vadd.f32 %v1031, %v1103
  %v1105 = vpop.f32.mrf.mxu0
  %v1106 = vadd.f32 %v1033, %v1105
  %1107 = vmatmul.bf16.gmra.mxu0 %v463
  %v1108 = vpop.f32.mrf.mxu0
  %v1109 = vadd.f32 %v1036, %v1108
  %v1110 = vpop.f32.mrf.mxu0
  %v1111 = vadd.f32 %v1038, %v1110
  %1112 = vmatmul.bf16.gmra.mxu0 %v469
  %v1113 = vpop.f32.mrf.mxu0
  %v1114 = vadd.f32 %v1041, %v1113
  %v1115 = vpop.f32.mrf.mxu0
  %v1116 = vadd.f32 %v1043, %v1115
  %1117 = vmatmul.bf16.gmra.mxu0 %v475
  %v1118 = vpop.f32.mrf.mxu0
  %v1119 = vadd.f32 %v1046, %v1118
  %v1120 = vpop.f32.mrf.mxu0
  %1121 = vdwg.mxu0
  %1122 = vmatpush.bf16.msra.mxu0 %v744
  %1123 = vmatpush.bf16.msra.mxu0 %v743
  %1124 = vmatpush.bf16.msra.mxu0 %v742
  %1125 = vmatpush.bf16.msra.mxu0 %v741
  %1126 = vmatpush.bf16.msra.mxu0 %v740
  %1127 = vmatpush.bf16.msra.mxu0 %v739
  %1128 = vmatpush.bf16.msra.mxu0 %v738
  %1129 = vmatpush.bf16.msra.mxu0 %v737
  %1130 = vmatmul.bf16.gmra.mxu0 %v404
  %v1131 = vpop.f32.mrf.mxu0
  %v1132 = vadd.f32 %v1059, %v1131
  %v1133 = vpop.f32.mrf.mxu0
  %v1134 = vadd.f32 %v1061, %v1133
  %1135 = vmatmul.bf16.gmra.mxu0 %v410
  %v1136 = vpop.f32.mrf.mxu0
  %v1137 = vadd.f32 %v1064, %v1136
  %v1138 = vpop.f32.mrf.mxu0
  %v1139 = vadd.f32 %v1066, %v1138
  %1140 = vmatmul.bf16.gmra.mxu0 %v416
  %v1141 = vpop.f32.mrf.mxu0
  %v1142 = vadd.f32 %v1069, %v1141
  %v1143 = vpop.f32.mrf.mxu0
  %v1144 = vadd.f32 %v1071, %v1143
  %1145 = vmatmul.bf16.gmra.mxu0 %v422
  %v1146 = vpop.f32.mrf.mxu0
  %v1147 = vadd.f32 %v1074, %v1146
  %v1148 = vpop.f32.mrf.mxu0
  %v1149 = vadd.f32 %v1076, %v1148
  %1150 = vmatmul.bf16.gmra.mxu0 %v428
  %v1151 = vpop.f32.mrf.mxu0
  %v1152 = vadd.f32 %v1079, %v1151
  %v1153 = vpop.f32.mrf.mxu0
  %v1154 = vadd.f32 %v1081, %v1153
  %1155 = vmatmul.bf16.gmra.mxu0 %v434
  %v1156 = vpop.f32.mrf.mxu0
  %v1157 = vadd.f32 %v1084, %v1156
  %v1158 = vpop.f32.mrf.mxu0
  %v1159 = vadd.f32 %v1086, %v1158
  %1160 = vmatmul.bf16.gmra.mxu0 %v440
  %v1161 = vpop.f32.mrf.mxu0
  %v1162 = vadd.f32 %v1089, %v1161
  %v1163 = vpop.f32.mrf.mxu0
  %v1164 = vadd.f32 %v1091, %v1163
  %1165 = vmatmul.bf16.gmra.mxu0 %v446
  %v1166 = vpop.f32.mrf.mxu0
  %v1167 = vadd.f32 %v1094, %v1166
  %v1168 = vpop.f32.mrf.mxu0
  %v1169 = vadd.f32 %v1096, %v1168
  %1170 = vmatmul.bf16.gmra.mxu0 %v452
  %v1171 = vpop.f32.mrf.mxu0
  %v1172 = vadd.f32 %v1099, %v1171
  %v1173 = vpop.f32.mrf.mxu0
  %v1174 = vadd.f32 %v1101, %v1173
  %1175 = vmatmul.bf16.gmra.mxu0 %v458
  %v1176 = vpop.f32.mrf.mxu0
  %v1177 = vadd.f32 %v1104, %v1176
  %v1178 = vpop.f32.mrf.mxu0
  %v1179 = vadd.f32 %v1106, %v1178
  %1180 = vmatmul.bf16.gmra.mxu0 %v464
  %v1181 = vpop.f32.mrf.mxu0
  %v1182 = vadd.f32 %v1109, %v1181
  %v1183 = vpop.f32.mrf.mxu0
  %v1184 = vadd.f32 %v1111, %v1183
  %1185 = vmatmul.bf16.gmra.mxu0 %v470
  %v1186 = vpop.f32.mrf.mxu0
  %v1187 = vadd.f32 %v1114, %v1186
  %v1188 = vpop.f32.mrf.mxu0
  %v1189 = vadd.f32 %v1116, %v1188
  %1190 = vmatmul.bf16.gmra.mxu0 %v476
  %v1191 = vpop.f32.mrf.mxu0
  %v1192 = vadd.f32 %v1119, %v1191
  %v1193 = vpop.f32.mrf.mxu0
  %1194 = vdwg.mxu0
  %1195 = vmatpush.bf16.msra.mxu0 0
  %1196 = vmatpush.bf16.msra.mxu0 0
  %1197 = vmatpush.bf16.msra.mxu0 0
  %1198 = vmatpush.bf16.msra.mxu0 0
  %1199 = vmatpush.bf16.msra.mxu0 0
  %1200 = vmatpush.bf16.msra.mxu0 0
  %1201 = vmatpush.bf16.msra.mxu0 0
  %1202 = vmatpush.bf16.msra.mxu0 %v828
  %1203 = vmatmul.bf16.gmra.mxu0 %v788
  %v1204 = vpop.f32.mrf.mxu0
  %v1205 = vadd.f32 %v1132, %v1204
  %v1206 = vpop.f32.mrf.mxu0
  %v1207 = vadd.f32 %v1134, %v1206
  %1208 = vmatmul.bf16.gmra.mxu0 %v791
  %v1209 = vpop.f32.mrf.mxu0
  %v1210 = vadd.f32 %v1137, %v1209
  %v1211 = vpop.f32.mrf.mxu0
  %v1212 = vadd.f32 %v1139, %v1211
  %1213 = vmatmul.bf16.gmra.mxu0 %v794
  %v1214 = vpop.f32.mrf.mxu0
  %v1215 = vadd.f32 %v1142, %v1214
  %v1216 = vpop.f32.mrf.mxu0
  %v1217 = vadd.f32 %v1144, %v1216
  %1218 = vmatmul.bf16.gmra.mxu0 %v797
  %v1219 = vpop.f32.mrf.mxu0
  %v1220 = vadd.f32 %v1147, %v1219
  %v1221 = vpop.f32.mrf.mxu0
  %v1222 = vadd.f32 %v1149, %v1221
  %1223 = vmatmul.bf16.gmra.mxu0 %v800
  %v1224 = vpop.f32.mrf.mxu0
  %v1225 = vadd.f32 %v1152, %v1224
  %v1226 = vpop.f32.mrf.mxu0
  %v1227 = vadd.f32 %v1154, %v1226
  %1228 = vmatmul.bf16.gmra.mxu0 %v803
  %v1229 = vpop.f32.mrf.mxu0
  %v1230 = vadd.f32 %v1157, %v1229
  %v1231 = vpop.f32.mrf.mxu0
  %v1232 = vadd.f32 %v1159, %v1231
  %1233 = vmatmul.bf16.gmra.mxu0 %v806
  %v1234 = vpop.f32.mrf.mxu0
  %v1235 = vadd.f32 %v1162, %v1234
  %v1236 = vpop.f32.mrf.mxu0
  %v1237 = vadd.f32 %v1164, %v1236
  %1238 = vmatmul.bf16.gmra.mxu0 %v809
  %v1239 = vpop.f32.mrf.mxu0
  %v1240 = vadd.f32 %v1167, %v1239
  %v1241 = vpop.f32.mrf.mxu0
  %v1242 = vadd.f32 %v1169, %v1241
  %1243 = vmatmul.bf16.gmra.mxu0 %v812
  %v1244 = vpop.f32.mrf.mxu0
  %v1245 = vadd.f32 %v1172, %v1244
  %v1246 = vpop.f32.mrf.mxu0
  %v1247 = vadd.f32 %v1174, %v1246
  %1248 = vmatmul.bf16.gmra.mxu0 %v815
  %v1249 = vpop.f32.mrf.mxu0
  %v1250 = vadd.f32 %v1177, %v1249
  %v1251 = vpop.f32.mrf.mxu0
  %v1252 = vadd.f32 %v1179, %v1251
  %1253 = vmatmul.bf16.gmra.mxu0 %v818
  %v1254 = vpop.f32.mrf.mxu0
  %v1255 = vadd.f32 %v1182, %v1254
  %v1256 = vpop.f32.mrf.mxu0
  %v1257 = vadd.f32 %v1184, %v1256
  %1258 = vmatmul.bf16.gmra.mxu0 %v821
  %v1259 = vpop.f32.mrf.mxu0
  %v1260 = vadd.f32 %v1187, %v1259
  %v1261 = vpop.f32.mrf.mxu0
  %v1262 = vadd.f32 %v1189, %v1261
  %1263 = vmatmul.bf16.gmra.mxu0 %v824
  %v1264 = vpop.f32.mrf.mxu0
  %v1265 = vadd.f32 %v1192, %v1264
  %v1266 = vpop.f32.mrf.mxu0
  %1267 = vdwg.mxu0
  %v1268 = vmax.f32 %v1205, 0.0
  %v1269 = vmax.f32 %v1207, 0.0
  %v1270 = vmax.f32 %v1210, 0.0
  %v1271 = vmax.f32 %v1212, 0.0
  %v1272 = vmax.f32 %v1215, 0.0
  %v1273 = vmax.f32 %v1217, 0.0
  %v1274 = vmax.f32 %v1220, 0.0
  %v1275 = vmax.f32 %v1222, 0.0
  %v1276 = vmax.f32 %v1225, 0.0
  %v1277 = vmax.f32 %v1227, 0.0
  %v1278 = vmax.f32 %v1230, 0.0
  %v1279 = vmax.f32 %v1232, 0.0
  %v1280 = vmax.f32 %v1235, 0.0
  %v1281 = vmax.f32 %v1237, 0.0
  %v1282 = vmax.f32 %v1240, 0.0
  %v1283 = vmax.f32 %v1242, 0.0
  %v1284 = vmax.f32 %v1245, 0.0
  %v1285 = vmax.f32 %v1247, 0.0
  %v1286 = vmax.f32 %v1250, 0.0
  %v1287 = vmax.f32 %v1252, 0.0
  %v1288 = vmax.f32 %v1255, 0.0
  %v1289 = vmax.f32 %v1257, 0.0
  %v1290 = vmax.f32 %v1260, 0.0
  %v1291 = vmax.f32 %v1262, 0.0
  %v1292 = vmax.f32 %v1265, 0.0
  %vm1293 = vcmask 261120
  %1294 = vst.msk [vmem:[%s3] sm:$0xff] %vm1293, %v1268
  %1295 = vst.msk [vmem:[%s3 + $0x8] sm:$0xff] %vm1293, %v1269
  %1296 = vst.msk [vmem:[%s3 + $0x10] sm:$0xff] %vm1293, %v1270
  %1297 = vst.msk [vmem:[%s3 + $0x18] sm:$0xff] %vm1293, %v1271
  %1298 = vst.msk [vmem:[%s3 + $0x20] sm:$0xff] %vm1293, %v1272
  %1299 = vst.msk [vmem:[%s3 + $0x28] sm:$0xff] %vm1293, %v1273
  %1300 = vst.msk [vmem:[%s3 + $0x30] sm:$0xff] %vm1293, %v1274
  %1301 = vst.msk [vmem:[%s3 + $0x38] sm:$0xff] %vm1293, %v1275
  %1302 = vst.msk [vmem:[%s3 + $0x40] sm:$0xff] %vm1293, %v1276
  %1303 = vst.msk [vmem:[%s3 + $0x48] sm:$0xff] %vm1293, %v1277
  %1304 = vst.msk [vmem:[%s3 + $0x50] sm:$0xff] %vm1293, %v1278
  %1305 = vst.msk [vmem:[%s3 + $0x58] sm:$0xff] %vm1293, %v1279
  %1306 = vst.msk [vmem:[%s3 + $0x60] sm:$0xff] %vm1293, %v1280
  %1307 = vst.msk [vmem:[%s3 + $0x68] sm:$0xff] %vm1293, %v1281
  %1308 = vst.msk [vmem:[%s3 + $0x70] sm:$0xff] %vm1293, %v1282
  %1309 = vst.msk [vmem:[%s3 + $0x78] sm:$0xff] %vm1293, %v1283
  %1310 = vst.msk [vmem:[%s3 + $0x80] sm:$0xff] %vm1293, %v1284
  %1311 = vst.msk [vmem:[%s3 + $0x88] sm:$0xff] %vm1293, %v1285
  %1312 = vst.msk [vmem:[%s3 + $0x90] sm:$0xff] %vm1293, %v1286
  %1313 = vst.msk [vmem:[%s3 + $0x98] sm:$0xff] %vm1293, %v1287
  %1314 = vst.msk [vmem:[%s3 + $0xa0] sm:$0xff] %vm1293, %v1288
  %1315 = vst.msk [vmem:[%s3 + $0xa8] sm:$0xff] %vm1293, %v1289
  %1316 = vst.msk [vmem:[%s3 + $0xb0] sm:$0xff] %vm1293, %v1290
  %1317 = vst.msk [vmem:[%s3 + $0xb8] sm:$0xff] %vm1293, %v1291
  %1318 = vst.msk [vmem:[%s3 + $0xc0] sm:$0xff] %vm1293, %v1292
  // Predicated region
  $region14: #{gcnet_forward.38} parent=0 // pred_check
    _
  $region15: #{gcnet_forward.38} parent=0 // pred_check_branch
    %1320 = sbr.rel (0) target = $region17
  $region16: #{gcnet_forward.38} parent=0 // pred_region
    _
  $region17: #{gcnet_forward.38} parent=0 // pred_fallthru
    _
  // Predicated region
  $region18: #{gcnet_forward.38} parent=0 // pred_check
    _
  $region19: #{gcnet_forward.38} parent=0 // pred_check_branch
    %1322 = sbr.rel (0) target = $region21
  $region20: #{gcnet_forward.38} parent=0 // pred_region
    _
  $region21: #{gcnet_forward.38} parent=0 // pred_fallthru
    _

// kernel: gcnet_forward.39
$region0: #{gcnet_forward.39}
  #allocation0 [shape = 'u32[]', space=smem, size = 0x4, offset = 0x4, fixed_abs, tag = 'smem constant byte address 0x4 - core index']
  #allocation1 [shape = 'u32[72,128]{1,0:T(1,128)}', space=vmem, size = 0x9000, scoped, tag = 'internal scratch']
  %s0 = inlined_call_operand.vmem [shape: bf16[200,936], index: 0, kind: input, shape index: {}]
  %s1 = inlined_call_operand.vmem [shape: bf16[936,32], index: 1, kind: input, shape index: {}]
  %s2 = inlined_call_operand.vmem [shape: f32[1,32], index: 2, kind: input, shape index: {}]
  %s3 = inlined_call_operand.vmem [shape: f32[200,32], index: 3, kind: output, shape index: {}]
  %s4 = sld [smem:[#allocation0]]
  $region22: #{gcnet_forward.39} parent=0
    _
  %s6 = ssub.s32 1, %s4
  %s7 = scalar_select 0, %s6, %s4
  // Predicated region
  $region2: #{gcnet_forward.39} parent=0 // pred_check
    _
  $region3: #{gcnet_forward.39} parent=0 // pred_check_branch
    %9 = sbr.rel (0) target = $region5
  $region4: #{gcnet_forward.39} parent=0 // pred_region
    _
  $region5: #{gcnet_forward.39} parent=0 // pred_fallthru
    _
  // Predicated region
  $region6: #{gcnet_forward.39} parent=0 // pred_check
    _
  $region7: #{gcnet_forward.39} parent=0 // pred_check_branch
    %11 = sbr.rel (0) target = $region9
  $region8: #{gcnet_forward.39} parent=0 // pred_region
    _
  $region9: #{gcnet_forward.39} parent=0 // pred_fallthru
    _
  // Predicated region
  $region10: #{gcnet_forward.39} parent=0 // pred_check
    _
  $region11: #{gcnet_forward.39} parent=0 // pred_check_branch
    %13 = sbr.rel (0) target = $region13
  $region12: #{gcnet_forward.39} parent=0 // pred_region
    _
  $region13: #{gcnet_forward.39} parent=0 // pred_fallthru
    _
  %v15 = vld [vmem:[%s0] sm:$0xff]
  %v16 = vld [vmem:[%s0 + $0x8] sm:$0xff]
  %v17 = vld [vmem:[%s0 + $0x10] sm:$0xff]
  %v18 = vld [vmem:[%s0 + $0x18] sm:$0xff]
  %v19 = vld [vmem:[%s0 + $0x20] sm:$0xff]
  %v20 = vld [vmem:[%s0 + $0x28] sm:$0xff]
  %v21 = vld [vmem:[%s0 + $0x30] sm:$0xff]
  %v22 = vld [vmem:[%s0 + $0x38] sm:$0xff]
  %v23 = vld [vmem:[%s0 + $0x40] sm:$0xff]
  %v24 = vld [vmem:[%s0 + $0x48] sm:$0xff]
  %v25 = vld [vmem:[%s0 + $0x50] sm:$0xff]
  %v26 = vld [vmem:[%s0 + $0x58] sm:$0xff]
  %v27 = vld [vmem:[%s0 + $0x60] sm:$0xff]
  %v28 = vld [vmem:[%s0 + $0x68] sm:$0xff]
  %v29 = vld [vmem:[%s0 + $0x70] sm:$0xff]
  %v30 = vld [vmem:[%s0 + $0x78] sm:$0xff]
  %v31 = vld [vmem:[%s0 + $0x80] sm:$0xff]
  %v32 = vld [vmem:[%s0 + $0x88] sm:$0xff]
  %v33 = vld [vmem:[%s0 + $0x90] sm:$0xff]
  %v34 = vld [vmem:[%s0 + $0x98] sm:$0xff]
  %v35 = vld [vmem:[%s0 + $0xa0] sm:$0xff]
  %v36 = vld [vmem:[%s0 + $0xa8] sm:$0xff]
  %v37 = vld [vmem:[%s0 + $0xb0] sm:$0xff]
  %v38 = vld [vmem:[%s0 + $0xb8] sm:$0xff]
  %v39 = vld [vmem:[%s0 + $0xc0] sm:$0xff]
  %v40 = vld [vmem:[%s0 + $0xc8] sm:$0xff]
  %v41 = vld [vmem:[%s0 + $0xd0] sm:$0xff]
  %v42 = vld [vmem:[%s0 + $0xd8] sm:$0xff]
  %v43 = vld [vmem:[%s0 + $0xe0] sm:$0xff]
  %v44 = vld [vmem:[%s0 + $0xe8] sm:$0xff]
  %v45 = vld [vmem:[%s0 + $0xf0] sm:$0xff]
  %v46 = vld [vmem:[%s0 + $0xf8] sm:$0xff]
  %v47 = vld [vmem:[%s0 + $0x100] sm:$0xff]
  %v48 = vld [vmem:[%s0 + $0x108] sm:$0xff]
  %v49 = vld [vmem:[%s0 + $0x110] sm:$0xff]
  %v50 = vld [vmem:[%s0 + $0x118] sm:$0xff]
  %v51 = vld [vmem:[%s0 + $0x120] sm:$0xff]
  %v52 = vld [vmem:[%s0 + $0x128] sm:$0xff]
  %v53 = vld [vmem:[%s0 + $0x130] sm:$0xff]
  %v54 = vld [vmem:[%s0 + $0x138] sm:$0xff]
  %v55 = vld [vmem:[%s0 + $0x140] sm:$0xff]
  %v56 = vld [vmem:[%s0 + $0x148] sm:$0xff]
  %v57 = vld [vmem:[%s0 + $0x150] sm:$0xff]
  %v58 = vld [vmem:[%s0 + $0x158] sm:$0xff]
  %v59 = vld [vmem:[%s0 + $0x160] sm:$0xff]
  %v60 = vld [vmem:[%s0 + $0x168] sm:$0xff]
  %v61 = vld [vmem:[%s0 + $0x170] sm:$0xff]
  %v62 = vld [vmem:[%s0 + $0x178] sm:$0xff]
  %v63 = vld [vmem:[%s0 + $0x180] sm:$0xff]
  %v64 = vld [vmem:[%s0 + $0x188] sm:$0xff]
  %v65 = vld [vmem:[%s0 + $0x190] sm:$0xff]
  %v66 = vld [vmem:[%s0 + $0x198] sm:$0xff]
  %v67 = vld [vmem:[%s0 + $0x1a0] sm:$0xff]
  %v68 = vld [vmem:[%s0 + $0x1a8] sm:$0xff]
  %v69 = vld [vmem:[%s0 + $0x1b0] sm:$0xff]
  %v70 = vld [vmem:[%s0 + $0x1b8] sm:$0xff]
  %v71 = vld [vmem:[%s0 + $0x1c0] sm:$0xff]
  %v72 = vld [vmem:[%s0 + $0x1c8] sm:$0xff]
  %v73 = vld [vmem:[%s0 + $0x1d0] sm:$0xff]
  %v74 = vld [vmem:[%s0 + $0x1d8] sm:$0xff]
  %v75 = vld [vmem:[%s0 + $0x1e0] sm:$0xff]
  %v76 = vld [vmem:[%s0 + $0x1e8] sm:$0xff]
  %v77 = vld [vmem:[%s0 + $0x1f0] sm:$0xff]
  %v78 = vld [vmem:[%s0 + $0x1f8] sm:$0xff]
  %v79 = vld [vmem:[%s0 + $0x200] sm:$0xff]
  %v80 = vld [vmem:[%s0 + $0x208] sm:$0xff]
  %v81 = vld [vmem:[%s0 + $0x210] sm:$0xff]
  %v82 = vld [vmem:[%s0 + $0x218] sm:$0xff]
  %v83 = vld [vmem:[%s0 + $0x220] sm:$0xff]
  %v84 = vld [vmem:[%s0 + $0x228] sm:$0xff]
  %v85 = vld [vmem:[%s0 + $0x230] sm:$0xff]
  %v86 = vld [vmem:[%s0 + $0x238] sm:$0xff]
  %v87 = vld [vmem:[%s0 + $0x240] sm:$0xff]
  %v88 = vld [vmem:[%s0 + $0x248] sm:$0xff]
  %v89 = vld [vmem:[%s0 + $0x250] sm:$0xff]
  %v90 = vld [vmem:[%s0 + $0x258] sm:$0xff]
  %v91 = vld [vmem:[%s0 + $0x260] sm:$0xff]
  %v92 = vld [vmem:[%s0 + $0x268] sm:$0xff]
  %v93 = vld [vmem:[%s0 + $0x270] sm:$0xff]
  %v94 = vld [vmem:[%s0 + $0x278] sm:$0xff]
  %v95 = vld [vmem:[%s0 + $0x280] sm:$0xff]
  %v96 = vld [vmem:[%s0 + $0x288] sm:$0xff]
  %v97 = vld [vmem:[%s0 + $0x290] sm:$0xff]
  %v98 = vld [vmem:[%s0 + $0x298] sm:$0xff]
  %v99 = vld [vmem:[%s0 + $0x2a0] sm:$0xff]
  %v100 = vld [vmem:[%s0 + $0x2a8] sm:$0xff]
  %v101 = vld [vmem:[%s0 + $0x2b0] sm:$0xff]
  %v102 = vld [vmem:[%s0 + $0x2b8] sm:$0xff]
  %v103 = vld [vmem:[%s0 + $0x2c0] sm:$0xff]
  %v104 = vld [vmem:[%s0 + $0x2c8] sm:$0xff]
  %v105 = vld [vmem:[%s0 + $0x2d0] sm:$0xff]
  %v106 = vld [vmem:[%s0 + $0x2d8] sm:$0xff]
  %v107 = vld [vmem:[%s0 + $0x2e0] sm:$0xff]
  %v108 = vld [vmem:[%s0 + $0x2e8] sm:$0xff]
  %v109 = vld [vmem:[%s0 + $0x2f0] sm:$0xff]
  %v110 = vld [vmem:[%s0 + $0x2f8] sm:$0xff]
  %v111 = vld [vmem:[%s0 + $0x300] sm:$0xff]
  %v112 = vld [vmem:[%s0 + $0x308] sm:$0xff]
  %v113 = vld [vmem:[%s0 + $0x310] sm:$0xff]
  %v114 = vld [vmem:[%s0 + $0x318] sm:$0xff]
  %v115 = vld [vmem:[%s1] sm:$0xf]
  %v116 = vld [vmem:[%s1 + $0x4] sm:$0xf]
  %v117 = vld [vmem:[%s1 + $0x8] sm:$0xf]
  %v118 = vld [vmem:[%s1 + $0xc] sm:$0xf]
  %v119 = vld [vmem:[%s1 + $0x10] sm:$0xf]
  %v120 = vld [vmem:[%s1 + $0x14] sm:$0xf]
  %v121 = vld [vmem:[%s1 + $0x18] sm:$0xf]
  %v122 = vld [vmem:[%s1 + $0x1c] sm:$0xf]
  %v123 = vld [vmem:[%s1 + $0x20] sm:$0xf]
  %v124 = vld [vmem:[%s1 + $0x24] sm:$0xf]
  %v125 = vld [vmem:[%s1 + $0x28] sm:$0xf]
  %v126 = vld [vmem:[%s1 + $0x2c] sm:$0xf]
  %v127 = vld [vmem:[%s1 + $0x30] sm:$0xf]
  %v128 = vld [vmem:[%s1 + $0x34] sm:$0xf]
  %v129 = vld [vmem:[%s1 + $0x38] sm:$0xf]
  %v130 = vld [vmem:[%s1 + $0x3c] sm:$0xf]
  %v131 = vld [vmem:[%s1 + $0x40] sm:$0xf]
  %v132 = vld [vmem:[%s1 + $0x44] sm:$0xf]
  %v133 = vld [vmem:[%s1 + $0x48] sm:$0xf]
  %v134 = vld [vmem:[%s1 + $0x4c] sm:$0xf]
  %v135 = vld [vmem:[%s1 + $0x50] sm:$0xf]
  %v136 = vld [vmem:[%s1 + $0x54] sm:$0xf]
  %v137 = vld [vmem:[%s1 + $0x58] sm:$0xf]
  %v138 = vld [vmem:[%s1 + $0x5c] sm:$0xf]
  %v139 = vld [vmem:[%s1 + $0x60] sm:$0xf]
  %v140 = vld [vmem:[%s1 + $0x64] sm:$0xf]
  %v141 = vld [vmem:[%s1 + $0x68] sm:$0xf]
  %v142 = vld [vmem:[%s1 + $0x6c] sm:$0xf]
  %v143 = vld [vmem:[%s1 + $0x70] sm:$0xf]
  %v144 = vld [vmem:[%s1 + $0x74] sm:$0xf]
  %v145 = vld [vmem:[%s1 + $0x78] sm:$0xf]
  %v146 = vld [vmem:[%s1 + $0x7c] sm:$0xf]
  %v147 = vld [vmem:[%s1 + $0x80] sm:$0xf]
  %v148 = vld [vmem:[%s1 + $0x84] sm:$0xf]
  %v149 = vld [vmem:[%s1 + $0x88] sm:$0xf]
  %v150 = vld [vmem:[%s1 + $0x8c] sm:$0xf]
  %v151 = vld [vmem:[%s1 + $0x90] sm:$0xf]
  %v152 = vld [vmem:[%s1 + $0x94] sm:$0xf]
  %v153 = vld [vmem:[%s1 + $0x98] sm:$0xf]
  %v154 = vld [vmem:[%s1 + $0x9c] sm:$0xf]
  %v155 = vld [vmem:[%s1 + $0xa0] sm:$0xf]
  %v156 = vld [vmem:[%s1 + $0xa4] sm:$0xf]
  %v157 = vld [vmem:[%s1 + $0xa8] sm:$0xf]
  %v158 = vld [vmem:[%s1 + $0xac] sm:$0xf]
  %v159 = vld [vmem:[%s1 + $0xb0] sm:$0xf]
  %v160 = vld [vmem:[%s1 + $0xb4] sm:$0xf]
  %v161 = vld [vmem:[%s1 + $0xb8] sm:$0xf]
  %v162 = vld [vmem:[%s1 + $0xbc] sm:$0xf]
  %v163 = vld [vmem:[%s1 + $0xc0] sm:$0xf]
  %v164 = vld [vmem:[%s1 + $0xc4] sm:$0xf]
  %v165 = vld [vmem:[%s1 + $0xc8] sm:$0xf]
  %v166 = vld [vmem:[%s1 + $0xcc] sm:$0xf]
  %v167 = vld [vmem:[%s1 + $0xd0] sm:$0xf]
  %v168 = vld [vmem:[%s1 + $0xd4] sm:$0xf]
  %v169 = vld [vmem:[%s1 + $0xd8] sm:$0xf]
  %v170 = vld [vmem:[%s1 + $0xdc] sm:$0xf]
  %v171 = vld [vmem:[%s1 + $0xe0] sm:$0xf]
  %v172 = vld [vmem:[%s1 + $0xe4] sm:$0xf]
  %v173 = vld [vmem:[%s1 + $0xe8] sm:$0xf]
  %v174 = vld [vmem:[%s1 + $0xec] sm:$0xf]
  %v175 = vld [vmem:[%s1 + $0xf0] sm:$0xf]
  %v176 = vld [vmem:[%s1 + $0xf4] sm:$0xf]
  %v177 = vld [vmem:[%s1 + $0xf8] sm:$0xf]
  %v178 = vld [vmem:[%s1 + $0xfc] sm:$0xf]
  %v179 = vld [vmem:[%s1 + $0x100] sm:$0xf]
  %v180 = vld [vmem:[%s1 + $0x104] sm:$0xf]
  %v181 = vld [vmem:[%s1 + $0x108] sm:$0xf]
  %v182 = vld [vmem:[%s1 + $0x10c] sm:$0xf]
  %v183 = vld [vmem:[%s1 + $0x110] sm:$0xf]
  %v184 = vld [vmem:[%s1 + $0x114] sm:$0xf]
  %v185 = vld [vmem:[%s1 + $0x118] sm:$0xf]
  %v186 = vld [vmem:[%s1 + $0x11c] sm:$0xf]
  %v187 = vld [vmem:[%s1 + $0x120] sm:$0xf]
  %v188 = vld [vmem:[%s1 + $0x124] sm:$0xf]
  %v189 = vld [vmem:[%s1 + $0x128] sm:$0xf]
  %v190 = vld [vmem:[%s1 + $0x12c] sm:$0xf]
  %v191 = vld [vmem:[%s1 + $0x130] sm:$0xf]
  %v192 = vld [vmem:[%s1 + $0x134] sm:$0xf]
  %v193 = vld [vmem:[%s1 + $0x138] sm:$0xf]
  %v194 = vld [vmem:[%s1 + $0x13c] sm:$0xf]
  %v195 = vld [vmem:[%s1 + $0x140] sm:$0xf]
  %v196 = vld [vmem:[%s1 + $0x144] sm:$0xf]
  %v197 = vld [vmem:[%s1 + $0x148] sm:$0xf]
  %v198 = vld [vmem:[%s1 + $0x14c] sm:$0xf]
  %v199 = vld [vmem:[%s1 + $0x150] sm:$0xf]
  %v200 = vld [vmem:[%s1 + $0x154] sm:$0xf]
  %v201 = vld [vmem:[%s1 + $0x158] sm:$0xf]
  %v202 = vld [vmem:[%s1 + $0x15c] sm:$0xf]
  %v203 = vld [vmem:[%s1 + $0x160] sm:$0xf]
  %v204 = vld [vmem:[%s1 + $0x164] sm:$0xf]
  %v205 = vld [vmem:[%s1 + $0x168] sm:$0xf]
  %v206 = vld [vmem:[%s1 + $0x16c] sm:$0xf]
  %v207 = vld [vmem:[%s1 + $0x170] sm:$0xf]
  %v208 = vld [vmem:[%s1 + $0x174] sm:$0xf]
  %v209 = vld [vmem:[%s1 + $0x178] sm:$0xf]
  %v210 = vld [vmem:[%s1 + $0x17c] sm:$0xf]
  %v211 = vld [vmem:[%s1 + $0x180] sm:$0xf]
  %v212 = vld [vmem:[%s1 + $0x184] sm:$0xf]
  %v213 = vld [vmem:[%s1 + $0x188] sm:$0xf]
  %v214 = vld [vmem:[%s1 + $0x18c] sm:$0xf]
  %v215 = vld [vmem:[%s1 + $0x190] sm:$0xf]
  %v216 = vld [vmem:[%s1 + $0x194] sm:$0xf]
  %v217 = vld [vmem:[%s1 + $0x198] sm:$0xf]
  %v218 = vld [vmem:[%s1 + $0x19c] sm:$0xf]
  %v219 = vld [vmem:[%s1 + $0x1a0] sm:$0xf]
  %v220 = vld [vmem:[%s1 + $0x1a4] sm:$0xf]
  %v221 = vld [vmem:[%s1 + $0x1a8] sm:$0xf]
  %v222 = vld [vmem:[%s1 + $0x1ac] sm:$0xf]
  %v223 = vld [vmem:[%s1 + $0x1b0] sm:$0xf]
  %v224 = vld [vmem:[%s1 + $0x1b4] sm:$0xf]
  %v225 = vld [vmem:[%s1 + $0x1b8] sm:$0xf]
  %v226 = vld [vmem:[%s1 + $0x1bc] sm:$0xf]
  %v227 = vld [vmem:[%s1 + $0x1c0] sm:$0xf]
  %v228 = vld [vmem:[%s1 + $0x1c4] sm:$0xf]
  %v229 = vld [vmem:[%s1 + $0x1c8] sm:$0xf]
  %v230 = vld [vmem:[%s1 + $0x1cc] sm:$0xf]
  %v231 = vld [vmem:[%s1 + $0x1d0] sm:$0xf]
  %v232 = vld [vmem:[%s2] sm:$0x1]
  %v234 = vperm.slane %v232, 0
  %v336 = vunpack.c.l.b16 %v15
  %v337 = vunpack.c.h.b16 %v15
  %v338 = vunpack.c.l.b16 %v16
  %v339 = vunpack.c.h.b16 %v16
  %v340 = vunpack.c.l.b16 %v17
  %v341 = vunpack.c.h.b16 %v17
  %v342 = vunpack.c.l.b16 %v18
  %v343 = vunpack.c.h.b16 %v18
  %v344 = vunpack.c.l.b16 %v19
  %v345 = vunpack.c.h.b16 %v19
  %v346 = vunpack.c.l.b16 %v20
  %v347 = vunpack.c.h.b16 %v20
  %v348 = vunpack.c.l.b16 %v21
  %v349 = vunpack.c.h.b16 %v21
  %v350 = vunpack.c.l.b16 %v22
  %v351 = vunpack.c.h.b16 %v22
  %v352 = vunpack.c.l.b16 %v23
  %v353 = vunpack.c.h.b16 %v23
  %v354 = vunpack.c.l.b16 %v24
  %v355 = vunpack.c.h.b16 %v24
  %v356 = vunpack.c.l.b16 %v25
  %v357 = vunpack.c.h.b16 %v25
  %v358 = vunpack.c.l.b16 %v26
  %v359 = vunpack.c.h.b16 %v26
  %v360 = vunpack.c.l.b16 %v27
  %v361 = vunpack.c.h.b16 %v27
  %v362 = vunpack.c.l.b16 %v28
  %v363 = vunpack.c.h.b16 %v28
  %v364 = vunpack.c.l.b16 %v29
  %v365 = vunpack.c.h.b16 %v29
  %v366 = vunpack.c.l.b16 %v30
  %v367 = vunpack.c.h.b16 %v30
  %v368 = vunpack.c.l.b16 %v31
  %v369 = vunpack.c.h.b16 %v31
  %v370 = vunpack.c.l.b16 %v32
  %v371 = vunpack.c.h.b16 %v32
  %v372 = vunpack.c.l.b16 %v33
  %v373 = vunpack.c.h.b16 %v33
  %v374 = vunpack.c.l.b16 %v34
  %v375 = vunpack.c.h.b16 %v34
  %v376 = vunpack.c.l.b16 %v35
  %v377 = vunpack.c.h.b16 %v35
  %v378 = vunpack.c.l.b16 %v36
  %v379 = vunpack.c.h.b16 %v36
  %v380 = vunpack.c.l.b16 %v37
  %v381 = vunpack.c.h.b16 %v37
  %v382 = vunpack.c.l.b16 %v38
  %v383 = vunpack.c.h.b16 %v38
  %v384 = vunpack.c.l.b16 %v39
  %v385 = vunpack.c.h.b16 %v39
  %v386 = vunpack.c.l.b16 %v40
  %v387 = vunpack.c.h.b16 %v40
  %v388 = vunpack.c.l.b16 %v41
  %v389 = vunpack.c.h.b16 %v41
  %v390 = vunpack.c.l.b16 %v42
  %v391 = vunpack.c.h.b16 %v42
  %v392 = vunpack.c.l.b16 %v43
  %v393 = vunpack.c.h.b16 %v43
  %v394 = vunpack.c.l.b16 %v44
  %v395 = vunpack.c.h.b16 %v44
  %v396 = vunpack.c.l.b16 %v45
  %v397 = vunpack.c.h.b16 %v45
  %v398 = vunpack.c.l.b16 %v46
  %v399 = vunpack.c.h.b16 %v46
  %v400 = vunpack.c.l.b16 %v47
  %v401 = vunpack.c.h.b16 %v47
  %v402 = vunpack.c.l.b16 %v48
  %v403 = vunpack.c.h.b16 %v48
  %v404 = vunpack.c.l.b16 %v49
  %v405 = vunpack.c.h.b16 %v49
  %v406 = vunpack.c.l.b16 %v50
  %v407 = vunpack.c.h.b16 %v50
  %v408 = vunpack.c.l.b16 %v51
  %v409 = vunpack.c.h.b16 %v51
  %v410 = vunpack.c.l.b16 %v52
  %v411 = vunpack.c.h.b16 %v52
  %v412 = vunpack.c.l.b16 %v53
  %v413 = vunpack.c.h.b16 %v53
  %v414 = vunpack.c.l.b16 %v54
  %v415 = vunpack.c.h.b16 %v54
  %v416 = vunpack.c.l.b16 %v55
  %v417 = vunpack.c.h.b16 %v55
  %v418 = vunpack.c.l.b16 %v56
  %v419 = vunpack.c.h.b16 %v56
  %v420 = vunpack.c.l.b16 %v57
  %v421 = vunpack.c.h.b16 %v57
  %v422 = vunpack.c.l.b16 %v58
  %v423 = vunpack.c.h.b16 %v58
  %v424 = vunpack.c.l.b16 %v59
  %v425 = vunpack.c.h.b16 %v59
  %v426 = vunpack.c.l.b16 %v60
  %v427 = vunpack.c.h.b16 %v60
  %v428 = vunpack.c.l.b16 %v61
  %v429 = vunpack.c.h.b16 %v61
  %v430 = vunpack.c.l.b16 %v62
  %v431 = vunpack.c.h.b16 %v62
  %v432 = vunpack.c.l.b16 %v63
  %v433 = vunpack.c.h.b16 %v63
  %v434 = vunpack.c.l.b16 %v64
  %v435 = vunpack.c.h.b16 %v64
  %v436 = vunpack.c.l.b16 %v65
  %v437 = vunpack.c.h.b16 %v65
  %v438 = vunpack.c.l.b16 %v66
  %v439 = vunpack.c.h.b16 %v66
  %v440 = vunpack.c.l.b16 %v67
  %v441 = vunpack.c.h.b16 %v67
  %v442 = vunpack.c.l.b16 %v68
  %v443 = vunpack.c.h.b16 %v68
  %v444 = vunpack.c.l.b16 %v69
  %v445 = vunpack.c.h.b16 %v69
  %v446 = vunpack.c.l.b16 %v70
  %v447 = vunpack.c.h.b16 %v70
  %v448 = vunpack.c.l.b16 %v71
  %v449 = vunpack.c.h.b16 %v71
  %v450 = vunpack.c.l.b16 %v72
  %v451 = vunpack.c.h.b16 %v72
  %v452 = vunpack.c.l.b16 %v73
  %v453 = vunpack.c.h.b16 %v73
  %v454 = vunpack.c.l.b16 %v74
  %v455 = vunpack.c.h.b16 %v74
  %v456 = vunpack.c.l.b16 %v75
  %v457 = vunpack.c.h.b16 %v75
  %v458 = vunpack.c.l.b16 %v76
  %v459 = vunpack.c.h.b16 %v76
  %v460 = vunpack.c.l.b16 %v77
  %v461 = vunpack.c.h.b16 %v77
  %v462 = vunpack.c.l.b16 %v78
  %v463 = vunpack.c.h.b16 %v78
  %v464 = vunpack.c.l.b16 %v79
  %v465 = vunpack.c.h.b16 %v79
  %v466 = vunpack.c.l.b16 %v80
  %v467 = vunpack.c.h.b16 %v80
  %v468 = vunpack.c.l.b16 %v81
  %v469 = vunpack.c.h.b16 %v81
  %v470 = vunpack.c.l.b16 %v82
  %v471 = vunpack.c.h.b16 %v82
  %v472 = vunpack.c.l.b16 %v83
  %v473 = vunpack.c.h.b16 %v83
  %v474 = vunpack.c.l.b16 %v84
  %v475 = vunpack.c.h.b16 %v84
  %v476 = vunpack.c.l.b16 %v85
  %v477 = vunpack.c.h.b16 %v85
  %v478 = vunpack.c.l.b16 %v86
  %v479 = vunpack.c.h.b16 %v86
  %v480 = vunpack.c.l.b16 %v87
  %v481 = vunpack.c.h.b16 %v87
  %v482 = vunpack.c.l.b16 %v88
  %v483 = vunpack.c.h.b16 %v88
  %v484 = vunpack.c.l.b16 %v89
  %v485 = vunpack.c.h.b16 %v89
  %v486 = vunpack.c.l.b16 %v90
  %v487 = vunpack.c.h.b16 %v90
  %v488 = vunpack.c.l.b16 %v91
  %v489 = vunpack.c.h.b16 %v91
  %v490 = vunpack.c.l.b16 %v92
  %v491 = vunpack.c.h.b16 %v92
  %v492 = vunpack.c.l.b16 %v93
  %v493 = vunpack.c.h.b16 %v93
  %v494 = vunpack.c.l.b16 %v94
  %v495 = vunpack.c.h.b16 %v94
  %v496 = vunpack.c.l.b16 %v95
  %v497 = vunpack.c.h.b16 %v95
  %v498 = vunpack.c.l.b16 %v96
  %v499 = vunpack.c.h.b16 %v96
  %v500 = vunpack.c.l.b16 %v97
  %v501 = vunpack.c.h.b16 %v97
  %v502 = vunpack.c.l.b16 %v98
  %v503 = vunpack.c.h.b16 %v98
  %v504 = vunpack.c.l.b16 %v99
  %v505 = vunpack.c.h.b16 %v99
  %v506 = vunpack.c.l.b16 %v100
  %v507 = vunpack.c.h.b16 %v100
  %v508 = vunpack.c.l.b16 %v101
  %v509 = vunpack.c.h.b16 %v101
  %v510 = vunpack.c.l.b16 %v102
  %v511 = vunpack.c.h.b16 %v102
  %v512 = vunpack.c.l.b16 %v103
  %v513 = vunpack.c.h.b16 %v103
  %v514 = vunpack.c.l.b16 %v104
  %v515 = vunpack.c.h.b16 %v104
  %v516 = vunpack.c.l.b16 %v105
  %v517 = vunpack.c.h.b16 %v105
  %v518 = vunpack.c.l.b16 %v106
  %v519 = vunpack.c.h.b16 %v106
  %v520 = vunpack.c.l.b16 %v107
  %v521 = vunpack.c.h.b16 %v107
  %v522 = vunpack.c.l.b16 %v108
  %v523 = vunpack.c.h.b16 %v108
  %v524 = vunpack.c.l.b16 %v109
  %v525 = vunpack.c.h.b16 %v109
  %v526 = vunpack.c.l.b16 %v110
  %v527 = vunpack.c.h.b16 %v110
  %v528 = vunpack.c.l.b16 %v111
  %v529 = vunpack.c.h.b16 %v111
  %v530 = vunpack.c.l.b16 %v112
  %v531 = vunpack.c.h.b16 %v112
  %v532 = vunpack.c.l.b16 %v113
  %v533 = vunpack.c.h.b16 %v113
  %v534 = vunpack.c.l.b16 %v114
  %v535 = vunpack.c.h.b16 %v114
  %v536 = vpack.c.b16 %v344, %v336
  %v537 = vpack.c.b16 %v345, %v337
  %v538 = vpack.c.b16 %v346, %v338
  %v539 = vpack.c.b16 %v347, %v339
  %v540 = vpack.c.b16 %v348, %v340
  %v541 = vpack.c.b16 %v349, %v341
  %v542 = vpack.c.b16 %v350, %v342
  %v543 = vpack.c.b16 %v351, %v343
  %v544 = vpack.c.b16 %v360, %v352
  %v545 = vpack.c.b16 %v361, %v353
  %v546 = vpack.c.b16 %v362, %v354
  %v547 = vpack.c.b16 %v363, %v355
  %v548 = vpack.c.b16 %v364, %v356
  %v549 = vpack.c.b16 %v365, %v357
  %v550 = vpack.c.b16 %v366, %v358
  %v551 = vpack.c.b16 %v367, %v359
  %v552 = vpack.c.b16 %v376, %v368
  %v553 = vpack.c.b16 %v377, %v369
  %v554 = vpack.c.b16 %v378, %v370
  %v555 = vpack.c.b16 %v379, %v371
  %v556 = vpack.c.b16 %v380, %v372
  %v557 = vpack.c.b16 %v381, %v373
  %v558 = vpack.c.b16 %v382, %v374
  %v559 = vpack.c.b16 %v383, %v375
  %v560 = vpack.c.b16 %v392, %v384
  %v561 = vpack.c.b16 %v393, %v385
  %v562 = vpack.c.b16 %v394, %v386
  %v563 = vpack.c.b16 %v395, %v387
  %v564 = vpack.c.b16 %v396, %v388
  %v565 = vpack.c.b16 %v397, %v389
  %v566 = vpack.c.b16 %v398, %v390
  %v567 = vpack.c.b16 %v399, %v391
  %v568 = vpack.c.b16 %v408, %v400
  %v569 = vpack.c.b16 %v409, %v401
  %v570 = vpack.c.b16 %v410, %v402
  %v571 = vpack.c.b16 %v411, %v403
  %v572 = vpack.c.b16 %v412, %v404
  %v573 = vpack.c.b16 %v413, %v405
  %v574 = vpack.c.b16 %v414, %v406
  %v575 = vpack.c.b16 %v415, %v407
  %v576 = vpack.c.b16 %v424, %v416
  %v577 = vpack.c.b16 %v425, %v417
  %v578 = vpack.c.b16 %v426, %v418
  %v579 = vpack.c.b16 %v427, %v419
  %v580 = vpack.c.b16 %v428, %v420
  %v581 = vpack.c.b16 %v429, %v421
  %v582 = vpack.c.b16 %v430, %v422
  %v583 = vpack.c.b16 %v431, %v423
  %v584 = vpack.c.b16 %v440, %v432
  %v585 = vpack.c.b16 %v441, %v433
  %v586 = vpack.c.b16 %v442, %v434
  %v587 = vpack.c.b16 %v443, %v435
  %v588 = vpack.c.b16 %v444, %v436
  %v589 = vpack.c.b16 %v445, %v437
  %v590 = vpack.c.b16 %v446, %v438
  %v591 = vpack.c.b16 %v447, %v439
  %v592 = vpack.c.b16 %v456, %v448
  %v593 = vpack.c.b16 %v457, %v449
  %v594 = vpack.c.b16 %v458, %v450
  %v595 = vpack.c.b16 %v459, %v451
  %v596 = vpack.c.b16 %v460, %v452
  %v597 = vpack.c.b16 %v461, %v453
  %v598 = vpack.c.b16 %v462, %v454
  %v599 = vpack.c.b16 %v463, %v455
  %v600 = vpack.c.b16 %v472, %v464
  %v601 = vpack.c.b16 %v473, %v465
  %v602 = vpack.c.b16 %v474, %v466
  %v603 = vpack.c.b16 %v475, %v467
  %v604 = vpack.c.b16 %v476, %v468
  %v605 = vpack.c.b16 %v477, %v469
  %v606 = vpack.c.b16 %v478, %v470
  %v607 = vpack.c.b16 %v479, %v471
  %v608 = vpack.c.b16 %v488, %v480
  %v609 = vpack.c.b16 %v489, %v481
  %v610 = vpack.c.b16 %v490, %v482
  %v611 = vpack.c.b16 %v491, %v483
  %v612 = vpack.c.b16 %v492, %v484
  %v613 = vpack.c.b16 %v493, %v485
  %v614 = vpack.c.b16 %v494, %v486
  %v615 = vpack.c.b16 %v495, %v487
  %v616 = vpack.c.b16 %v504, %v496
  %v617 = vpack.c.b16 %v505, %v497
  %v618 = vpack.c.b16 %v506, %v498
  %v619 = vpack.c.b16 %v507, %v499
  %v620 = vpack.c.b16 %v508, %v500
  %v621 = vpack.c.b16 %v509, %v501
  %v622 = vpack.c.b16 %v510, %v502
  %v623 = vpack.c.b16 %v511, %v503
  %v624 = vpack.c.b16 %v520, %v512
  %v625 = vpack.c.b16 %v521, %v513
  %v626 = vpack.c.b16 %v522, %v514
  %v627 = vpack.c.b16 %v523, %v515
  %v628 = vpack.c.b16 %v524, %v516
  %v629 = vpack.c.b16 %v525, %v517
  %v630 = vpack.c.b16 %v526, %v518
  %v631 = vpack.c.b16 %v527, %v519
  %v632 = vpack.c.b16 %v528, %v528
  %v633 = vpack.c.b16 %v529, %v529
  %v634 = vpack.c.b16 %v530, %v530
  %v635 = vpack.c.b16 %v531, %v531
  %v636 = vpack.c.b16 %v532, %v532
  %v637 = vpack.c.b16 %v533, %v533
  %v638 = vpack.c.b16 %v534, %v534
  %v639 = vpack.c.b16 %v535, %v535
  %v848 = vunpack.c.l.b16 %v115
  %v849 = vunpack.c.l.b16 %v116
  %v850 = vunpack.c.l.b16 %v117
  %v851 = vunpack.c.l.b16 %v118
  %v852 = vunpack.c.l.b16 %v119
  %v853 = vunpack.c.l.b16 %v120
  %v854 = vunpack.c.l.b16 %v121
  %v855 = vunpack.c.l.b16 %v122
  %v856 = vunpack.c.l.b16 %v123
  %v857 = vunpack.c.l.b16 %v124
  %v858 = vunpack.c.l.b16 %v125
  %v859 = vunpack.c.l.b16 %v126
  %v860 = vunpack.c.l.b16 %v127
  %v861 = vunpack.c.l.b16 %v128
  %v862 = vunpack.c.l.b16 %v129
  %v863 = vunpack.c.l.b16 %v130
  %v864 = vunpack.c.l.b16 %v131
  %v865 = vunpack.c.l.b16 %v132
  %v866 = vunpack.c.l.b16 %v133
  %v867 = vunpack.c.l.b16 %v134
  %v868 = vunpack.c.l.b16 %v135
  %v869 = vunpack.c.l.b16 %v136
  %v870 = vunpack.c.l.b16 %v137
  %v871 = vunpack.c.l.b16 %v138
  %v872 = vunpack.c.l.b16 %v139
  %v873 = vunpack.c.l.b16 %v140
  %v874 = vunpack.c.l.b16 %v141
  %v875 = vunpack.c.l.b16 %v142
  %v876 = vunpack.c.l.b16 %v143
  %v877 = vunpack.c.l.b16 %v144
  %v878 = vunpack.c.l.b16 %v145
  %v879 = vunpack.c.l.b16 %v146
  %v880 = vunpack.c.l.b16 %v147
  %v881 = vunpack.c.l.b16 %v148
  %v882 = vunpack.c.l.b16 %v149
  %v883 = vunpack.c.l.b16 %v150
  %v884 = vunpack.c.l.b16 %v151
  %v885 = vunpack.c.l.b16 %v152
  %v886 = vunpack.c.l.b16 %v153
  %v887 = vunpack.c.l.b16 %v154
  %v888 = vunpack.c.l.b16 %v155
  %v889 = vunpack.c.l.b16 %v156
  %v890 = vunpack.c.l.b16 %v157
  %v891 = vunpack.c.l.b16 %v158
  %v892 = vunpack.c.l.b16 %v159
  %v893 = vunpack.c.l.b16 %v160
  %v894 = vunpack.c.l.b16 %v161
  %v895 = vunpack.c.l.b16 %v162
  %v896 = vunpack.c.l.b16 %v163
  %v897 = vunpack.c.l.b16 %v164
  %v898 = vunpack.c.l.b16 %v165
  %v899 = vunpack.c.l.b16 %v166
  %v900 = vunpack.c.l.b16 %v167
  %v901 = vunpack.c.l.b16 %v168
  %v902 = vunpack.c.l.b16 %v169
  %v903 = vunpack.c.l.b16 %v170
  %v904 = vunpack.c.l.b16 %v171
  %v905 = vunpack.c.l.b16 %v172
  %v906 = vunpack.c.l.b16 %v173
  %v907 = vunpack.c.l.b16 %v174
  %v908 = vunpack.c.l.b16 %v175
  %v909 = vunpack.c.l.b16 %v176
  %v910 = vunpack.c.l.b16 %v177
  %v911 = vunpack.c.l.b16 %v178
  %v912 = vunpack.c.l.b16 %v179
  %v913 = vunpack.c.l.b16 %v180
  %v914 = vunpack.c.l.b16 %v181
  %v915 = vunpack.c.l.b16 %v182
  %v916 = vunpack.c.l.b16 %v183
  %v917 = vunpack.c.l.b16 %v184
  %v918 = vunpack.c.l.b16 %v185
  %v919 = vunpack.c.l.b16 %v186
  %v920 = vunpack.c.l.b16 %v187
  %v921 = vunpack.c.l.b16 %v188
  %v922 = vunpack.c.l.b16 %v189
  %v923 = vunpack.c.l.b16 %v190
  %v924 = vunpack.c.l.b16 %v191
  %v925 = vunpack.c.l.b16 %v192
  %v926 = vunpack.c.l.b16 %v193
  %v927 = vunpack.c.l.b16 %v194
  %v928 = vunpack.c.l.b16 %v195
  %v929 = vunpack.c.l.b16 %v196
  %v930 = vunpack.c.l.b16 %v197
  %v931 = vunpack.c.l.b16 %v198
  %v932 = vunpack.c.l.b16 %v199
  %v933 = vunpack.c.l.b16 %v200
  %v934 = vunpack.c.l.b16 %v201
  %v935 = vunpack.c.l.b16 %v202
  %v936 = vunpack.c.l.b16 %v203
  %v937 = vunpack.c.l.b16 %v204
  %v938 = vunpack.c.l.b16 %v205
  %v939 = vunpack.c.l.b16 %v206
  %v940 = vunpack.c.l.b16 %v207
  %v941 = vunpack.c.l.b16 %v208
  %v942 = vunpack.c.l.b16 %v209
  %v943 = vunpack.c.l.b16 %v210
  %v944 = vunpack.c.l.b16 %v211
  %v945 = vunpack.c.l.b16 %v212
  %v946 = vunpack.c.l.b16 %v213
  %v947 = vunpack.c.l.b16 %v214
  %v948 = vunpack.c.l.b16 %v215
  %v949 = vunpack.c.l.b16 %v216
  %v950 = vunpack.c.l.b16 %v217
  %v951 = vunpack.c.l.b16 %v218
  %v952 = vunpack.c.l.b16 %v219
  %v953 = vunpack.c.l.b16 %v220
  %v954 = vunpack.c.l.b16 %v221
  %v955 = vunpack.c.l.b16 %v222
  %v956 = vunpack.c.l.b16 %v223
  %v957 = vunpack.c.l.b16 %v224
  %v958 = vunpack.c.l.b16 %v225
  %v959 = vunpack.c.l.b16 %v226
  %v960 = vunpack.c.l.b16 %v227
  %v961 = vunpack.c.l.b16 %v228
  %v962 = vunpack.c.l.b16 %v229
  %v963 = vunpack.c.l.b16 %v230
  %v964 = vunpack.c.l.b16 %v231
  %v965 = vpack.c.b16 %v849, %v848
  %v966 = vpack.c.b16 %v851, %v850
  %v967 = vpack.c.b16 %v853, %v852
  %v968 = vpack.c.b16 %v855, %v854
  %v969 = vpack.c.b16 %v857, %v856
  %v970 = vpack.c.b16 %v859, %v858
  %v971 = vpack.c.b16 %v861, %v860
  %v972 = vpack.c.b16 %v863, %v862
  %v973 = vpack.c.b16 %v865, %v864
  %v974 = vpack.c.b16 %v867, %v866
  %v975 = vpack.c.b16 %v869, %v868
  %v976 = vpack.c.b16 %v871, %v870
  %v977 = vpack.c.b16 %v873, %v872
  %v978 = vpack.c.b16 %v875, %v874
  %v979 = vpack.c.b16 %v877, %v876
  %v980 = vpack.c.b16 %v879, %v878
  %v981 = vpack.c.b16 %v881, %v880
  %v982 = vpack.c.b16 %v883, %v882
  %v983 = vpack.c.b16 %v885, %v884
  %v984 = vpack.c.b16 %v887, %v886
  %v985 = vpack.c.b16 %v889, %v888
  %v986 = vpack.c.b16 %v891, %v890
  %v987 = vpack.c.b16 %v893, %v892
  %v988 = vpack.c.b16 %v895, %v894
  %v989 = vpack.c.b16 %v897, %v896
  %v990 = vpack.c.b16 %v899, %v898
  %v991 = vpack.c.b16 %v901, %v900
  %v992 = vpack.c.b16 %v903, %v902
  %v993 = vpack.c.b16 %v905, %v904
  %v994 = vpack.c.b16 %v907, %v906
  %v995 = vpack.c.b16 %v909, %v908
  %v996 = vpack.c.b16 %v911, %v910
  %v997 = vpack.c.b16 %v913, %v912
  %v998 = vpack.c.b16 %v915, %v914
  %v999 = vpack.c.b16 %v917, %v916
  %v1000 = vpack.c.b16 %v919, %v918
  %v1001 = vpack.c.b16 %v921, %v920
  %v1002 = vpack.c.b16 %v923, %v922
  %v1003 = vpack.c.b16 %v925, %v924
  %v1004 = vpack.c.b16 %v927, %v926
  %v1005 = vpack.c.b16 %v929, %v928
  %v1006 = vpack.c.b16 %v931, %v930
  %v1007 = vpack.c.b16 %v933, %v932
  %v1008 = vpack.c.b16 %v935, %v934
  %v1009 = vpack.c.b16 %v937, %v936
  %v1010 = vpack.c.b16 %v939, %v938
  %v1011 = vpack.c.b16 %v941, %v940
  %v1012 = vpack.c.b16 %v943, %v942
  %v1013 = vpack.c.b16 %v945, %v944
  %v1014 = vpack.c.b16 %v947, %v946
  %v1015 = vpack.c.b16 %v949, %v948
  %v1016 = vpack.c.b16 %v951, %v950
  %v1017 = vpack.c.b16 %v953, %v952
  %v1018 = vpack.c.b16 %v955, %v954
  %v1019 = vpack.c.b16 %v957, %v956
  %v1020 = vpack.c.b16 %v959, %v958
  %v1021 = vpack.c.b16 %v961, %v960
  %v1022 = vpack.c.b16 %v963, %v962
  %v1023 = vpack.c.b16 %v964, %v964
  %vm1082 = vcmask 326656
  %v1084 = vsel %vm1082, %v543, 0
  %v1087 = vsel %vm1082, %v551, 0
  %v1090 = vsel %vm1082, %v559, 0
  %v1093 = vsel %vm1082, %v567, 0
  %v1096 = vsel %vm1082, %v575, 0
  %v1099 = vsel %vm1082, %v583, 0
  %v1102 = vsel %vm1082, %v591, 0
  %v1105 = vsel %vm1082, %v599, 0
  %v1108 = vsel %vm1082, %v607, 0
  %v1111 = vsel %vm1082, %v615, 0
  %v1114 = vsel %vm1082, %v623, 0
  %v1117 = vsel %vm1082, %v631, 0
  %v1120 = vsel %vm1082, %v639, 0
  %vm1122 = vcmask 1043456
  %v1124 = vsel %vm1122, %v1023, 0
  %1126 = vmatpush.bf16.msra.mxu0 %v972
  %1127 = vmatpush.bf16.msra.mxu0 %v971
  %1128 = vmatpush.bf16.msra.mxu0 %v970
  %1129 = vmatpush.bf16.msra.mxu0 %v969
  %1130 = vmatpush.bf16.msra.mxu0 %v968
  %1131 = vmatpush.bf16.msra.mxu0 %v967
  %1132 = vmatpush.bf16.msra.mxu0 %v966
  %1133 = vmatpush.bf16.msra.mxu0 %v965
  %1134 = vmatmul.bf16.gmra.mxu0 %v536
  %v1135 = vpop.f32.mrf.mxu0
  %v1136 = vadd.f32 %v234, %v1135
  %v1137 = vpop.f32.mrf.mxu0
  %v1138 = vadd.f32 %v234, %v1137
  %1139 = vmatmul.bf16.gmra.mxu0 %v544
  %v1140 = vpop.f32.mrf.mxu0
  %v1141 = vadd.f32 %v234, %v1140
  %v1142 = vpop.f32.mrf.mxu0
  %v1143 = vadd.f32 %v234, %v1142
  %1144 = vmatmul.bf16.gmra.mxu0 %v552
  %v1145 = vpop.f32.mrf.mxu0
  %v1146 = vadd.f32 %v234, %v1145
  %v1147 = vpop.f32.mrf.mxu0
  %v1148 = vadd.f32 %v234, %v1147
  %1149 = vmatmul.bf16.gmra.mxu0 %v560
  %v1150 = vpop.f32.mrf.mxu0
  %v1151 = vadd.f32 %v234, %v1150
  %v1152 = vpop.f32.mrf.mxu0
  %v1153 = vadd.f32 %v234, %v1152
  %1154 = vmatmul.bf16.gmra.mxu0 %v568
  %v1155 = vpop.f32.mrf.mxu0
  %v1156 = vadd.f32 %v234, %v1155
  %v1157 = vpop.f32.mrf.mxu0
  %v1158 = vadd.f32 %v234, %v1157
  %1159 = vmatmul.bf16.gmra.mxu0 %v576
  %v1160 = vpop.f32.mrf.mxu0
  %v1161 = vadd.f32 %v234, %v1160
  %v1162 = vpop.f32.mrf.mxu0
  %v1163 = vadd.f32 %v234, %v1162
  %1164 = vmatmul.bf16.gmra.mxu0 %v584
  %v1165 = vpop.f32.mrf.mxu0
  %v1166 = vadd.f32 %v234, %v1165
  %v1167 = vpop.f32.mrf.mxu0
  %v1168 = vadd.f32 %v234, %v1167
  %1169 = vmatmul.bf16.gmra.mxu0 %v592
  %v1170 = vpop.f32.mrf.mxu0
  %v1171 = vadd.f32 %v234, %v1170
  %v1172 = vpop.f32.mrf.mxu0
  %v1173 = vadd.f32 %v234, %v1172
  %1174 = vmatmul.bf16.gmra.mxu0 %v600
  %v1175 = vpop.f32.mrf.mxu0
  %v1176 = vadd.f32 %v234, %v1175
  %v1177 = vpop.f32.mrf.mxu0
  %v1178 = vadd.f32 %v234, %v1177
  %1179 = vmatmul.bf16.gmra.mxu0 %v608
  %v1180 = vpop.f32.mrf.mxu0
  %v1181 = vadd.f32 %v234, %v1180
  %v1182 = vpop.f32.mrf.mxu0
  %v1183 = vadd.f32 %v234, %v1182
  %1184 = vmatmul.bf16.gmra.mxu0 %v616
  %v1185 = vpop.f32.mrf.mxu0
  %v1186 = vadd.f32 %v234, %v1185
  %v1187 = vpop.f32.mrf.mxu0
  %v1188 = vadd.f32 %v234, %v1187
  %1189 = vmatmul.bf16.gmra.mxu0 %v624
  %v1190 = vpop.f32.mrf.mxu0
  %v1191 = vadd.f32 %v234, %v1190
  %v1192 = vpop.f32.mrf.mxu0
  %v1193 = vadd.f32 %v234, %v1192
  %1194 = vmatmul.bf16.gmra.mxu0 %v632
  %v1195 = vpop.f32.mrf.mxu0
  %v1196 = vadd.f32 %v234, %v1195
  %v1197 = vpop.f32.mrf.mxu0
  %1198 = vdwg.mxu0
  %1199 = vmatpush.bf16.msra.mxu0 %v980
  %1200 = vmatpush.bf16.msra.mxu0 %v979
  %1201 = vmatpush.bf16.msra.mxu0 %v978
  %1202 = vmatpush.bf16.msra.mxu0 %v977
  %1203 = vmatpush.bf16.msra.mxu0 %v976
  %1204 = vmatpush.bf16.msra.mxu0 %v975
  %1205 = vmatpush.bf16.msra.mxu0 %v974
  %1206 = vmatpush.bf16.msra.mxu0 %v973
  %1207 = vmatmul.bf16.gmra.mxu0 %v537
  %v1208 = vpop.f32.mrf.mxu0
  %v1209 = vadd.f32 %v1136, %v1208
  %v1210 = vpop.f32.mrf.mxu0
  %v1211 = vadd.f32 %v1138, %v1210
  %1212 = vmatmul.bf16.gmra.mxu0 %v545
  %v1213 = vpop.f32.mrf.mxu0
  %v1214 = vadd.f32 %v1141, %v1213
  %v1215 = vpop.f32.mrf.mxu0
  %v1216 = vadd.f32 %v1143, %v1215
  %1217 = vmatmul.bf16.gmra.mxu0 %v553
  %v1218 = vpop.f32.mrf.mxu0
  %v1219 = vadd.f32 %v1146, %v1218
  %v1220 = vpop.f32.mrf.mxu0
  %v1221 = vadd.f32 %v1148, %v1220
  %1222 = vmatmul.bf16.gmra.mxu0 %v561
  %v1223 = vpop.f32.mrf.mxu0
  %v1224 = vadd.f32 %v1151, %v1223
  %v1225 = vpop.f32.mrf.mxu0
  %v1226 = vadd.f32 %v1153, %v1225
  %1227 = vmatmul.bf16.gmra.mxu0 %v569
  %v1228 = vpop.f32.mrf.mxu0
  %v1229 = vadd.f32 %v1156, %v1228
  %v1230 = vpop.f32.mrf.mxu0
  %v1231 = vadd.f32 %v1158, %v1230
  %1232 = vmatmul.bf16.gmra.mxu0 %v577
  %v1233 = vpop.f32.mrf.mxu0
  %v1234 = vadd.f32 %v1161, %v1233
  %v1235 = vpop.f32.mrf.mxu0
  %v1236 = vadd.f32 %v1163, %v1235
  %1237 = vmatmul.bf16.gmra.mxu0 %v585
  %v1238 = vpop.f32.mrf.mxu0
  %v1239 = vadd.f32 %v1166, %v1238
  %v1240 = vpop.f32.mrf.mxu0
  %v1241 = vadd.f32 %v1168, %v1240
  %1242 = vmatmul.bf16.gmra.mxu0 %v593
  %v1243 = vpop.f32.mrf.mxu0
  %v1244 = vadd.f32 %v1171, %v1243
  %v1245 = vpop.f32.mrf.mxu0
  %v1246 = vadd.f32 %v1173, %v1245
  %1247 = vmatmul.bf16.gmra.mxu0 %v601
  %v1248 = vpop.f32.mrf.mxu0
  %v1249 = vadd.f32 %v1176, %v1248
  %v1250 = vpop.f32.mrf.mxu0
  %v1251 = vadd.f32 %v1178, %v1250
  %1252 = vmatmul.bf16.gmra.mxu0 %v609
  %v1253 = vpop.f32.mrf.mxu0
  %v1254 = vadd.f32 %v1181, %v1253
  %v1255 = vpop.f32.mrf.mxu0
  %v1256 = vadd.f32 %v1183, %v1255
  %1257 = vmatmul.bf16.gmra.mxu0 %v617
  %v1258 = vpop.f32.mrf.mxu0
  %v1259 = vadd.f32 %v1186, %v1258
  %v1260 = vpop.f32.mrf.mxu0
  %v1261 = vadd.f32 %v1188, %v1260
  %1262 = vmatmul.bf16.gmra.mxu0 %v625
  %v1263 = vpop.f32.mrf.mxu0
  %v1264 = vadd.f32 %v1191, %v1263
  %v1265 = vpop.f32.mrf.mxu0
  %v1266 = vadd.f32 %v1193, %v1265
  %1267 = vmatmul.bf16.gmra.mxu0 %v633
  %v1268 = vpop.f32.mrf.mxu0
  %v1269 = vadd.f32 %v1196, %v1268
  %v1270 = vpop.f32.mrf.mxu0
  %1271 = vdwg.mxu0
  %1272 = vmatpush.bf16.msra.mxu0 %v988
  %1273 = vmatpush.bf16.msra.mxu0 %v987
  %1274 = vmatpush.bf16.msra.mxu0 %v986
  %1275 = vmatpush.bf16.msra.mxu0 %v985
  %1276 = vmatpush.bf16.msra.mxu0 %v984
  %1277 = vmatpush.bf16.msra.mxu0 %v983
  %1278 = vmatpush.bf16.msra.mxu0 %v982
  %1279 = vmatpush.bf16.msra.mxu0 %v981
  %1280 = vmatmul.bf16.gmra.mxu0 %v538
  %v1281 = vpop.f32.mrf.mxu0
  %v1282 = vadd.f32 %v1209, %v1281
  %v1283 = vpop.f32.mrf.mxu0
  %v1284 = vadd.f32 %v1211, %v1283
  %1285 = vmatmul.bf16.gmra.mxu0 %v546
  %v1286 = vpop.f32.mrf.mxu0
  %v1287 = vadd.f32 %v1214, %v1286
  %v1288 = vpop.f32.mrf.mxu0
  %v1289 = vadd.f32 %v1216, %v1288
  %1290 = vmatmul.bf16.gmra.mxu0 %v554
  %v1291 = vpop.f32.mrf.mxu0
  %v1292 = vadd.f32 %v1219, %v1291
  %v1293 = vpop.f32.mrf.mxu0
  %v1294 = vadd.f32 %v1221, %v1293
  %1295 = vmatmul.bf16.gmra.mxu0 %v562
  %v1296 = vpop.f32.mrf.mxu0
  %v1297 = vadd.f32 %v1224, %v1296
  %v1298 = vpop.f32.mrf.mxu0
  %v1299 = vadd.f32 %v1226, %v1298
  %1300 = vmatmul.bf16.gmra.mxu0 %v570
  %v1301 = vpop.f32.mrf.mxu0
  %v1302 = vadd.f32 %v1229, %v1301
  %v1303 = vpop.f32.mrf.mxu0
  %v1304 = vadd.f32 %v1231, %v1303
  %1305 = vmatmul.bf16.gmra.mxu0 %v578
  %v1306 = vpop.f32.mrf.mxu0
  %v1307 = vadd.f32 %v1234, %v1306
  %v1308 = vpop.f32.mrf.mxu0
  %v1309 = vadd.f32 %v1236, %v1308
  %1310 = vmatmul.bf16.gmra.mxu0 %v586
  %v1311 = vpop.f32.mrf.mxu0
  %v1312 = vadd.f32 %v1239, %v1311
  %v1313 = vpop.f32.mrf.mxu0
  %v1314 = vadd.f32 %v1241, %v1313
  %1315 = vmatmul.bf16.gmra.mxu0 %v594
  %v1316 = vpop.f32.mrf.mxu0
  %v1317 = vadd.f32 %v1244, %v1316
  %v1318 = vpop.f32.mrf.mxu0
  %v1319 = vadd.f32 %v1246, %v1318
  %1320 = vmatmul.bf16.gmra.mxu0 %v602
  %v1321 = vpop.f32.mrf.mxu0
  %v1322 = vadd.f32 %v1249, %v1321
  %v1323 = vpop.f32.mrf.mxu0
  %v1324 = vadd.f32 %v1251, %v1323
  %1325 = vmatmul.bf16.gmra.mxu0 %v610
  %v1326 = vpop.f32.mrf.mxu0
  %v1327 = vadd.f32 %v1254, %v1326
  %v1328 = vpop.f32.mrf.mxu0
  %v1329 = vadd.f32 %v1256, %v1328
  %1330 = vmatmul.bf16.gmra.mxu0 %v618
  %v1331 = vpop.f32.mrf.mxu0
  %v1332 = vadd.f32 %v1259, %v1331
  %v1333 = vpop.f32.mrf.mxu0
  %v1334 = vadd.f32 %v1261, %v1333
  %1335 = vmatmul.bf16.gmra.mxu0 %v626
  %v1336 = vpop.f32.mrf.mxu0
  %v1337 = vadd.f32 %v1264, %v1336
  %v1338 = vpop.f32.mrf.mxu0
  %v1339 = vadd.f32 %v1266, %v1338
  %1340 = vmatmul.bf16.gmra.mxu0 %v634
  %v1341 = vpop.f32.mrf.mxu0
  %v1342 = vadd.f32 %v1269, %v1341
  %v1343 = vpop.f32.mrf.mxu0
  %1344 = vdwg.mxu0
  %1345 = vmatpush.bf16.msra.mxu0 %v996
  %1346 = vmatpush.bf16.msra.mxu0 %v995
  %1347 = vmatpush.bf16.msra.mxu0 %v994
  %1348 = vmatpush.bf16.msra.mxu0 %v993
  %1349 = vmatpush.bf16.msra.mxu0 %v992
  %1350 = vmatpush.bf16.msra.mxu0 %v991
  %1351 = vmatpush.bf16.msra.mxu0 %v990
  %1352 = vmatpush.bf16.msra.mxu0 %v989
  %1353 = vmatmul.bf16.gmra.mxu0 %v539
  %v1354 = vpop.f32.mrf.mxu0
  %v1355 = vadd.f32 %v1282, %v1354
  %v1356 = vpop.f32.mrf.mxu0
  %v1357 = vadd.f32 %v1284, %v1356
  %1358 = vmatmul.bf16.gmra.mxu0 %v547
  %v1359 = vpop.f32.mrf.mxu0
  %v1360 = vadd.f32 %v1287, %v1359
  %v1361 = vpop.f32.mrf.mxu0
  %v1362 = vadd.f32 %v1289, %v1361
  %1363 = vmatmul.bf16.gmra.mxu0 %v555
  %v1364 = vpop.f32.mrf.mxu0
  %v1365 = vadd.f32 %v1292, %v1364
  %v1366 = vpop.f32.mrf.mxu0
  %v1367 = vadd.f32 %v1294, %v1366
  %1368 = vmatmul.bf16.gmra.mxu0 %v563
  %v1369 = vpop.f32.mrf.mxu0
  %v1370 = vadd.f32 %v1297, %v1369
  %v1371 = vpop.f32.mrf.mxu0
  %v1372 = vadd.f32 %v1299, %v1371
  %1373 = vmatmul.bf16.gmra.mxu0 %v571
  %v1374 = vpop.f32.mrf.mxu0
  %v1375 = vadd.f32 %v1302, %v1374
  %v1376 = vpop.f32.mrf.mxu0
  %v1377 = vadd.f32 %v1304, %v1376
  %1378 = vmatmul.bf16.gmra.mxu0 %v579
  %v1379 = vpop.f32.mrf.mxu0
  %v1380 = vadd.f32 %v1307, %v1379
  %v1381 = vpop.f32.mrf.mxu0
  %v1382 = vadd.f32 %v1309, %v1381
  %1383 = vmatmul.bf16.gmra.mxu0 %v587
  %v1384 = vpop.f32.mrf.mxu0
  %v1385 = vadd.f32 %v1312, %v1384
  %v1386 = vpop.f32.mrf.mxu0
  %v1387 = vadd.f32 %v1314, %v1386
  %1388 = vmatmul.bf16.gmra.mxu0 %v595
  %v1389 = vpop.f32.mrf.mxu0
  %v1390 = vadd.f32 %v1317, %v1389
  %v1391 = vpop.f32.mrf.mxu0
  %v1392 = vadd.f32 %v1319, %v1391
  %1393 = vmatmul.bf16.gmra.mxu0 %v603
  %v1394 = vpop.f32.mrf.mxu0
  %v1395 = vadd.f32 %v1322, %v1394
  %v1396 = vpop.f32.mrf.mxu0
  %v1397 = vadd.f32 %v1324, %v1396
  %1398 = vmatmul.bf16.gmra.mxu0 %v611
  %v1399 = vpop.f32.mrf.mxu0
  %v1400 = vadd.f32 %v1327, %v1399
  %v1401 = vpop.f32.mrf.mxu0
  %v1402 = vadd.f32 %v1329, %v1401
  %1403 = vmatmul.bf16.gmra.mxu0 %v619
  %v1404 = vpop.f32.mrf.mxu0
  %v1405 = vadd.f32 %v1332, %v1404
  %v1406 = vpop.f32.mrf.mxu0
  %v1407 = vadd.f32 %v1334, %v1406
  %1408 = vmatmul.bf16.gmra.mxu0 %v627
  %v1409 = vpop.f32.mrf.mxu0
  %v1410 = vadd.f32 %v1337, %v1409
  %v1411 = vpop.f32.mrf.mxu0
  %v1412 = vadd.f32 %v1339, %v1411
  %1413 = vmatmul.bf16.gmra.mxu0 %v635
  %v1414 = vpop.f32.mrf.mxu0
  %v1415 = vadd.f32 %v1342, %v1414
  %v1416 = vpop.f32.mrf.mxu0
  %1417 = vdwg.mxu0
  %1418 = vmatpush.bf16.msra.mxu0 %v1004
  %1419 = vmatpush.bf16.msra.mxu0 %v1003
  %1420 = vmatpush.bf16.msra.mxu0 %v1002
  %1421 = vmatpush.bf16.msra.mxu0 %v1001
  %1422 = vmatpush.bf16.msra.mxu0 %v1000
  %1423 = vmatpush.bf16.msra.mxu0 %v999
  %1424 = vmatpush.bf16.msra.mxu0 %v998
  %1425 = vmatpush.bf16.msra.mxu0 %v997
  %1426 = vmatmul.bf16.gmra.mxu0 %v540
  %v1427 = vpop.f32.mrf.mxu0
  %v1428 = vadd.f32 %v1355, %v1427
  %v1429 = vpop.f32.mrf.mxu0
  %v1430 = vadd.f32 %v1357, %v1429
  %1431 = vmatmul.bf16.gmra.mxu0 %v548
  %v1432 = vpop.f32.mrf.mxu0
  %v1433 = vadd.f32 %v1360, %v1432
  %v1434 = vpop.f32.mrf.mxu0
  %v1435 = vadd.f32 %v1362, %v1434
  %1436 = vmatmul.bf16.gmra.mxu0 %v556
  %v1437 = vpop.f32.mrf.mxu0
  %v1438 = vadd.f32 %v1365, %v1437
  %v1439 = vpop.f32.mrf.mxu0
  %v1440 = vadd.f32 %v1367, %v1439
  %1441 = vmatmul.bf16.gmra.mxu0 %v564
  %v1442 = vpop.f32.mrf.mxu0
  %v1443 = vadd.f32 %v1370, %v1442
  %v1444 = vpop.f32.mrf.mxu0
  %v1445 = vadd.f32 %v1372, %v1444
  %1446 = vmatmul.bf16.gmra.mxu0 %v572
  %v1447 = vpop.f32.mrf.mxu0
  %v1448 = vadd.f32 %v1375, %v1447
  %v1449 = vpop.f32.mrf.mxu0
  %v1450 = vadd.f32 %v1377, %v1449
  %1451 = vmatmul.bf16.gmra.mxu0 %v580
  %v1452 = vpop.f32.mrf.mxu0
  %v1453 = vadd.f32 %v1380, %v1452
  %v1454 = vpop.f32.mrf.mxu0
  %v1455 = vadd.f32 %v1382, %v1454
  %1456 = vmatmul.bf16.gmra.mxu0 %v588
  %v1457 = vpop.f32.mrf.mxu0
  %v1458 = vadd.f32 %v1385, %v1457
  %v1459 = vpop.f32.mrf.mxu0
  %v1460 = vadd.f32 %v1387, %v1459
  %1461 = vmatmul.bf16.gmra.mxu0 %v596
  %v1462 = vpop.f32.mrf.mxu0
  %v1463 = vadd.f32 %v1390, %v1462
  %v1464 = vpop.f32.mrf.mxu0
  %v1465 = vadd.f32 %v1392, %v1464
  %1466 = vmatmul.bf16.gmra.mxu0 %v604
  %v1467 = vpop.f32.mrf.mxu0
  %v1468 = vadd.f32 %v1395, %v1467
  %v1469 = vpop.f32.mrf.mxu0
  %v1470 = vadd.f32 %v1397, %v1469
  %1471 = vmatmul.bf16.gmra.mxu0 %v612
  %v1472 = vpop.f32.mrf.mxu0
  %v1473 = vadd.f32 %v1400, %v1472
  %v1474 = vpop.f32.mrf.mxu0
  %v1475 = vadd.f32 %v1402, %v1474
  %1476 = vmatmul.bf16.gmra.mxu0 %v620
  %v1477 = vpop.f32.mrf.mxu0
  %v1478 = vadd.f32 %v1405, %v1477
  %v1479 = vpop.f32.mrf.mxu0
  %v1480 = vadd.f32 %v1407, %v1479
  %1481 = vmatmul.bf16.gmra.mxu0 %v628
  %v1482 = vpop.f32.mrf.mxu0
  %v1483 = vadd.f32 %v1410, %v1482
  %v1484 = vpop.f32.mrf.mxu0
  %v1485 = vadd.f32 %v1412, %v1484
  %1486 = vmatmul.bf16.gmra.mxu0 %v636
  %v1487 = vpop.f32.mrf.mxu0
  %v1488 = vadd.f32 %v1415, %v1487
  %v1489 = vpop.f32.mrf.mxu0
  %1490 = vdwg.mxu0
  %1491 = vmatpush.bf16.msra.mxu0 %v1012
  %1492 = vmatpush.bf16.msra.mxu0 %v1011
  %1493 = vmatpush.bf16.msra.mxu0 %v1010
  %1494 = vmatpush.bf16.msra.mxu0 %v1009
  %1495 = vmatpush.bf16.msra.mxu0 %v1008
  %1496 = vmatpush.bf16.msra.mxu0 %v1007
  %1497 = vmatpush.bf16.msra.mxu0 %v1006
  %1498 = vmatpush.bf16.msra.mxu0 %v1005
  %1499 = vmatmul.bf16.gmra.mxu0 %v541
  %v1500 = vpop.f32.mrf.mxu0
  %v1501 = vadd.f32 %v1428, %v1500
  %v1502 = vpop.f32.mrf.mxu0
  %v1503 = vadd.f32 %v1430, %v1502
  %1504 = vmatmul.bf16.gmra.mxu0 %v549
  %v1505 = vpop.f32.mrf.mxu0
  %v1506 = vadd.f32 %v1433, %v1505
  %v1507 = vpop.f32.mrf.mxu0
  %v1508 = vadd.f32 %v1435, %v1507
  %1509 = vmatmul.bf16.gmra.mxu0 %v557
  %v1510 = vpop.f32.mrf.mxu0
  %v1511 = vadd.f32 %v1438, %v1510
  %v1512 = vpop.f32.mrf.mxu0
  %v1513 = vadd.f32 %v1440, %v1512
  %1514 = vmatmul.bf16.gmra.mxu0 %v565
  %v1515 = vpop.f32.mrf.mxu0
  %v1516 = vadd.f32 %v1443, %v1515
  %v1517 = vpop.f32.mrf.mxu0
  %v1518 = vadd.f32 %v1445, %v1517
  %1519 = vmatmul.bf16.gmra.mxu0 %v573
  %v1520 = vpop.f32.mrf.mxu0
  %v1521 = vadd.f32 %v1448, %v1520
  %v1522 = vpop.f32.mrf.mxu0
  %v1523 = vadd.f32 %v1450, %v1522
  %1524 = vmatmul.bf16.gmra.mxu0 %v581
  %v1525 = vpop.f32.mrf.mxu0
  %v1526 = vadd.f32 %v1453, %v1525
  %v1527 = vpop.f32.mrf.mxu0
  %v1528 = vadd.f32 %v1455, %v1527
  %1529 = vmatmul.bf16.gmra.mxu0 %v589
  %v1530 = vpop.f32.mrf.mxu0
  %v1531 = vadd.f32 %v1458, %v1530
  %v1532 = vpop.f32.mrf.mxu0
  %v1533 = vadd.f32 %v1460, %v1532
  %1534 = vmatmul.bf16.gmra.mxu0 %v597
  %v1535 = vpop.f32.mrf.mxu0
  %v1536 = vadd.f32 %v1463, %v1535
  %v1537 = vpop.f32.mrf.mxu0
  %v1538 = vadd.f32 %v1465, %v1537
  %1539 = vmatmul.bf16.gmra.mxu0 %v605
  %v1540 = vpop.f32.mrf.mxu0
  %v1541 = vadd.f32 %v1468, %v1540
  %v1542 = vpop.f32.mrf.mxu0
  %v1543 = vadd.f32 %v1470, %v1542
  %1544 = vmatmul.bf16.gmra.mxu0 %v613
  %v1545 = vpop.f32.mrf.mxu0
  %v1546 = vadd.f32 %v1473, %v1545
  %v1547 = vpop.f32.mrf.mxu0
  %v1548 = vadd.f32 %v1475, %v1547
  %1549 = vmatmul.bf16.gmra.mxu0 %v621
  %v1550 = vpop.f32.mrf.mxu0
  %v1551 = vadd.f32 %v1478, %v1550
  %v1552 = vpop.f32.mrf.mxu0
  %v1553 = vadd.f32 %v1480, %v1552
  %1554 = vmatmul.bf16.gmra.mxu0 %v629
  %v1555 = vpop.f32.mrf.mxu0
  %v1556 = vadd.f32 %v1483, %v1555
  %v1557 = vpop.f32.mrf.mxu0
  %v1558 = vadd.f32 %v1485, %v1557
  %1559 = vmatmul.bf16.gmra.mxu0 %v637
  %v1560 = vpop.f32.mrf.mxu0
  %v1561 = vadd.f32 %v1488, %v1560
  %v1562 = vpop.f32.mrf.mxu0
  %1563 = vdwg.mxu0
  %1564 = vmatpush.bf16.msra.mxu0 %v1020
  %1565 = vmatpush.bf16.msra.mxu0 %v1019
  %1566 = vmatpush.bf16.msra.mxu0 %v1018
  %1567 = vmatpush.bf16.msra.mxu0 %v1017
  %1568 = vmatpush.bf16.msra.mxu0 %v1016
  %1569 = vmatpush.bf16.msra.mxu0 %v1015
  %1570 = vmatpush.bf16.msra.mxu0 %v1014
  %1571 = vmatpush.bf16.msra.mxu0 %v1013
  %1572 = vmatmul.bf16.gmra.mxu0 %v542
  %v1573 = vpop.f32.mrf.mxu0
  %v1574 = vadd.f32 %v1501, %v1573
  %v1575 = vpop.f32.mrf.mxu0
  %v1576 = vadd.f32 %v1503, %v1575
  %1577 = vmatmul.bf16.gmra.mxu0 %v550
  %v1578 = vpop.f32.mrf.mxu0
  %v1579 = vadd.f32 %v1506, %v1578
  %v1580 = vpop.f32.mrf.mxu0
  %v1581 = vadd.f32 %v1508, %v1580
  %1582 = vmatmul.bf16.gmra.mxu0 %v558
  %v1583 = vpop.f32.mrf.mxu0
  %v1584 = vadd.f32 %v1511, %v1583
  %v1585 = vpop.f32.mrf.mxu0
  %v1586 = vadd.f32 %v1513, %v1585
  %1587 = vmatmul.bf16.gmra.mxu0 %v566
  %v1588 = vpop.f32.mrf.mxu0
  %v1589 = vadd.f32 %v1516, %v1588
  %v1590 = vpop.f32.mrf.mxu0
  %v1591 = vadd.f32 %v1518, %v1590
  %1592 = vmatmul.bf16.gmra.mxu0 %v574
  %v1593 = vpop.f32.mrf.mxu0
  %v1594 = vadd.f32 %v1521, %v1593
  %v1595 = vpop.f32.mrf.mxu0
  %v1596 = vadd.f32 %v1523, %v1595
  %1597 = vmatmul.bf16.gmra.mxu0 %v582
  %v1598 = vpop.f32.mrf.mxu0
  %v1599 = vadd.f32 %v1526, %v1598
  %v1600 = vpop.f32.mrf.mxu0
  %v1601 = vadd.f32 %v1528, %v1600
  %1602 = vmatmul.bf16.gmra.mxu0 %v590
  %v1603 = vpop.f32.mrf.mxu0
  %v1604 = vadd.f32 %v1531, %v1603
  %v1605 = vpop.f32.mrf.mxu0
  %v1606 = vadd.f32 %v1533, %v1605
  %1607 = vmatmul.bf16.gmra.mxu0 %v598
  %v1608 = vpop.f32.mrf.mxu0
  %v1609 = vadd.f32 %v1536, %v1608
  %v1610 = vpop.f32.mrf.mxu0
  %v1611 = vadd.f32 %v1538, %v1610
  %1612 = vmatmul.bf16.gmra.mxu0 %v606
  %v1613 = vpop.f32.mrf.mxu0
  %v1614 = vadd.f32 %v1541, %v1613
  %v1615 = vpop.f32.mrf.mxu0
  %v1616 = vadd.f32 %v1543, %v1615
  %1617 = vmatmul.bf16.gmra.mxu0 %v614
  %v1618 = vpop.f32.mrf.mxu0
  %v1619 = vadd.f32 %v1546, %v1618
  %v1620 = vpop.f32.mrf.mxu0
  %v1621 = vadd.f32 %v1548, %v1620
  %1622 = vmatmul.bf16.gmra.mxu0 %v622
  %v1623 = vpop.f32.mrf.mxu0
  %v1624 = vadd.f32 %v1551, %v1623
  %v1625 = vpop.f32.mrf.mxu0
  %v1626 = vadd.f32 %v1553, %v1625
  %1627 = vmatmul.bf16.gmra.mxu0 %v630
  %v1628 = vpop.f32.mrf.mxu0
  %v1629 = vadd.f32 %v1556, %v1628
  %v1630 = vpop.f32.mrf.mxu0
  %v1631 = vadd.f32 %v1558, %v1630
  %1632 = vmatmul.bf16.gmra.mxu0 %v638
  %v1633 = vpop.f32.mrf.mxu0
  %v1634 = vadd.f32 %v1561, %v1633
  %v1635 = vpop.f32.mrf.mxu0
  %1636 = vdwg.mxu0
  %1637 = vmatpush.bf16.msra.mxu0 0
  %1638 = vmatpush.bf16.msra.mxu0 0
  %1639 = vmatpush.bf16.msra.mxu0 0
  %1640 = vmatpush.bf16.msra.mxu0 0
  %1641 = vmatpush.bf16.msra.mxu0 0
  %1642 = vmatpush.bf16.msra.mxu0 %v1124
  %1643 = vmatpush.bf16.msra.mxu0 %v1022
  %1644 = vmatpush.bf16.msra.mxu0 %v1021
  %1645 = vmatmul.bf16.gmra.mxu0 %v1084
  %v1646 = vpop.f32.mrf.mxu0
  %v1647 = vadd.f32 %v1574, %v1646
  %v1648 = vpop.f32.mrf.mxu0
  %v1649 = vadd.f32 %v1576, %v1648
  %1650 = vmatmul.bf16.gmra.mxu0 %v1087
  %v1651 = vpop.f32.mrf.mxu0
  %v1652 = vadd.f32 %v1579, %v1651
  %v1653 = vpop.f32.mrf.mxu0
  %v1654 = vadd.f32 %v1581, %v1653
  %1655 = vmatmul.bf16.gmra.mxu0 %v1090
  %v1656 = vpop.f32.mrf.mxu0
  %v1657 = vadd.f32 %v1584, %v1656
  %v1658 = vpop.f32.mrf.mxu0
  %v1659 = vadd.f32 %v1586, %v1658
  %1660 = vmatmul.bf16.gmra.mxu0 %v1093
  %v1661 = vpop.f32.mrf.mxu0
  %v1662 = vadd.f32 %v1589, %v1661
  %v1663 = vpop.f32.mrf.mxu0
  %v1664 = vadd.f32 %v1591, %v1663
  %1665 = vmatmul.bf16.gmra.mxu0 %v1096
  %v1666 = vpop.f32.mrf.mxu0
  %v1667 = vadd.f32 %v1594, %v1666
  %v1668 = vpop.f32.mrf.mxu0
  %v1669 = vadd.f32 %v1596, %v1668
  %1670 = vmatmul.bf16.gmra.mxu0 %v1099
  %v1671 = vpop.f32.mrf.mxu0
  %v1672 = vadd.f32 %v1599, %v1671
  %v1673 = vpop.f32.mrf.mxu0
  %v1674 = vadd.f32 %v1601, %v1673
  %1675 = vmatmul.bf16.gmra.mxu0 %v1102
  %v1676 = vpop.f32.mrf.mxu0
  %v1677 = vadd.f32 %v1604, %v1676
  %v1678 = vpop.f32.mrf.mxu0
  %v1679 = vadd.f32 %v1606, %v1678
  %1680 = vmatmul.bf16.gmra.mxu0 %v1105
  %v1681 = vpop.f32.mrf.mxu0
  %v1682 = vadd.f32 %v1609, %v1681
  %v1683 = vpop.f32.mrf.mxu0
  %v1684 = vadd.f32 %v1611, %v1683
  %1685 = vmatmul.bf16.gmra.mxu0 %v1108
  %v1686 = vpop.f32.mrf.mxu0
  %v1687 = vadd.f32 %v1614, %v1686
  %v1688 = vpop.f32.mrf.mxu0
  %v1689 = vadd.f32 %v1616, %v1688
  %1690 = vmatmul.bf16.gmra.mxu0 %v1111
  %v1691 = vpop.f32.mrf.mxu0
  %v1692 = vadd.f32 %v1619, %v1691
  %v1693 = vpop.f32.mrf.mxu0
  %v1694 = vadd.f32 %v1621, %v1693
  %1695 = vmatmul.bf16.gmra.mxu0 %v1114
  %v1696 = vpop.f32.mrf.mxu0
  %v1697 = vadd.f32 %v1624, %v1696
  %v1698 = vpop.f32.mrf.mxu0
  %v1699 = vadd.f32 %v1626, %v1698
  %1700 = vmatmul.bf16.gmra.mxu0 %v1117
  %v1701 = vpop.f32.mrf.mxu0
  %v1702 = vadd.f32 %v1629, %v1701
  %v1703 = vpop.f32.mrf.mxu0
  %v1704 = vadd.f32 %v1631, %v1703
  %1705 = vmatmul.bf16.gmra.mxu0 %v1120
  %v1706 = vpop.f32.mrf.mxu0
  %v1707 = vadd.f32 %v1634, %v1706
  %v1708 = vpop.f32.mrf.mxu0
  %1709 = vdwg.mxu0
  %v1710 = vmax.f32 %v1647, 0.0
  %v1711 = vmax.f32 %v1649, 0.0
  %v1712 = vmax.f32 %v1652, 0.0
  %v1713 = vmax.f32 %v1654, 0.0
  %v1714 = vmax.f32 %v1657, 0.0
  %v1715 = vmax.f32 %v1659, 0.0
  %v1716 = vmax.f32 %v1662, 0.0
  %v1717 = vmax.f32 %v1664, 0.0
  %v1718 = vmax.f32 %v1667, 0.0
  %v1719 = vmax.f32 %v1669, 0.0
  %v1720 = vmax.f32 %v1672, 0.0
  %v1721 = vmax.f32 %v1674, 0.0
  %v1722 = vmax.f32 %v1677, 0.0
  %v1723 = vmax.f32 %v1679, 0.0
  %v1724 = vmax.f32 %v1682, 0.0
  %v1725 = vmax.f32 %v1684, 0.0
  %v1726 = vmax.f32 %v1687, 0.0
  %v1727 = vmax.f32 %v1689, 0.0
  %v1728 = vmax.f32 %v1692, 0.0
  %v1729 = vmax.f32 %v1694, 0.0
  %v1730 = vmax.f32 %v1697, 0.0
  %v1731 = vmax.f32 %v1699, 0.0
  %v1732 = vmax.f32 %v1702, 0.0
  %v1733 = vmax.f32 %v1704, 0.0
  %v1734 = vmax.f32 %v1707, 0.0
  %vm1735 = vcmask 261120
  %1736 = vst.msk [vmem:[%s3] sm:$0xff] %vm1735, %v1710
  %1737 = vst.msk [vmem:[%s3 + $0x8] sm:$0xff] %vm1735, %v1711
  %1738 = vst.msk [vmem:[%s3 + $0x10] sm:$0xff] %vm1735, %v1712
  %1739 = vst.msk [vmem:[%s3 + $0x18] sm:$0xff] %vm1735, %v1713
  %1740 = vst.msk [vmem:[%s3 + $0x20] sm:$0xff] %vm1735, %v1714
  %1741 = vst.msk [vmem:[%s3 + $0x28] sm:$0xff] %vm1735, %v1715
  %1742 = vst.msk [vmem:[%s3 + $0x30] sm:$0xff] %vm1735, %v1716
  %1743 = vst.msk [vmem:[%s3 + $0x38] sm:$0xff] %vm1735, %v1717
  %1744 = vst.msk [vmem:[%s3 + $0x40] sm:$0xff] %vm1735, %v1718
  %1745 = vst.msk [vmem:[%s3 + $0x48] sm:$0xff] %vm1735, %v1719
  %1746 = vst.msk [vmem:[%s3 + $0x50] sm:$0xff] %vm1735, %v1720
  %1747 = vst.msk [vmem:[%s3 + $0x58] sm:$0xff] %vm1735, %v1721
  %1748 = vst.msk [vmem:[%s3 + $0x60] sm:$0xff] %vm1735, %v1722
  %1749 = vst.msk [vmem:[%s3 + $0x68] sm:$0xff] %vm1735, %v1723
  %1750 = vst.msk [vmem:[%s3 + $0x70] sm:$0xff] %vm1735, %v1724
  %1751 = vst.msk [vmem:[%s3 + $0x78] sm:$0xff] %vm1735, %v1725
  %1752 = vst.msk [vmem:[%s3 + $0x80] sm:$0xff] %vm1735, %v1726
  %1753 = vst.msk [vmem:[%s3 + $0x88] sm:$0xff] %vm1735, %v1727
  %1754 = vst.msk [vmem:[%s3 + $0x90] sm:$0xff] %vm1735, %v1728
  %1755 = vst.msk [vmem:[%s3 + $0x98] sm:$0xff] %vm1735, %v1729
  %1756 = vst.msk [vmem:[%s3 + $0xa0] sm:$0xff] %vm1735, %v1730
  %1757 = vst.msk [vmem:[%s3 + $0xa8] sm:$0xff] %vm1735, %v1731
  %1758 = vst.msk [vmem:[%s3 + $0xb0] sm:$0xff] %vm1735, %v1732
  %1759 = vst.msk [vmem:[%s3 + $0xb8] sm:$0xff] %vm1735, %v1733
  %1760 = vst.msk [vmem:[%s3 + $0xc0] sm:$0xff] %vm1735, %v1734
  // Predicated region
  $region14: #{gcnet_forward.39} parent=0 // pred_check
    _
  $region15: #{gcnet_forward.39} parent=0 // pred_check_branch
    %1762 = sbr.rel (0) target = $region17
  $region16: #{gcnet_forward.39} parent=0 // pred_region
    _
  $region17: #{gcnet_forward.39} parent=0 // pred_fallthru
    _
  // Predicated region
  $region18: #{gcnet_forward.39} parent=0 // pred_check
    _
  $region19: #{gcnet_forward.39} parent=0 // pred_check_branch
    %1764 = sbr.rel (0) target = $region21
  $region20: #{gcnet_forward.39} parent=0 // pred_region
    _
  $region21: #{gcnet_forward.39} parent=0 // pred_fallthru
    _

// kernel: gcnet_forward.40
$region0: #{gcnet_forward.40}
  #allocation0 [shape = 'u32[]', space=smem, size = 0x4, offset = 0x4, fixed_abs, tag = 'smem constant byte address 0x4 - core index']
  #allocation1 [shape = 'u32[72,128]{1,0:T(1,128)}', space=vmem, size = 0x9000, scoped, tag = 'internal scratch']
  %s0 = inlined_call_operand.vmem [shape: bf16[200,288], index: 0, kind: input, shape index: {}]
  %s1 = inlined_call_operand.vmem [shape: bf16[288,32], index: 1, kind: input, shape index: {}]
  %s2 = inlined_call_operand.vmem [shape: f32[1,32], index: 2, kind: input, shape index: {}]
  %s3 = inlined_call_operand.vmem [shape: f32[200,32], index: 3, kind: output, shape index: {}]
  %s4 = sld [smem:[#allocation0]]
  $region22: #{gcnet_forward.40} parent=0
    _
  %s6 = ssub.s32 1, %s4
  %s7 = scalar_select 0, %s6, %s4
  // Predicated region
  $region2: #{gcnet_forward.40} parent=0 // pred_check
    _
  $region3: #{gcnet_forward.40} parent=0 // pred_check_branch
    %9 = sbr.rel (0) target = $region5
  $region4: #{gcnet_forward.40} parent=0 // pred_region
    _
  $region5: #{gcnet_forward.40} parent=0 // pred_fallthru
    _
  // Predicated region
  $region6: #{gcnet_forward.40} parent=0 // pred_check
    _
  $region7: #{gcnet_forward.40} parent=0 // pred_check_branch
    %11 = sbr.rel (0) target = $region9
  $region8: #{gcnet_forward.40} parent=0 // pred_region
    _
  $region9: #{gcnet_forward.40} parent=0 // pred_fallthru
    _
  // Predicated region
  $region10: #{gcnet_forward.40} parent=0 // pred_check
    _
  $region11: #{gcnet_forward.40} parent=0 // pred_check_branch
    %13 = sbr.rel (0) target = $region13
  $region12: #{gcnet_forward.40} parent=0 // pred_region
    _
  $region13: #{gcnet_forward.40} parent=0 // pred_fallthru
    _
  %v15 = vld [vmem:[%s0] sm:$0xff]
  %v16 = vld [vmem:[%s0 + $0x8] sm:$0xf]
  %v17 = vld [vmem:[%s0 + $0xc] sm:$0xff]
  %v18 = vld [vmem:[%s0 + $0x14] sm:$0xf]
  %v19 = vld [vmem:[%s0 + $0x18] sm:$0xff]
  %v20 = vld [vmem:[%s0 + $0x20] sm:$0xf]
  %v21 = vld [vmem:[%s0 + $0x24] sm:$0xff]
  %v22 = vld [vmem:[%s0 + $0x2c] sm:$0xf]
  %v23 = vld [vmem:[%s0 + $0x30] sm:$0xff]
  %v24 = vld [vmem:[%s0 + $0x38] sm:$0xf]
  %v25 = vld [vmem:[%s0 + $0x3c] sm:$0xff]
  %v26 = vld [vmem:[%s0 + $0x44] sm:$0xf]
  %v27 = vld [vmem:[%s0 + $0x48] sm:$0xff]
  %v28 = vld [vmem:[%s0 + $0x50] sm:$0xf]
  %v29 = vld [vmem:[%s0 + $0x54] sm:$0xff]
  %v30 = vld [vmem:[%s0 + $0x5c] sm:$0xf]
  %v31 = vld [vmem:[%s0 + $0x60] sm:$0xff]
  %v32 = vld [vmem:[%s0 + $0x68] sm:$0xf]
  %v33 = vld [vmem:[%s0 + $0x6c] sm:$0xff]
  %v34 = vld [vmem:[%s0 + $0x74] sm:$0xf]
  %v35 = vld [vmem:[%s0 + $0x78] sm:$0xff]
  %v36 = vld [vmem:[%s0 + $0x80] sm:$0xf]
  %v37 = vld [vmem:[%s0 + $0x84] sm:$0xff]
  %v38 = vld [vmem:[%s0 + $0x8c] sm:$0xf]
  %v39 = vld [vmem:[%s0 + $0x90] sm:$0xff]
  %v40 = vld [vmem:[%s0 + $0x98] sm:$0xf]
  %v41 = vld [vmem:[%s0 + $0x9c] sm:$0xff]
  %v42 = vld [vmem:[%s0 + $0xa4] sm:$0xf]
  %v43 = vld [vmem:[%s0 + $0xa8] sm:$0xff]
  %v44 = vld [vmem:[%s0 + $0xb0] sm:$0xf]
  %v45 = vld [vmem:[%s0 + $0xb4] sm:$0xff]
  %v46 = vld [vmem:[%s0 + $0xbc] sm:$0xf]
  %v47 = vld [vmem:[%s0 + $0xc0] sm:$0xff]
  %v48 = vld [vmem:[%s0 + $0xc8] sm:$0xf]
  %v49 = vld [vmem:[%s0 + $0xcc] sm:$0xff]
  %v50 = vld [vmem:[%s0 + $0xd4] sm:$0xf]
  %v51 = vld [vmem:[%s0 + $0xd8] sm:$0xff]
  %v52 = vld [vmem:[%s0 + $0xe0] sm:$0xf]
  %v53 = vld [vmem:[%s0 + $0xe4] sm:$0xff]
  %v54 = vld [vmem:[%s0 + $0xec] sm:$0xf]
  %v55 = vld [vmem:[%s0 + $0xf0] sm:$0xff]
  %v56 = vld [vmem:[%s0 + $0xf8] sm:$0xf]
  %v57 = vld [vmem:[%s0 + $0xfc] sm:$0xff]
  %v58 = vld [vmem:[%s0 + $0x104] sm:$0xf]
  %v59 = vld [vmem:[%s0 + $0x108] sm:$0xff]
  %v60 = vld [vmem:[%s0 + $0x110] sm:$0xf]
  %v61 = vld [vmem:[%s0 + $0x114] sm:$0xff]
  %v62 = vld [vmem:[%s0 + $0x11c] sm:$0xf]
  %v63 = vld [vmem:[%s0 + $0x120] sm:$0xff]
  %v64 = vld [vmem:[%s0 + $0x128] sm:$0xf]
  %v65 = vld [vmem:[%s1] sm:$0xf]
  %v66 = vld [vmem:[%s1 + $0x4] sm:$0xf]
  %v67 = vld [vmem:[%s1 + $0x8] sm:$0xf]
  %v68 = vld [vmem:[%s1 + $0xc] sm:$0xf]
  %v69 = vld [vmem:[%s1 + $0x10] sm:$0xf]
  %v70 = vld [vmem:[%s1 + $0x14] sm:$0xf]
  %v71 = vld [vmem:[%s1 + $0x18] sm:$0xf]
  %v72 = vld [vmem:[%s1 + $0x1c] sm:$0xf]
  %v73 = vld [vmem:[%s1 + $0x20] sm:$0xf]
  %v74 = vld [vmem:[%s1 + $0x24] sm:$0xf]
  %v75 = vld [vmem:[%s1 + $0x28] sm:$0xf]
  %v76 = vld [vmem:[%s1 + $0x2c] sm:$0xf]
  %v77 = vld [vmem:[%s1 + $0x30] sm:$0xf]
  %v78 = vld [vmem:[%s1 + $0x34] sm:$0xf]
  %v79 = vld [vmem:[%s1 + $0x38] sm:$0xf]
  %v80 = vld [vmem:[%s1 + $0x3c] sm:$0xf]
  %v81 = vld [vmem:[%s1 + $0x40] sm:$0xf]
  %v82 = vld [vmem:[%s1 + $0x44] sm:$0xf]
  %v83 = vld [vmem:[%s1 + $0x48] sm:$0xf]
  %v84 = vld [vmem:[%s1 + $0x4c] sm:$0xf]
  %v85 = vld [vmem:[%s1 + $0x50] sm:$0xf]
  %v86 = vld [vmem:[%s1 + $0x54] sm:$0xf]
  %v87 = vld [vmem:[%s1 + $0x58] sm:$0xf]
  %v88 = vld [vmem:[%s1 + $0x5c] sm:$0xf]
  %v89 = vld [vmem:[%s1 + $0x60] sm:$0xf]
  %v90 = vld [vmem:[%s1 + $0x64] sm:$0xf]
  %v91 = vld [vmem:[%s1 + $0x68] sm:$0xf]
  %v92 = vld [vmem:[%s1 + $0x6c] sm:$0xf]
  %v93 = vld [vmem:[%s1 + $0x70] sm:$0xf]
  %v94 = vld [vmem:[%s1 + $0x74] sm:$0xf]
  %v95 = vld [vmem:[%s1 + $0x78] sm:$0xf]
  %v96 = vld [vmem:[%s1 + $0x7c] sm:$0xf]
  %v97 = vld [vmem:[%s1 + $0x80] sm:$0xf]
  %v98 = vld [vmem:[%s1 + $0x84] sm:$0xf]
  %v99 = vld [vmem:[%s1 + $0x88] sm:$0xf]
  %v100 = vld [vmem:[%s1 + $0x8c] sm:$0xf]
  %v101 = vld [vmem:[%s2] sm:$0x1]
  %v103 = vperm.slane %v101, 0
  %v155 = vunpack.c.l.b16 %v15
  %v156 = vunpack.c.h.b16 %v15
  %v157 = vunpack.c.l.b16 %v16
  %v158 = vunpack.c.l.b16 %v17
  %v159 = vunpack.c.h.b16 %v17
  %v160 = vunpack.c.l.b16 %v18
  %v161 = vunpack.c.l.b16 %v19
  %v162 = vunpack.c.h.b16 %v19
  %v163 = vunpack.c.l.b16 %v20
  %v164 = vunpack.c.l.b16 %v21
  %v165 = vunpack.c.h.b16 %v21
  %v166 = vunpack.c.l.b16 %v22
  %v167 = vunpack.c.l.b16 %v23
  %v168 = vunpack.c.h.b16 %v23
  %v169 = vunpack.c.l.b16 %v24
  %v170 = vunpack.c.l.b16 %v25
  %v171 = vunpack.c.h.b16 %v25
  %v172 = vunpack.c.l.b16 %v26
  %v173 = vunpack.c.l.b16 %v27
  %v174 = vunpack.c.h.b16 %v27
  %v175 = vunpack.c.l.b16 %v28
  %v176 = vunpack.c.l.b16 %v29
  %v177 = vunpack.c.h.b16 %v29
  %v178 = vunpack.c.l.b16 %v30
  %v179 = vunpack.c.l.b16 %v31
  %v180 = vunpack.c.h.b16 %v31
  %v181 = vunpack.c.l.b16 %v32
  %v182 = vunpack.c.l.b16 %v33
  %v183 = vunpack.c.h.b16 %v33
  %v184 = vunpack.c.l.b16 %v34
  %v185 = vunpack.c.l.b16 %v35
  %v186 = vunpack.c.h.b16 %v35
  %v187 = vunpack.c.l.b16 %v36
  %v188 = vunpack.c.l.b16 %v37
  %v189 = vunpack.c.h.b16 %v37
  %v190 = vunpack.c.l.b16 %v38
  %v191 = vunpack.c.l.b16 %v39
  %v192 = vunpack.c.h.b16 %v39
  %v193 = vunpack.c.l.b16 %v40
  %v194 = vunpack.c.l.b16 %v41
  %v195 = vunpack.c.h.b16 %v41
  %v196 = vunpack.c.l.b16 %v42
  %v197 = vunpack.c.l.b16 %v43
  %v198 = vunpack.c.h.b16 %v43
  %v199 = vunpack.c.l.b16 %v44
  %v200 = vunpack.c.l.b16 %v45
  %v201 = vunpack.c.h.b16 %v45
  %v202 = vunpack.c.l.b16 %v46
  %v203 = vunpack.c.l.b16 %v47
  %v204 = vunpack.c.h.b16 %v47
  %v205 = vunpack.c.l.b16 %v48
  %v206 = vunpack.c.l.b16 %v49
  %v207 = vunpack.c.h.b16 %v49
  %v208 = vunpack.c.l.b16 %v50
  %v209 = vunpack.c.l.b16 %v51
  %v210 = vunpack.c.h.b16 %v51
  %v211 = vunpack.c.l.b16 %v52
  %v212 = vunpack.c.l.b16 %v53
  %v213 = vunpack.c.h.b16 %v53
  %v214 = vunpack.c.l.b16 %v54
  %v215 = vunpack.c.l.b16 %v55
  %v216 = vunpack.c.h.b16 %v55
  %v217 = vunpack.c.l.b16 %v56
  %v218 = vunpack.c.l.b16 %v57
  %v219 = vunpack.c.h.b16 %v57
  %v220 = vunpack.c.l.b16 %v58
  %v221 = vunpack.c.l.b16 %v59
  %v222 = vunpack.c.h.b16 %v59
  %v223 = vunpack.c.l.b16 %v60
  %v224 = vunpack.c.l.b16 %v61
  %v225 = vunpack.c.h.b16 %v61
  %v226 = vunpack.c.l.b16 %v62
  %v227 = vunpack.c.l.b16 %v63
  %v228 = vunpack.c.h.b16 %v63
  %v229 = vunpack.c.l.b16 %v64
  %v230 = vpack.c.b16 %v158, %v155
  %v231 = vpack.c.b16 %v159, %v156
  %v232 = vpack.c.b16 %v160, %v157
  %v233 = vpack.c.b16 %v164, %v161
  %v234 = vpack.c.b16 %v165, %v162
  %v235 = vpack.c.b16 %v166, %v163
  %v236 = vpack.c.b16 %v170, %v167
  %v237 = vpack.c.b16 %v171, %v168
  %v238 = vpack.c.b16 %v172, %v169
  %v239 = vpack.c.b16 %v176, %v173
  %v240 = vpack.c.b16 %v177, %v174
  %v241 = vpack.c.b16 %v178, %v175
  %v242 = vpack.c.b16 %v182, %v179
  %v243 = vpack.c.b16 %v183, %v180
  %v244 = vpack.c.b16 %v184, %v181
  %v245 = vpack.c.b16 %v188, %v185
  %v246 = vpack.c.b16 %v189, %v186
  %v247 = vpack.c.b16 %v190, %v187
  %v248 = vpack.c.b16 %v194, %v191
  %v249 = vpack.c.b16 %v195, %v192
  %v250 = vpack.c.b16 %v196, %v193
  %v251 = vpack.c.b16 %v200, %v197
  %v252 = vpack.c.b16 %v201, %v198
  %v253 = vpack.c.b16 %v202, %v199
  %v254 = vpack.c.b16 %v206, %v203
  %v255 = vpack.c.b16 %v207, %v204
  %v256 = vpack.c.b16 %v208, %v205
  %v257 = vpack.c.b16 %v212, %v209
  %v258 = vpack.c.b16 %v213, %v210
  %v259 = vpack.c.b16 %v214, %v211
  %v260 = vpack.c.b16 %v218, %v215
  %v261 = vpack.c.b16 %v219, %v216
  %v262 = vpack.c.b16 %v220, %v217
  %v263 = vpack.c.b16 %v224, %v221
  %v264 = vpack.c.b16 %v225, %v222
  %v265 = vpack.c.b16 %v226, %v223
  %v266 = vpack.c.b16 %v227, %v227
  %v267 = vpack.c.b16 %v228, %v228
  %v268 = vpack.c.b16 %v229, %v229
  %v331 = vunpack.c.l.b16 %v65
  %v332 = vunpack.c.l.b16 %v66
  %v333 = vunpack.c.l.b16 %v67
  %v334 = vunpack.c.l.b16 %v68
  %v335 = vunpack.c.l.b16 %v69
  %v336 = vunpack.c.l.b16 %v70
  %v337 = vunpack.c.l.b16 %v71
  %v338 = vunpack.c.l.b16 %v72
  %v339 = vunpack.c.l.b16 %v73
  %v340 = vunpack.c.l.b16 %v74
  %v341 = vunpack.c.l.b16 %v75
  %v342 = vunpack.c.l.b16 %v76
  %v343 = vunpack.c.l.b16 %v77
  %v344 = vunpack.c.l.b16 %v78
  %v345 = vunpack.c.l.b16 %v79
  %v346 = vunpack.c.l.b16 %v80
  %v347 = vunpack.c.l.b16 %v81
  %v348 = vunpack.c.l.b16 %v82
  %v349 = vunpack.c.l.b16 %v83
  %v350 = vunpack.c.l.b16 %v84
  %v351 = vunpack.c.l.b16 %v85
  %v352 = vunpack.c.l.b16 %v86
  %v353 = vunpack.c.l.b16 %v87
  %v354 = vunpack.c.l.b16 %v88
  %v355 = vunpack.c.l.b16 %v89
  %v356 = vunpack.c.l.b16 %v90
  %v357 = vunpack.c.l.b16 %v91
  %v358 = vunpack.c.l.b16 %v92
  %v359 = vunpack.c.l.b16 %v93
  %v360 = vunpack.c.l.b16 %v94
  %v361 = vunpack.c.l.b16 %v95
  %v362 = vunpack.c.l.b16 %v96
  %v363 = vunpack.c.l.b16 %v97
  %v364 = vunpack.c.l.b16 %v98
  %v365 = vunpack.c.l.b16 %v99
  %v366 = vunpack.c.l.b16 %v100
  %v367 = vpack.c.b16 %v332, %v331
  %v368 = vpack.c.b16 %v334, %v333
  %v369 = vpack.c.b16 %v336, %v335
  %v370 = vpack.c.b16 %v338, %v337
  %v371 = vpack.c.b16 %v340, %v339
  %v372 = vpack.c.b16 %v342, %v341
  %v373 = vpack.c.b16 %v344, %v343
  %v374 = vpack.c.b16 %v346, %v345
  %v375 = vpack.c.b16 %v348, %v347
  %v376 = vpack.c.b16 %v350, %v349
  %v377 = vpack.c.b16 %v352, %v351
  %v378 = vpack.c.b16 %v354, %v353
  %v379 = vpack.c.b16 %v356, %v355
  %v380 = vpack.c.b16 %v358, %v357
  %v381 = vpack.c.b16 %v360, %v359
  %v382 = vpack.c.b16 %v362, %v361
  %v383 = vpack.c.b16 %v364, %v363
  %v384 = vpack.c.b16 %v366, %v365
  %vm403 = vcmask 261120
  %v405 = vsel %vm403, %v232, 0
  %v408 = vsel %vm403, %v235, 0
  %v411 = vsel %vm403, %v238, 0
  %v414 = vsel %vm403, %v241, 0
  %v417 = vsel %vm403, %v244, 0
  %v420 = vsel %vm403, %v247, 0
  %v423 = vsel %vm403, %v250, 0
  %v426 = vsel %vm403, %v253, 0
  %v429 = vsel %vm403, %v256, 0
  %v432 = vsel %vm403, %v259, 0
  %v435 = vsel %vm403, %v262, 0
  %v438 = vsel %vm403, %v265, 0
  %v441 = vsel %vm403, %v268, 0
  %443 = vmatpush.bf16.msra.mxu0 %v374
  %444 = vmatpush.bf16.msra.mxu0 %v373
  %445 = vmatpush.bf16.msra.mxu0 %v372
  %446 = vmatpush.bf16.msra.mxu0 %v371
  %447 = vmatpush.bf16.msra.mxu0 %v370
  %448 = vmatpush.bf16.msra.mxu0 %v369
  %449 = vmatpush.bf16.msra.mxu0 %v368
  %450 = vmatpush.bf16.msra.mxu0 %v367
  %451 = vmatmul.bf16.gmra.mxu0 %v230
  %v452 = vpop.f32.mrf.mxu0
  %v453 = vadd.f32 %v103, %v452
  %v454 = vpop.f32.mrf.mxu0
  %v455 = vadd.f32 %v103, %v454
  %456 = vmatmul.bf16.gmra.mxu0 %v233
  %v457 = vpop.f32.mrf.mxu0
  %v458 = vadd.f32 %v103, %v457
  %v459 = vpop.f32.mrf.mxu0
  %v460 = vadd.f32 %v103, %v459
  %461 = vmatmul.bf16.gmra.mxu0 %v236
  %v462 = vpop.f32.mrf.mxu0
  %v463 = vadd.f32 %v103, %v462
  %v464 = vpop.f32.mrf.mxu0
  %v465 = vadd.f32 %v103, %v464
  %466 = vmatmul.bf16.gmra.mxu0 %v239
  %v467 = vpop.f32.mrf.mxu0
  %v468 = vadd.f32 %v103, %v467
  %v469 = vpop.f32.mrf.mxu0
  %v470 = vadd.f32 %v103, %v469
  %471 = vmatmul.bf16.gmra.mxu0 %v242
  %v472 = vpop.f32.mrf.mxu0
  %v473 = vadd.f32 %v103, %v472
  %v474 = vpop.f32.mrf.mxu0
  %v475 = vadd.f32 %v103, %v474
  %476 = vmatmul.bf16.gmra.mxu0 %v245
  %v477 = vpop.f32.mrf.mxu0
  %v478 = vadd.f32 %v103, %v477
  %v479 = vpop.f32.mrf.mxu0
  %v480 = vadd.f32 %v103, %v479
  %481 = vmatmul.bf16.gmra.mxu0 %v248
  %v482 = vpop.f32.mrf.mxu0
  %v483 = vadd.f32 %v103, %v482
  %v484 = vpop.f32.mrf.mxu0
  %v485 = vadd.f32 %v103, %v484
  %486 = vmatmul.bf16.gmra.mxu0 %v251
  %v487 = vpop.f32.mrf.mxu0
  %v488 = vadd.f32 %v103, %v487
  %v489 = vpop.f32.mrf.mxu0
  %v490 = vadd.f32 %v103, %v489
  %491 = vmatmul.bf16.gmra.mxu0 %v254
  %v492 = vpop.f32.mrf.mxu0
  %v493 = vadd.f32 %v103, %v492
  %v494 = vpop.f32.mrf.mxu0
  %v495 = vadd.f32 %v103, %v494
  %496 = vmatmul.bf16.gmra.mxu0 %v257
  %v497 = vpop.f32.mrf.mxu0
  %v498 = vadd.f32 %v103, %v497
  %v499 = vpop.f32.mrf.mxu0
  %v500 = vadd.f32 %v103, %v499
  %501 = vmatmul.bf16.gmra.mxu0 %v260
  %v502 = vpop.f32.mrf.mxu0
  %v503 = vadd.f32 %v103, %v502
  %v504 = vpop.f32.mrf.mxu0
  %v505 = vadd.f32 %v103, %v504
  %506 = vmatmul.bf16.gmra.mxu0 %v263
  %v507 = vpop.f32.mrf.mxu0
  %v508 = vadd.f32 %v103, %v507
  %v509 = vpop.f32.mrf.mxu0
  %v510 = vadd.f32 %v103, %v509
  %511 = vmatmul.bf16.gmra.mxu0 %v266
  %v512 = vpop.f32.mrf.mxu0
  %v513 = vadd.f32 %v103, %v512
  %v514 = vpop.f32.mrf.mxu0
  %515 = vdwg.mxu0
  %516 = vmatpush.bf16.msra.mxu0 %v382
  %517 = vmatpush.bf16.msra.mxu0 %v381
  %518 = vmatpush.bf16.msra.mxu0 %v380
  %519 = vmatpush.bf16.msra.mxu0 %v379
  %520 = vmatpush.bf16.msra.mxu0 %v378
  %521 = vmatpush.bf16.msra.mxu0 %v377
  %522 = vmatpush.bf16.msra.mxu0 %v376
  %523 = vmatpush.bf16.msra.mxu0 %v375
  %524 = vmatmul.bf16.gmra.mxu0 %v231
  %v525 = vpop.f32.mrf.mxu0
  %v526 = vadd.f32 %v453, %v525
  %v527 = vpop.f32.mrf.mxu0
  %v528 = vadd.f32 %v455, %v527
  %529 = vmatmul.bf16.gmra.mxu0 %v234
  %v530 = vpop.f32.mrf.mxu0
  %v531 = vadd.f32 %v458, %v530
  %v532 = vpop.f32.mrf.mxu0
  %v533 = vadd.f32 %v460, %v532
  %534 = vmatmul.bf16.gmra.mxu0 %v237
  %v535 = vpop.f32.mrf.mxu0
  %v536 = vadd.f32 %v463, %v535
  %v537 = vpop.f32.mrf.mxu0
  %v538 = vadd.f32 %v465, %v537
  %539 = vmatmul.bf16.gmra.mxu0 %v240
  %v540 = vpop.f32.mrf.mxu0
  %v541 = vadd.f32 %v468, %v540
  %v542 = vpop.f32.mrf.mxu0
  %v543 = vadd.f32 %v470, %v542
  %544 = vmatmul.bf16.gmra.mxu0 %v243
  %v545 = vpop.f32.mrf.mxu0
  %v546 = vadd.f32 %v473, %v545
  %v547 = vpop.f32.mrf.mxu0
  %v548 = vadd.f32 %v475, %v547
  %549 = vmatmul.bf16.gmra.mxu0 %v246
  %v550 = vpop.f32.mrf.mxu0
  %v551 = vadd.f32 %v478, %v550
  %v552 = vpop.f32.mrf.mxu0
  %v553 = vadd.f32 %v480, %v552
  %554 = vmatmul.bf16.gmra.mxu0 %v249
  %v555 = vpop.f32.mrf.mxu0
  %v556 = vadd.f32 %v483, %v555
  %v557 = vpop.f32.mrf.mxu0
  %v558 = vadd.f32 %v485, %v557
  %559 = vmatmul.bf16.gmra.mxu0 %v252
  %v560 = vpop.f32.mrf.mxu0
  %v561 = vadd.f32 %v488, %v560
  %v562 = vpop.f32.mrf.mxu0
  %v563 = vadd.f32 %v490, %v562
  %564 = vmatmul.bf16.gmra.mxu0 %v255
  %v565 = vpop.f32.mrf.mxu0
  %v566 = vadd.f32 %v493, %v565
  %v567 = vpop.f32.mrf.mxu0
  %v568 = vadd.f32 %v495, %v567
  %569 = vmatmul.bf16.gmra.mxu0 %v258
  %v570 = vpop.f32.mrf.mxu0
  %v571 = vadd.f32 %v498, %v570
  %v572 = vpop.f32.mrf.mxu0
  %v573 = vadd.f32 %v500, %v572
  %574 = vmatmul.bf16.gmra.mxu0 %v261
  %v575 = vpop.f32.mrf.mxu0
  %v576 = vadd.f32 %v503, %v575
  %v577 = vpop.f32.mrf.mxu0
  %v578 = vadd.f32 %v505, %v577
  %579 = vmatmul.bf16.gmra.mxu0 %v264
  %v580 = vpop.f32.mrf.mxu0
  %v581 = vadd.f32 %v508, %v580
  %v582 = vpop.f32.mrf.mxu0
  %v583 = vadd.f32 %v510, %v582
  %584 = vmatmul.bf16.gmra.mxu0 %v267
  %v585 = vpop.f32.mrf.mxu0
  %v586 = vadd.f32 %v513, %v585
  %v587 = vpop.f32.mrf.mxu0
  %588 = vdwg.mxu0
  %589 = vmatpush.bf16.msra.mxu0 0
  %590 = vmatpush.bf16.msra.mxu0 0
  %591 = vmatpush.bf16.msra.mxu0 0
  %592 = vmatpush.bf16.msra.mxu0 0
  %593 = vmatpush.bf16.msra.mxu0 0
  %594 = vmatpush.bf16.msra.mxu0 0
  %595 = vmatpush.bf16.msra.mxu0 %v384
  %596 = vmatpush.bf16.msra.mxu0 %v383
  %597 = vmatmul.bf16.gmra.mxu0 %v405
  %v598 = vpop.f32.mrf.mxu0
  %v599 = vadd.f32 %v526, %v598
  %v600 = vpop.f32.mrf.mxu0
  %v601 = vadd.f32 %v528, %v600
  %602 = vmatmul.bf16.gmra.mxu0 %v408
  %v603 = vpop.f32.mrf.mxu0
  %v604 = vadd.f32 %v531, %v603
  %v605 = vpop.f32.mrf.mxu0
  %v606 = vadd.f32 %v533, %v605
  %607 = vmatmul.bf16.gmra.mxu0 %v411
  %v608 = vpop.f32.mrf.mxu0
  %v609 = vadd.f32 %v536, %v608
  %v610 = vpop.f32.mrf.mxu0
  %v611 = vadd.f32 %v538, %v610
  %612 = vmatmul.bf16.gmra.mxu0 %v414
  %v613 = vpop.f32.mrf.mxu0
  %v614 = vadd.f32 %v541, %v613
  %v615 = vpop.f32.mrf.mxu0
  %v616 = vadd.f32 %v543, %v615
  %617 = vmatmul.bf16.gmra.mxu0 %v417
  %v618 = vpop.f32.mrf.mxu0
  %v619 = vadd.f32 %v546, %v618
  %v620 = vpop.f32.mrf.mxu0
  %v621 = vadd.f32 %v548, %v620
  %622 = vmatmul.bf16.gmra.mxu0 %v420
  %v623 = vpop.f32.mrf.mxu0
  %v624 = vadd.f32 %v551, %v623
  %v625 = vpop.f32.mrf.mxu0
  %v626 = vadd.f32 %v553, %v625
  %627 = vmatmul.bf16.gmra.mxu0 %v423
  %v628 = vpop.f32.mrf.mxu0
  %v629 = vadd.f32 %v556, %v628
  %v630 = vpop.f32.mrf.mxu0
  %v631 = vadd.f32 %v558, %v630
  %632 = vmatmul.bf16.gmra.mxu0 %v426
  %v633 = vpop.f32.mrf.mxu0
  %v634 = vadd.f32 %v561, %v633
  %v635 = vpop.f32.mrf.mxu0
  %v636 = vadd.f32 %v563, %v635
  %637 = vmatmul.bf16.gmra.mxu0 %v429
  %v638 = vpop.f32.mrf.mxu0
  %v639 = vadd.f32 %v566, %v638
  %v640 = vpop.f32.mrf.mxu0
  %v641 = vadd.f32 %v568, %v640
  %642 = vmatmul.bf16.gmra.mxu0 %v432
  %v643 = vpop.f32.mrf.mxu0
  %v644 = vadd.f32 %v571, %v643
  %v645 = vpop.f32.mrf.mxu0
  %v646 = vadd.f32 %v573, %v645
  %647 = vmatmul.bf16.gmra.mxu0 %v435
  %v648 = vpop.f32.mrf.mxu0
  %v649 = vadd.f32 %v576, %v648
  %v650 = vpop.f32.mrf.mxu0
  %v651 = vadd.f32 %v578, %v650
  %652 = vmatmul.bf16.gmra.mxu0 %v438
  %v653 = vpop.f32.mrf.mxu0
  %v654 = vadd.f32 %v581, %v653
  %v655 = vpop.f32.mrf.mxu0
  %v656 = vadd.f32 %v583, %v655
  %657 = vmatmul.bf16.gmra.mxu0 %v441
  %v658 = vpop.f32.mrf.mxu0
  %v659 = vadd.f32 %v586, %v658
  %v660 = vpop.f32.mrf.mxu0
  %661 = vdwg.mxu0
  %662 = vst.msk [vmem:[%s3] sm:$0xff] %vm403, %v599
  %663 = vst.msk [vmem:[%s3 + $0x8] sm:$0xff] %vm403, %v601
  %664 = vst.msk [vmem:[%s3 + $0x10] sm:$0xff] %vm403, %v604
  %665 = vst.msk [vmem:[%s3 + $0x18] sm:$0xff] %vm403, %v606
  %666 = vst.msk [vmem:[%s3 + $0x20] sm:$0xff] %vm403, %v609
  %667 = vst.msk [vmem:[%s3 + $0x28] sm:$0xff] %vm403, %v611
  %668 = vst.msk [vmem:[%s3 + $0x30] sm:$0xff] %vm403, %v614
  %669 = vst.msk [vmem:[%s3 + $0x38] sm:$0xff] %vm403, %v616
  %670 = vst.msk [vmem:[%s3 + $0x40] sm:$0xff] %vm403, %v619
  %671 = vst.msk [vmem:[%s3 + $0x48] sm:$0xff] %vm403, %v621
  %672 = vst.msk [vmem:[%s3 + $0x50] sm:$0xff] %vm403, %v624
  %673 = vst.msk [vmem:[%s3 + $0x58] sm:$0xff] %vm403, %v626
  %674 = vst.msk [vmem:[%s3 + $0x60] sm:$0xff] %vm403, %v629
  %675 = vst.msk [vmem:[%s3 + $0x68] sm:$0xff] %vm403, %v631
  %676 = vst.msk [vmem:[%s3 + $0x70] sm:$0xff] %vm403, %v634
  %677 = vst.msk [vmem:[%s3 + $0x78] sm:$0xff] %vm403, %v636
  %678 = vst.msk [vmem:[%s3 + $0x80] sm:$0xff] %vm403, %v639
  %679 = vst.msk [vmem:[%s3 + $0x88] sm:$0xff] %vm403, %v641
  %680 = vst.msk [vmem:[%s3 + $0x90] sm:$0xff] %vm403, %v644
  %681 = vst.msk [vmem:[%s3 + $0x98] sm:$0xff] %vm403, %v646
  %682 = vst.msk [vmem:[%s3 + $0xa0] sm:$0xff] %vm403, %v649
  %683 = vst.msk [vmem:[%s3 + $0xa8] sm:$0xff] %vm403, %v651
  %684 = vst.msk [vmem:[%s3 + $0xb0] sm:$0xff] %vm403, %v654
  %685 = vst.msk [vmem:[%s3 + $0xb8] sm:$0xff] %vm403, %v656
  %686 = vst.msk [vmem:[%s3 + $0xc0] sm:$0xff] %vm403, %v659
  // Predicated region
  $region14: #{gcnet_forward.40} parent=0 // pred_check
    _
  $region15: #{gcnet_forward.40} parent=0 // pred_check_branch
    %688 = sbr.rel (0) target = $region17
  $region16: #{gcnet_forward.40} parent=0 // pred_region
    _
  $region17: #{gcnet_forward.40} parent=0 // pred_fallthru
    _
  // Predicated region
  $region18: #{gcnet_forward.40} parent=0 // pred_check
    _
  $region19: #{gcnet_forward.40} parent=0 // pred_check_branch
    %690 = sbr.rel (0) target = $region21
  $region20: #{gcnet_forward.40} parent=0 // pred_region
    _
  $region21: #{gcnet_forward.40} parent=0 // pred_fallthru
    _

// kernel: gcnet_forward.45
$region0: #{gcnet_forward.45}
  #allocation0 [shape = 'u32[]', space=smem, size = 0x4, offset = 0x4, fixed_abs, tag = 'smem constant byte address 0x4 - core index']
  #allocation1 [shape = 'u32[72,128]{1,0:T(1,128)}', space=vmem, size = 0x9000, scoped, tag = 'internal scratch']
  %s0 = inlined_call_operand.vmem [shape: bf16[200,288], index: 0, kind: input, shape index: {}]
  %s1 = inlined_call_operand.vmem [shape: bf16[288,4], index: 1, kind: input, shape index: {}]
  %s2 = inlined_call_operand.vmem [shape: f32[1,4], index: 2, kind: input, shape index: {}]
  %s3 = inlined_call_operand.vmem [shape: f32[200,4], index: 3, kind: output, shape index: {}]
  %s4 = sld [smem:[#allocation0]]
  $region22: #{gcnet_forward.45} parent=0
    _
  %s6 = ssub.s32 1, %s4
  %s7 = scalar_select 0, %s6, %s4
  // Predicated region
  $region2: #{gcnet_forward.45} parent=0 // pred_check
    _
  $region3: #{gcnet_forward.45} parent=0 // pred_check_branch
    %9 = sbr.rel (0) target = $region5
  $region4: #{gcnet_forward.45} parent=0 // pred_region
    _
  $region5: #{gcnet_forward.45} parent=0 // pred_fallthru
    _
  // Predicated region
  $region6: #{gcnet_forward.45} parent=0 // pred_check
    _
  $region7: #{gcnet_forward.45} parent=0 // pred_check_branch
    %11 = sbr.rel (0) target = $region9
  $region8: #{gcnet_forward.45} parent=0 // pred_region
    _
  $region9: #{gcnet_forward.45} parent=0 // pred_fallthru
    _
  // Predicated region
  $region10: #{gcnet_forward.45} parent=0 // pred_check
    _
  $region11: #{gcnet_forward.45} parent=0 // pred_check_branch
    %13 = sbr.rel (0) target = $region13
  $region12: #{gcnet_forward.45} parent=0 // pred_region
    _
  $region13: #{gcnet_forward.45} parent=0 // pred_fallthru
    _
  %v15 = vld [vmem:[%s0] sm:$0xff]
  %v16 = vld [vmem:[%s0 + $0x8] sm:$0xf]
  %v17 = vld [vmem:[%s0 + $0xc] sm:$0xff]
  %v18 = vld [vmem:[%s0 + $0x14] sm:$0xf]
  %v19 = vld [vmem:[%s0 + $0x18] sm:$0xff]
  %v20 = vld [vmem:[%s0 + $0x20] sm:$0xf]
  %v21 = vld [vmem:[%s0 + $0x24] sm:$0xff]
  %v22 = vld [vmem:[%s0 + $0x2c] sm:$0xf]
  %v23 = vld [vmem:[%s0 + $0x30] sm:$0xff]
  %v24 = vld [vmem:[%s0 + $0x38] sm:$0xf]
  %v25 = vld [vmem:[%s0 + $0x3c] sm:$0xff]
  %v26 = vld [vmem:[%s0 + $0x44] sm:$0xf]
  %v27 = vld [vmem:[%s0 + $0x48] sm:$0xff]
  %v28 = vld [vmem:[%s0 + $0x50] sm:$0xf]
  %v29 = vld [vmem:[%s0 + $0x54] sm:$0xff]
  %v30 = vld [vmem:[%s0 + $0x5c] sm:$0xf]
  %v31 = vld [vmem:[%s0 + $0x60] sm:$0xff]
  %v32 = vld [vmem:[%s0 + $0x68] sm:$0xf]
  %v33 = vld [vmem:[%s0 + $0x6c] sm:$0xff]
  %v34 = vld [vmem:[%s0 + $0x74] sm:$0xf]
  %v35 = vld [vmem:[%s0 + $0x78] sm:$0xff]
  %v36 = vld [vmem:[%s0 + $0x80] sm:$0xf]
  %v37 = vld [vmem:[%s0 + $0x84] sm:$0xff]
  %v38 = vld [vmem:[%s0 + $0x8c] sm:$0xf]
  %v39 = vld [vmem:[%s0 + $0x90] sm:$0xff]
  %v40 = vld [vmem:[%s0 + $0x98] sm:$0xf]
  %v41 = vld [vmem:[%s0 + $0x9c] sm:$0xff]
  %v42 = vld [vmem:[%s0 + $0xa4] sm:$0xf]
  %v43 = vld [vmem:[%s0 + $0xa8] sm:$0xff]
  %v44 = vld [vmem:[%s0 + $0xb0] sm:$0xf]
  %v45 = vld [vmem:[%s0 + $0xb4] sm:$0xff]
  %v46 = vld [vmem:[%s0 + $0xbc] sm:$0xf]
  %v47 = vld [vmem:[%s0 + $0xc0] sm:$0xff]
  %v48 = vld [vmem:[%s0 + $0xc8] sm:$0xf]
  %v49 = vld [vmem:[%s0 + $0xcc] sm:$0xff]
  %v50 = vld [vmem:[%s0 + $0xd4] sm:$0xf]
  %v51 = vld [vmem:[%s0 + $0xd8] sm:$0xff]
  %v52 = vld [vmem:[%s0 + $0xe0] sm:$0xf]
  %v53 = vld [vmem:[%s0 + $0xe4] sm:$0xff]
  %v54 = vld [vmem:[%s0 + $0xec] sm:$0xf]
  %v55 = vld [vmem:[%s0 + $0xf0] sm:$0xff]
  %v56 = vld [vmem:[%s0 + $0xf8] sm:$0xf]
  %v57 = vld [vmem:[%s0 + $0xfc] sm:$0xff]
  %v58 = vld [vmem:[%s0 + $0x104] sm:$0xf]
  %v59 = vld [vmem:[%s0 + $0x108] sm:$0xff]
  %v60 = vld [vmem:[%s0 + $0x110] sm:$0xf]
  %v61 = vld [vmem:[%s0 + $0x114] sm:$0xff]
  %v62 = vld [vmem:[%s0 + $0x11c] sm:$0xf]
  %v63 = vld [vmem:[%s0 + $0x120] sm:$0xff]
  %v64 = vld [vmem:[%s0 + $0x128] sm:$0xf]
  %v65 = vld [vmem:[%s1] sm:$0xf]
  %v66 = vld [vmem:[%s1 + $0x4] sm:$0xf]
  %v67 = vld [vmem:[%s1 + $0x8] sm:$0xf]
  %v68 = vld [vmem:[%s1 + $0xc] sm:$0xf]
  %v69 = vld [vmem:[%s1 + $0x10] sm:$0xf]
  %v70 = vld [vmem:[%s1 + $0x14] sm:$0xf]
  %v71 = vld [vmem:[%s1 + $0x18] sm:$0xf]
  %v72 = vld [vmem:[%s1 + $0x1c] sm:$0xf]
  %v73 = vld [vmem:[%s1 + $0x20] sm:$0xf]
  %v74 = vld [vmem:[%s1 + $0x24] sm:$0xf]
  %v75 = vld [vmem:[%s1 + $0x28] sm:$0xf]
  %v76 = vld [vmem:[%s1 + $0x2c] sm:$0xf]
  %v77 = vld [vmem:[%s1 + $0x30] sm:$0xf]
  %v78 = vld [vmem:[%s1 + $0x34] sm:$0xf]
  %v79 = vld [vmem:[%s1 + $0x38] sm:$0xf]
  %v80 = vld [vmem:[%s1 + $0x3c] sm:$0xf]
  %v81 = vld [vmem:[%s1 + $0x40] sm:$0xf]
  %v82 = vld [vmem:[%s1 + $0x44] sm:$0xf]
  %v83 = vld [vmem:[%s1 + $0x48] sm:$0xf]
  %v84 = vld [vmem:[%s1 + $0x4c] sm:$0xf]
  %v85 = vld [vmem:[%s1 + $0x50] sm:$0xf]
  %v86 = vld [vmem:[%s1 + $0x54] sm:$0xf]
  %v87 = vld [vmem:[%s1 + $0x58] sm:$0xf]
  %v88 = vld [vmem:[%s1 + $0x5c] sm:$0xf]
  %v89 = vld [vmem:[%s1 + $0x60] sm:$0xf]
  %v90 = vld [vmem:[%s1 + $0x64] sm:$0xf]
  %v91 = vld [vmem:[%s1 + $0x68] sm:$0xf]
  %v92 = vld [vmem:[%s1 + $0x6c] sm:$0xf]
  %v93 = vld [vmem:[%s1 + $0x70] sm:$0xf]
  %v94 = vld [vmem:[%s1 + $0x74] sm:$0xf]
  %v95 = vld [vmem:[%s1 + $0x78] sm:$0xf]
  %v96 = vld [vmem:[%s1 + $0x7c] sm:$0xf]
  %v97 = vld [vmem:[%s1 + $0x80] sm:$0xf]
  %v98 = vld [vmem:[%s1 + $0x84] sm:$0xf]
  %v99 = vld [vmem:[%s1 + $0x88] sm:$0xf]
  %v100 = vld [vmem:[%s1 + $0x8c] sm:$0xf]
  %v101 = vld [vmem:[%s2] sm:$0x1]
  %v103 = vperm.slane %v101, 0
  %v155 = vunpack.c.l.b16 %v15
  %v156 = vunpack.c.h.b16 %v15
  %v157 = vunpack.c.l.b16 %v16
  %v158 = vunpack.c.l.b16 %v17
  %v159 = vunpack.c.h.b16 %v17
  %v160 = vunpack.c.l.b16 %v18
  %v161 = vunpack.c.l.b16 %v19
  %v162 = vunpack.c.h.b16 %v19
  %v163 = vunpack.c.l.b16 %v20
  %v164 = vunpack.c.l.b16 %v21
  %v165 = vunpack.c.h.b16 %v21
  %v166 = vunpack.c.l.b16 %v22
  %v167 = vunpack.c.l.b16 %v23
  %v168 = vunpack.c.h.b16 %v23
  %v169 = vunpack.c.l.b16 %v24
  %v170 = vunpack.c.l.b16 %v25
  %v171 = vunpack.c.h.b16 %v25
  %v172 = vunpack.c.l.b16 %v26
  %v173 = vunpack.c.l.b16 %v27
  %v174 = vunpack.c.h.b16 %v27
  %v175 = vunpack.c.l.b16 %v28
  %v176 = vunpack.c.l.b16 %v29
  %v177 = vunpack.c.h.b16 %v29
  %v178 = vunpack.c.l.b16 %v30
  %v179 = vunpack.c.l.b16 %v31
  %v180 = vunpack.c.h.b16 %v31
  %v181 = vunpack.c.l.b16 %v32
  %v182 = vunpack.c.l.b16 %v33
  %v183 = vunpack.c.h.b16 %v33
  %v184 = vunpack.c.l.b16 %v34
  %v185 = vunpack.c.l.b16 %v35
  %v186 = vunpack.c.h.b16 %v35
  %v187 = vunpack.c.l.b16 %v36
  %v188 = vunpack.c.l.b16 %v37
  %v189 = vunpack.c.h.b16 %v37
  %v190 = vunpack.c.l.b16 %v38
  %v191 = vunpack.c.l.b16 %v39
  %v192 = vunpack.c.h.b16 %v39
  %v193 = vunpack.c.l.b16 %v40
  %v194 = vunpack.c.l.b16 %v41
  %v195 = vunpack.c.h.b16 %v41
  %v196 = vunpack.c.l.b16 %v42
  %v197 = vunpack.c.l.b16 %v43
  %v198 = vunpack.c.h.b16 %v43
  %v199 = vunpack.c.l.b16 %v44
  %v200 = vunpack.c.l.b16 %v45
  %v201 = vunpack.c.h.b16 %v45
  %v202 = vunpack.c.l.b16 %v46
  %v203 = vunpack.c.l.b16 %v47
  %v204 = vunpack.c.h.b16 %v47
  %v205 = vunpack.c.l.b16 %v48
  %v206 = vunpack.c.l.b16 %v49
  %v207 = vunpack.c.h.b16 %v49
  %v208 = vunpack.c.l.b16 %v50
  %v209 = vunpack.c.l.b16 %v51
  %v210 = vunpack.c.h.b16 %v51
  %v211 = vunpack.c.l.b16 %v52
  %v212 = vunpack.c.l.b16 %v53
  %v213 = vunpack.c.h.b16 %v53
  %v214 = vunpack.c.l.b16 %v54
  %v215 = vunpack.c.l.b16 %v55
  %v216 = vunpack.c.h.b16 %v55
  %v217 = vunpack.c.l.b16 %v56
  %v218 = vunpack.c.l.b16 %v57
  %v219 = vunpack.c.h.b16 %v57
  %v220 = vunpack.c.l.b16 %v58
  %v221 = vunpack.c.l.b16 %v59
  %v222 = vunpack.c.h.b16 %v59
  %v223 = vunpack.c.l.b16 %v60
  %v224 = vunpack.c.l.b16 %v61
  %v225 = vunpack.c.h.b16 %v61
  %v226 = vunpack.c.l.b16 %v62
  %v227 = vunpack.c.l.b16 %v63
  %v228 = vunpack.c.h.b16 %v63
  %v229 = vunpack.c.l.b16 %v64
  %v230 = vpack.c.b16 %v158, %v155
  %v231 = vpack.c.b16 %v159, %v156
  %v232 = vpack.c.b16 %v160, %v157
  %v233 = vpack.c.b16 %v164, %v161
  %v234 = vpack.c.b16 %v165, %v162
  %v235 = vpack.c.b16 %v166, %v163
  %v236 = vpack.c.b16 %v170, %v167
  %v237 = vpack.c.b16 %v171, %v168
  %v238 = vpack.c.b16 %v172, %v169
  %v239 = vpack.c.b16 %v176, %v173
  %v240 = vpack.c.b16 %v177, %v174
  %v241 = vpack.c.b16 %v178, %v175
  %v242 = vpack.c.b16 %v182, %v179
  %v243 = vpack.c.b16 %v183, %v180
  %v244 = vpack.c.b16 %v184, %v181
  %v245 = vpack.c.b16 %v188, %v185
  %v246 = vpack.c.b16 %v189, %v186
  %v247 = vpack.c.b16 %v190, %v187
  %v248 = vpack.c.b16 %v194, %v191
  %v249 = vpack.c.b16 %v195, %v192
  %v250 = vpack.c.b16 %v196, %v193
  %v251 = vpack.c.b16 %v200, %v197
  %v252 = vpack.c.b16 %v201, %v198
  %v253 = vpack.c.b16 %v202, %v199
  %v254 = vpack.c.b16 %v206, %v203
  %v255 = vpack.c.b16 %v207, %v204
  %v256 = vpack.c.b16 %v208, %v205
  %v257 = vpack.c.b16 %v212, %v209
  %v258 = vpack.c.b16 %v213, %v210
  %v259 = vpack.c.b16 %v214, %v211
  %v260 = vpack.c.b16 %v218, %v215
  %v261 = vpack.c.b16 %v219, %v216
  %v262 = vpack.c.b16 %v220, %v217
  %v263 = vpack.c.b16 %v224, %v221
  %v264 = vpack.c.b16 %v225, %v222
  %v265 = vpack.c.b16 %v226, %v223
  %v266 = vpack.c.b16 %v227, %v227
  %v267 = vpack.c.b16 %v228, %v228
  %v268 = vpack.c.b16 %v229, %v229
  %v331 = vunpack.c.l.b16 %v65
  %v332 = vunpack.c.l.b16 %v66
  %v333 = vunpack.c.l.b16 %v67
  %v334 = vunpack.c.l.b16 %v68
  %v335 = vunpack.c.l.b16 %v69
  %v336 = vunpack.c.l.b16 %v70
  %v337 = vunpack.c.l.b16 %v71
  %v338 = vunpack.c.l.b16 %v72
  %v339 = vunpack.c.l.b16 %v73
  %v340 = vunpack.c.l.b16 %v74
  %v341 = vunpack.c.l.b16 %v75
  %v342 = vunpack.c.l.b16 %v76
  %v343 = vunpack.c.l.b16 %v77
  %v344 = vunpack.c.l.b16 %v78
  %v345 = vunpack.c.l.b16 %v79
  %v346 = vunpack.c.l.b16 %v80
  %v347 = vunpack.c.l.b16 %v81
  %v348 = vunpack.c.l.b16 %v82
  %v349 = vunpack.c.l.b16 %v83
  %v350 = vunpack.c.l.b16 %v84
  %v351 = vunpack.c.l.b16 %v85
  %v352 = vunpack.c.l.b16 %v86
  %v353 = vunpack.c.l.b16 %v87
  %v354 = vunpack.c.l.b16 %v88
  %v355 = vunpack.c.l.b16 %v89
  %v356 = vunpack.c.l.b16 %v90
  %v357 = vunpack.c.l.b16 %v91
  %v358 = vunpack.c.l.b16 %v92
  %v359 = vunpack.c.l.b16 %v93
  %v360 = vunpack.c.l.b16 %v94
  %v361 = vunpack.c.l.b16 %v95
  %v362 = vunpack.c.l.b16 %v96
  %v363 = vunpack.c.l.b16 %v97
  %v364 = vunpack.c.l.b16 %v98
  %v365 = vunpack.c.l.b16 %v99
  %v366 = vunpack.c.l.b16 %v100
  %v367 = vpack.c.b16 %v332, %v331
  %v368 = vpack.c.b16 %v334, %v333
  %v369 = vpack.c.b16 %v336, %v335
  %v370 = vpack.c.b16 %v338, %v337
  %v371 = vpack.c.b16 %v340, %v339
  %v372 = vpack.c.b16 %v342, %v341
  %v373 = vpack.c.b16 %v344, %v343
  %v374 = vpack.c.b16 %v346, %v345
  %v375 = vpack.c.b16 %v348, %v347
  %v376 = vpack.c.b16 %v350, %v349
  %v377 = vpack.c.b16 %v352, %v351
  %v378 = vpack.c.b16 %v354, %v353
  %v379 = vpack.c.b16 %v356, %v355
  %v380 = vpack.c.b16 %v358, %v357
  %v381 = vpack.c.b16 %v360, %v359
  %v382 = vpack.c.b16 %v362, %v361
  %v383 = vpack.c.b16 %v364, %v363
  %v384 = vpack.c.b16 %v366, %v365
  %vm403 = vcmask 261120
  %v405 = vsel %vm403, %v232, 0
  %v408 = vsel %vm403, %v235, 0
  %v411 = vsel %vm403, %v238, 0
  %v414 = vsel %vm403, %v241, 0
  %v417 = vsel %vm403, %v244, 0
  %v420 = vsel %vm403, %v247, 0
  %v423 = vsel %vm403, %v250, 0
  %v426 = vsel %vm403, %v253, 0
  %v429 = vsel %vm403, %v256, 0
  %v432 = vsel %vm403, %v259, 0
  %v435 = vsel %vm403, %v262, 0
  %v438 = vsel %vm403, %v265, 0
  %v441 = vsel %vm403, %v268, 0
  %443 = vmatpush.bf16.msra.mxu0 %v374
  %444 = vmatpush.bf16.msra.mxu0 %v373
  %445 = vmatpush.bf16.msra.mxu0 %v372
  %446 = vmatpush.bf16.msra.mxu0 %v371
  %447 = vmatpush.bf16.msra.mxu0 %v370
  %448 = vmatpush.bf16.msra.mxu0 %v369
  %449 = vmatpush.bf16.msra.mxu0 %v368
  %450 = vmatpush.bf16.msra.mxu0 %v367
  %451 = vmatmul.bf16.gmra.mxu0 %v230
  %v452 = vpop.f32.mrf.mxu0
  %v453 = vadd.f32 %v103, %v452
  %v454 = vpop.f32.mrf.mxu0
  %v455 = vadd.f32 %v103, %v454
  %456 = vmatmul.bf16.gmra.mxu0 %v233
  %v457 = vpop.f32.mrf.mxu0
  %v458 = vadd.f32 %v103, %v457
  %v459 = vpop.f32.mrf.mxu0
  %v460 = vadd.f32 %v103, %v459
  %461 = vmatmul.bf16.gmra.mxu0 %v236
  %v462 = vpop.f32.mrf.mxu0
  %v463 = vadd.f32 %v103, %v462
  %v464 = vpop.f32.mrf.mxu0
  %v465 = vadd.f32 %v103, %v464
  %466 = vmatmul.bf16.gmra.mxu0 %v239
  %v467 = vpop.f32.mrf.mxu0
  %v468 = vadd.f32 %v103, %v467
  %v469 = vpop.f32.mrf.mxu0
  %v470 = vadd.f32 %v103, %v469
  %471 = vmatmul.bf16.gmra.mxu0 %v242
  %v472 = vpop.f32.mrf.mxu0
  %v473 = vadd.f32 %v103, %v472
  %v474 = vpop.f32.mrf.mxu0
  %v475 = vadd.f32 %v103, %v474
  %476 = vmatmul.bf16.gmra.mxu0 %v245
  %v477 = vpop.f32.mrf.mxu0
  %v478 = vadd.f32 %v103, %v477
  %v479 = vpop.f32.mrf.mxu0
  %v480 = vadd.f32 %v103, %v479
  %481 = vmatmul.bf16.gmra.mxu0 %v248
  %v482 = vpop.f32.mrf.mxu0
  %v483 = vadd.f32 %v103, %v482
  %v484 = vpop.f32.mrf.mxu0
  %v485 = vadd.f32 %v103, %v484
  %486 = vmatmul.bf16.gmra.mxu0 %v251
  %v487 = vpop.f32.mrf.mxu0
  %v488 = vadd.f32 %v103, %v487
  %v489 = vpop.f32.mrf.mxu0
  %v490 = vadd.f32 %v103, %v489
  %491 = vmatmul.bf16.gmra.mxu0 %v254
  %v492 = vpop.f32.mrf.mxu0
  %v493 = vadd.f32 %v103, %v492
  %v494 = vpop.f32.mrf.mxu0
  %v495 = vadd.f32 %v103, %v494
  %496 = vmatmul.bf16.gmra.mxu0 %v257
  %v497 = vpop.f32.mrf.mxu0
  %v498 = vadd.f32 %v103, %v497
  %v499 = vpop.f32.mrf.mxu0
  %v500 = vadd.f32 %v103, %v499
  %501 = vmatmul.bf16.gmra.mxu0 %v260
  %v502 = vpop.f32.mrf.mxu0
  %v503 = vadd.f32 %v103, %v502
  %v504 = vpop.f32.mrf.mxu0
  %v505 = vadd.f32 %v103, %v504
  %506 = vmatmul.bf16.gmra.mxu0 %v263
  %v507 = vpop.f32.mrf.mxu0
  %v508 = vadd.f32 %v103, %v507
  %v509 = vpop.f32.mrf.mxu0
  %v510 = vadd.f32 %v103, %v509
  %511 = vmatmul.bf16.gmra.mxu0 %v266
  %v512 = vpop.f32.mrf.mxu0
  %v513 = vadd.f32 %v103, %v512
  %v514 = vpop.f32.mrf.mxu0
  %515 = vdwg.mxu0
  %516 = vmatpush.bf16.msra.mxu0 %v382
  %517 = vmatpush.bf16.msra.mxu0 %v381
  %518 = vmatpush.bf16.msra.mxu0 %v380
  %519 = vmatpush.bf16.msra.mxu0 %v379
  %520 = vmatpush.bf16.msra.mxu0 %v378
  %521 = vmatpush.bf16.msra.mxu0 %v377
  %522 = vmatpush.bf16.msra.mxu0 %v376
  %523 = vmatpush.bf16.msra.mxu0 %v375
  %524 = vmatmul.bf16.gmra.mxu0 %v231
  %v525 = vpop.f32.mrf.mxu0
  %v526 = vadd.f32 %v453, %v525
  %v527 = vpop.f32.mrf.mxu0
  %v528 = vadd.f32 %v455, %v527
  %529 = vmatmul.bf16.gmra.mxu0 %v234
  %v530 = vpop.f32.mrf.mxu0
  %v531 = vadd.f32 %v458, %v530
  %v532 = vpop.f32.mrf.mxu0
  %v533 = vadd.f32 %v460, %v532
  %534 = vmatmul.bf16.gmra.mxu0 %v237
  %v535 = vpop.f32.mrf.mxu0
  %v536 = vadd.f32 %v463, %v535
  %v537 = vpop.f32.mrf.mxu0
  %v538 = vadd.f32 %v465, %v537
  %539 = vmatmul.bf16.gmra.mxu0 %v240
  %v540 = vpop.f32.mrf.mxu0
  %v541 = vadd.f32 %v468, %v540
  %v542 = vpop.f32.mrf.mxu0
  %v543 = vadd.f32 %v470, %v542
  %544 = vmatmul.bf16.gmra.mxu0 %v243
  %v545 = vpop.f32.mrf.mxu0
  %v546 = vadd.f32 %v473, %v545
  %v547 = vpop.f32.mrf.mxu0
  %v548 = vadd.f32 %v475, %v547
  %549 = vmatmul.bf16.gmra.mxu0 %v246
  %v550 = vpop.f32.mrf.mxu0
  %v551 = vadd.f32 %v478, %v550
  %v552 = vpop.f32.mrf.mxu0
  %v553 = vadd.f32 %v480, %v552
  %554 = vmatmul.bf16.gmra.mxu0 %v249
  %v555 = vpop.f32.mrf.mxu0
  %v556 = vadd.f32 %v483, %v555
  %v557 = vpop.f32.mrf.mxu0
  %v558 = vadd.f32 %v485, %v557
  %559 = vmatmul.bf16.gmra.mxu0 %v252
  %v560 = vpop.f32.mrf.mxu0
  %v561 = vadd.f32 %v488, %v560
  %v562 = vpop.f32.mrf.mxu0
  %v563 = vadd.f32 %v490, %v562
  %564 = vmatmul.bf16.gmra.mxu0 %v255
  %v565 = vpop.f32.mrf.mxu0
  %v566 = vadd.f32 %v493, %v565
  %v567 = vpop.f32.mrf.mxu0
  %v568 = vadd.f32 %v495, %v567
  %569 = vmatmul.bf16.gmra.mxu0 %v258
  %v570 = vpop.f32.mrf.mxu0
  %v571 = vadd.f32 %v498, %v570
  %v572 = vpop.f32.mrf.mxu0
  %v573 = vadd.f32 %v500, %v572
  %574 = vmatmul.bf16.gmra.mxu0 %v261
  %v575 = vpop.f32.mrf.mxu0
  %v576 = vadd.f32 %v503, %v575
  %v577 = vpop.f32.mrf.mxu0
  %v578 = vadd.f32 %v505, %v577
  %579 = vmatmul.bf16.gmra.mxu0 %v264
  %v580 = vpop.f32.mrf.mxu0
  %v581 = vadd.f32 %v508, %v580
  %v582 = vpop.f32.mrf.mxu0
  %v583 = vadd.f32 %v510, %v582
  %584 = vmatmul.bf16.gmra.mxu0 %v267
  %v585 = vpop.f32.mrf.mxu0
  %v586 = vadd.f32 %v513, %v585
  %v587 = vpop.f32.mrf.mxu0
  %588 = vdwg.mxu0
  %589 = vmatpush.bf16.msra.mxu0 0
  %590 = vmatpush.bf16.msra.mxu0 0
  %591 = vmatpush.bf16.msra.mxu0 0
  %592 = vmatpush.bf16.msra.mxu0 0
  %593 = vmatpush.bf16.msra.mxu0 0
  %594 = vmatpush.bf16.msra.mxu0 0
  %595 = vmatpush.bf16.msra.mxu0 %v384
  %596 = vmatpush.bf16.msra.mxu0 %v383
  %597 = vmatmul.bf16.gmra.mxu0 %v405
  %v598 = vpop.f32.mrf.mxu0
  %v599 = vadd.f32 %v526, %v598
  %v600 = vpop.f32.mrf.mxu0
  %v601 = vadd.f32 %v528, %v600
  %602 = vmatmul.bf16.gmra.mxu0 %v408
  %v603 = vpop.f32.mrf.mxu0
  %v604 = vadd.f32 %v531, %v603
  %v605 = vpop.f32.mrf.mxu0
  %v606 = vadd.f32 %v533, %v605
  %607 = vmatmul.bf16.gmra.mxu0 %v411
  %v608 = vpop.f32.mrf.mxu0
  %v609 = vadd.f32 %v536, %v608
  %v610 = vpop.f32.mrf.mxu0
  %v611 = vadd.f32 %v538, %v610
  %612 = vmatmul.bf16.gmra.mxu0 %v414
  %v613 = vpop.f32.mrf.mxu0
  %v614 = vadd.f32 %v541, %v613
  %v615 = vpop.f32.mrf.mxu0
  %v616 = vadd.f32 %v543, %v615
  %617 = vmatmul.bf16.gmra.mxu0 %v417
  %v618 = vpop.f32.mrf.mxu0
  %v619 = vadd.f32 %v546, %v618
  %v620 = vpop.f32.mrf.mxu0
  %v621 = vadd.f32 %v548, %v620
  %622 = vmatmul.bf16.gmra.mxu0 %v420
  %v623 = vpop.f32.mrf.mxu0
  %v624 = vadd.f32 %v551, %v623
  %v625 = vpop.f32.mrf.mxu0
  %v626 = vadd.f32 %v553, %v625
  %627 = vmatmul.bf16.gmra.mxu0 %v423
  %v628 = vpop.f32.mrf.mxu0
  %v629 = vadd.f32 %v556, %v628
  %v630 = vpop.f32.mrf.mxu0
  %v631 = vadd.f32 %v558, %v630
  %632 = vmatmul.bf16.gmra.mxu0 %v426
  %v633 = vpop.f32.mrf.mxu0
  %v634 = vadd.f32 %v561, %v633
  %v635 = vpop.f32.mrf.mxu0
  %v636 = vadd.f32 %v563, %v635
  %637 = vmatmul.bf16.gmra.mxu0 %v429
  %v638 = vpop.f32.mrf.mxu0
  %v639 = vadd.f32 %v566, %v638
  %v640 = vpop.f32.mrf.mxu0
  %v641 = vadd.f32 %v568, %v640
  %642 = vmatmul.bf16.gmra.mxu0 %v432
  %v643 = vpop.f32.mrf.mxu0
  %v644 = vadd.f32 %v571, %v643
  %v645 = vpop.f32.mrf.mxu0
  %v646 = vadd.f32 %v573, %v645
  %647 = vmatmul.bf16.gmra.mxu0 %v435
  %v648 = vpop.f32.mrf.mxu0
  %v649 = vadd.f32 %v576, %v648
  %v650 = vpop.f32.mrf.mxu0
  %v651 = vadd.f32 %v578, %v650
  %652 = vmatmul.bf16.gmra.mxu0 %v438
  %v653 = vpop.f32.mrf.mxu0
  %v654 = vadd.f32 %v581, %v653
  %v655 = vpop.f32.mrf.mxu0
  %v656 = vadd.f32 %v583, %v655
  %657 = vmatmul.bf16.gmra.mxu0 %v441
  %v658 = vpop.f32.mrf.mxu0
  %v659 = vadd.f32 %v586, %v658
  %v660 = vpop.f32.mrf.mxu0
  %661 = vdwg.mxu0
  %vm662 = vcmask 31744
  %663 = vst.msk [vmem:[%s3] sm:$0xff] %vm662, %v599
  %664 = vst.msk [vmem:[%s3 + $0x8] sm:$0xff] %vm662, %v601
  %665 = vst.msk [vmem:[%s3 + $0x10] sm:$0xff] %vm662, %v604
  %666 = vst.msk [vmem:[%s3 + $0x18] sm:$0xff] %vm662, %v606
  %667 = vst.msk [vmem:[%s3 + $0x20] sm:$0xff] %vm662, %v609
  %668 = vst.msk [vmem:[%s3 + $0x28] sm:$0xff] %vm662, %v611
  %669 = vst.msk [vmem:[%s3 + $0x30] sm:$0xff] %vm662, %v614
  %670 = vst.msk [vmem:[%s3 + $0x38] sm:$0xff] %vm662, %v616
  %671 = vst.msk [vmem:[%s3 + $0x40] sm:$0xff] %vm662, %v619
  %672 = vst.msk [vmem:[%s3 + $0x48] sm:$0xff] %vm662, %v621
  %673 = vst.msk [vmem:[%s3 + $0x50] sm:$0xff] %vm662, %v624
  %674 = vst.msk [vmem:[%s3 + $0x58] sm:$0xff] %vm662, %v626
  %675 = vst.msk [vmem:[%s3 + $0x60] sm:$0xff] %vm662, %v629
  %676 = vst.msk [vmem:[%s3 + $0x68] sm:$0xff] %vm662, %v631
  %677 = vst.msk [vmem:[%s3 + $0x70] sm:$0xff] %vm662, %v634
  %678 = vst.msk [vmem:[%s3 + $0x78] sm:$0xff] %vm662, %v636
  %679 = vst.msk [vmem:[%s3 + $0x80] sm:$0xff] %vm662, %v639
  %680 = vst.msk [vmem:[%s3 + $0x88] sm:$0xff] %vm662, %v641
  %681 = vst.msk [vmem:[%s3 + $0x90] sm:$0xff] %vm662, %v644
  %682 = vst.msk [vmem:[%s3 + $0x98] sm:$0xff] %vm662, %v646
  %683 = vst.msk [vmem:[%s3 + $0xa0] sm:$0xff] %vm662, %v649
  %684 = vst.msk [vmem:[%s3 + $0xa8] sm:$0xff] %vm662, %v651
  %685 = vst.msk [vmem:[%s3 + $0xb0] sm:$0xff] %vm662, %v654
  %686 = vst.msk [vmem:[%s3 + $0xb8] sm:$0xff] %vm662, %v656
  %687 = vst.msk [vmem:[%s3 + $0xc0] sm:$0xff] %vm662, %v659
  // Predicated region
  $region14: #{gcnet_forward.45} parent=0 // pred_check
    _
  $region15: #{gcnet_forward.45} parent=0 // pred_check_branch
    %689 = sbr.rel (0) target = $region17
  $region16: #{gcnet_forward.45} parent=0 // pred_region
    _
  $region17: #{gcnet_forward.45} parent=0 // pred_fallthru
    _
  // Predicated region
  $region18: #{gcnet_forward.45} parent=0 // pred_check
    _
  $region19: #{gcnet_forward.45} parent=0 // pred_check_branch
    %691 = sbr.rel (0) target = $region21
  $region20: #{gcnet_forward.45} parent=0 // pred_region
    _
  $region21: #{gcnet_forward.45} parent=0 // pred_fallthru
    _

// kernel: gcnet_forward.41
$region0: #{gcnet_forward.41}
  #allocation0 [shape = 'u32[]', space=smem, size = 0x4, offset = 0x4, fixed_abs, tag = 'smem constant byte address 0x4 - core index']
  #allocation1 [shape = 'u32[72,128]{1,0:T(1,128)}', space=vmem, size = 0x9000, scoped, tag = 'internal scratch']
  %s0 = inlined_call_operand.vmem [shape: bf16[200,576], index: 0, kind: input, shape index: {}]
  %s1 = inlined_call_operand.vmem [shape: bf16[576,32], index: 1, kind: input, shape index: {}]
  %s2 = inlined_call_operand.vmem [shape: f32[1,32], index: 2, kind: input, shape index: {}]
  %s3 = inlined_call_operand.vmem [shape: f32[200,32], index: 3, kind: output, shape index: {}]
  %s4 = sld [smem:[#allocation0]]
  $region22: #{gcnet_forward.41} parent=0
    _
  %s6 = ssub.s32 1, %s4
  %s7 = scalar_select 0, %s6, %s4
  // Predicated region
  $region2: #{gcnet_forward.41} parent=0 // pred_check
    _
  $region3: #{gcnet_forward.41} parent=0 // pred_check_branch
    %9 = sbr.rel (0) target = $region5
  $region4: #{gcnet_forward.41} parent=0 // pred_region
    _
  $region5: #{gcnet_forward.41} parent=0 // pred_fallthru
    _
  // Predicated region
  $region6: #{gcnet_forward.41} parent=0 // pred_check
    _
  $region7: #{gcnet_forward.41} parent=0 // pred_check_branch
    %11 = sbr.rel (0) target = $region9
  $region8: #{gcnet_forward.41} parent=0 // pred_region
    _
  $region9: #{gcnet_forward.41} parent=0 // pred_fallthru
    _
  // Predicated region
  $region10: #{gcnet_forward.41} parent=0 // pred_check
    _
  $region11: #{gcnet_forward.41} parent=0 // pred_check_branch
    %13 = sbr.rel (0) target = $region13
  $region12: #{gcnet_forward.41} parent=0 // pred_region
    _
  $region13: #{gcnet_forward.41} parent=0 // pred_fallthru
    _
  %v15 = vld [vmem:[%s0] sm:$0xff]
  %v16 = vld [vmem:[%s0 + $0x8] sm:$0xff]
  %v17 = vld [vmem:[%s0 + $0x10] sm:$0xf]
  %v18 = vld [vmem:[%s0 + $0x14] sm:$0xff]
  %v19 = vld [vmem:[%s0 + $0x1c] sm:$0xff]
  %v20 = vld [vmem:[%s0 + $0x24] sm:$0xf]
  %v21 = vld [vmem:[%s0 + $0x28] sm:$0xff]
  %v22 = vld [vmem:[%s0 + $0x30] sm:$0xff]
  %v23 = vld [vmem:[%s0 + $0x38] sm:$0xf]
  %v24 = vld [vmem:[%s0 + $0x3c] sm:$0xff]
  %v25 = vld [vmem:[%s0 + $0x44] sm:$0xff]
  %v26 = vld [vmem:[%s0 + $0x4c] sm:$0xf]
  %v27 = vld [vmem:[%s0 + $0x50] sm:$0xff]
  %v28 = vld [vmem:[%s0 + $0x58] sm:$0xff]
  %v29 = vld [vmem:[%s0 + $0x60] sm:$0xf]
  %v30 = vld [vmem:[%s0 + $0x64] sm:$0xff]
  %v31 = vld [vmem:[%s0 + $0x6c] sm:$0xff]
  %v32 = vld [vmem:[%s0 + $0x74] sm:$0xf]
  %v33 = vld [vmem:[%s0 + $0x78] sm:$0xff]
  %v34 = vld [vmem:[%s0 + $0x80] sm:$0xff]
  %v35 = vld [vmem:[%s0 + $0x88] sm:$0xf]
  %v36 = vld [vmem:[%s0 + $0x8c] sm:$0xff]
  %v37 = vld [vmem:[%s0 + $0x94] sm:$0xff]
  %v38 = vld [vmem:[%s0 + $0x9c] sm:$0xf]
  %v39 = vld [vmem:[%s0 + $0xa0] sm:$0xff]
  %v40 = vld [vmem:[%s0 + $0xa8] sm:$0xff]
  %v41 = vld [vmem:[%s0 + $0xb0] sm:$0xf]
  %v42 = vld [vmem:[%s0 + $0xb4] sm:$0xff]
  %v43 = vld [vmem:[%s0 + $0xbc] sm:$0xff]
  %v44 = vld [vmem:[%s0 + $0xc4] sm:$0xf]
  %v45 = vld [vmem:[%s0 + $0xc8] sm:$0xff]
  %v46 = vld [vmem:[%s0 + $0xd0] sm:$0xff]
  %v47 = vld [vmem:[%s0 + $0xd8] sm:$0xf]
  %v48 = vld [vmem:[%s0 + $0xdc] sm:$0xff]
  %v49 = vld [vmem:[%s0 + $0xe4] sm:$0xff]
  %v50 = vld [vmem:[%s0 + $0xec] sm:$0xf]
  %v51 = vld [vmem:[%s0 + $0xf0] sm:$0xff]
  %v52 = vld [vmem:[%s0 + $0xf8] sm:$0xff]
  %v53 = vld [vmem:[%s0 + $0x100] sm:$0xf]
  %v54 = vld [vmem:[%s0 + $0x104] sm:$0xff]
  %v55 = vld [vmem:[%s0 + $0x10c] sm:$0xff]
  %v56 = vld [vmem:[%s0 + $0x114] sm:$0xf]
  %v57 = vld [vmem:[%s0 + $0x118] sm:$0xff]
  %v58 = vld [vmem:[%s0 + $0x120] sm:$0xff]
  %v59 = vld [vmem:[%s0 + $0x128] sm:$0xf]
  %v60 = vld [vmem:[%s0 + $0x12c] sm:$0xff]
  %v61 = vld [vmem:[%s0 + $0x134] sm:$0xff]
  %v62 = vld [vmem:[%s0 + $0x13c] sm:$0xf]
  %v63 = vld [vmem:[%s0 + $0x140] sm:$0xff]
  %v64 = vld [vmem:[%s0 + $0x148] sm:$0xff]
  %v65 = vld [vmem:[%s0 + $0x150] sm:$0xf]
  %v66 = vld [vmem:[%s0 + $0x154] sm:$0xff]
  %v67 = vld [vmem:[%s0 + $0x15c] sm:$0xff]
  %v68 = vld [vmem:[%s0 + $0x164] sm:$0xf]
  %v69 = vld [vmem:[%s0 + $0x168] sm:$0xff]
  %v70 = vld [vmem:[%s0 + $0x170] sm:$0xff]
  %v71 = vld [vmem:[%s0 + $0x178] sm:$0xf]
  %v72 = vld [vmem:[%s0 + $0x17c] sm:$0xff]
  %v73 = vld [vmem:[%s0 + $0x184] sm:$0xff]
  %v74 = vld [vmem:[%s0 + $0x18c] sm:$0xf]
  %v75 = vld [vmem:[%s0 + $0x190] sm:$0xff]
  %v76 = vld [vmem:[%s0 + $0x198] sm:$0xff]
  %v77 = vld [vmem:[%s0 + $0x1a0] sm:$0xf]
  %v78 = vld [vmem:[%s0 + $0x1a4] sm:$0xff]
  %v79 = vld [vmem:[%s0 + $0x1ac] sm:$0xff]
  %v80 = vld [vmem:[%s0 + $0x1b4] sm:$0xf]
  %v81 = vld [vmem:[%s0 + $0x1b8] sm:$0xff]
  %v82 = vld [vmem:[%s0 + $0x1c0] sm:$0xff]
  %v83 = vld [vmem:[%s0 + $0x1c8] sm:$0xf]
  %v84 = vld [vmem:[%s0 + $0x1cc] sm:$0xff]
  %v85 = vld [vmem:[%s0 + $0x1d4] sm:$0xff]
  %v86 = vld [vmem:[%s0 + $0x1dc] sm:$0xf]
  %v87 = vld [vmem:[%s0 + $0x1e0] sm:$0xff]
  %v88 = vld [vmem:[%s0 + $0x1e8] sm:$0xff]
  %v89 = vld [vmem:[%s0 + $0x1f0] sm:$0xf]
  %v90 = vld [vmem:[%s1] sm:$0xf]
  %v91 = vld [vmem:[%s1 + $0x4] sm:$0xf]
  %v92 = vld [vmem:[%s1 + $0x8] sm:$0xf]
  %v93 = vld [vmem:[%s1 + $0xc] sm:$0xf]
  %v94 = vld [vmem:[%s1 + $0x10] sm:$0xf]
  %v95 = vld [vmem:[%s1 + $0x14] sm:$0xf]
  %v96 = vld [vmem:[%s1 + $0x18] sm:$0xf]
  %v97 = vld [vmem:[%s1 + $0x1c] sm:$0xf]
  %v98 = vld [vmem:[%s1 + $0x20] sm:$0xf]
  %v99 = vld [vmem:[%s1 + $0x24] sm:$0xf]
  %v100 = vld [vmem:[%s1 + $0x28] sm:$0xf]
  %v101 = vld [vmem:[%s1 + $0x2c] sm:$0xf]
  %v102 = vld [vmem:[%s1 + $0x30] sm:$0xf]
  %v103 = vld [vmem:[%s1 + $0x34] sm:$0xf]
  %v104 = vld [vmem:[%s1 + $0x38] sm:$0xf]
  %v105 = vld [vmem:[%s1 + $0x3c] sm:$0xf]
  %v106 = vld [vmem:[%s1 + $0x40] sm:$0xf]
  %v107 = vld [vmem:[%s1 + $0x44] sm:$0xf]
  %v108 = vld [vmem:[%s1 + $0x48] sm:$0xf]
  %v109 = vld [vmem:[%s1 + $0x4c] sm:$0xf]
  %v110 = vld [vmem:[%s1 + $0x50] sm:$0xf]
  %v111 = vld [vmem:[%s1 + $0x54] sm:$0xf]
  %v112 = vld [vmem:[%s1 + $0x58] sm:$0xf]
  %v113 = vld [vmem:[%s1 + $0x5c] sm:$0xf]
  %v114 = vld [vmem:[%s1 + $0x60] sm:$0xf]
  %v115 = vld [vmem:[%s1 + $0x64] sm:$0xf]
  %v116 = vld [vmem:[%s1 + $0x68] sm:$0xf]
  %v117 = vld [vmem:[%s1 + $0x6c] sm:$0xf]
  %v118 = vld [vmem:[%s1 + $0x70] sm:$0xf]
  %v119 = vld [vmem:[%s1 + $0x74] sm:$0xf]
  %v120 = vld [vmem:[%s1 + $0x78] sm:$0xf]
  %v121 = vld [vmem:[%s1 + $0x7c] sm:$0xf]
  %v122 = vld [vmem:[%s1 + $0x80] sm:$0xf]
  %v123 = vld [vmem:[%s1 + $0x84] sm:$0xf]
  %v124 = vld [vmem:[%s1 + $0x88] sm:$0xf]
  %v125 = vld [vmem:[%s1 + $0x8c] sm:$0xf]
  %v126 = vld [vmem:[%s1 + $0x90] sm:$0xf]
  %v127 = vld [vmem:[%s1 + $0x94] sm:$0xf]
  %v128 = vld [vmem:[%s1 + $0x98] sm:$0xf]
  %v129 = vld [vmem:[%s1 + $0x9c] sm:$0xf]
  %v130 = vld [vmem:[%s1 + $0xa0] sm:$0xf]
  %v131 = vld [vmem:[%s1 + $0xa4] sm:$0xf]
  %v132 = vld [vmem:[%s1 + $0xa8] sm:$0xf]
  %v133 = vld [vmem:[%s1 + $0xac] sm:$0xf]
  %v134 = vld [vmem:[%s1 + $0xb0] sm:$0xf]
  %v135 = vld [vmem:[%s1 + $0xb4] sm:$0xf]
  %v136 = vld [vmem:[%s1 + $0xb8] sm:$0xf]
  %v137 = vld [vmem:[%s1 + $0xbc] sm:$0xf]
  %v138 = vld [vmem:[%s1 + $0xc0] sm:$0xf]
  %v139 = vld [vmem:[%s1 + $0xc4] sm:$0xf]
  %v140 = vld [vmem:[%s1 + $0xc8] sm:$0xf]
  %v141 = vld [vmem:[%s1 + $0xcc] sm:$0xf]
  %v142 = vld [vmem:[%s1 + $0xd0] sm:$0xf]
  %v143 = vld [vmem:[%s1 + $0xd4] sm:$0xf]
  %v144 = vld [vmem:[%s1 + $0xd8] sm:$0xf]
  %v145 = vld [vmem:[%s1 + $0xdc] sm:$0xf]
  %v146 = vld [vmem:[%s1 + $0xe0] sm:$0xf]
  %v147 = vld [vmem:[%s1 + $0xe4] sm:$0xf]
  %v148 = vld [vmem:[%s1 + $0xe8] sm:$0xf]
  %v149 = vld [vmem:[%s1 + $0xec] sm:$0xf]
  %v150 = vld [vmem:[%s1 + $0xf0] sm:$0xf]
  %v151 = vld [vmem:[%s1 + $0xf4] sm:$0xf]
  %v152 = vld [vmem:[%s1 + $0xf8] sm:$0xf]
  %v153 = vld [vmem:[%s1 + $0xfc] sm:$0xf]
  %v154 = vld [vmem:[%s1 + $0x100] sm:$0xf]
  %v155 = vld [vmem:[%s1 + $0x104] sm:$0xf]
  %v156 = vld [vmem:[%s1 + $0x108] sm:$0xf]
  %v157 = vld [vmem:[%s1 + $0x10c] sm:$0xf]
  %v158 = vld [vmem:[%s1 + $0x110] sm:$0xf]
  %v159 = vld [vmem:[%s1 + $0x114] sm:$0xf]
  %v160 = vld [vmem:[%s1 + $0x118] sm:$0xf]
  %v161 = vld [vmem:[%s1 + $0x11c] sm:$0xf]
  %v162 = vld [vmem:[%s2] sm:$0x1]
  %v164 = vperm.slane %v162, 0
  %v241 = vunpack.c.l.b16 %v15
  %v242 = vunpack.c.h.b16 %v15
  %v243 = vunpack.c.l.b16 %v16
  %v244 = vunpack.c.h.b16 %v16
  %v245 = vunpack.c.l.b16 %v17
  %v246 = vunpack.c.l.b16 %v18
  %v247 = vunpack.c.h.b16 %v18
  %v248 = vunpack.c.l.b16 %v19
  %v249 = vunpack.c.h.b16 %v19
  %v250 = vunpack.c.l.b16 %v20
  %v251 = vunpack.c.l.b16 %v21
  %v252 = vunpack.c.h.b16 %v21
  %v253 = vunpack.c.l.b16 %v22
  %v254 = vunpack.c.h.b16 %v22
  %v255 = vunpack.c.l.b16 %v23
  %v256 = vunpack.c.l.b16 %v24
  %v257 = vunpack.c.h.b16 %v24
  %v258 = vunpack.c.l.b16 %v25
  %v259 = vunpack.c.h.b16 %v25
  %v260 = vunpack.c.l.b16 %v26
  %v261 = vunpack.c.l.b16 %v27
  %v262 = vunpack.c.h.b16 %v27
  %v263 = vunpack.c.l.b16 %v28
  %v264 = vunpack.c.h.b16 %v28
  %v265 = vunpack.c.l.b16 %v29
  %v266 = vunpack.c.l.b16 %v30
  %v267 = vunpack.c.h.b16 %v30
  %v268 = vunpack.c.l.b16 %v31
  %v269 = vunpack.c.h.b16 %v31
  %v270 = vunpack.c.l.b16 %v32
  %v271 = vunpack.c.l.b16 %v33
  %v272 = vunpack.c.h.b16 %v33
  %v273 = vunpack.c.l.b16 %v34
  %v274 = vunpack.c.h.b16 %v34
  %v275 = vunpack.c.l.b16 %v35
  %v276 = vunpack.c.l.b16 %v36
  %v277 = vunpack.c.h.b16 %v36
  %v278 = vunpack.c.l.b16 %v37
  %v279 = vunpack.c.h.b16 %v37
  %v280 = vunpack.c.l.b16 %v38
  %v281 = vunpack.c.l.b16 %v39
  %v282 = vunpack.c.h.b16 %v39
  %v283 = vunpack.c.l.b16 %v40
  %v284 = vunpack.c.h.b16 %v40
  %v285 = vunpack.c.l.b16 %v41
  %v286 = vunpack.c.l.b16 %v42
  %v287 = vunpack.c.h.b16 %v42
  %v288 = vunpack.c.l.b16 %v43
  %v289 = vunpack.c.h.b16 %v43
  %v290 = vunpack.c.l.b16 %v44
  %v291 = vunpack.c.l.b16 %v45
  %v292 = vunpack.c.h.b16 %v45
  %v293 = vunpack.c.l.b16 %v46
  %v294 = vunpack.c.h.b16 %v46
  %v295 = vunpack.c.l.b16 %v47
  %v296 = vunpack.c.l.b16 %v48
  %v297 = vunpack.c.h.b16 %v48
  %v298 = vunpack.c.l.b16 %v49
  %v299 = vunpack.c.h.b16 %v49
  %v300 = vunpack.c.l.b16 %v50
  %v301 = vunpack.c.l.b16 %v51
  %v302 = vunpack.c.h.b16 %v51
  %v303 = vunpack.c.l.b16 %v52
  %v304 = vunpack.c.h.b16 %v52
  %v305 = vunpack.c.l.b16 %v53
  %v306 = vunpack.c.l.b16 %v54
  %v307 = vunpack.c.h.b16 %v54
  %v308 = vunpack.c.l.b16 %v55
  %v309 = vunpack.c.h.b16 %v55
  %v310 = vunpack.c.l.b16 %v56
  %v311 = vunpack.c.l.b16 %v57
  %v312 = vunpack.c.h.b16 %v57
  %v313 = vunpack.c.l.b16 %v58
  %v314 = vunpack.c.h.b16 %v58
  %v315 = vunpack.c.l.b16 %v59
  %v316 = vunpack.c.l.b16 %v60
  %v317 = vunpack.c.h.b16 %v60
  %v318 = vunpack.c.l.b16 %v61
  %v319 = vunpack.c.h.b16 %v61
  %v320 = vunpack.c.l.b16 %v62
  %v321 = vunpack.c.l.b16 %v63
  %v322 = vunpack.c.h.b16 %v63
  %v323 = vunpack.c.l.b16 %v64
  %v324 = vunpack.c.h.b16 %v64
  %v325 = vunpack.c.l.b16 %v65
  %v326 = vunpack.c.l.b16 %v66
  %v327 = vunpack.c.h.b16 %v66
  %v328 = vunpack.c.l.b16 %v67
  %v329 = vunpack.c.h.b16 %v67
  %v330 = vunpack.c.l.b16 %v68
  %v331 = vunpack.c.l.b16 %v69
  %v332 = vunpack.c.h.b16 %v69
  %v333 = vunpack.c.l.b16 %v70
  %v334 = vunpack.c.h.b16 %v70
  %v335 = vunpack.c.l.b16 %v71
  %v336 = vunpack.c.l.b16 %v72
  %v337 = vunpack.c.h.b16 %v72
  %v338 = vunpack.c.l.b16 %v73
  %v339 = vunpack.c.h.b16 %v73
  %v340 = vunpack.c.l.b16 %v74
  %v341 = vunpack.c.l.b16 %v75
  %v342 = vunpack.c.h.b16 %v75
  %v343 = vunpack.c.l.b16 %v76
  %v344 = vunpack.c.h.b16 %v76
  %v345 = vunpack.c.l.b16 %v77
  %v346 = vunpack.c.l.b16 %v78
  %v347 = vunpack.c.h.b16 %v78
  %v348 = vunpack.c.l.b16 %v79
  %v349 = vunpack.c.h.b16 %v79
  %v350 = vunpack.c.l.b16 %v80
  %v351 = vunpack.c.l.b16 %v81
  %v352 = vunpack.c.h.b16 %v81
  %v353 = vunpack.c.l.b16 %v82
  %v354 = vunpack.c.h.b16 %v82
  %v355 = vunpack.c.l.b16 %v83
  %v356 = vunpack.c.l.b16 %v84
  %v357 = vunpack.c.h.b16 %v84
  %v358 = vunpack.c.l.b16 %v85
  %v359 = vunpack.c.h.b16 %v85
  %v360 = vunpack.c.l.b16 %v86
  %v361 = vunpack.c.l.b16 %v87
  %v362 = vunpack.c.h.b16 %v87
  %v363 = vunpack.c.l.b16 %v88
  %v364 = vunpack.c.h.b16 %v88
  %v365 = vunpack.c.l.b16 %v89
  %v366 = vpack.c.b16 %v246, %v241
  %v367 = vpack.c.b16 %v247, %v242
  %v368 = vpack.c.b16 %v248, %v243
  %v369 = vpack.c.b16 %v249, %v244
  %v370 = vpack.c.b16 %v250, %v245
  %v371 = vpack.c.b16 %v256, %v251
  %v372 = vpack.c.b16 %v257, %v252
  %v373 = vpack.c.b16 %v258, %v253
  %v374 = vpack.c.b16 %v259, %v254
  %v375 = vpack.c.b16 %v260, %v255
  %v376 = vpack.c.b16 %v266, %v261
  %v377 = vpack.c.b16 %v267, %v262
  %v378 = vpack.c.b16 %v268, %v263
  %v379 = vpack.c.b16 %v269, %v264
  %v380 = vpack.c.b16 %v270, %v265
  %v381 = vpack.c.b16 %v276, %v271
  %v382 = vpack.c.b16 %v277, %v272
  %v383 = vpack.c.b16 %v278, %v273
  %v384 = vpack.c.b16 %v279, %v274
  %v385 = vpack.c.b16 %v280, %v275
  %v386 = vpack.c.b16 %v286, %v281
  %v387 = vpack.c.b16 %v287, %v282
  %v388 = vpack.c.b16 %v288, %v283
  %v389 = vpack.c.b16 %v289, %v284
  %v390 = vpack.c.b16 %v290, %v285
  %v391 = vpack.c.b16 %v296, %v291
  %v392 = vpack.c.b16 %v297, %v292
  %v393 = vpack.c.b16 %v298, %v293
  %v394 = vpack.c.b16 %v299, %v294
  %v395 = vpack.c.b16 %v300, %v295
  %v396 = vpack.c.b16 %v306, %v301
  %v397 = vpack.c.b16 %v307, %v302
  %v398 = vpack.c.b16 %v308, %v303
  %v399 = vpack.c.b16 %v309, %v304
  %v400 = vpack.c.b16 %v310, %v305
  %v401 = vpack.c.b16 %v316, %v311
  %v402 = vpack.c.b16 %v317, %v312
  %v403 = vpack.c.b16 %v318, %v313
  %v404 = vpack.c.b16 %v319, %v314
  %v405 = vpack.c.b16 %v320, %v315
  %v406 = vpack.c.b16 %v326, %v321
  %v407 = vpack.c.b16 %v327, %v322
  %v408 = vpack.c.b16 %v328, %v323
  %v409 = vpack.c.b16 %v329, %v324
  %v410 = vpack.c.b16 %v330, %v325
  %v411 = vpack.c.b16 %v336, %v331
  %v412 = vpack.c.b16 %v337, %v332
  %v413 = vpack.c.b16 %v338, %v333
  %v414 = vpack.c.b16 %v339, %v334
  %v415 = vpack.c.b16 %v340, %v335
  %v416 = vpack.c.b16 %v346, %v341
  %v417 = vpack.c.b16 %v347, %v342
  %v418 = vpack.c.b16 %v348, %v343
  %v419 = vpack.c.b16 %v349, %v344
  %v420 = vpack.c.b16 %v350, %v345
  %v421 = vpack.c.b16 %v356, %v351
  %v422 = vpack.c.b16 %v357, %v352
  %v423 = vpack.c.b16 %v358, %v353
  %v424 = vpack.c.b16 %v359, %v354
  %v425 = vpack.c.b16 %v360, %v355
  %v426 = vpack.c.b16 %v361, %v361
  %v427 = vpack.c.b16 %v362, %v362
  %v428 = vpack.c.b16 %v363, %v363
  %v429 = vpack.c.b16 %v364, %v364
  %v430 = vpack.c.b16 %v365, %v365
  %v555 = vunpack.c.l.b16 %v90
  %v556 = vunpack.c.l.b16 %v91
  %v557 = vunpack.c.l.b16 %v92
  %v558 = vunpack.c.l.b16 %v93
  %v559 = vunpack.c.l.b16 %v94
  %v560 = vunpack.c.l.b16 %v95
  %v561 = vunpack.c.l.b16 %v96
  %v562 = vunpack.c.l.b16 %v97
  %v563 = vunpack.c.l.b16 %v98
  %v564 = vunpack.c.l.b16 %v99
  %v565 = vunpack.c.l.b16 %v100
  %v566 = vunpack.c.l.b16 %v101
  %v567 = vunpack.c.l.b16 %v102
  %v568 = vunpack.c.l.b16 %v103
  %v569 = vunpack.c.l.b16 %v104
  %v570 = vunpack.c.l.b16 %v105
  %v571 = vunpack.c.l.b16 %v106
  %v572 = vunpack.c.l.b16 %v107
  %v573 = vunpack.c.l.b16 %v108
  %v574 = vunpack.c.l.b16 %v109
  %v575 = vunpack.c.l.b16 %v110
  %v576 = vunpack.c.l.b16 %v111
  %v577 = vunpack.c.l.b16 %v112
  %v578 = vunpack.c.l.b16 %v113
  %v579 = vunpack.c.l.b16 %v114
  %v580 = vunpack.c.l.b16 %v115
  %v581 = vunpack.c.l.b16 %v116
  %v582 = vunpack.c.l.b16 %v117
  %v583 = vunpack.c.l.b16 %v118
  %v584 = vunpack.c.l.b16 %v119
  %v585 = vunpack.c.l.b16 %v120
  %v586 = vunpack.c.l.b16 %v121
  %v587 = vunpack.c.l.b16 %v122
  %v588 = vunpack.c.l.b16 %v123
  %v589 = vunpack.c.l.b16 %v124
  %v590 = vunpack.c.l.b16 %v125
  %v591 = vunpack.c.l.b16 %v126
  %v592 = vunpack.c.l.b16 %v127
  %v593 = vunpack.c.l.b16 %v128
  %v594 = vunpack.c.l.b16 %v129
  %v595 = vunpack.c.l.b16 %v130
  %v596 = vunpack.c.l.b16 %v131
  %v597 = vunpack.c.l.b16 %v132
  %v598 = vunpack.c.l.b16 %v133
  %v599 = vunpack.c.l.b16 %v134
  %v600 = vunpack.c.l.b16 %v135
  %v601 = vunpack.c.l.b16 %v136
  %v602 = vunpack.c.l.b16 %v137
  %v603 = vunpack.c.l.b16 %v138
  %v604 = vunpack.c.l.b16 %v139
  %v605 = vunpack.c.l.b16 %v140
  %v606 = vunpack.c.l.b16 %v141
  %v607 = vunpack.c.l.b16 %v142
  %v608 = vunpack.c.l.b16 %v143
  %v609 = vunpack.c.l.b16 %v144
  %v610 = vunpack.c.l.b16 %v145
  %v611 = vunpack.c.l.b16 %v146
  %v612 = vunpack.c.l.b16 %v147
  %v613 = vunpack.c.l.b16 %v148
  %v614 = vunpack.c.l.b16 %v149
  %v615 = vunpack.c.l.b16 %v150
  %v616 = vunpack.c.l.b16 %v151
  %v617 = vunpack.c.l.b16 %v152
  %v618 = vunpack.c.l.b16 %v153
  %v619 = vunpack.c.l.b16 %v154
  %v620 = vunpack.c.l.b16 %v155
  %v621 = vunpack.c.l.b16 %v156
  %v622 = vunpack.c.l.b16 %v157
  %v623 = vunpack.c.l.b16 %v158
  %v624 = vunpack.c.l.b16 %v159
  %v625 = vunpack.c.l.b16 %v160
  %v626 = vunpack.c.l.b16 %v161
  %v627 = vpack.c.b16 %v556, %v555
  %v628 = vpack.c.b16 %v558, %v557
  %v629 = vpack.c.b16 %v560, %v559
  %v630 = vpack.c.b16 %v562, %v561
  %v631 = vpack.c.b16 %v564, %v563
  %v632 = vpack.c.b16 %v566, %v565
  %v633 = vpack.c.b16 %v568, %v567
  %v634 = vpack.c.b16 %v570, %v569
  %v635 = vpack.c.b16 %v572, %v571
  %v636 = vpack.c.b16 %v574, %v573
  %v637 = vpack.c.b16 %v576, %v575
  %v638 = vpack.c.b16 %v578, %v577
  %v639 = vpack.c.b16 %v580, %v579
  %v640 = vpack.c.b16 %v582, %v581
  %v641 = vpack.c.b16 %v584, %v583
  %v642 = vpack.c.b16 %v586, %v585
  %v643 = vpack.c.b16 %v588, %v587
  %v644 = vpack.c.b16 %v590, %v589
  %v645 = vpack.c.b16 %v592, %v591
  %v646 = vpack.c.b16 %v594, %v593
  %v647 = vpack.c.b16 %v596, %v595
  %v648 = vpack.c.b16 %v598, %v597
  %v649 = vpack.c.b16 %v600, %v599
  %v650 = vpack.c.b16 %v602, %v601
  %v651 = vpack.c.b16 %v604, %v603
  %v652 = vpack.c.b16 %v606, %v605
  %v653 = vpack.c.b16 %v608, %v607
  %v654 = vpack.c.b16 %v610, %v609
  %v655 = vpack.c.b16 %v612, %v611
  %v656 = vpack.c.b16 %v614, %v613
  %v657 = vpack.c.b16 %v616, %v615
  %v658 = vpack.c.b16 %v618, %v617
  %v659 = vpack.c.b16 %v620, %v619
  %v660 = vpack.c.b16 %v622, %v621
  %v661 = vpack.c.b16 %v624, %v623
  %v662 = vpack.c.b16 %v626, %v625
  %vm699 = vcmask 523264
  %v701 = vsel %vm699, %v370, 0
  %v704 = vsel %vm699, %v375, 0
  %v707 = vsel %vm699, %v380, 0
  %v710 = vsel %vm699, %v385, 0
  %v713 = vsel %vm699, %v390, 0
  %v716 = vsel %vm699, %v395, 0
  %v719 = vsel %vm699, %v400, 0
  %v722 = vsel %vm699, %v405, 0
  %v725 = vsel %vm699, %v410, 0
  %v728 = vsel %vm699, %v415, 0
  %v731 = vsel %vm699, %v420, 0
  %v734 = vsel %vm699, %v425, 0
  %v737 = vsel %vm699, %v430, 0
  %739 = vmatpush.bf16.msra.mxu0 %v634
  %740 = vmatpush.bf16.msra.mxu0 %v633
  %741 = vmatpush.bf16.msra.mxu0 %v632
  %742 = vmatpush.bf16.msra.mxu0 %v631
  %743 = vmatpush.bf16.msra.mxu0 %v630
  %744 = vmatpush.bf16.msra.mxu0 %v629
  %745 = vmatpush.bf16.msra.mxu0 %v628
  %746 = vmatpush.bf16.msra.mxu0 %v627
  %747 = vmatmul.bf16.gmra.mxu0 %v366
  %v748 = vpop.f32.mrf.mxu0
  %v749 = vadd.f32 %v164, %v748
  %v750 = vpop.f32.mrf.mxu0
  %v751 = vadd.f32 %v164, %v750
  %752 = vmatmul.bf16.gmra.mxu0 %v371
  %v753 = vpop.f32.mrf.mxu0
  %v754 = vadd.f32 %v164, %v753
  %v755 = vpop.f32.mrf.mxu0
  %v756 = vadd.f32 %v164, %v755
  %757 = vmatmul.bf16.gmra.mxu0 %v376
  %v758 = vpop.f32.mrf.mxu0
  %v759 = vadd.f32 %v164, %v758
  %v760 = vpop.f32.mrf.mxu0
  %v761 = vadd.f32 %v164, %v760
  %762 = vmatmul.bf16.gmra.mxu0 %v381
  %v763 = vpop.f32.mrf.mxu0
  %v764 = vadd.f32 %v164, %v763
  %v765 = vpop.f32.mrf.mxu0
  %v766 = vadd.f32 %v164, %v765
  %767 = vmatmul.bf16.gmra.mxu0 %v386
  %v768 = vpop.f32.mrf.mxu0
  %v769 = vadd.f32 %v164, %v768
  %v770 = vpop.f32.mrf.mxu0
  %v771 = vadd.f32 %v164, %v770
  %772 = vmatmul.bf16.gmra.mxu0 %v391
  %v773 = vpop.f32.mrf.mxu0
  %v774 = vadd.f32 %v164, %v773
  %v775 = vpop.f32.mrf.mxu0
  %v776 = vadd.f32 %v164, %v775
  %777 = vmatmul.bf16.gmra.mxu0 %v396
  %v778 = vpop.f32.mrf.mxu0
  %v779 = vadd.f32 %v164, %v778
  %v780 = vpop.f32.mrf.mxu0
  %v781 = vadd.f32 %v164, %v780
  %782 = vmatmul.bf16.gmra.mxu0 %v401
  %v783 = vpop.f32.mrf.mxu0
  %v784 = vadd.f32 %v164, %v783
  %v785 = vpop.f32.mrf.mxu0
  %v786 = vadd.f32 %v164, %v785
  %787 = vmatmul.bf16.gmra.mxu0 %v406
  %v788 = vpop.f32.mrf.mxu0
  %v789 = vadd.f32 %v164, %v788
  %v790 = vpop.f32.mrf.mxu0
  %v791 = vadd.f32 %v164, %v790
  %792 = vmatmul.bf16.gmra.mxu0 %v411
  %v793 = vpop.f32.mrf.mxu0
  %v794 = vadd.f32 %v164, %v793
  %v795 = vpop.f32.mrf.mxu0
  %v796 = vadd.f32 %v164, %v795
  %797 = vmatmul.bf16.gmra.mxu0 %v416
  %v798 = vpop.f32.mrf.mxu0
  %v799 = vadd.f32 %v164, %v798
  %v800 = vpop.f32.mrf.mxu0
  %v801 = vadd.f32 %v164, %v800
  %802 = vmatmul.bf16.gmra.mxu0 %v421
  %v803 = vpop.f32.mrf.mxu0
  %v804 = vadd.f32 %v164, %v803
  %v805 = vpop.f32.mrf.mxu0
  %v806 = vadd.f32 %v164, %v805
  %807 = vmatmul.bf16.gmra.mxu0 %v426
  %v808 = vpop.f32.mrf.mxu0
  %v809 = vadd.f32 %v164, %v808
  %v810 = vpop.f32.mrf.mxu0
  %811 = vdwg.mxu0
  %812 = vmatpush.bf16.msra.mxu0 %v642
  %813 = vmatpush.bf16.msra.mxu0 %v641
  %814 = vmatpush.bf16.msra.mxu0 %v640
  %815 = vmatpush.bf16.msra.mxu0 %v639
  %816 = vmatpush.bf16.msra.mxu0 %v638
  %817 = vmatpush.bf16.msra.mxu0 %v637
  %818 = vmatpush.bf16.msra.mxu0 %v636
  %819 = vmatpush.bf16.msra.mxu0 %v635
  %820 = vmatmul.bf16.gmra.mxu0 %v367
  %v821 = vpop.f32.mrf.mxu0
  %v822 = vadd.f32 %v749, %v821
  %v823 = vpop.f32.mrf.mxu0
  %v824 = vadd.f32 %v751, %v823
  %825 = vmatmul.bf16.gmra.mxu0 %v372
  %v826 = vpop.f32.mrf.mxu0
  %v827 = vadd.f32 %v754, %v826
  %v828 = vpop.f32.mrf.mxu0
  %v829 = vadd.f32 %v756, %v828
  %830 = vmatmul.bf16.gmra.mxu0 %v377
  %v831 = vpop.f32.mrf.mxu0
  %v832 = vadd.f32 %v759, %v831
  %v833 = vpop.f32.mrf.mxu0
  %v834 = vadd.f32 %v761, %v833
  %835 = vmatmul.bf16.gmra.mxu0 %v382
  %v836 = vpop.f32.mrf.mxu0
  %v837 = vadd.f32 %v764, %v836
  %v838 = vpop.f32.mrf.mxu0
  %v839 = vadd.f32 %v766, %v838
  %840 = vmatmul.bf16.gmra.mxu0 %v387
  %v841 = vpop.f32.mrf.mxu0
  %v842 = vadd.f32 %v769, %v841
  %v843 = vpop.f32.mrf.mxu0
  %v844 = vadd.f32 %v771, %v843
  %845 = vmatmul.bf16.gmra.mxu0 %v392
  %v846 = vpop.f32.mrf.mxu0
  %v847 = vadd.f32 %v774, %v846
  %v848 = vpop.f32.mrf.mxu0
  %v849 = vadd.f32 %v776, %v848
  %850 = vmatmul.bf16.gmra.mxu0 %v397
  %v851 = vpop.f32.mrf.mxu0
  %v852 = vadd.f32 %v779, %v851
  %v853 = vpop.f32.mrf.mxu0
  %v854 = vadd.f32 %v781, %v853
  %855 = vmatmul.bf16.gmra.mxu0 %v402
  %v856 = vpop.f32.mrf.mxu0
  %v857 = vadd.f32 %v784, %v856
  %v858 = vpop.f32.mrf.mxu0
  %v859 = vadd.f32 %v786, %v858
  %860 = vmatmul.bf16.gmra.mxu0 %v407
  %v861 = vpop.f32.mrf.mxu0
  %v862 = vadd.f32 %v789, %v861
  %v863 = vpop.f32.mrf.mxu0
  %v864 = vadd.f32 %v791, %v863
  %865 = vmatmul.bf16.gmra.mxu0 %v412
  %v866 = vpop.f32.mrf.mxu0
  %v867 = vadd.f32 %v794, %v866
  %v868 = vpop.f32.mrf.mxu0
  %v869 = vadd.f32 %v796, %v868
  %870 = vmatmul.bf16.gmra.mxu0 %v417
  %v871 = vpop.f32.mrf.mxu0
  %v872 = vadd.f32 %v799, %v871
  %v873 = vpop.f32.mrf.mxu0
  %v874 = vadd.f32 %v801, %v873
  %875 = vmatmul.bf16.gmra.mxu0 %v422
  %v876 = vpop.f32.mrf.mxu0
  %v877 = vadd.f32 %v804, %v876
  %v878 = vpop.f32.mrf.mxu0
  %v879 = vadd.f32 %v806, %v878
  %880 = vmatmul.bf16.gmra.mxu0 %v427
  %v881 = vpop.f32.mrf.mxu0
  %v882 = vadd.f32 %v809, %v881
  %v883 = vpop.f32.mrf.mxu0
  %884 = vdwg.mxu0
  %885 = vmatpush.bf16.msra.mxu0 %v650
  %886 = vmatpush.bf16.msra.mxu0 %v649
  %887 = vmatpush.bf16.msra.mxu0 %v648
  %888 = vmatpush.bf16.msra.mxu0 %v647
  %889 = vmatpush.bf16.msra.mxu0 %v646
  %890 = vmatpush.bf16.msra.mxu0 %v645
  %891 = vmatpush.bf16.msra.mxu0 %v644
  %892 = vmatpush.bf16.msra.mxu0 %v643
  %893 = vmatmul.bf16.gmra.mxu0 %v368
  %v894 = vpop.f32.mrf.mxu0
  %v895 = vadd.f32 %v822, %v894
  %v896 = vpop.f32.mrf.mxu0
  %v897 = vadd.f32 %v824, %v896
  %898 = vmatmul.bf16.gmra.mxu0 %v373
  %v899 = vpop.f32.mrf.mxu0
  %v900 = vadd.f32 %v827, %v899
  %v901 = vpop.f32.mrf.mxu0
  %v902 = vadd.f32 %v829, %v901
  %903 = vmatmul.bf16.gmra.mxu0 %v378
  %v904 = vpop.f32.mrf.mxu0
  %v905 = vadd.f32 %v832, %v904
  %v906 = vpop.f32.mrf.mxu0
  %v907 = vadd.f32 %v834, %v906
  %908 = vmatmul.bf16.gmra.mxu0 %v383
  %v909 = vpop.f32.mrf.mxu0
  %v910 = vadd.f32 %v837, %v909
  %v911 = vpop.f32.mrf.mxu0
  %v912 = vadd.f32 %v839, %v911
  %913 = vmatmul.bf16.gmra.mxu0 %v388
  %v914 = vpop.f32.mrf.mxu0
  %v915 = vadd.f32 %v842, %v914
  %v916 = vpop.f32.mrf.mxu0
  %v917 = vadd.f32 %v844, %v916
  %918 = vmatmul.bf16.gmra.mxu0 %v393
  %v919 = vpop.f32.mrf.mxu0
  %v920 = vadd.f32 %v847, %v919
  %v921 = vpop.f32.mrf.mxu0
  %v922 = vadd.f32 %v849, %v921
  %923 = vmatmul.bf16.gmra.mxu0 %v398
  %v924 = vpop.f32.mrf.mxu0
  %v925 = vadd.f32 %v852, %v924
  %v926 = vpop.f32.mrf.mxu0
  %v927 = vadd.f32 %v854, %v926
  %928 = vmatmul.bf16.gmra.mxu0 %v403
  %v929 = vpop.f32.mrf.mxu0
  %v930 = vadd.f32 %v857, %v929
  %v931 = vpop.f32.mrf.mxu0
  %v932 = vadd.f32 %v859, %v931
  %933 = vmatmul.bf16.gmra.mxu0 %v408
  %v934 = vpop.f32.mrf.mxu0
  %v935 = vadd.f32 %v862, %v934
  %v936 = vpop.f32.mrf.mxu0
  %v937 = vadd.f32 %v864, %v936
  %938 = vmatmul.bf16.gmra.mxu0 %v413
  %v939 = vpop.f32.mrf.mxu0
  %v940 = vadd.f32 %v867, %v939
  %v941 = vpop.f32.mrf.mxu0
  %v942 = vadd.f32 %v869, %v941
  %943 = vmatmul.bf16.gmra.mxu0 %v418
  %v944 = vpop.f32.mrf.mxu0
  %v945 = vadd.f32 %v872, %v944
  %v946 = vpop.f32.mrf.mxu0
  %v947 = vadd.f32 %v874, %v946
  %948 = vmatmul.bf16.gmra.mxu0 %v423
  %v949 = vpop.f32.mrf.mxu0
  %v950 = vadd.f32 %v877, %v949
  %v951 = vpop.f32.mrf.mxu0
  %v952 = vadd.f32 %v879, %v951
  %953 = vmatmul.bf16.gmra.mxu0 %v428
  %v954 = vpop.f32.mrf.mxu0
  %v955 = vadd.f32 %v882, %v954
  %v956 = vpop.f32.mrf.mxu0
  %957 = vdwg.mxu0
  %958 = vmatpush.bf16.msra.mxu0 %v658
  %959 = vmatpush.bf16.msra.mxu0 %v657
  %960 = vmatpush.bf16.msra.mxu0 %v656
  %961 = vmatpush.bf16.msra.mxu0 %v655
  %962 = vmatpush.bf16.msra.mxu0 %v654
  %963 = vmatpush.bf16.msra.mxu0 %v653
  %964 = vmatpush.bf16.msra.mxu0 %v652
  %965 = vmatpush.bf16.msra.mxu0 %v651
  %966 = vmatmul.bf16.gmra.mxu0 %v369
  %v967 = vpop.f32.mrf.mxu0
  %v968 = vadd.f32 %v895, %v967
  %v969 = vpop.f32.mrf.mxu0
  %v970 = vadd.f32 %v897, %v969
  %971 = vmatmul.bf16.gmra.mxu0 %v374
  %v972 = vpop.f32.mrf.mxu0
  %v973 = vadd.f32 %v900, %v972
  %v974 = vpop.f32.mrf.mxu0
  %v975 = vadd.f32 %v902, %v974
  %976 = vmatmul.bf16.gmra.mxu0 %v379
  %v977 = vpop.f32.mrf.mxu0
  %v978 = vadd.f32 %v905, %v977
  %v979 = vpop.f32.mrf.mxu0
  %v980 = vadd.f32 %v907, %v979
  %981 = vmatmul.bf16.gmra.mxu0 %v384
  %v982 = vpop.f32.mrf.mxu0
  %v983 = vadd.f32 %v910, %v982
  %v984 = vpop.f32.mrf.mxu0
  %v985 = vadd.f32 %v912, %v984
  %986 = vmatmul.bf16.gmra.mxu0 %v389
  %v987 = vpop.f32.mrf.mxu0
  %v988 = vadd.f32 %v915, %v987
  %v989 = vpop.f32.mrf.mxu0
  %v990 = vadd.f32 %v917, %v989
  %991 = vmatmul.bf16.gmra.mxu0 %v394
  %v992 = vpop.f32.mrf.mxu0
  %v993 = vadd.f32 %v920, %v992
  %v994 = vpop.f32.mrf.mxu0
  %v995 = vadd.f32 %v922, %v994
  %996 = vmatmul.bf16.gmra.mxu0 %v399
  %v997 = vpop.f32.mrf.mxu0
  %v998 = vadd.f32 %v925, %v997
  %v999 = vpop.f32.mrf.mxu0
  %v1000 = vadd.f32 %v927, %v999
  %1001 = vmatmul.bf16.gmra.mxu0 %v404
  %v1002 = vpop.f32.mrf.mxu0
  %v1003 = vadd.f32 %v930, %v1002
  %v1004 = vpop.f32.mrf.mxu0
  %v1005 = vadd.f32 %v932, %v1004
  %1006 = vmatmul.bf16.gmra.mxu0 %v409
  %v1007 = vpop.f32.mrf.mxu0
  %v1008 = vadd.f32 %v935, %v1007
  %v1009 = vpop.f32.mrf.mxu0
  %v1010 = vadd.f32 %v937, %v1009
  %1011 = vmatmul.bf16.gmra.mxu0 %v414
  %v1012 = vpop.f32.mrf.mxu0
  %v1013 = vadd.f32 %v940, %v1012
  %v1014 = vpop.f32.mrf.mxu0
  %v1015 = vadd.f32 %v942, %v1014
  %1016 = vmatmul.bf16.gmra.mxu0 %v419
  %v1017 = vpop.f32.mrf.mxu0
  %v1018 = vadd.f32 %v945, %v1017
  %v1019 = vpop.f32.mrf.mxu0
  %v1020 = vadd.f32 %v947, %v1019
  %1021 = vmatmul.bf16.gmra.mxu0 %v424
  %v1022 = vpop.f32.mrf.mxu0
  %v1023 = vadd.f32 %v950, %v1022
  %v1024 = vpop.f32.mrf.mxu0
  %v1025 = vadd.f32 %v952, %v1024
  %1026 = vmatmul.bf16.gmra.mxu0 %v429
  %v1027 = vpop.f32.mrf.mxu0
  %v1028 = vadd.f32 %v955, %v1027
  %v1029 = vpop.f32.mrf.mxu0
  %1030 = vdwg.mxu0
  %1031 = vmatpush.bf16.msra.mxu0 0
  %1032 = vmatpush.bf16.msra.mxu0 0
  %1033 = vmatpush.bf16.msra.mxu0 0
  %1034 = vmatpush.bf16.msra.mxu0 0
  %1035 = vmatpush.bf16.msra.mxu0 %v662
  %1036 = vmatpush.bf16.msra.mxu0 %v661
  %1037 = vmatpush.bf16.msra.mxu0 %v660
  %1038 = vmatpush.bf16.msra.mxu0 %v659
  %1039 = vmatmul.bf16.gmra.mxu0 %v701
  %v1040 = vpop.f32.mrf.mxu0
  %v1041 = vadd.f32 %v968, %v1040
  %v1042 = vpop.f32.mrf.mxu0
  %v1043 = vadd.f32 %v970, %v1042
  %1044 = vmatmul.bf16.gmra.mxu0 %v704
  %v1045 = vpop.f32.mrf.mxu0
  %v1046 = vadd.f32 %v973, %v1045
  %v1047 = vpop.f32.mrf.mxu0
  %v1048 = vadd.f32 %v975, %v1047
  %1049 = vmatmul.bf16.gmra.mxu0 %v707
  %v1050 = vpop.f32.mrf.mxu0
  %v1051 = vadd.f32 %v978, %v1050
  %v1052 = vpop.f32.mrf.mxu0
  %v1053 = vadd.f32 %v980, %v1052
  %1054 = vmatmul.bf16.gmra.mxu0 %v710
  %v1055 = vpop.f32.mrf.mxu0
  %v1056 = vadd.f32 %v983, %v1055
  %v1057 = vpop.f32.mrf.mxu0
  %v1058 = vadd.f32 %v985, %v1057
  %1059 = vmatmul.bf16.gmra.mxu0 %v713
  %v1060 = vpop.f32.mrf.mxu0
  %v1061 = vadd.f32 %v988, %v1060
  %v1062 = vpop.f32.mrf.mxu0
  %v1063 = vadd.f32 %v990, %v1062
  %1064 = vmatmul.bf16.gmra.mxu0 %v716
  %v1065 = vpop.f32.mrf.mxu0
  %v1066 = vadd.f32 %v993, %v1065
  %v1067 = vpop.f32.mrf.mxu0
  %v1068 = vadd.f32 %v995, %v1067
  %1069 = vmatmul.bf16.gmra.mxu0 %v719
  %v1070 = vpop.f32.mrf.mxu0
  %v1071 = vadd.f32 %v998, %v1070
  %v1072 = vpop.f32.mrf.mxu0
  %v1073 = vadd.f32 %v1000, %v1072
  %1074 = vmatmul.bf16.gmra.mxu0 %v722
  %v1075 = vpop.f32.mrf.mxu0
  %v1076 = vadd.f32 %v1003, %v1075
  %v1077 = vpop.f32.mrf.mxu0
  %v1078 = vadd.f32 %v1005, %v1077
  %1079 = vmatmul.bf16.gmra.mxu0 %v725
  %v1080 = vpop.f32.mrf.mxu0
  %v1081 = vadd.f32 %v1008, %v1080
  %v1082 = vpop.f32.mrf.mxu0
  %v1083 = vadd.f32 %v1010, %v1082
  %1084 = vmatmul.bf16.gmra.mxu0 %v728
  %v1085 = vpop.f32.mrf.mxu0
  %v1086 = vadd.f32 %v1013, %v1085
  %v1087 = vpop.f32.mrf.mxu0
  %v1088 = vadd.f32 %v1015, %v1087
  %1089 = vmatmul.bf16.gmra.mxu0 %v731
  %v1090 = vpop.f32.mrf.mxu0
  %v1091 = vadd.f32 %v1018, %v1090
  %v1092 = vpop.f32.mrf.mxu0
  %v1093 = vadd.f32 %v1020, %v1092
  %1094 = vmatmul.bf16.gmra.mxu0 %v734
  %v1095 = vpop.f32.mrf.mxu0
  %v1096 = vadd.f32 %v1023, %v1095
  %v1097 = vpop.f32.mrf.mxu0
  %v1098 = vadd.f32 %v1025, %v1097
  %1099 = vmatmul.bf16.gmra.mxu0 %v737
  %v1100 = vpop.f32.mrf.mxu0
  %v1101 = vadd.f32 %v1028, %v1100
  %v1102 = vpop.f32.mrf.mxu0
  %1103 = vdwg.mxu0
  %v1104 = vmax.f32 %v1041, 0.0
  %v1105 = vmax.f32 %v1043, 0.0
  %v1106 = vmax.f32 %v1046, 0.0
  %v1107 = vmax.f32 %v1048, 0.0
  %v1108 = vmax.f32 %v1051, 0.0
  %v1109 = vmax.f32 %v1053, 0.0
  %v1110 = vmax.f32 %v1056, 0.0
  %v1111 = vmax.f32 %v1058, 0.0
  %v1112 = vmax.f32 %v1061, 0.0
  %v1113 = vmax.f32 %v1063, 0.0
  %v1114 = vmax.f32 %v1066, 0.0
  %v1115 = vmax.f32 %v1068, 0.0
  %v1116 = vmax.f32 %v1071, 0.0
  %v1117 = vmax.f32 %v1073, 0.0
  %v1118 = vmax.f32 %v1076, 0.0
  %v1119 = vmax.f32 %v1078, 0.0
  %v1120 = vmax.f32 %v1081, 0.0
  %v1121 = vmax.f32 %v1083, 0.0
  %v1122 = vmax.f32 %v1086, 0.0
  %v1123 = vmax.f32 %v1088, 0.0
  %v1124 = vmax.f32 %v1091, 0.0
  %v1125 = vmax.f32 %v1093, 0.0
  %v1126 = vmax.f32 %v1096, 0.0
  %v1127 = vmax.f32 %v1098, 0.0
  %v1128 = vmax.f32 %v1101, 0.0
  %vm1129 = vcmask 261120
  %1130 = vst.msk [vmem:[%s3] sm:$0xff] %vm1129, %v1104
  %1131 = vst.msk [vmem:[%s3 + $0x8] sm:$0xff] %vm1129, %v1105
  %1132 = vst.msk [vmem:[%s3 + $0x10] sm:$0xff] %vm1129, %v1106
  %1133 = vst.msk [vmem:[%s3 + $0x18] sm:$0xff] %vm1129, %v1107
  %1134 = vst.msk [vmem:[%s3 + $0x20] sm:$0xff] %vm1129, %v1108
  %1135 = vst.msk [vmem:[%s3 + $0x28] sm:$0xff] %vm1129, %v1109
  %1136 = vst.msk [vmem:[%s3 + $0x30] sm:$0xff] %vm1129, %v1110
  %1137 = vst.msk [vmem:[%s3 + $0x38] sm:$0xff] %vm1129, %v1111
  %1138 = vst.msk [vmem:[%s3 + $0x40] sm:$0xff] %vm1129, %v1112
  %1139 = vst.msk [vmem:[%s3 + $0x48] sm:$0xff] %vm1129, %v1113
  %1140 = vst.msk [vmem:[%s3 + $0x50] sm:$0xff] %vm1129, %v1114
  %1141 = vst.msk [vmem:[%s3 + $0x58] sm:$0xff] %vm1129, %v1115
  %1142 = vst.msk [vmem:[%s3 + $0x60] sm:$0xff] %vm1129, %v1116
  %1143 = vst.msk [vmem:[%s3 + $0x68] sm:$0xff] %vm1129, %v1117
  %1144 = vst.msk [vmem:[%s3 + $0x70] sm:$0xff] %vm1129, %v1118
  %1145 = vst.msk [vmem:[%s3 + $0x78] sm:$0xff] %vm1129, %v1119
  %1146 = vst.msk [vmem:[%s3 + $0x80] sm:$0xff] %vm1129, %v1120
  %1147 = vst.msk [vmem:[%s3 + $0x88] sm:$0xff] %vm1129, %v1121
  %1148 = vst.msk [vmem:[%s3 + $0x90] sm:$0xff] %vm1129, %v1122
  %1149 = vst.msk [vmem:[%s3 + $0x98] sm:$0xff] %vm1129, %v1123
  %1150 = vst.msk [vmem:[%s3 + $0xa0] sm:$0xff] %vm1129, %v1124
  %1151 = vst.msk [vmem:[%s3 + $0xa8] sm:$0xff] %vm1129, %v1125
  %1152 = vst.msk [vmem:[%s3 + $0xb0] sm:$0xff] %vm1129, %v1126
  %1153 = vst.msk [vmem:[%s3 + $0xb8] sm:$0xff] %vm1129, %v1127
  %1154 = vst.msk [vmem:[%s3 + $0xc0] sm:$0xff] %vm1129, %v1128
  // Predicated region
  $region14: #{gcnet_forward.41} parent=0 // pred_check
    _
  $region15: #{gcnet_forward.41} parent=0 // pred_check_branch
    %1156 = sbr.rel (0) target = $region17
  $region16: #{gcnet_forward.41} parent=0 // pred_region
    _
  $region17: #{gcnet_forward.41} parent=0 // pred_fallthru
    _
  // Predicated region
  $region18: #{gcnet_forward.41} parent=0 // pred_check
    _
  $region19: #{gcnet_forward.41} parent=0 // pred_check_branch
    %1158 = sbr.rel (0) target = $region21
  $region20: #{gcnet_forward.41} parent=0 // pred_region
    _
  $region21: #{gcnet_forward.41} parent=0 // pred_fallthru
    _

// kernel: gcnet_forward.43
$region0: #{gcnet_forward.43}
  #allocation0 [shape = 'u32[]', space=smem, size = 0x4, offset = 0x4, fixed_abs, tag = 'smem constant byte address 0x4 - core index']
  #allocation1 [shape = 'u32[72,128]{1,0:T(1,128)}', space=vmem, size = 0x9000, scoped, tag = 'internal scratch']
  %s0 = inlined_call_operand.vmem [shape: bf16[104,288], index: 0, kind: input, shape index: {}]
  %s1 = inlined_call_operand.vmem [shape: bf16[288,4], index: 1, kind: input, shape index: {}]
  %s2 = inlined_call_operand.vmem [shape: f32[1,4], index: 2, kind: input, shape index: {}]
  %s3 = inlined_call_operand.vmem [shape: f32[104,4], index: 3, kind: output, shape index: {}]
  %s4 = sld [smem:[#allocation0]]
  $region22: #{gcnet_forward.43} parent=0
    _
  %s6 = ssub.s32 1, %s4
  %s7 = scalar_select 0, %s6, %s4
  // Predicated region
  $region2: #{gcnet_forward.43} parent=0 // pred_check
    _
  $region3: #{gcnet_forward.43} parent=0 // pred_check_branch
    %9 = sbr.rel (0) target = $region5
  $region4: #{gcnet_forward.43} parent=0 // pred_region
    _
  $region5: #{gcnet_forward.43} parent=0 // pred_fallthru
    _
  // Predicated region
  $region6: #{gcnet_forward.43} parent=0 // pred_check
    _
  $region7: #{gcnet_forward.43} parent=0 // pred_check_branch
    %11 = sbr.rel (0) target = $region9
  $region8: #{gcnet_forward.43} parent=0 // pred_region
    _
  $region9: #{gcnet_forward.43} parent=0 // pred_fallthru
    _
  // Predicated region
  $region10: #{gcnet_forward.43} parent=0 // pred_check
    _
  $region11: #{gcnet_forward.43} parent=0 // pred_check_branch
    %13 = sbr.rel (0) target = $region13
  $region12: #{gcnet_forward.43} parent=0 // pred_region
    _
  $region13: #{gcnet_forward.43} parent=0 // pred_fallthru
    _
  %v15 = vld [vmem:[%s0] sm:$0xff]
  %v16 = vld [vmem:[%s0 + $0x8] sm:$0xf]
  %v17 = vld [vmem:[%s0 + $0xc] sm:$0xff]
  %v18 = vld [vmem:[%s0 + $0x14] sm:$0xf]
  %v19 = vld [vmem:[%s0 + $0x18] sm:$0xff]
  %v20 = vld [vmem:[%s0 + $0x20] sm:$0xf]
  %v21 = vld [vmem:[%s0 + $0x24] sm:$0xff]
  %v22 = vld [vmem:[%s0 + $0x2c] sm:$0xf]
  %v23 = vld [vmem:[%s0 + $0x30] sm:$0xff]
  %v24 = vld [vmem:[%s0 + $0x38] sm:$0xf]
  %v25 = vld [vmem:[%s0 + $0x3c] sm:$0xff]
  %v26 = vld [vmem:[%s0 + $0x44] sm:$0xf]
  %v27 = vld [vmem:[%s0 + $0x48] sm:$0xff]
  %v28 = vld [vmem:[%s0 + $0x50] sm:$0xf]
  %v29 = vld [vmem:[%s0 + $0x54] sm:$0xff]
  %v30 = vld [vmem:[%s0 + $0x5c] sm:$0xf]
  %v31 = vld [vmem:[%s0 + $0x60] sm:$0xff]
  %v32 = vld [vmem:[%s0 + $0x68] sm:$0xf]
  %v33 = vld [vmem:[%s0 + $0x6c] sm:$0xff]
  %v34 = vld [vmem:[%s0 + $0x74] sm:$0xf]
  %v35 = vld [vmem:[%s0 + $0x78] sm:$0xff]
  %v36 = vld [vmem:[%s0 + $0x80] sm:$0xf]
  %v37 = vld [vmem:[%s0 + $0x84] sm:$0xff]
  %v38 = vld [vmem:[%s0 + $0x8c] sm:$0xf]
  %v39 = vld [vmem:[%s0 + $0x90] sm:$0xff]
  %v40 = vld [vmem:[%s0 + $0x98] sm:$0xf]
  %v41 = vld [vmem:[%s1] sm:$0xf]
  %v42 = vld [vmem:[%s1 + $0x4] sm:$0xf]
  %v43 = vld [vmem:[%s1 + $0x8] sm:$0xf]
  %v44 = vld [vmem:[%s1 + $0xc] sm:$0xf]
  %v45 = vld [vmem:[%s1 + $0x10] sm:$0xf]
  %v46 = vld [vmem:[%s1 + $0x14] sm:$0xf]
  %v47 = vld [vmem:[%s1 + $0x18] sm:$0xf]
  %v48 = vld [vmem:[%s1 + $0x1c] sm:$0xf]
  %v49 = vld [vmem:[%s1 + $0x20] sm:$0xf]
  %v50 = vld [vmem:[%s1 + $0x24] sm:$0xf]
  %v51 = vld [vmem:[%s1 + $0x28] sm:$0xf]
  %v52 = vld [vmem:[%s1 + $0x2c] sm:$0xf]
  %v53 = vld [vmem:[%s1 + $0x30] sm:$0xf]
  %v54 = vld [vmem:[%s1 + $0x34] sm:$0xf]
  %v55 = vld [vmem:[%s1 + $0x38] sm:$0xf]
  %v56 = vld [vmem:[%s1 + $0x3c] sm:$0xf]
  %v57 = vld [vmem:[%s1 + $0x40] sm:$0xf]
  %v58 = vld [vmem:[%s1 + $0x44] sm:$0xf]
  %v59 = vld [vmem:[%s1 + $0x48] sm:$0xf]
  %v60 = vld [vmem:[%s1 + $0x4c] sm:$0xf]
  %v61 = vld [vmem:[%s1 + $0x50] sm:$0xf]
  %v62 = vld [vmem:[%s1 + $0x54] sm:$0xf]
  %v63 = vld [vmem:[%s1 + $0x58] sm:$0xf]
  %v64 = vld [vmem:[%s1 + $0x5c] sm:$0xf]
  %v65 = vld [vmem:[%s1 + $0x60] sm:$0xf]
  %v66 = vld [vmem:[%s1 + $0x64] sm:$0xf]
  %v67 = vld [vmem:[%s1 + $0x68] sm:$0xf]
  %v68 = vld [vmem:[%s1 + $0x6c] sm:$0xf]
  %v69 = vld [vmem:[%s1 + $0x70] sm:$0xf]
  %v70 = vld [vmem:[%s1 + $0x74] sm:$0xf]
  %v71 = vld [vmem:[%s1 + $0x78] sm:$0xf]
  %v72 = vld [vmem:[%s1 + $0x7c] sm:$0xf]
  %v73 = vld [vmem:[%s1 + $0x80] sm:$0xf]
  %v74 = vld [vmem:[%s1 + $0x84] sm:$0xf]
  %v75 = vld [vmem:[%s1 + $0x88] sm:$0xf]
  %v76 = vld [vmem:[%s1 + $0x8c] sm:$0xf]
  %v77 = vld [vmem:[%s2] sm:$0x1]
  %v79 = vperm.slane %v77, 0
  %v107 = vunpack.c.l.b16 %v15
  %v108 = vunpack.c.h.b16 %v15
  %v109 = vunpack.c.l.b16 %v16
  %v110 = vunpack.c.l.b16 %v17
  %v111 = vunpack.c.h.b16 %v17
  %v112 = vunpack.c.l.b16 %v18
  %v113 = vunpack.c.l.b16 %v19
  %v114 = vunpack.c.h.b16 %v19
  %v115 = vunpack.c.l.b16 %v20
  %v116 = vunpack.c.l.b16 %v21
  %v117 = vunpack.c.h.b16 %v21
  %v118 = vunpack.c.l.b16 %v22
  %v119 = vunpack.c.l.b16 %v23
  %v120 = vunpack.c.h.b16 %v23
  %v121 = vunpack.c.l.b16 %v24
  %v122 = vunpack.c.l.b16 %v25
  %v123 = vunpack.c.h.b16 %v25
  %v124 = vunpack.c.l.b16 %v26
  %v125 = vunpack.c.l.b16 %v27
  %v126 = vunpack.c.h.b16 %v27
  %v127 = vunpack.c.l.b16 %v28
  %v128 = vunpack.c.l.b16 %v29
  %v129 = vunpack.c.h.b16 %v29
  %v130 = vunpack.c.l.b16 %v30
  %v131 = vunpack.c.l.b16 %v31
  %v132 = vunpack.c.h.b16 %v31
  %v133 = vunpack.c.l.b16 %v32
  %v134 = vunpack.c.l.b16 %v33
  %v135 = vunpack.c.h.b16 %v33
  %v136 = vunpack.c.l.b16 %v34
  %v137 = vunpack.c.l.b16 %v35
  %v138 = vunpack.c.h.b16 %v35
  %v139 = vunpack.c.l.b16 %v36
  %v140 = vunpack.c.l.b16 %v37
  %v141 = vunpack.c.h.b16 %v37
  %v142 = vunpack.c.l.b16 %v38
  %v143 = vunpack.c.l.b16 %v39
  %v144 = vunpack.c.h.b16 %v39
  %v145 = vunpack.c.l.b16 %v40
  %v146 = vpack.c.b16 %v110, %v107
  %v147 = vpack.c.b16 %v111, %v108
  %v148 = vpack.c.b16 %v112, %v109
  %v149 = vpack.c.b16 %v116, %v113
  %v150 = vpack.c.b16 %v117, %v114
  %v151 = vpack.c.b16 %v118, %v115
  %v152 = vpack.c.b16 %v122, %v119
  %v153 = vpack.c.b16 %v123, %v120
  %v154 = vpack.c.b16 %v124, %v121
  %v155 = vpack.c.b16 %v128, %v125
  %v156 = vpack.c.b16 %v129, %v126
  %v157 = vpack.c.b16 %v130, %v127
  %v158 = vpack.c.b16 %v134, %v131
  %v159 = vpack.c.b16 %v135, %v132
  %v160 = vpack.c.b16 %v136, %v133
  %v161 = vpack.c.b16 %v140, %v137
  %v162 = vpack.c.b16 %v141, %v138
  %v163 = vpack.c.b16 %v142, %v139
  %v164 = vpack.c.b16 %v143, %v143
  %v165 = vpack.c.b16 %v144, %v144
  %v166 = vpack.c.b16 %v145, %v145
  %v217 = vunpack.c.l.b16 %v41
  %v218 = vunpack.c.l.b16 %v42
  %v219 = vunpack.c.l.b16 %v43
  %v220 = vunpack.c.l.b16 %v44
  %v221 = vunpack.c.l.b16 %v45
  %v222 = vunpack.c.l.b16 %v46
  %v223 = vunpack.c.l.b16 %v47
  %v224 = vunpack.c.l.b16 %v48
  %v225 = vunpack.c.l.b16 %v49
  %v226 = vunpack.c.l.b16 %v50
  %v227 = vunpack.c.l.b16 %v51
  %v228 = vunpack.c.l.b16 %v52
  %v229 = vunpack.c.l.b16 %v53
  %v230 = vunpack.c.l.b16 %v54
  %v231 = vunpack.c.l.b16 %v55
  %v232 = vunpack.c.l.b16 %v56
  %v233 = vunpack.c.l.b16 %v57
  %v234 = vunpack.c.l.b16 %v58
  %v235 = vunpack.c.l.b16 %v59
  %v236 = vunpack.c.l.b16 %v60
  %v237 = vunpack.c.l.b16 %v61
  %v238 = vunpack.c.l.b16 %v62
  %v239 = vunpack.c.l.b16 %v63
  %v240 = vunpack.c.l.b16 %v64
  %v241 = vunpack.c.l.b16 %v65
  %v242 = vunpack.c.l.b16 %v66
  %v243 = vunpack.c.l.b16 %v67
  %v244 = vunpack.c.l.b16 %v68
  %v245 = vunpack.c.l.b16 %v69
  %v246 = vunpack.c.l.b16 %v70
  %v247 = vunpack.c.l.b16 %v71
  %v248 = vunpack.c.l.b16 %v72
  %v249 = vunpack.c.l.b16 %v73
  %v250 = vunpack.c.l.b16 %v74
  %v251 = vunpack.c.l.b16 %v75
  %v252 = vunpack.c.l.b16 %v76
  %v253 = vpack.c.b16 %v218, %v217
  %v254 = vpack.c.b16 %v220, %v219
  %v255 = vpack.c.b16 %v222, %v221
  %v256 = vpack.c.b16 %v224, %v223
  %v257 = vpack.c.b16 %v226, %v225
  %v258 = vpack.c.b16 %v228, %v227
  %v259 = vpack.c.b16 %v230, %v229
  %v260 = vpack.c.b16 %v232, %v231
  %v261 = vpack.c.b16 %v234, %v233
  %v262 = vpack.c.b16 %v236, %v235
  %v263 = vpack.c.b16 %v238, %v237
  %v264 = vpack.c.b16 %v240, %v239
  %v265 = vpack.c.b16 %v242, %v241
  %v266 = vpack.c.b16 %v244, %v243
  %v267 = vpack.c.b16 %v246, %v245
  %v268 = vpack.c.b16 %v248, %v247
  %v269 = vpack.c.b16 %v250, %v249
  %v270 = vpack.c.b16 %v252, %v251
  %vm289 = vcmask 261120
  %v291 = vsel %vm289, %v148, 0
  %v294 = vsel %vm289, %v151, 0
  %v297 = vsel %vm289, %v154, 0
  %v300 = vsel %vm289, %v157, 0
  %v303 = vsel %vm289, %v160, 0
  %v306 = vsel %vm289, %v163, 0
  %v309 = vsel %vm289, %v166, 0
  %311 = vmatpush.bf16.msra.mxu0 %v260
  %312 = vmatpush.bf16.msra.mxu0 %v259
  %313 = vmatpush.bf16.msra.mxu0 %v258
  %314 = vmatpush.bf16.msra.mxu0 %v257
  %315 = vmatpush.bf16.msra.mxu0 %v256
  %316 = vmatpush.bf16.msra.mxu0 %v255
  %317 = vmatpush.bf16.msra.mxu0 %v254
  %318 = vmatpush.bf16.msra.mxu0 %v253
  %319 = vmatmul.bf16.gmra.mxu0 %v146
  %v320 = vpop.f32.mrf.mxu0
  %v321 = vadd.f32 %v79, %v320
  %v322 = vpop.f32.mrf.mxu0
  %v323 = vadd.f32 %v79, %v322
  %324 = vmatmul.bf16.gmra.mxu0 %v149
  %v325 = vpop.f32.mrf.mxu0
  %v326 = vadd.f32 %v79, %v325
  %v327 = vpop.f32.mrf.mxu0
  %v328 = vadd.f32 %v79, %v327
  %329 = vmatmul.bf16.gmra.mxu0 %v152
  %v330 = vpop.f32.mrf.mxu0
  %v331 = vadd.f32 %v79, %v330
  %v332 = vpop.f32.mrf.mxu0
  %v333 = vadd.f32 %v79, %v332
  %334 = vmatmul.bf16.gmra.mxu0 %v155
  %v335 = vpop.f32.mrf.mxu0
  %v336 = vadd.f32 %v79, %v335
  %v337 = vpop.f32.mrf.mxu0
  %v338 = vadd.f32 %v79, %v337
  %339 = vmatmul.bf16.gmra.mxu0 %v158
  %v340 = vpop.f32.mrf.mxu0
  %v341 = vadd.f32 %v79, %v340
  %v342 = vpop.f32.mrf.mxu0
  %v343 = vadd.f32 %v79, %v342
  %344 = vmatmul.bf16.gmra.mxu0 %v161
  %v345 = vpop.f32.mrf.mxu0
  %v346 = vadd.f32 %v79, %v345
  %v347 = vpop.f32.mrf.mxu0
  %v348 = vadd.f32 %v79, %v347
  %349 = vmatmul.bf16.gmra.mxu0 %v164
  %v350 = vpop.f32.mrf.mxu0
  %v351 = vadd.f32 %v79, %v350
  %v352 = vpop.f32.mrf.mxu0
  %353 = vdwg.mxu0
  %354 = vmatpush.bf16.msra.mxu0 %v268
  %355 = vmatpush.bf16.msra.mxu0 %v267
  %356 = vmatpush.bf16.msra.mxu0 %v266
  %357 = vmatpush.bf16.msra.mxu0 %v265
  %358 = vmatpush.bf16.msra.mxu0 %v264
  %359 = vmatpush.bf16.msra.mxu0 %v263
  %360 = vmatpush.bf16.msra.mxu0 %v262
  %361 = vmatpush.bf16.msra.mxu0 %v261
  %362 = vmatmul.bf16.gmra.mxu0 %v147
  %v363 = vpop.f32.mrf.mxu0
  %v364 = vadd.f32 %v321, %v363
  %v365 = vpop.f32.mrf.mxu0
  %v366 = vadd.f32 %v323, %v365
  %367 = vmatmul.bf16.gmra.mxu0 %v150
  %v368 = vpop.f32.mrf.mxu0
  %v369 = vadd.f32 %v326, %v368
  %v370 = vpop.f32.mrf.mxu0
  %v371 = vadd.f32 %v328, %v370
  %372 = vmatmul.bf16.gmra.mxu0 %v153
  %v373 = vpop.f32.mrf.mxu0
  %v374 = vadd.f32 %v331, %v373
  %v375 = vpop.f32.mrf.mxu0
  %v376 = vadd.f32 %v333, %v375
  %377 = vmatmul.bf16.gmra.mxu0 %v156
  %v378 = vpop.f32.mrf.mxu0
  %v379 = vadd.f32 %v336, %v378
  %v380 = vpop.f32.mrf.mxu0
  %v381 = vadd.f32 %v338, %v380
  %382 = vmatmul.bf16.gmra.mxu0 %v159
  %v383 = vpop.f32.mrf.mxu0
  %v384 = vadd.f32 %v341, %v383
  %v385 = vpop.f32.mrf.mxu0
  %v386 = vadd.f32 %v343, %v385
  %387 = vmatmul.bf16.gmra.mxu0 %v162
  %v388 = vpop.f32.mrf.mxu0
  %v389 = vadd.f32 %v346, %v388
  %v390 = vpop.f32.mrf.mxu0
  %v391 = vadd.f32 %v348, %v390
  %392 = vmatmul.bf16.gmra.mxu0 %v165
  %v393 = vpop.f32.mrf.mxu0
  %v394 = vadd.f32 %v351, %v393
  %v395 = vpop.f32.mrf.mxu0
  %396 = vdwg.mxu0
  %397 = vmatpush.bf16.msra.mxu0 0
  %398 = vmatpush.bf16.msra.mxu0 0
  %399 = vmatpush.bf16.msra.mxu0 0
  %400 = vmatpush.bf16.msra.mxu0 0
  %401 = vmatpush.bf16.msra.mxu0 0
  %402 = vmatpush.bf16.msra.mxu0 0
  %403 = vmatpush.bf16.msra.mxu0 %v270
  %404 = vmatpush.bf16.msra.mxu0 %v269
  %405 = vmatmul.bf16.gmra.mxu0 %v291
  %v406 = vpop.f32.mrf.mxu0
  %v407 = vadd.f32 %v364, %v406
  %v408 = vpop.f32.mrf.mxu0
  %v409 = vadd.f32 %v366, %v408
  %410 = vmatmul.bf16.gmra.mxu0 %v294
  %v411 = vpop.f32.mrf.mxu0
  %v412 = vadd.f32 %v369, %v411
  %v413 = vpop.f32.mrf.mxu0
  %v414 = vadd.f32 %v371, %v413
  %415 = vmatmul.bf16.gmra.mxu0 %v297
  %v416 = vpop.f32.mrf.mxu0
  %v417 = vadd.f32 %v374, %v416
  %v418 = vpop.f32.mrf.mxu0
  %v419 = vadd.f32 %v376, %v418
  %420 = vmatmul.bf16.gmra.mxu0 %v300
  %v421 = vpop.f32.mrf.mxu0
  %v422 = vadd.f32 %v379, %v421
  %v423 = vpop.f32.mrf.mxu0
  %v424 = vadd.f32 %v381, %v423
  %425 = vmatmul.bf16.gmra.mxu0 %v303
  %v426 = vpop.f32.mrf.mxu0
  %v427 = vadd.f32 %v384, %v426
  %v428 = vpop.f32.mrf.mxu0
  %v429 = vadd.f32 %v386, %v428
  %430 = vmatmul.bf16.gmra.mxu0 %v306
  %v431 = vpop.f32.mrf.mxu0
  %v432 = vadd.f32 %v389, %v431
  %v433 = vpop.f32.mrf.mxu0
  %v434 = vadd.f32 %v391, %v433
  %435 = vmatmul.bf16.gmra.mxu0 %v309
  %v436 = vpop.f32.mrf.mxu0
  %v437 = vadd.f32 %v394, %v436
  %v438 = vpop.f32.mrf.mxu0
  %439 = vdwg.mxu0
  %vm440 = vcmask 31744
  %441 = vst.msk [vmem:[%s3] sm:$0xff] %vm440, %v407
  %442 = vst.msk [vmem:[%s3 + $0x8] sm:$0xff] %vm440, %v409
  %443 = vst.msk [vmem:[%s3 + $0x10] sm:$0xff] %vm440, %v412
  %444 = vst.msk [vmem:[%s3 + $0x18] sm:$0xff] %vm440, %v414
  %445 = vst.msk [vmem:[%s3 + $0x20] sm:$0xff] %vm440, %v417
  %446 = vst.msk [vmem:[%s3 + $0x28] sm:$0xff] %vm440, %v419
  %447 = vst.msk [vmem:[%s3 + $0x30] sm:$0xff] %vm440, %v422
  %448 = vst.msk [vmem:[%s3 + $0x38] sm:$0xff] %vm440, %v424
  %449 = vst.msk [vmem:[%s3 + $0x40] sm:$0xff] %vm440, %v427
  %450 = vst.msk [vmem:[%s3 + $0x48] sm:$0xff] %vm440, %v429
  %451 = vst.msk [vmem:[%s3 + $0x50] sm:$0xff] %vm440, %v432
  %452 = vst.msk [vmem:[%s3 + $0x58] sm:$0xff] %vm440, %v434
  %453 = vst.msk [vmem:[%s3 + $0x60] sm:$0xff] %vm440, %v437
  // Predicated region
  $region14: #{gcnet_forward.43} parent=0 // pred_check
    _
  $region15: #{gcnet_forward.43} parent=0 // pred_check_branch
    %455 = sbr.rel (0) target = $region17
  $region16: #{gcnet_forward.43} parent=0 // pred_region
    _
  $region17: #{gcnet_forward.43} parent=0 // pred_fallthru
    _
  // Predicated region
  $region18: #{gcnet_forward.43} parent=0 // pred_check
    _
  $region19: #{gcnet_forward.43} parent=0 // pred_check_branch
    %457 = sbr.rel (0) target = $region21
  $region20: #{gcnet_forward.43} parent=0 // pred_region
    _
  $region21: #{gcnet_forward.43} parent=0 // pred_fallthru
    _

// kernel: gcnet_forward.46
$region0: #{gcnet_forward.46}
  #allocation0 [shape = 'u32[]', space=smem, size = 0x4, offset = 0x4, fixed_abs, tag = 'smem constant byte address 0x4 - core index']
  #allocation1 [shape = 'u32[72,128]{1,0:T(1,128)}', space=vmem, size = 0x9000, scoped, tag = 'internal scratch']
  %s0 = inlined_call_operand.vmem [shape: f32[4,4,1], index: 0, kind: input, shape index: {}]
  %s1 = inlined_call_operand.vmem [shape: f32[4,1,4], index: 1, kind: input, shape index: {}]
  %s2 = inlined_call_operand.vmem [shape: f32[4,49,4], index: 2, kind: input, shape index: {}]
  %s3 = inlined_call_operand.vmem [shape: f32[4,49,4], index: 3, kind: output, shape index: {}]
  %s4 = sld [smem:[#allocation0]]
  $region45: #{gcnet_forward.46} parent=0
    _
  %s6 = ssub.s32 1, %s4
  %s7 = scalar_select 0, %s6, %s4
  loop: start=0, step=1, limit=6
  $region2: #{gcnet_forward.46} parent=0 // loop_pre_header
    _
  $region3: #{gcnet_forward.46} parent=0 // loop_header
    %s9 = sphi 0, %s13
    %p10 = scmp.ge.s32.totalorder %s9, 6
    %s19 = sphi 0, %s21
    %s22 = sphi 0, %s19
    %s23 = sphi 0, %s22
    %s39 = sphi 0, %s23
    %s45 = sphi 0, %s47
    %s48 = sphi 0, %s45
    %s49 = sphi 0, %s48
    %s65 = sphi 0, %s49
    %s71 = sphi 0, %s73
    %s74 = sphi 0, %s71
    %s75 = sphi 0, %s74
    %s91 = sphi 0, %s75
    %s97 = sphi 0, %s99
    %s100 = sphi 0, %s97
    %s101 = sphi 0, %s100
    %s117 = sphi 0, %s101
  $region4: #{gcnet_forward.46} parent=0 // loop_header_branch
    %12 = sbr.rel (%p10) target = $region8
  $region5: #{gcnet_forward.46} parent=0 // loop_body
    %s14 = ssub.s32 %s9, 1
    %s15 = ssub.s32 %s9, 2
    %s16 = sadd.s32 %s9, 1
    %s17 = ssub.s32 %s9, %s16
    %p18 = scmp.eq.s32.totalorder %s17, 0
    %s20 = sadd.s32 %s19, 1
    %s21 = scalar_select %p18, %s19, %s20
    %p24 = pneg %p18
    %p25 = scmp.eq.s32.totalorder %s9, 3
    %p26 = por %p24, %p25
    %p27 = scmp.ne.s32.totalorder %s19, %s22
    %p28 = scmp.eq.s32.totalorder %s9, 0
    %p29 = por %p27, %p28
    %p30 = scmp.ne.s32.totalorder %s19, %s22
    %p31 = scmp.eq.s32.totalorder %s14, 3
    %p32 = por %p30, %p31
    %p33 = scmp.ne.s32.totalorder %s22, %s23
    %p34 = scmp.eq.s32.totalorder %s14, 0
    %p35 = por %p33, %p34
    %p36 = scmp.ne.s32.totalorder %s22, %s23
    %p37 = scmp.eq.s32.totalorder %s15, 3
    %p38 = por %p36, %p37
    %p40 = scmp.ne.s32.totalorder %s23, %s39
    %p41 = scmp.eq.s32.totalorder %s15, 0
    %p42 = por %p40, %p41
    %s43 = ssub.s32 %s9, %s16
    %p44 = scmp.eq.s32.totalorder %s43, 0
    %s46 = sadd.s32 %s45, 1
    %s47 = scalar_select %p44, %s45, %s46
    %p50 = pneg %p44
    %p51 = scmp.eq.s32.totalorder %s9, 3
    %p52 = por %p50, %p51
    %p53 = scmp.ne.s32.totalorder %s45, %s48
    %p54 = scmp.eq.s32.totalorder %s9, 0
    %p55 = por %p53, %p54
    %p56 = scmp.ne.s32.totalorder %s45, %s48
    %p57 = scmp.eq.s32.totalorder %s14, 3
    %p58 = por %p56, %p57
    %p59 = scmp.ne.s32.totalorder %s48, %s49
    %p60 = scmp.eq.s32.totalorder %s14, 0
    %p61 = por %p59, %p60
    %p62 = scmp.ne.s32.totalorder %s48, %s49
    %p63 = scmp.eq.s32.totalorder %s15, 3
    %p64 = por %p62, %p63
    %p66 = scmp.ne.s32.totalorder %s49, %s65
    %p67 = scmp.eq.s32.totalorder %s15, 0
    %p68 = por %p66, %p67
    %s69 = ssub.s32 %s9, %s16
    %p70 = scmp.eq.s32.totalorder %s69, 0
    %s72 = sadd.s32 %s71, 1
    %s73 = scalar_select %p70, %s71, %s72
    %p76 = pneg %p70
    %p77 = scmp.eq.s32.totalorder %s9, 3
    %p78 = por %p76, %p77
    %p79 = scmp.ne.s32.totalorder %s71, %s74
    %p80 = scmp.eq.s32.totalorder %s9, 0
    %p81 = por %p79, %p80
    %p82 = scmp.ne.s32.totalorder %s71, %s74
    %p83 = scmp.eq.s32.totalorder %s14, 3
    %p84 = por %p82, %p83
    %p85 = scmp.ne.s32.totalorder %s74, %s75
    %p86 = scmp.eq.s32.totalorder %s14, 0
    %p87 = por %p85, %p86
    %p88 = scmp.ne.s32.totalorder %s74, %s75
    %p89 = scmp.eq.s32.totalorder %s15, 3
    %p90 = por %p88, %p89
    %p92 = scmp.ne.s32.totalorder %s75, %s91
    %p93 = scmp.eq.s32.totalorder %s15, 0
    %p94 = por %p92, %p93
    %s95 = ssub.s32 %s9, %s16
    %p96 = scmp.eq.s32.totalorder %s95, 0
    %s98 = sadd.s32 %s97, 1
    %s99 = scalar_select %p96, %s97, %s98
    %p102 = pneg %p96
    %p103 = scmp.eq.s32.totalorder %s9, 3
    %p104 = por %p102, %p103
    %p105 = scmp.ne.s32.totalorder %s97, %s100
    %p106 = scmp.eq.s32.totalorder %s9, 0
    %p107 = por %p105, %p106
    %p108 = scmp.ne.s32.totalorder %s97, %s100
    %p109 = scmp.eq.s32.totalorder %s14, 3
    %p110 = por %p108, %p109
    %p111 = scmp.ne.s32.totalorder %s100, %s101
    %p112 = scmp.eq.s32.totalorder %s14, 0
    %p113 = por %p111, %p112
    %p114 = scmp.ne.s32.totalorder %s100, %s101
    %p115 = scmp.eq.s32.totalorder %s15, 3
    %p116 = por %p114, %p115
    %p118 = scmp.ne.s32.totalorder %s101, %s117
    %p119 = scmp.eq.s32.totalorder %s15, 0
    %p120 = por %p118, %p119
    %p121 = scmp.le.s32.totalorder 1, %s9
    %p122 = scmp.lt.s32.totalorder %s9, 5
    %p123 = pnand %p121, %p122
    %p124 = pneg %p123
    // Predicated region
    $region9: #{gcnet_forward.46} parent=5 // pred_check
      _
    $region10: #{gcnet_forward.46} parent=5 // pred_check_branch
      %126 = sbr.rel (%p123) target = $region12
    $region11: #{gcnet_forward.46} parent=5 // pred_region
      %s127 = ssub.s32 %s9, 1
    $region12: #{gcnet_forward.46} parent=5 // pred_fallthru
      _
    %p128 = scmp.lt.s32.totalorder %s9, 4
    // Predicated region
    $region13: #{gcnet_forward.46} parent=5 // pred_check
      %p129 = pneg %p128
    $region14: #{gcnet_forward.46} parent=5 // pred_check_branch
      %131 = sbr.rel (%p129) target = $region16
    $region15: #{gcnet_forward.46} parent=5 // pred_region
      // Predicated region
      $region17: #{gcnet_forward.46} parent=15 // pred_check
        %p132 = pneg %p29
      $region18: #{gcnet_forward.46} parent=15 // pred_check_branch
        %134 = sbr.rel (%p132) target = $region20
      $region19: #{gcnet_forward.46} parent=15 // pred_region
        %p135 = scmp.lt.s32.totalorder %s9, 3
        %s136 = scalar_select %p135, %s9, 3
        %s137 = smul.addr %s136, 4
        %s138 = scalar_lea.vmem %s0, %s137
      $region20: #{gcnet_forward.46} parent=15 // pred_fallthru
        _
      // Predicated region
      $region21: #{gcnet_forward.46} parent=15 // pred_check
        %p139 = pneg %p55
      $region22: #{gcnet_forward.46} parent=15 // pred_check_branch
        %141 = sbr.rel (%p139) target = $region24
      $region23: #{gcnet_forward.46} parent=15 // pred_region
        %p142 = scmp.lt.s32.totalorder %s9, 3
        %s143 = scalar_select %p142, %s9, 3
        %s144 = scalar_lea.vmem %s1, %s143
      $region24: #{gcnet_forward.46} parent=15 // pred_fallthru
        _
      // Predicated region
      $region25: #{gcnet_forward.46} parent=15 // pred_check
        %p145 = pneg %p81
      $region26: #{gcnet_forward.46} parent=15 // pred_check_branch
        %147 = sbr.rel (%p145) target = $region28
      $region27: #{gcnet_forward.46} parent=15 // pred_region
        %p148 = scmp.lt.s32.totalorder %s9, 3
        %s149 = scalar_select %p148, %s9, 3
        %s150 = smul.addr %s149, 7
        %s151 = smul.addr %s150, 8
        %s152 = scalar_lea.vmem %s2, %s151
      $region28: #{gcnet_forward.46} parent=15 // pred_fallthru
        _
    $region16: #{gcnet_forward.46} parent=5 // pred_fallthru
      _
    %p153 = scmp.le.s32.totalorder 1, %s9
    %p154 = scmp.lt.s32.totalorder %s9, 5
    %p155 = pnand %p153, %p154
    %p156 = pneg %p155
    // Predicated region
    $region29: #{gcnet_forward.46} parent=5 // pred_check
      _
    $region30: #{gcnet_forward.46} parent=5 // pred_check_branch
      %158 = sbr.rel (%p155) target = $region32
    $region31: #{gcnet_forward.46} parent=5 // pred_region
      %s159 = ssub.s32 %s9, 1
      %p160 = scmp.lt.s32.totalorder %s14, 3
      %s161 = scalar_select %p160, %s14, 3
      %s162 = smul.addr %s161, 4
      %s163 = scalar_lea.vmem %s0, %s162
      %p164 = pneg %p35
      %p165 = pneg %p32
      %p166 = scmp.lt.s32.totalorder %s14, 3
      %s167 = scalar_select %p166, %s14, 3
      %s168 = scalar_lea.vmem %s1, %s167
      %p169 = pneg %p61
      %p170 = pneg %p58
      %p171 = scmp.lt.s32.totalorder %s14, 3
      %s172 = scalar_select %p171, %s14, 3
      %s173 = smul.addr %s172, 7
      %s174 = smul.addr %s173, 8
      %s175 = scalar_lea.vmem %s2, %s174
      %p176 = pneg %p87
      %p177 = pneg %p84
      %p178 = pneg %p113
      %p179 = pneg %p110
      %p180 = scmp.lt.s32.totalorder %s14, 3
      %s181 = scalar_select %p180, %s14, 3
      %s182 = smul.addr %s181, 7
      %s183 = smul.addr %s182, 8
      %s184 = scalar_lea.vmem %s3, %s183
      %p185 = scmp.lt.s32.totalorder %s14, 3
      %s186 = scalar_select %p185, %s14, 3
      %s187 = smul.addr %s186, 4
      %s188 = scalar_lea.vmem %s0, %s187
      %p189 = scmp.lt.s32.totalorder %s14, 3
      %s190 = scalar_select %p189, %s14, 3
      %s191 = scalar_lea.vmem %s1, %s190
      %p192 = scmp.lt.s32.totalorder %s14, 3
      %s193 = scalar_select %p192, %s14, 3
      %s194 = smul.addr %s193, 7
      %s195 = smul.addr %s194, 8
      %s196 = scalar_lea.vmem %s2, %s195
      %p197 = scmp.lt.s32.totalorder %s14, 3
      %s198 = scalar_select %p197, %s14, 3
      %s199 = smul.addr %s198, 7
      %s200 = smul.addr %s199, 8
      %s201 = scalar_lea.vmem %s3, %s200
      %v203 = vld [vmem:[%s188] sm:$0xf]
      %v204 = vld [vmem:[%s191] sm:$0x1]
      %206 = vset.pattern.permute.xlu0 0
      %207 = vperm.xlu0 %206, %v203
      %v208 = vpop.permute.xlu0 %207
      %v211 = vperm.slane %v204, 0
      %v213 = vmul.f32 %v208, %v211
      %vm214 = vcmask 27648
      %v215 = vsel %vm214, %v213, -inf
      %216 = vmax.xlane.f32.xlu0 %v215
      %v217 = vpop.xlane.xlu0 %216
      %v218 = vsub.f32 %v213, %v217
      %v219 = vmul.f32 %v218, 1.442695
      %v220 = vpow.pop %v219
      %v221 = vsel %vm214, %v220, 0.0
      %222 = vadd.xlane.f32.xlu0 %v221
      %v223 = vpop.xlane.xlu0 %222
      %v224 = vrcp.pop %v223
      %v225 = vmul.f32 %v220, %v224
      %v226 = vld [vmem:[%s196] sm:$0xff]
      %v227 = vld [vmem:[%s196 + $0x8] sm:$0xff]
      %v228 = vld [vmem:[%s196 + $0x10] sm:$0xff]
      %v229 = vld [vmem:[%s196 + $0x18] sm:$0xff]
      %v230 = vld [vmem:[%s196 + $0x20] sm:$0xff]
      %v231 = vld [vmem:[%s196 + $0x28] sm:$0xff]
      %v232 = vld [vmem:[%s196 + $0x30] sm:$0x1]
      %v233 = vpack.c.bf16 %v227, %v226
      %v234 = vpack.c.bf16 %v229, %v228
      %v235 = vpack.c.bf16 %v231, %v230
      %v236 = vpack.c.bf16 %v232, %v232
      %v237 = vpack.c.bf16 %v225, %v225
      %vm238 = vcmask 31744
      %v240 = vsel %vm238, %v233, 0
      %v243 = vsel %vm238, %v234, 0
      %v246 = vsel %vm238, %v235, 0
      %v249 = vsel %vm238, %v236, 0
      %v252 = vsel %vm238, %v237, 0
      %254 = vmatpush.bf16.xpose.msra.mxu0 0
      %255 = vmatpush.bf16.xpose.msra.mxu0 0
      %256 = vmatpush.bf16.xpose.msra.mxu0 0
      %257 = vmatpush.bf16.xpose.msra.mxu0 0
      %258 = vmatpush.bf16.xpose.msra.mxu0 0
      %259 = vmatpush.bf16.xpose.msra.mxu0 0
      %260 = vmatpush.bf16.xpose.msra.mxu0 0
      %261 = vmatpush.bf16.xpose.msra.mxu0 %v252
      %262 = vmatmul.bf16.gmra.mxu0 %v240
      %v263 = vpop.f32.mrf.mxu0
      %v264 = vadd.f32 0.0, %v263
      %v265 = vpop.f32.mrf.mxu0
      %v266 = vadd.f32 0.0, %v265
      %267 = vmatmul.bf16.gmra.mxu0 %v243
      %v268 = vpop.f32.mrf.mxu0
      %v269 = vadd.f32 0.0, %v268
      %v270 = vpop.f32.mrf.mxu0
      %v271 = vadd.f32 0.0, %v270
      %272 = vmatmul.bf16.gmra.mxu0 %v246
      %v273 = vpop.f32.mrf.mxu0
      %v274 = vadd.f32 0.0, %v273
      %v275 = vpop.f32.mrf.mxu0
      %v276 = vadd.f32 0.0, %v275
      %277 = vmatmul.bf16.gmra.mxu0 %v249
      %v278 = vpop.f32.mrf.mxu0
      %v279 = vadd.f32 0.0, %v278
      %v280 = vpop.f32.mrf.mxu0
      %281 = vdwg.mxu0
      %282 = vst.msk [vmem:[%s201] sm:$0xff] %vm238, %v264
      %283 = vst.msk [vmem:[%s201 + $0x8] sm:$0xff] %vm238, %v266
      %284 = vst.msk [vmem:[%s201 + $0x10] sm:$0xff] %vm238, %v269
      %285 = vst.msk [vmem:[%s201 + $0x18] sm:$0xff] %vm238, %v271
      %286 = vst.msk [vmem:[%s201 + $0x20] sm:$0xff] %vm238, %v274
      %287 = vst.msk [vmem:[%s201 + $0x28] sm:$0xff] %vm238, %v276
      %vm288 = vcmask 24576
      %289 = vst.msk [vmem:[%s201 + $0x30] sm:$0x1] %vm288, %v279
      %p290 = scmp.lt.s32.totalorder %s14, 3
      %s291 = scalar_select %p290, %s14, 3
      %s292 = smul.addr %s291, 7
      %s293 = smul.addr %s292, 8
      %s294 = scalar_lea.vmem %s3, %s293
      // Predicated region
      $region33: #{gcnet_forward.46} parent=31 // pred_check
        %p295 = pneg %p110
      $region34: #{gcnet_forward.46} parent=31 // pred_check_branch
        %297 = sbr.rel (%p295) target = $region36
      $region35: #{gcnet_forward.46} parent=31 // pred_region
        _
      $region36: #{gcnet_forward.46} parent=31 // pred_fallthru
        _
    $region32: #{gcnet_forward.46} parent=5 // pred_fallthru
      _
    %p298 = scmp.le.s32.totalorder 2, %s9
    // Predicated region
    $region37: #{gcnet_forward.46} parent=5 // pred_check
      %p299 = pneg %p298
    $region38: #{gcnet_forward.46} parent=5 // pred_check_branch
      %301 = sbr.rel (%p299) target = $region40
    $region39: #{gcnet_forward.46} parent=5 // pred_region
      %s302 = ssub.s32 %s9, 2
      // Predicated region
      $region41: #{gcnet_forward.46} parent=39 // pred_check
        %p303 = pneg %p116
      $region42: #{gcnet_forward.46} parent=39 // pred_check_branch
        %305 = sbr.rel (%p303) target = $region44
      $region43: #{gcnet_forward.46} parent=39 // pred_region
        %p306 = scmp.lt.s32.totalorder %s15, 3
        %s307 = scalar_select %p306, %s15, 3
        %s308 = smul.addr %s307, 7
        %s309 = smul.addr %s308, 8
        %s310 = scalar_lea.vmem %s3, %s309
      $region44: #{gcnet_forward.46} parent=39 // pred_fallthru
        _
    $region40: #{gcnet_forward.46} parent=5 // pred_fallthru
      _
  $region6: #{gcnet_forward.46} parent=0 // loop_footer
    %s13 = sadd.s32 1, %s9
  $region7: #{gcnet_forward.46} parent=0 // loop_footer_branch
    %8 = sbr.rel target = $region3
  $region8: #{gcnet_forward.46} parent=0 // loop_exit
    _

// kernel: gcnet_forward.47
$region0: #{gcnet_forward.47}
  #allocation0 [shape = 'u32[]', space=smem, size = 0x4, offset = 0x4, fixed_abs, tag = 'smem constant byte address 0x4 - core index']
  #allocation1 [shape = 'u32[72,128]{1,0:T(1,128)}', space=vmem, size = 0x9000, scoped, tag = 'internal scratch']
  %s0 = inlined_call_operand.vmem [shape: bf16[200,36], index: 0, kind: input, shape index: {}]
  %s1 = inlined_call_operand.vmem [shape: bf16[36,32], index: 1, kind: input, shape index: {}]
  %s2 = inlined_call_operand.vmem [shape: f32[1,32], index: 2, kind: input, shape index: {}]
  %s3 = inlined_call_operand.vmem [shape: f32[200,32], index: 3, kind: output, shape index: {}]
  %s4 = sld [smem:[#allocation0]]
  $region22: #{gcnet_forward.47} parent=0
    _
  %s6 = ssub.s32 1, %s4
  %s7 = scalar_select 0, %s6, %s4
  // Predicated region
  $region2: #{gcnet_forward.47} parent=0 // pred_check
    _
  $region3: #{gcnet_forward.47} parent=0 // pred_check_branch
    %9 = sbr.rel (0) target = $region5
  $region4: #{gcnet_forward.47} parent=0 // pred_region
    _
  $region5: #{gcnet_forward.47} parent=0 // pred_fallthru
    _
  // Predicated region
  $region6: #{gcnet_forward.47} parent=0 // pred_check
    _
  $region7: #{gcnet_forward.47} parent=0 // pred_check_branch
    %11 = sbr.rel (0) target = $region9
  $region8: #{gcnet_forward.47} parent=0 // pred_region
    _
  $region9: #{gcnet_forward.47} parent=0 // pred_fallthru
    _
  // Predicated region
  $region10: #{gcnet_forward.47} parent=0 // pred_check
    _
  $region11: #{gcnet_forward.47} parent=0 // pred_check_branch
    %13 = sbr.rel (0) target = $region13
  $region12: #{gcnet_forward.47} parent=0 // pred_region
    _
  $region13: #{gcnet_forward.47} parent=0 // pred_fallthru
    _
  %v15 = vld [vmem:[%s0] sm:$0xf]
  %v16 = vld [vmem:[%s0 + $0x4] sm:$0xf]
  %v17 = vld [vmem:[%s0 + $0x8] sm:$0xf]
  %v18 = vld [vmem:[%s0 + $0xc] sm:$0xf]
  %v19 = vld [vmem:[%s0 + $0x10] sm:$0xf]
  %v20 = vld [vmem:[%s0 + $0x14] sm:$0xf]
  %v21 = vld [vmem:[%s0 + $0x18] sm:$0xf]
  %v22 = vld [vmem:[%s0 + $0x1c] sm:$0xf]
  %v23 = vld [vmem:[%s0 + $0x20] sm:$0xf]
  %v24 = vld [vmem:[%s0 + $0x24] sm:$0xf]
  %v25 = vld [vmem:[%s0 + $0x28] sm:$0xf]
  %v26 = vld [vmem:[%s0 + $0x2c] sm:$0xf]
  %v27 = vld [vmem:[%s0 + $0x30] sm:$0xf]
  %v28 = vld [vmem:[%s0 + $0x34] sm:$0xf]
  %v29 = vld [vmem:[%s0 + $0x38] sm:$0xf]
  %v30 = vld [vmem:[%s0 + $0x3c] sm:$0xf]
  %v31 = vld [vmem:[%s0 + $0x40] sm:$0xf]
  %v32 = vld [vmem:[%s0 + $0x44] sm:$0xf]
  %v33 = vld [vmem:[%s0 + $0x48] sm:$0xf]
  %v34 = vld [vmem:[%s0 + $0x4c] sm:$0xf]
  %v35 = vld [vmem:[%s0 + $0x50] sm:$0xf]
  %v36 = vld [vmem:[%s0 + $0x54] sm:$0xf]
  %v37 = vld [vmem:[%s0 + $0x58] sm:$0xf]
  %v38 = vld [vmem:[%s0 + $0x5c] sm:$0xf]
  %v39 = vld [vmem:[%s0 + $0x60] sm:$0xf]
  %v40 = vld [vmem:[%s1] sm:$0xf]
  %v41 = vld [vmem:[%s1 + $0x4] sm:$0xf]
  %v42 = vld [vmem:[%s1 + $0x8] sm:$0xf]
  %v43 = vld [vmem:[%s1 + $0xc] sm:$0xf]
  %v44 = vld [vmem:[%s1 + $0x10] sm:$0x3]
  %v45 = vld [vmem:[%s2] sm:$0x1]
  %v47 = vperm.slane %v45, 0
  %v74 = vunpack.c.l.b16 %v15
  %v75 = vunpack.c.l.b16 %v16
  %v76 = vunpack.c.l.b16 %v17
  %v77 = vunpack.c.l.b16 %v18
  %v78 = vunpack.c.l.b16 %v19
  %v79 = vunpack.c.l.b16 %v20
  %v80 = vunpack.c.l.b16 %v21
  %v81 = vunpack.c.l.b16 %v22
  %v82 = vunpack.c.l.b16 %v23
  %v83 = vunpack.c.l.b16 %v24
  %v84 = vunpack.c.l.b16 %v25
  %v85 = vunpack.c.l.b16 %v26
  %v86 = vunpack.c.l.b16 %v27
  %v87 = vunpack.c.l.b16 %v28
  %v88 = vunpack.c.l.b16 %v29
  %v89 = vunpack.c.l.b16 %v30
  %v90 = vunpack.c.l.b16 %v31
  %v91 = vunpack.c.l.b16 %v32
  %v92 = vunpack.c.l.b16 %v33
  %v93 = vunpack.c.l.b16 %v34
  %v94 = vunpack.c.l.b16 %v35
  %v95 = vunpack.c.l.b16 %v36
  %v96 = vunpack.c.l.b16 %v37
  %v97 = vunpack.c.l.b16 %v38
  %v98 = vunpack.c.l.b16 %v39
  %v99 = vpack.c.b16 %v75, %v74
  %v100 = vpack.c.b16 %v77, %v76
  %v101 = vpack.c.b16 %v79, %v78
  %v102 = vpack.c.b16 %v81, %v80
  %v103 = vpack.c.b16 %v83, %v82
  %v104 = vpack.c.b16 %v85, %v84
  %v105 = vpack.c.b16 %v87, %v86
  %v106 = vpack.c.b16 %v89, %v88
  %v107 = vpack.c.b16 %v91, %v90
  %v108 = vpack.c.b16 %v93, %v92
  %v109 = vpack.c.b16 %v95, %v94
  %v110 = vpack.c.b16 %v97, %v96
  %v111 = vpack.c.b16 %v98, %v98
  %v117 = vunpack.c.l.b16 %v40
  %v118 = vunpack.c.l.b16 %v41
  %v119 = vunpack.c.l.b16 %v42
  %v120 = vunpack.c.l.b16 %v43
  %v121 = vunpack.c.l.b16 %v44
  %v122 = vpack.c.b16 %v118, %v117
  %v123 = vpack.c.b16 %v120, %v119
  %v124 = vpack.c.b16 %v121, %v121
  %vm127 = vcmask 293888
  %v129 = vsel %vm127, %v99, 0
  %v132 = vsel %vm127, %v100, 0
  %v135 = vsel %vm127, %v101, 0
  %v138 = vsel %vm127, %v102, 0
  %v141 = vsel %vm127, %v103, 0
  %v144 = vsel %vm127, %v104, 0
  %v147 = vsel %vm127, %v105, 0
  %v150 = vsel %vm127, %v106, 0
  %v153 = vsel %vm127, %v107, 0
  %v156 = vsel %vm127, %v108, 0
  %v159 = vsel %vm127, %v109, 0
  %v162 = vsel %vm127, %v110, 0
  %v165 = vsel %vm127, %v111, 0
  %vm167 = vcmask 1041408
  %v169 = vsel %vm167, %v124, 0
  %171 = vmatpush.bf16.msra.mxu0 0
  %172 = vmatpush.bf16.msra.mxu0 0
  %173 = vmatpush.bf16.msra.mxu0 0
  %174 = vmatpush.bf16.msra.mxu0 0
  %175 = vmatpush.bf16.msra.mxu0 0
  %176 = vmatpush.bf16.msra.mxu0 %v169
  %177 = vmatpush.bf16.msra.mxu0 %v123
  %178 = vmatpush.bf16.msra.mxu0 %v122
  %179 = vmatmul.bf16.gmra.mxu0 %v129
  %v180 = vpop.f32.mrf.mxu0
  %v181 = vadd.f32 %v47, %v180
  %v182 = vpop.f32.mrf.mxu0
  %v183 = vadd.f32 %v47, %v182
  %184 = vmatmul.bf16.gmra.mxu0 %v132
  %v185 = vpop.f32.mrf.mxu0
  %v186 = vadd.f32 %v47, %v185
  %v187 = vpop.f32.mrf.mxu0
  %v188 = vadd.f32 %v47, %v187
  %189 = vmatmul.bf16.gmra.mxu0 %v135
  %v190 = vpop.f32.mrf.mxu0
  %v191 = vadd.f32 %v47, %v190
  %v192 = vpop.f32.mrf.mxu0
  %v193 = vadd.f32 %v47, %v192
  %194 = vmatmul.bf16.gmra.mxu0 %v138
  %v195 = vpop.f32.mrf.mxu0
  %v196 = vadd.f32 %v47, %v195
  %v197 = vpop.f32.mrf.mxu0
  %v198 = vadd.f32 %v47, %v197
  %199 = vmatmul.bf16.gmra.mxu0 %v141
  %v200 = vpop.f32.mrf.mxu0
  %v201 = vadd.f32 %v47, %v200
  %v202 = vpop.f32.mrf.mxu0
  %v203 = vadd.f32 %v47, %v202
  %204 = vmatmul.bf16.gmra.mxu0 %v144
  %v205 = vpop.f32.mrf.mxu0
  %v206 = vadd.f32 %v47, %v205
  %v207 = vpop.f32.mrf.mxu0
  %v208 = vadd.f32 %v47, %v207
  %209 = vmatmul.bf16.gmra.mxu0 %v147
  %v210 = vpop.f32.mrf.mxu0
  %v211 = vadd.f32 %v47, %v210
  %v212 = vpop.f32.mrf.mxu0
  %v213 = vadd.f32 %v47, %v212
  %214 = vmatmul.bf16.gmra.mxu0 %v150
  %v215 = vpop.f32.mrf.mxu0
  %v216 = vadd.f32 %v47, %v215
  %v217 = vpop.f32.mrf.mxu0
  %v218 = vadd.f32 %v47, %v217
  %219 = vmatmul.bf16.gmra.mxu0 %v153
  %v220 = vpop.f32.mrf.mxu0
  %v221 = vadd.f32 %v47, %v220
  %v222 = vpop.f32.mrf.mxu0
  %v223 = vadd.f32 %v47, %v222
  %224 = vmatmul.bf16.gmra.mxu0 %v156
  %v225 = vpop.f32.mrf.mxu0
  %v226 = vadd.f32 %v47, %v225
  %v227 = vpop.f32.mrf.mxu0
  %v228 = vadd.f32 %v47, %v227
  %229 = vmatmul.bf16.gmra.mxu0 %v159
  %v230 = vpop.f32.mrf.mxu0
  %v231 = vadd.f32 %v47, %v230
  %v232 = vpop.f32.mrf.mxu0
  %v233 = vadd.f32 %v47, %v232
  %234 = vmatmul.bf16.gmra.mxu0 %v162
  %v235 = vpop.f32.mrf.mxu0
  %v236 = vadd.f32 %v47, %v235
  %v237 = vpop.f32.mrf.mxu0
  %v238 = vadd.f32 %v47, %v237
  %239 = vmatmul.bf16.gmra.mxu0 %v165
  %v240 = vpop.f32.mrf.mxu0
  %v241 = vadd.f32 %v47, %v240
  %v242 = vpop.f32.mrf.mxu0
  %243 = vdwg.mxu0
  %vm244 = vcmask 261120
  %245 = vst.msk [vmem:[%s3] sm:$0xff] %vm244, %v181
  %246 = vst.msk [vmem:[%s3 + $0x8] sm:$0xff] %vm244, %v183
  %247 = vst.msk [vmem:[%s3 + $0x10] sm:$0xff] %vm244, %v186
  %248 = vst.msk [vmem:[%s3 + $0x18] sm:$0xff] %vm244, %v188
  %249 = vst.msk [vmem:[%s3 + $0x20] sm:$0xff] %vm244, %v191
  %250 = vst.msk [vmem:[%s3 + $0x28] sm:$0xff] %vm244, %v193
  %251 = vst.msk [vmem:[%s3 + $0x30] sm:$0xff] %vm244, %v196
  %252 = vst.msk [vmem:[%s3 + $0x38] sm:$0xff] %vm244, %v198
  %253 = vst.msk [vmem:[%s3 + $0x40] sm:$0xff] %vm244, %v201
  %254 = vst.msk [vmem:[%s3 + $0x48] sm:$0xff] %vm244, %v203
  %255 = vst.msk [vmem:[%s3 + $0x50] sm:$0xff] %vm244, %v206
  %256 = vst.msk [vmem:[%s3 + $0x58] sm:$0xff] %vm244, %v208
  %257 = vst.msk [vmem:[%s3 + $0x60] sm:$0xff] %vm244, %v211
  %258 = vst.msk [vmem:[%s3 + $0x68] sm:$0xff] %vm244, %v213
  %259 = vst.msk [vmem:[%s3 + $0x70] sm:$0xff] %vm244, %v216
  %260 = vst.msk [vmem:[%s3 + $0x78] sm:$0xff] %vm244, %v218
  %261 = vst.msk [vmem:[%s3 + $0x80] sm:$0xff] %vm244, %v221
  %262 = vst.msk [vmem:[%s3 + $0x88] sm:$0xff] %vm244, %v223
  %263 = vst.msk [vmem:[%s3 + $0x90] sm:$0xff] %vm244, %v226
  %264 = vst.msk [vmem:[%s3 + $0x98] sm:$0xff] %vm244, %v228
  %265 = vst.msk [vmem:[%s3 + $0xa0] sm:$0xff] %vm244, %v231
  %266 = vst.msk [vmem:[%s3 + $0xa8] sm:$0xff] %vm244, %v233
  %267 = vst.msk [vmem:[%s3 + $0xb0] sm:$0xff] %vm244, %v236
  %268 = vst.msk [vmem:[%s3 + $0xb8] sm:$0xff] %vm244, %v238
  %269 = vst.msk [vmem:[%s3 + $0xc0] sm:$0xff] %vm244, %v241
  // Predicated region
  $region14: #{gcnet_forward.47} parent=0 // pred_check
    _
  $region15: #{gcnet_forward.47} parent=0 // pred_check_branch
    %271 = sbr.rel (0) target = $region17
  $region16: #{gcnet_forward.47} parent=0 // pred_region
    _
  $region17: #{gcnet_forward.47} parent=0 // pred_fallthru
    _
  // Predicated region
  $region18: #{gcnet_forward.47} parent=0 // pred_check
    _
  $region19: #{gcnet_forward.47} parent=0 // pred_check_branch
    %273 = sbr.rel (0) target = $region21
  $region20: #{gcnet_forward.47} parent=0 // pred_region
    _
  $region21: #{gcnet_forward.47} parent=0 // pred_fallthru
    _

// kernel: gcnet_forward.61
$region0: #{gcnet_forward.61}
  #allocation0 [shape = 'u32[]', space=smem, size = 0x4, offset = 0x4, fixed_abs, tag = 'smem constant byte address 0x4 - core index']
  #allocation1 [shape = 'u32[72,128]{1,0:T(1,128)}', space=vmem, size = 0x9000, scoped, tag = 'internal scratch']
  %s0 = inlined_call_operand.vmem [shape: bf16[104,288], index: 0, kind: input, shape index: {}]
  %s1 = inlined_call_operand.vmem [shape: bf16[288,16], index: 1, kind: input, shape index: {}]
  %s2 = inlined_call_operand.vmem [shape: f32[1,16], index: 2, kind: input, shape index: {}]
  %s3 = inlined_call_operand.vmem [shape: f32[104,16], index: 3, kind: output, shape index: {}]
  %s4 = sld [smem:[#allocation0]]
  $region22: #{gcnet_forward.61} parent=0
    _
  %s6 = ssub.s32 1, %s4
  %s7 = scalar_select 0, %s6, %s4
  // Predicated region
  $region2: #{gcnet_forward.61} parent=0 // pred_check
    _
  $region3: #{gcnet_forward.61} parent=0 // pred_check_branch
    %9 = sbr.rel (0) target = $region5
  $region4: #{gcnet_forward.61} parent=0 // pred_region
    _
  $region5: #{gcnet_forward.61} parent=0 // pred_fallthru
    _
  // Predicated region
  $region6: #{gcnet_forward.61} parent=0 // pred_check
    _
  $region7: #{gcnet_forward.61} parent=0 // pred_check_branch
    %11 = sbr.rel (0) target = $region9
  $region8: #{gcnet_forward.61} parent=0 // pred_region
    _
  $region9: #{gcnet_forward.61} parent=0 // pred_fallthru
    _
  // Predicated region
  $region10: #{gcnet_forward.61} parent=0 // pred_check
    _
  $region11: #{gcnet_forward.61} parent=0 // pred_check_branch
    %13 = sbr.rel (0) target = $region13
  $region12: #{gcnet_forward.61} parent=0 // pred_region
    _
  $region13: #{gcnet_forward.61} parent=0 // pred_fallthru
    _
  %v15 = vld [vmem:[%s0] sm:$0xff]
  %v16 = vld [vmem:[%s0 + $0x8] sm:$0xf]
  %v17 = vld [vmem:[%s0 + $0xc] sm:$0xff]
  %v18 = vld [vmem:[%s0 + $0x14] sm:$0xf]
  %v19 = vld [vmem:[%s0 + $0x18] sm:$0xff]
  %v20 = vld [vmem:[%s0 + $0x20] sm:$0xf]
  %v21 = vld [vmem:[%s0 + $0x24] sm:$0xff]
  %v22 = vld [vmem:[%s0 + $0x2c] sm:$0xf]
  %v23 = vld [vmem:[%s0 + $0x30] sm:$0xff]
  %v24 = vld [vmem:[%s0 + $0x38] sm:$0xf]
  %v25 = vld [vmem:[%s0 + $0x3c] sm:$0xff]
  %v26 = vld [vmem:[%s0 + $0x44] sm:$0xf]
  %v27 = vld [vmem:[%s0 + $0x48] sm:$0xff]
  %v28 = vld [vmem:[%s0 + $0x50] sm:$0xf]
  %v29 = vld [vmem:[%s0 + $0x54] sm:$0xff]
  %v30 = vld [vmem:[%s0 + $0x5c] sm:$0xf]
  %v31 = vld [vmem:[%s0 + $0x60] sm:$0xff]
  %v32 = vld [vmem:[%s0 + $0x68] sm:$0xf]
  %v33 = vld [vmem:[%s0 + $0x6c] sm:$0xff]
  %v34 = vld [vmem:[%s0 + $0x74] sm:$0xf]
  %v35 = vld [vmem:[%s0 + $0x78] sm:$0xff]
  %v36 = vld [vmem:[%s0 + $0x80] sm:$0xf]
  %v37 = vld [vmem:[%s0 + $0x84] sm:$0xff]
  %v38 = vld [vmem:[%s0 + $0x8c] sm:$0xf]
  %v39 = vld [vmem:[%s0 + $0x90] sm:$0xff]
  %v40 = vld [vmem:[%s0 + $0x98] sm:$0xf]
  %v41 = vld [vmem:[%s1] sm:$0xf]
  %v42 = vld [vmem:[%s1 + $0x4] sm:$0xf]
  %v43 = vld [vmem:[%s1 + $0x8] sm:$0xf]
  %v44 = vld [vmem:[%s1 + $0xc] sm:$0xf]
  %v45 = vld [vmem:[%s1 + $0x10] sm:$0xf]
  %v46 = vld [vmem:[%s1 + $0x14] sm:$0xf]
  %v47 = vld [vmem:[%s1 + $0x18] sm:$0xf]
  %v48 = vld [vmem:[%s1 + $0x1c] sm:$0xf]
  %v49 = vld [vmem:[%s1 + $0x20] sm:$0xf]
  %v50 = vld [vmem:[%s1 + $0x24] sm:$0xf]
  %v51 = vld [vmem:[%s1 + $0x28] sm:$0xf]
  %v52 = vld [vmem:[%s1 + $0x2c] sm:$0xf]
  %v53 = vld [vmem:[%s1 + $0x30] sm:$0xf]
  %v54 = vld [vmem:[%s1 + $0x34] sm:$0xf]
  %v55 = vld [vmem:[%s1 + $0x38] sm:$0xf]
  %v56 = vld [vmem:[%s1 + $0x3c] sm:$0xf]
  %v57 = vld [vmem:[%s1 + $0x40] sm:$0xf]
  %v58 = vld [vmem:[%s1 + $0x44] sm:$0xf]
  %v59 = vld [vmem:[%s1 + $0x48] sm:$0xf]
  %v60 = vld [vmem:[%s1 + $0x4c] sm:$0xf]
  %v61 = vld [vmem:[%s1 + $0x50] sm:$0xf]
  %v62 = vld [vmem:[%s1 + $0x54] sm:$0xf]
  %v63 = vld [vmem:[%s1 + $0x58] sm:$0xf]
  %v64 = vld [vmem:[%s1 + $0x5c] sm:$0xf]
  %v65 = vld [vmem:[%s1 + $0x60] sm:$0xf]
  %v66 = vld [vmem:[%s1 + $0x64] sm:$0xf]
  %v67 = vld [vmem:[%s1 + $0x68] sm:$0xf]
  %v68 = vld [vmem:[%s1 + $0x6c] sm:$0xf]
  %v69 = vld [vmem:[%s1 + $0x70] sm:$0xf]
  %v70 = vld [vmem:[%s1 + $0x74] sm:$0xf]
  %v71 = vld [vmem:[%s1 + $0x78] sm:$0xf]
  %v72 = vld [vmem:[%s1 + $0x7c] sm:$0xf]
  %v73 = vld [vmem:[%s1 + $0x80] sm:$0xf]
  %v74 = vld [vmem:[%s1 + $0x84] sm:$0xf]
  %v75 = vld [vmem:[%s1 + $0x88] sm:$0xf]
  %v76 = vld [vmem:[%s1 + $0x8c] sm:$0xf]
  %v77 = vld [vmem:[%s2] sm:$0x1]
  %v79 = vperm.slane %v77, 0
  %v107 = vunpack.c.l.b16 %v15
  %v108 = vunpack.c.h.b16 %v15
  %v109 = vunpack.c.l.b16 %v16
  %v110 = vunpack.c.l.b16 %v17
  %v111 = vunpack.c.h.b16 %v17
  %v112 = vunpack.c.l.b16 %v18
  %v113 = vunpack.c.l.b16 %v19
  %v114 = vunpack.c.h.b16 %v19
  %v115 = vunpack.c.l.b16 %v20
  %v116 = vunpack.c.l.b16 %v21
  %v117 = vunpack.c.h.b16 %v21
  %v118 = vunpack.c.l.b16 %v22
  %v119 = vunpack.c.l.b16 %v23
  %v120 = vunpack.c.h.b16 %v23
  %v121 = vunpack.c.l.b16 %v24
  %v122 = vunpack.c.l.b16 %v25
  %v123 = vunpack.c.h.b16 %v25
  %v124 = vunpack.c.l.b16 %v26
  %v125 = vunpack.c.l.b16 %v27
  %v126 = vunpack.c.h.b16 %v27
  %v127 = vunpack.c.l.b16 %v28
  %v128 = vunpack.c.l.b16 %v29
  %v129 = vunpack.c.h.b16 %v29
  %v130 = vunpack.c.l.b16 %v30
  %v131 = vunpack.c.l.b16 %v31
  %v132 = vunpack.c.h.b16 %v31
  %v133 = vunpack.c.l.b16 %v32
  %v134 = vunpack.c.l.b16 %v33
  %v135 = vunpack.c.h.b16 %v33
  %v136 = vunpack.c.l.b16 %v34
  %v137 = vunpack.c.l.b16 %v35
  %v138 = vunpack.c.h.b16 %v35
  %v139 = vunpack.c.l.b16 %v36
  %v140 = vunpack.c.l.b16 %v37
  %v141 = vunpack.c.h.b16 %v37
  %v142 = vunpack.c.l.b16 %v38
  %v143 = vunpack.c.l.b16 %v39
  %v144 = vunpack.c.h.b16 %v39
  %v145 = vunpack.c.l.b16 %v40
  %v146 = vpack.c.b16 %v110, %v107
  %v147 = vpack.c.b16 %v111, %v108
  %v148 = vpack.c.b16 %v112, %v109
  %v149 = vpack.c.b16 %v116, %v113
  %v150 = vpack.c.b16 %v117, %v114
  %v151 = vpack.c.b16 %v118, %v115
  %v152 = vpack.c.b16 %v122, %v119
  %v153 = vpack.c.b16 %v123, %v120
  %v154 = vpack.c.b16 %v124, %v121
  %v155 = vpack.c.b16 %v128, %v125
  %v156 = vpack.c.b16 %v129, %v126
  %v157 = vpack.c.b16 %v130, %v127
  %v158 = vpack.c.b16 %v134, %v131
  %v159 = vpack.c.b16 %v135, %v132
  %v160 = vpack.c.b16 %v136, %v133
  %v161 = vpack.c.b16 %v140, %v137
  %v162 = vpack.c.b16 %v141, %v138
  %v163 = vpack.c.b16 %v142, %v139
  %v164 = vpack.c.b16 %v143, %v143
  %v165 = vpack.c.b16 %v144, %v144
  %v166 = vpack.c.b16 %v145, %v145
  %v217 = vunpack.c.l.b16 %v41
  %v218 = vunpack.c.l.b16 %v42
  %v219 = vunpack.c.l.b16 %v43
  %v220 = vunpack.c.l.b16 %v44
  %v221 = vunpack.c.l.b16 %v45
  %v222 = vunpack.c.l.b16 %v46
  %v223 = vunpack.c.l.b16 %v47
  %v224 = vunpack.c.l.b16 %v48
  %v225 = vunpack.c.l.b16 %v49
  %v226 = vunpack.c.l.b16 %v50
  %v227 = vunpack.c.l.b16 %v51
  %v228 = vunpack.c.l.b16 %v52
  %v229 = vunpack.c.l.b16 %v53
  %v230 = vunpack.c.l.b16 %v54
  %v231 = vunpack.c.l.b16 %v55
  %v232 = vunpack.c.l.b16 %v56
  %v233 = vunpack.c.l.b16 %v57
  %v234 = vunpack.c.l.b16 %v58
  %v235 = vunpack.c.l.b16 %v59
  %v236 = vunpack.c.l.b16 %v60
  %v237 = vunpack.c.l.b16 %v61
  %v238 = vunpack.c.l.b16 %v62
  %v239 = vunpack.c.l.b16 %v63
  %v240 = vunpack.c.l.b16 %v64
  %v241 = vunpack.c.l.b16 %v65
  %v242 = vunpack.c.l.b16 %v66
  %v243 = vunpack.c.l.b16 %v67
  %v244 = vunpack.c.l.b16 %v68
  %v245 = vunpack.c.l.b16 %v69
  %v246 = vunpack.c.l.b16 %v70
  %v247 = vunpack.c.l.b16 %v71
  %v248 = vunpack.c.l.b16 %v72
  %v249 = vunpack.c.l.b16 %v73
  %v250 = vunpack.c.l.b16 %v74
  %v251 = vunpack.c.l.b16 %v75
  %v252 = vunpack.c.l.b16 %v76
  %v253 = vpack.c.b16 %v218, %v217
  %v254 = vpack.c.b16 %v220, %v219
  %v255 = vpack.c.b16 %v222, %v221
  %v256 = vpack.c.b16 %v224, %v223
  %v257 = vpack.c.b16 %v226, %v225
  %v258 = vpack.c.b16 %v228, %v227
  %v259 = vpack.c.b16 %v230, %v229
  %v260 = vpack.c.b16 %v232, %v231
  %v261 = vpack.c.b16 %v234, %v233
  %v262 = vpack.c.b16 %v236, %v235
  %v263 = vpack.c.b16 %v238, %v237
  %v264 = vpack.c.b16 %v240, %v239
  %v265 = vpack.c.b16 %v242, %v241
  %v266 = vpack.c.b16 %v244, %v243
  %v267 = vpack.c.b16 %v246, %v245
  %v268 = vpack.c.b16 %v248, %v247
  %v269 = vpack.c.b16 %v250, %v249
  %v270 = vpack.c.b16 %v252, %v251
  %vm289 = vcmask 261120
  %v291 = vsel %vm289, %v148, 0
  %v294 = vsel %vm289, %v151, 0
  %v297 = vsel %vm289, %v154, 0
  %v300 = vsel %vm289, %v157, 0
  %v303 = vsel %vm289, %v160, 0
  %v306 = vsel %vm289, %v163, 0
  %v309 = vsel %vm289, %v166, 0
  %311 = vmatpush.bf16.msra.mxu0 %v260
  %312 = vmatpush.bf16.msra.mxu0 %v259
  %313 = vmatpush.bf16.msra.mxu0 %v258
  %314 = vmatpush.bf16.msra.mxu0 %v257
  %315 = vmatpush.bf16.msra.mxu0 %v256
  %316 = vmatpush.bf16.msra.mxu0 %v255
  %317 = vmatpush.bf16.msra.mxu0 %v254
  %318 = vmatpush.bf16.msra.mxu0 %v253
  %319 = vmatmul.bf16.gmra.mxu0 %v146
  %v320 = vpop.f32.mrf.mxu0
  %v321 = vadd.f32 %v79, %v320
  %v322 = vpop.f32.mrf.mxu0
  %v323 = vadd.f32 %v79, %v322
  %324 = vmatmul.bf16.gmra.mxu0 %v149
  %v325 = vpop.f32.mrf.mxu0
  %v326 = vadd.f32 %v79, %v325
  %v327 = vpop.f32.mrf.mxu0
  %v328 = vadd.f32 %v79, %v327
  %329 = vmatmul.bf16.gmra.mxu0 %v152
  %v330 = vpop.f32.mrf.mxu0
  %v331 = vadd.f32 %v79, %v330
  %v332 = vpop.f32.mrf.mxu0
  %v333 = vadd.f32 %v79, %v332
  %334 = vmatmul.bf16.gmra.mxu0 %v155
  %v335 = vpop.f32.mrf.mxu0
  %v336 = vadd.f32 %v79, %v335
  %v337 = vpop.f32.mrf.mxu0
  %v338 = vadd.f32 %v79, %v337
  %339 = vmatmul.bf16.gmra.mxu0 %v158
  %v340 = vpop.f32.mrf.mxu0
  %v341 = vadd.f32 %v79, %v340
  %v342 = vpop.f32.mrf.mxu0
  %v343 = vadd.f32 %v79, %v342
  %344 = vmatmul.bf16.gmra.mxu0 %v161
  %v345 = vpop.f32.mrf.mxu0
  %v346 = vadd.f32 %v79, %v345
  %v347 = vpop.f32.mrf.mxu0
  %v348 = vadd.f32 %v79, %v347
  %349 = vmatmul.bf16.gmra.mxu0 %v164
  %v350 = vpop.f32.mrf.mxu0
  %v351 = vadd.f32 %v79, %v350
  %v352 = vpop.f32.mrf.mxu0
  %353 = vdwg.mxu0
  %354 = vmatpush.bf16.msra.mxu0 %v268
  %355 = vmatpush.bf16.msra.mxu0 %v267
  %356 = vmatpush.bf16.msra.mxu0 %v266
  %357 = vmatpush.bf16.msra.mxu0 %v265
  %358 = vmatpush.bf16.msra.mxu0 %v264
  %359 = vmatpush.bf16.msra.mxu0 %v263
  %360 = vmatpush.bf16.msra.mxu0 %v262
  %361 = vmatpush.bf16.msra.mxu0 %v261
  %362 = vmatmul.bf16.gmra.mxu0 %v147
  %v363 = vpop.f32.mrf.mxu0
  %v364 = vadd.f32 %v321, %v363
  %v365 = vpop.f32.mrf.mxu0
  %v366 = vadd.f32 %v323, %v365
  %367 = vmatmul.bf16.gmra.mxu0 %v150
  %v368 = vpop.f32.mrf.mxu0
  %v369 = vadd.f32 %v326, %v368
  %v370 = vpop.f32.mrf.mxu0
  %v371 = vadd.f32 %v328, %v370
  %372 = vmatmul.bf16.gmra.mxu0 %v153
  %v373 = vpop.f32.mrf.mxu0
  %v374 = vadd.f32 %v331, %v373
  %v375 = vpop.f32.mrf.mxu0
  %v376 = vadd.f32 %v333, %v375
  %377 = vmatmul.bf16.gmra.mxu0 %v156
  %v378 = vpop.f32.mrf.mxu0
  %v379 = vadd.f32 %v336, %v378
  %v380 = vpop.f32.mrf.mxu0
  %v381 = vadd.f32 %v338, %v380
  %382 = vmatmul.bf16.gmra.mxu0 %v159
  %v383 = vpop.f32.mrf.mxu0
  %v384 = vadd.f32 %v341, %v383
  %v385 = vpop.f32.mrf.mxu0
  %v386 = vadd.f32 %v343, %v385
  %387 = vmatmul.bf16.gmra.mxu0 %v162
  %v388 = vpop.f32.mrf.mxu0
  %v389 = vadd.f32 %v346, %v388
  %v390 = vpop.f32.mrf.mxu0
  %v391 = vadd.f32 %v348, %v390
  %392 = vmatmul.bf16.gmra.mxu0 %v165
  %v393 = vpop.f32.mrf.mxu0
  %v394 = vadd.f32 %v351, %v393
  %v395 = vpop.f32.mrf.mxu0
  %396 = vdwg.mxu0
  %397 = vmatpush.bf16.msra.mxu0 0
  %398 = vmatpush.bf16.msra.mxu0 0
  %399 = vmatpush.bf16.msra.mxu0 0
  %400 = vmatpush.bf16.msra.mxu0 0
  %401 = vmatpush.bf16.msra.mxu0 0
  %402 = vmatpush.bf16.msra.mxu0 0
  %403 = vmatpush.bf16.msra.mxu0 %v270
  %404 = vmatpush.bf16.msra.mxu0 %v269
  %405 = vmatmul.bf16.gmra.mxu0 %v291
  %v406 = vpop.f32.mrf.mxu0
  %v407 = vadd.f32 %v364, %v406
  %v408 = vpop.f32.mrf.mxu0
  %v409 = vadd.f32 %v366, %v408
  %410 = vmatmul.bf16.gmra.mxu0 %v294
  %v411 = vpop.f32.mrf.mxu0
  %v412 = vadd.f32 %v369, %v411
  %v413 = vpop.f32.mrf.mxu0
  %v414 = vadd.f32 %v371, %v413
  %415 = vmatmul.bf16.gmra.mxu0 %v297
  %v416 = vpop.f32.mrf.mxu0
  %v417 = vadd.f32 %v374, %v416
  %v418 = vpop.f32.mrf.mxu0
  %v419 = vadd.f32 %v376, %v418
  %420 = vmatmul.bf16.gmra.mxu0 %v300
  %v421 = vpop.f32.mrf.mxu0
  %v422 = vadd.f32 %v379, %v421
  %v423 = vpop.f32.mrf.mxu0
  %v424 = vadd.f32 %v381, %v423
  %425 = vmatmul.bf16.gmra.mxu0 %v303
  %v426 = vpop.f32.mrf.mxu0
  %v427 = vadd.f32 %v384, %v426
  %v428 = vpop.f32.mrf.mxu0
  %v429 = vadd.f32 %v386, %v428
  %430 = vmatmul.bf16.gmra.mxu0 %v306
  %v431 = vpop.f32.mrf.mxu0
  %v432 = vadd.f32 %v389, %v431
  %v433 = vpop.f32.mrf.mxu0
  %v434 = vadd.f32 %v391, %v433
  %435 = vmatmul.bf16.gmra.mxu0 %v309
  %v436 = vpop.f32.mrf.mxu0
  %v437 = vadd.f32 %v394, %v436
  %v438 = vpop.f32.mrf.mxu0
  %439 = vdwg.mxu0
  %v440 = vmax.f32 %v407, 0.0
  %v441 = vmax.f32 %v409, 0.0
  %v442 = vmax.f32 %v412, 0.0
  %v443 = vmax.f32 %v414, 0.0
  %v444 = vmax.f32 %v417, 0.0
  %v445 = vmax.f32 %v419, 0.0
  %v446 = vmax.f32 %v422, 0.0
  %v447 = vmax.f32 %v424, 0.0
  %v448 = vmax.f32 %v427, 0.0
  %v449 = vmax.f32 %v429, 0.0
  %v450 = vmax.f32 %v432, 0.0
  %v451 = vmax.f32 %v434, 0.0
  %v452 = vmax.f32 %v437, 0.0
  %vm453 = vcmask 130048
  %454 = vst.msk [vmem:[%s3] sm:$0xff] %vm453, %v440
  %455 = vst.msk [vmem:[%s3 + $0x8] sm:$0xff] %vm453, %v441
  %456 = vst.msk [vmem:[%s3 + $0x10] sm:$0xff] %vm453, %v442
  %457 = vst.msk [vmem:[%s3 + $0x18] sm:$0xff] %vm453, %v443
  %458 = vst.msk [vmem:[%s3 + $0x20] sm:$0xff] %vm453, %v444
  %459 = vst.msk [vmem:[%s3 + $0x28] sm:$0xff] %vm453, %v445
  %460 = vst.msk [vmem:[%s3 + $0x30] sm:$0xff] %vm453, %v446
  %461 = vst.msk [vmem:[%s3 + $0x38] sm:$0xff] %vm453, %v447
  %462 = vst.msk [vmem:[%s3 + $0x40] sm:$0xff] %vm453, %v448
  %463 = vst.msk [vmem:[%s3 + $0x48] sm:$0xff] %vm453, %v449
  %464 = vst.msk [vmem:[%s3 + $0x50] sm:$0xff] %vm453, %v450
  %465 = vst.msk [vmem:[%s3 + $0x58] sm:$0xff] %vm453, %v451
  %466 = vst.msk [vmem:[%s3 + $0x60] sm:$0xff] %vm453, %v452
  // Predicated region
  $region14: #{gcnet_forward.61} parent=0 // pred_check
    _
  $region15: #{gcnet_forward.61} parent=0 // pred_check_branch
    %468 = sbr.rel (0) target = $region17
  $region16: #{gcnet_forward.61} parent=0 // pred_region
    _
  $region17: #{gcnet_forward.61} parent=0 // pred_fallthru
    _
  // Predicated region
  $region18: #{gcnet_forward.61} parent=0 // pred_check
    _
  $region19: #{gcnet_forward.61} parent=0 // pred_check_branch
    %470 = sbr.rel (0) target = $region21
  $region20: #{gcnet_forward.61} parent=0 // pred_region
    _
  $region21: #{gcnet_forward.61} parent=0 // pred_fallthru
    _

// kernel: gcnet_forward.62
$region0: #{gcnet_forward.62}
  #allocation0 [shape = 'u32[]', space=smem, size = 0x4, offset = 0x4, fixed_abs, tag = 'smem constant byte address 0x4 - core index']
  #allocation1 [shape = 'u32[72,128]{1,0:T(1,128)}', space=vmem, size = 0x9000, scoped, tag = 'internal scratch']
  %s0 = inlined_call_operand.vmem [shape: bf16[40,144], index: 0, kind: input, shape index: {}]
  %s1 = inlined_call_operand.vmem [shape: bf16[144,16], index: 1, kind: input, shape index: {}]
  %s2 = inlined_call_operand.vmem [shape: f32[1,16], index: 2, kind: input, shape index: {}]
  %s3 = inlined_call_operand.vmem [shape: f32[40,16], index: 3, kind: output, shape index: {}]
  %s4 = sld [smem:[#allocation0]]
  $region22: #{gcnet_forward.62} parent=0
    _
  %s6 = ssub.s32 1, %s4
  %s7 = scalar_select 0, %s6, %s4
  // Predicated region
  $region2: #{gcnet_forward.62} parent=0 // pred_check
    _
  $region3: #{gcnet_forward.62} parent=0 // pred_check_branch
    %9 = sbr.rel (0) target = $region5
  $region4: #{gcnet_forward.62} parent=0 // pred_region
    _
  $region5: #{gcnet_forward.62} parent=0 // pred_fallthru
    _
  // Predicated region
  $region6: #{gcnet_forward.62} parent=0 // pred_check
    _
  $region7: #{gcnet_forward.62} parent=0 // pred_check_branch
    %11 = sbr.rel (0) target = $region9
  $region8: #{gcnet_forward.62} parent=0 // pred_region
    _
  $region9: #{gcnet_forward.62} parent=0 // pred_fallthru
    _
  // Predicated region
  $region10: #{gcnet_forward.62} parent=0 // pred_check
    _
  $region11: #{gcnet_forward.62} parent=0 // pred_check_branch
    %13 = sbr.rel (0) target = $region13
  $region12: #{gcnet_forward.62} parent=0 // pred_region
    _
  $region13: #{gcnet_forward.62} parent=0 // pred_fallthru
    _
  %v15 = vld [vmem:[%s0] sm:$0xff]
  %v16 = vld [vmem:[%s0 + $0x8] sm:$0xff]
  %v17 = vld [vmem:[%s0 + $0x10] sm:$0xff]
  %v18 = vld [vmem:[%s0 + $0x18] sm:$0xff]
  %v19 = vld [vmem:[%s0 + $0x20] sm:$0xff]
  %v20 = vld [vmem:[%s1] sm:$0xf]
  %v21 = vld [vmem:[%s1 + $0x4] sm:$0xf]
  %v22 = vld [vmem:[%s1 + $0x8] sm:$0xf]
  %v23 = vld [vmem:[%s1 + $0xc] sm:$0xf]
  %v24 = vld [vmem:[%s1 + $0x10] sm:$0xf]
  %v25 = vld [vmem:[%s1 + $0x14] sm:$0xf]
  %v26 = vld [vmem:[%s1 + $0x18] sm:$0xf]
  %v27 = vld [vmem:[%s1 + $0x1c] sm:$0xf]
  %v28 = vld [vmem:[%s1 + $0x20] sm:$0xf]
  %v29 = vld [vmem:[%s1 + $0x24] sm:$0xf]
  %v30 = vld [vmem:[%s1 + $0x28] sm:$0xf]
  %v31 = vld [vmem:[%s1 + $0x2c] sm:$0xf]
  %v32 = vld [vmem:[%s1 + $0x30] sm:$0xf]
  %v33 = vld [vmem:[%s1 + $0x34] sm:$0xf]
  %v34 = vld [vmem:[%s1 + $0x38] sm:$0xf]
  %v35 = vld [vmem:[%s1 + $0x3c] sm:$0xf]
  %v36 = vld [vmem:[%s1 + $0x40] sm:$0xf]
  %v37 = vld [vmem:[%s1 + $0x44] sm:$0xf]
  %v38 = vld [vmem:[%s2] sm:$0x1]
  %v40 = vperm.slane %v38, 0
  %v47 = vunpack.c.l.b16 %v15
  %v48 = vunpack.c.h.b16 %v15
  %v49 = vunpack.c.l.b16 %v16
  %v50 = vunpack.c.h.b16 %v16
  %v51 = vunpack.c.l.b16 %v17
  %v52 = vunpack.c.h.b16 %v17
  %v53 = vunpack.c.l.b16 %v18
  %v54 = vunpack.c.h.b16 %v18
  %v55 = vunpack.c.l.b16 %v19
  %v56 = vunpack.c.h.b16 %v19
  %v57 = vpack.c.b16 %v49, %v47
  %v58 = vpack.c.b16 %v50, %v48
  %v59 = vpack.c.b16 %v53, %v51
  %v60 = vpack.c.b16 %v54, %v52
  %v61 = vpack.c.b16 %v55, %v55
  %v62 = vpack.c.b16 %v56, %v56
  %v84 = vunpack.c.l.b16 %v20
  %v85 = vunpack.c.l.b16 %v21
  %v86 = vunpack.c.l.b16 %v22
  %v87 = vunpack.c.l.b16 %v23
  %v88 = vunpack.c.l.b16 %v24
  %v89 = vunpack.c.l.b16 %v25
  %v90 = vunpack.c.l.b16 %v26
  %v91 = vunpack.c.l.b16 %v27
  %v92 = vunpack.c.l.b16 %v28
  %v93 = vunpack.c.l.b16 %v29
  %v94 = vunpack.c.l.b16 %v30
  %v95 = vunpack.c.l.b16 %v31
  %v96 = vunpack.c.l.b16 %v32
  %v97 = vunpack.c.l.b16 %v33
  %v98 = vunpack.c.l.b16 %v34
  %v99 = vunpack.c.l.b16 %v35
  %v100 = vunpack.c.l.b16 %v36
  %v101 = vunpack.c.l.b16 %v37
  %v102 = vpack.c.b16 %v85, %v84
  %v103 = vpack.c.b16 %v87, %v86
  %v104 = vpack.c.b16 %v89, %v88
  %v105 = vpack.c.b16 %v91, %v90
  %v106 = vpack.c.b16 %v93, %v92
  %v107 = vpack.c.b16 %v95, %v94
  %v108 = vpack.c.b16 %v97, %v96
  %v109 = vpack.c.b16 %v99, %v98
  %v110 = vpack.c.b16 %v101, %v100
  %vm120 = vcmask 130048
  %v122 = vsel %vm120, %v58, 0
  %v125 = vsel %vm120, %v60, 0
  %v128 = vsel %vm120, %v62, 0
  %130 = vmatpush.bf16.msra.mxu0 %v109
  %131 = vmatpush.bf16.msra.mxu0 %v108
  %132 = vmatpush.bf16.msra.mxu0 %v107
  %133 = vmatpush.bf16.msra.mxu0 %v106
  %134 = vmatpush.bf16.msra.mxu0 %v105
  %135 = vmatpush.bf16.msra.mxu0 %v104
  %136 = vmatpush.bf16.msra.mxu0 %v103
  %137 = vmatpush.bf16.msra.mxu0 %v102
  %138 = vmatmul.bf16.gmra.mxu0 %v57
  %v139 = vpop.f32.mrf.mxu0
  %v140 = vadd.f32 %v40, %v139
  %v141 = vpop.f32.mrf.mxu0
  %v142 = vadd.f32 %v40, %v141
  %143 = vmatmul.bf16.gmra.mxu0 %v59
  %v144 = vpop.f32.mrf.mxu0
  %v145 = vadd.f32 %v40, %v144
  %v146 = vpop.f32.mrf.mxu0
  %v147 = vadd.f32 %v40, %v146
  %148 = vmatmul.bf16.gmra.mxu0 %v61
  %v149 = vpop.f32.mrf.mxu0
  %v150 = vadd.f32 %v40, %v149
  %v151 = vpop.f32.mrf.mxu0
  %152 = vdwg.mxu0
  %153 = vmatpush.bf16.msra.mxu0 0
  %154 = vmatpush.bf16.msra.mxu0 0
  %155 = vmatpush.bf16.msra.mxu0 0
  %156 = vmatpush.bf16.msra.mxu0 0
  %157 = vmatpush.bf16.msra.mxu0 0
  %158 = vmatpush.bf16.msra.mxu0 0
  %159 = vmatpush.bf16.msra.mxu0 0
  %160 = vmatpush.bf16.msra.mxu0 %v110
  %161 = vmatmul.bf16.gmra.mxu0 %v122
  %v162 = vpop.f32.mrf.mxu0
  %v163 = vadd.f32 %v140, %v162
  %v164 = vpop.f32.mrf.mxu0
  %v165 = vadd.f32 %v142, %v164
  %166 = vmatmul.bf16.gmra.mxu0 %v125
  %v167 = vpop.f32.mrf.mxu0
  %v168 = vadd.f32 %v145, %v167
  %v169 = vpop.f32.mrf.mxu0
  %v170 = vadd.f32 %v147, %v169
  %171 = vmatmul.bf16.gmra.mxu0 %v128
  %v172 = vpop.f32.mrf.mxu0
  %v173 = vadd.f32 %v150, %v172
  %v174 = vpop.f32.mrf.mxu0
  %175 = vdwg.mxu0
  %v176 = vmax.f32 %v163, 0.0
  %v177 = vmax.f32 %v165, 0.0
  %v178 = vmax.f32 %v168, 0.0
  %v179 = vmax.f32 %v170, 0.0
  %v180 = vmax.f32 %v173, 0.0
  %181 = vst.msk [vmem:[%s3] sm:$0xff] %vm120, %v176
  %182 = vst.msk [vmem:[%s3 + $0x8] sm:$0xff] %vm120, %v177
  %183 = vst.msk [vmem:[%s3 + $0x10] sm:$0xff] %vm120, %v178
  %184 = vst.msk [vmem:[%s3 + $0x18] sm:$0xff] %vm120, %v179
  %185 = vst.msk [vmem:[%s3 + $0x20] sm:$0xff] %vm120, %v180
  // Predicated region
  $region14: #{gcnet_forward.62} parent=0 // pred_check
    _
  $region15: #{gcnet_forward.62} parent=0 // pred_check_branch
    %187 = sbr.rel (0) target = $region17
  $region16: #{gcnet_forward.62} parent=0 // pred_region
    _
  $region17: #{gcnet_forward.62} parent=0 // pred_fallthru
    _
  // Predicated region
  $region18: #{gcnet_forward.62} parent=0 // pred_check
    _
  $region19: #{gcnet_forward.62} parent=0 // pred_check_branch
    %189 = sbr.rel (0) target = $region21
  $region20: #{gcnet_forward.62} parent=0 // pred_region
    _
  $region21: #{gcnet_forward.62} parent=0 // pred_fallthru
    _

// kernel: gcnet_forward.63
$region0: #{gcnet_forward.63}
  #allocation0 [shape = 'u32[]', space=smem, size = 0x4, offset = 0x4, fixed_abs, tag = 'smem constant byte address 0x4 - core index']
  #allocation1 [shape = 'u32[72,128]{1,0:T(1,128)}', space=vmem, size = 0x9000, scoped, tag = 'internal scratch']
  %s0 = inlined_call_operand.vmem [shape: bf16[8,144], index: 0, kind: input, shape index: {}]
  %s1 = inlined_call_operand.vmem [shape: bf16[144,6], index: 1, kind: input, shape index: {}]
  %s2 = inlined_call_operand.vmem [shape: f32[1,6], index: 2, kind: input, shape index: {}]
  %s3 = inlined_call_operand.vmem [shape: f32[8,6], index: 3, kind: output, shape index: {}]
  %s4 = sld [smem:[#allocation0]]
  $region22: #{gcnet_forward.63} parent=0
    _
  %s6 = ssub.s32 1, %s4
  %s7 = scalar_select 0, %s6, %s4
  // Predicated region
  $region2: #{gcnet_forward.63} parent=0 // pred_check
    _
  $region3: #{gcnet_forward.63} parent=0 // pred_check_branch
    %9 = sbr.rel (0) target = $region5
  $region4: #{gcnet_forward.63} parent=0 // pred_region
    _
  $region5: #{gcnet_forward.63} parent=0 // pred_fallthru
    _
  // Predicated region
  $region6: #{gcnet_forward.63} parent=0 // pred_check
    _
  $region7: #{gcnet_forward.63} parent=0 // pred_check_branch
    %11 = sbr.rel (0) target = $region9
  $region8: #{gcnet_forward.63} parent=0 // pred_region
    _
  $region9: #{gcnet_forward.63} parent=0 // pred_fallthru
    _
  // Predicated region
  $region10: #{gcnet_forward.63} parent=0 // pred_check
    _
  $region11: #{gcnet_forward.63} parent=0 // pred_check_branch
    %13 = sbr.rel (0) target = $region13
  $region12: #{gcnet_forward.63} parent=0 // pred_region
    _
  $region13: #{gcnet_forward.63} parent=0 // pred_fallthru
    _
  %v15 = vld [vmem:[%s0] sm:$0xff]
  %v16 = vld [vmem:[%s1] sm:$0xf]
  %v17 = vld [vmem:[%s1 + $0x4] sm:$0xf]
  %v18 = vld [vmem:[%s1 + $0x8] sm:$0xf]
  %v19 = vld [vmem:[%s1 + $0xc] sm:$0xf]
  %v20 = vld [vmem:[%s1 + $0x10] sm:$0xf]
  %v21 = vld [vmem:[%s1 + $0x14] sm:$0xf]
  %v22 = vld [vmem:[%s1 + $0x18] sm:$0xf]
  %v23 = vld [vmem:[%s1 + $0x1c] sm:$0xf]
  %v24 = vld [vmem:[%s1 + $0x20] sm:$0xf]
  %v25 = vld [vmem:[%s1 + $0x24] sm:$0xf]
  %v26 = vld [vmem:[%s1 + $0x28] sm:$0xf]
  %v27 = vld [vmem:[%s1 + $0x2c] sm:$0xf]
  %v28 = vld [vmem:[%s1 + $0x30] sm:$0xf]
  %v29 = vld [vmem:[%s1 + $0x34] sm:$0xf]
  %v30 = vld [vmem:[%s1 + $0x38] sm:$0xf]
  %v31 = vld [vmem:[%s1 + $0x3c] sm:$0xf]
  %v32 = vld [vmem:[%s1 + $0x40] sm:$0xf]
  %v33 = vld [vmem:[%s1 + $0x44] sm:$0xf]
  %v34 = vld [vmem:[%s2] sm:$0x1]
  %v36 = vperm.slane %v34, 0
  %v39 = vunpack.c.l.b16 %v15
  %v40 = vunpack.c.h.b16 %v15
  %v41 = vpack.c.b16 %v39, %v39
  %v42 = vpack.c.b16 %v40, %v40
  %v62 = vunpack.c.l.b16 %v16
  %v63 = vunpack.c.l.b16 %v17
  %v64 = vunpack.c.l.b16 %v18
  %v65 = vunpack.c.l.b16 %v19
  %v66 = vunpack.c.l.b16 %v20
  %v67 = vunpack.c.l.b16 %v21
  %v68 = vunpack.c.l.b16 %v22
  %v69 = vunpack.c.l.b16 %v23
  %v70 = vunpack.c.l.b16 %v24
  %v71 = vunpack.c.l.b16 %v25
  %v72 = vunpack.c.l.b16 %v26
  %v73 = vunpack.c.l.b16 %v27
  %v74 = vunpack.c.l.b16 %v28
  %v75 = vunpack.c.l.b16 %v29
  %v76 = vunpack.c.l.b16 %v30
  %v77 = vunpack.c.l.b16 %v31
  %v78 = vunpack.c.l.b16 %v32
  %v79 = vunpack.c.l.b16 %v33
  %v80 = vpack.c.b16 %v63, %v62
  %v81 = vpack.c.b16 %v65, %v64
  %v82 = vpack.c.b16 %v67, %v66
  %v83 = vpack.c.b16 %v69, %v68
  %v84 = vpack.c.b16 %v71, %v70
  %v85 = vpack.c.b16 %v73, %v72
  %v86 = vpack.c.b16 %v75, %v74
  %v87 = vpack.c.b16 %v77, %v76
  %v88 = vpack.c.b16 %v79, %v78
  %vm98 = vcmask 130048
  %v100 = vsel %vm98, %v42, 0
  %102 = vmatpush.bf16.msra.mxu0 %v87
  %103 = vmatpush.bf16.msra.mxu0 %v86
  %104 = vmatpush.bf16.msra.mxu0 %v85
  %105 = vmatpush.bf16.msra.mxu0 %v84
  %106 = vmatpush.bf16.msra.mxu0 %v83
  %107 = vmatpush.bf16.msra.mxu0 %v82
  %108 = vmatpush.bf16.msra.mxu0 %v81
  %109 = vmatpush.bf16.msra.mxu0 %v80
  %110 = vmatmul.bf16.gmra.mxu0 %v41
  %v111 = vpop.f32.mrf.mxu0
  %v112 = vadd.f32 %v36, %v111
  %v113 = vpop.f32.mrf.mxu0
  %114 = vdwg.mxu0
  %115 = vmatpush.bf16.msra.mxu0 0
  %116 = vmatpush.bf16.msra.mxu0 0
  %117 = vmatpush.bf16.msra.mxu0 0
  %118 = vmatpush.bf16.msra.mxu0 0
  %119 = vmatpush.bf16.msra.mxu0 0
  %120 = vmatpush.bf16.msra.mxu0 0
  %121 = vmatpush.bf16.msra.mxu0 0
  %122 = vmatpush.bf16.msra.mxu0 %v88
  %123 = vmatmul.bf16.gmra.mxu0 %v100
  %v124 = vpop.f32.mrf.mxu0
  %v125 = vadd.f32 %v112, %v124
  %v126 = vpop.f32.mrf.mxu0
  %127 = vdwg.mxu0
  %vm128 = vcmask 48128
  %129 = vst.msk [vmem:[%s3] sm:$0xff] %vm128, %v125
  // Predicated region
  $region14: #{gcnet_forward.63} parent=0 // pred_check
    _
  $region15: #{gcnet_forward.63} parent=0 // pred_check_branch
    %131 = sbr.rel (0) target = $region17
  $region16: #{gcnet_forward.63} parent=0 // pred_region
    _
  $region17: #{gcnet_forward.63} parent=0 // pred_fallthru
    _
  // Predicated region
  $region18: #{gcnet_forward.63} parent=0 // pred_check
    _
  $region19: #{gcnet_forward.63} parent=0 // pred_check_branch
    %133 = sbr.rel (0) target = $region21
  $region20: #{gcnet_forward.63} parent=0 // pred_region
    _
  $region21: #{gcnet_forward.63} parent=0 // pred_fallthru
    _

// kernel: gcnet_forward.68
$region0: #{gcnet_forward.68}
  #allocation0 [shape = 'u32[]', space=smem, size = 0x4, offset = 0x4, fixed_abs, tag = 'smem constant byte address 0x4 - core index']
  #allocation1 [shape = 'u32[72,128]{1,0:T(1,128)}', space=vmem, size = 0x9000, scoped, tag = 'internal scratch']
  %s0 = inlined_call_operand.vmem [shape: f32[4,144], index: 0, kind: input, shape index: {}]
  %s1 = inlined_call_operand.vmem [shape: f32[4,144], index: 1, kind: input, shape index: {}]
  %s2 = inlined_call_operand.vmem [shape: f32[4,144], index: 2, kind: input, shape index: {}]
  %s3 = inlined_call_operand.vmem [shape: f32[4,4], index: 3, kind: input, shape index: {}]
  %s4 = inlined_call_operand.vmem [shape: f32[4,144], index: 4, kind: output, shape index: {}]
  %s5 = sld [smem:[#allocation0]]
  $region26: #{gcnet_forward.68} parent=0
    _
  %s7 = ssub.s32 1, %s5
  %s8 = scalar_select 0, %s7, %s5
  // Predicated region
  $region2: #{gcnet_forward.68} parent=0 // pred_check
    _
  $region3: #{gcnet_forward.68} parent=0 // pred_check_branch
    %10 = sbr.rel (0) target = $region5
  $region4: #{gcnet_forward.68} parent=0 // pred_region
    _
  $region5: #{gcnet_forward.68} parent=0 // pred_fallthru
    _
  // Predicated region
  $region6: #{gcnet_forward.68} parent=0 // pred_check
    _
  $region7: #{gcnet_forward.68} parent=0 // pred_check_branch
    %12 = sbr.rel (0) target = $region9
  $region8: #{gcnet_forward.68} parent=0 // pred_region
    _
  $region9: #{gcnet_forward.68} parent=0 // pred_fallthru
    _
  // Predicated region
  $region10: #{gcnet_forward.68} parent=0 // pred_check
    _
  $region11: #{gcnet_forward.68} parent=0 // pred_check_branch
    %14 = sbr.rel (0) target = $region13
  $region12: #{gcnet_forward.68} parent=0 // pred_region
    _
  $region13: #{gcnet_forward.68} parent=0 // pred_fallthru
    _
  // Predicated region
  $region14: #{gcnet_forward.68} parent=0 // pred_check
    _
  $region15: #{gcnet_forward.68} parent=0 // pred_check_branch
    %16 = sbr.rel (0) target = $region17
  $region16: #{gcnet_forward.68} parent=0 // pred_region
    _
  $region17: #{gcnet_forward.68} parent=0 // pred_fallthru
    _
  %v18 = vld [vmem:[%s0] sm:$0xff]
  %20 = vst [vmem:[#allocation1] ss:$2 sm:$0xff] %v18
  %v21 = vld.sshfl [vmem:[#allocation1] sm:$0xff pattern:$0x75316420]
  %v22 = vld.sshfl [vmem:[#allocation1 + $0x8] sm:$0xff pattern:$0x75316420]
  %v25 = vpack.c.bf16 %v21, %v21
  %v26 = vpack.c.bf16 %v22, %v22
  %v27 = vld [vmem:[%s1] sm:$0xff]
  %29 = vst [vmem:[#allocation1] ss:$2 sm:$0xff] %v27
  %v30 = vld.sshfl [vmem:[#allocation1] sm:$0xff pattern:$0x75316420]
  %v31 = vld.sshfl [vmem:[#allocation1 + $0x8] sm:$0xff pattern:$0x75316420]
  %v34 = vpack.c.bf16 %v30, %v30
  %v35 = vpack.c.bf16 %v31, %v31
  %vm36 = vcmask 130048
  %v38 = vsel %vm36, %v26, 0
  %v41 = vsel %vm36, %v35, 0
  %43 = vmatpush.bf16.xpose.msra.mxu0 0
  %44 = vmatpush.bf16.xpose.msra.mxu0 0
  %45 = vmatpush.bf16.xpose.msra.mxu0 0
  %46 = vmatpush.bf16.xpose.msra.mxu0 0
  %47 = vmatpush.bf16.xpose.msra.mxu0 0
  %48 = vmatpush.bf16.xpose.msra.mxu0 0
  %49 = vmatpush.bf16.xpose.msra.mxu0 0
  %50 = vmatpush.bf16.xpose.msra.mxu0 %v34
  %51 = vmatmul.bf16.gmra.mxu0 %v25
  %v52 = vpop.f32.mrf.mxu0
  %v53 = vadd.f32 0.0, %v52
  %v54 = vpop.f32.mrf.mxu0
  %55 = vdwg.mxu0
  %56 = vmatpush.bf16.xpose.msra.mxu0 0
  %57 = vmatpush.bf16.xpose.msra.mxu0 0
  %58 = vmatpush.bf16.xpose.msra.mxu0 0
  %59 = vmatpush.bf16.xpose.msra.mxu0 0
  %60 = vmatpush.bf16.xpose.msra.mxu0 0
  %61 = vmatpush.bf16.xpose.msra.mxu0 0
  %62 = vmatpush.bf16.xpose.msra.mxu0 0
  %63 = vmatpush.bf16.xpose.msra.mxu0 %v41
  %64 = vmatmul.bf16.gmra.mxu0 %v38
  %v65 = vpop.f32.mrf.mxu0
  %v66 = vadd.f32 %v53, %v65
  %v67 = vpop.f32.mrf.mxu0
  %68 = vdwg.mxu0
  %v69 = vmul.f32 %v66, 0.17677669
  %v70 = vld [vmem:[%s3] sm:$0xf]
  %vm71 = vcmp.gt.f32.partialorder %v70, 0.5
  %v72 = vsel %vm71, %v69, -1e+30
  %vm73 = vcmask 27648
  %v74 = vsel %vm73, %v72, -inf
  %75 = vmax.xlane.f32.xlu0 %v74
  %v76 = vpop.xlane.xlu0 %75
  %v77 = vsub.f32 %v72, %v76
  %v78 = vmul.f32 %v77, 1.442695
  %v79 = vpow.pop %v78
  %v80 = vsel %vm73, %v79, 0.0
  %81 = vadd.xlane.f32.xlu0 %v80
  %v82 = vpop.xlane.xlu0 %81
  %v83 = vrcp.pop %v82
  %v84 = vmul.f32 %v79, %v83
  %v85 = vpack.c.bf16 %v84, %v84
  %v86 = vld [vmem:[%s2] sm:$0xff]
  %88 = vst [vmem:[#allocation1] ss:$2 sm:$0xff] %v86
  %v89 = vld.sshfl [vmem:[#allocation1] sm:$0xff pattern:$0x75316420]
  %v90 = vld.sshfl [vmem:[#allocation1 + $0x8] sm:$0xff pattern:$0x75316420]
  %v93 = vpack.c.bf16 %v89, %v89
  %v94 = vpack.c.bf16 %v90, %v90
  %vm95 = vcmask 31744
  %v97 = vsel %vm95, %v85, 0
  %vm99 = vcmask 1041408
  %v101 = vsel %vm99, %v93, 0
  %v104 = vsel %vm99, %v94, 0
  %106 = vmatpush.bf16.msra.mxu0 0
  %107 = vmatpush.bf16.msra.mxu0 0
  %108 = vmatpush.bf16.msra.mxu0 0
  %109 = vmatpush.bf16.msra.mxu0 0
  %110 = vmatpush.bf16.msra.mxu0 0
  %111 = vmatpush.bf16.msra.mxu0 0
  %112 = vmatpush.bf16.msra.mxu0 0
  %113 = vmatpush.bf16.msra.mxu0 %v101
  %114 = vmatmul.bf16.gmra.mxu0 %v97
  %v115 = vpop.f32.mrf.mxu0
  %v116 = vadd.f32 0.0, %v115
  %v117 = vpop.f32.mrf.mxu0
  %118 = vdwg.mxu0
  %119 = vmatpush.bf16.msra.mxu0 0
  %120 = vmatpush.bf16.msra.mxu0 0
  %121 = vmatpush.bf16.msra.mxu0 0
  %122 = vmatpush.bf16.msra.mxu0 0
  %123 = vmatpush.bf16.msra.mxu0 0
  %124 = vmatpush.bf16.msra.mxu0 0
  %125 = vmatpush.bf16.msra.mxu0 0
  %126 = vmatpush.bf16.msra.mxu0 %v104
  %127 = vmatmul.bf16.gmra.mxu0 %v97
  %v128 = vpop.f32.mrf.mxu0
  %v129 = vadd.f32 0.0, %v128
  %v130 = vpop.f32.mrf.mxu0
  %131 = vdwg.mxu0
  %v134 = vrot.slane %v129, 4
  %vm135 = vcmask 1043456
  %v136 = vsel %vm135, %v116, %v134
  %vm138 = vcmask 130052
  %vm139 = vmor %vm138, %vm135
  %140 = vst.msk [vmem:[%s4] sm:$0xff] %vm139, %v136
  // Predicated region
  $region18: #{gcnet_forward.68} parent=0 // pred_check
    _
  $region19: #{gcnet_forward.68} parent=0 // pred_check_branch
    %142 = sbr.rel (0) target = $region21
  $region20: #{gcnet_forward.68} parent=0 // pred_region
    _
  $region21: #{gcnet_forward.68} parent=0 // pred_fallthru
    _
  // Predicated region
  $region22: #{gcnet_forward.68} parent=0 // pred_check
    _
  $region23: #{gcnet_forward.68} parent=0 // pred_check_branch
    %144 = sbr.rel (0) target = $region25
  $region24: #{gcnet_forward.68} parent=0 // pred_region
    _
  $region25: #{gcnet_forward.68} parent=0 // pred_fallthru
    _

// kernel: gcnet_forward.64
$region0: #{gcnet_forward.64}
  #allocation0 [shape = 'u32[]', space=smem, size = 0x4, offset = 0x4, fixed_abs, tag = 'smem constant byte address 0x4 - core index']
  #allocation1 [shape = 'u32[72,128]{1,0:T(1,128)}', space=vmem, size = 0x9000, scoped, tag = 'internal scratch']
  %s0 = inlined_call_operand.vmem [shape: bf16[104,936], index: 0, kind: input, shape index: {}]
  %s1 = inlined_call_operand.vmem [shape: bf16[936,48], index: 1, kind: input, shape index: {}]
  %s2 = inlined_call_operand.vmem [shape: f32[1,48], index: 2, kind: input, shape index: {}]
  %s3 = inlined_call_operand.vmem [shape: f32[104,48], index: 3, kind: output, shape index: {}]
  %s4 = sld [smem:[#allocation0]]
  $region22: #{gcnet_forward.64} parent=0
    _
  %s6 = ssub.s32 1, %s4
  %s7 = scalar_select 0, %s6, %s4
  // Predicated region
  $region2: #{gcnet_forward.64} parent=0 // pred_check
    _
  $region3: #{gcnet_forward.64} parent=0 // pred_check_branch
    %9 = sbr.rel (0) target = $region5
  $region4: #{gcnet_forward.64} parent=0 // pred_region
    _
  $region5: #{gcnet_forward.64} parent=0 // pred_fallthru
    _
  // Predicated region
  $region6: #{gcnet_forward.64} parent=0 // pred_check
    _
  $region7: #{gcnet_forward.64} parent=0 // pred_check_branch
    %11 = sbr.rel (0) target = $region9
  $region8: #{gcnet_forward.64} parent=0 // pred_region
    _
  $region9: #{gcnet_forward.64} parent=0 // pred_fallthru
    _
  // Predicated region
  $region10: #{gcnet_forward.64} parent=0 // pred_check
    _
  $region11: #{gcnet_forward.64} parent=0 // pred_check_branch
    %13 = sbr.rel (0) target = $region13
  $region12: #{gcnet_forward.64} parent=0 // pred_region
    _
  $region13: #{gcnet_forward.64} parent=0 // pred_fallthru
    _
  %v15 = vld [vmem:[%s0] sm:$0xff]
  %v16 = vld [vmem:[%s0 + $0x8] sm:$0xff]
  %v17 = vld [vmem:[%s0 + $0x10] sm:$0xff]
  %v18 = vld [vmem:[%s0 + $0x18] sm:$0xff]
  %v19 = vld [vmem:[%s0 + $0x20] sm:$0xff]
  %v20 = vld [vmem:[%s0 + $0x28] sm:$0xff]
  %v21 = vld [vmem:[%s0 + $0x30] sm:$0xff]
  %v22 = vld [vmem:[%s0 + $0x38] sm:$0xff]
  %v23 = vld [vmem:[%s0 + $0x40] sm:$0xff]
  %v24 = vld [vmem:[%s0 + $0x48] sm:$0xff]
  %v25 = vld [vmem:[%s0 + $0x50] sm:$0xff]
  %v26 = vld [vmem:[%s0 + $0x58] sm:$0xff]
  %v27 = vld [vmem:[%s0 + $0x60] sm:$0xff]
  %v28 = vld [vmem:[%s0 + $0x68] sm:$0xff]
  %v29 = vld [vmem:[%s0 + $0x70] sm:$0xff]
  %v30 = vld [vmem:[%s0 + $0x78] sm:$0xff]
  %v31 = vld [vmem:[%s0 + $0x80] sm:$0xff]
  %v32 = vld [vmem:[%s0 + $0x88] sm:$0xff]
  %v33 = vld [vmem:[%s0 + $0x90] sm:$0xff]
  %v34 = vld [vmem:[%s0 + $0x98] sm:$0xff]
  %v35 = vld [vmem:[%s0 + $0xa0] sm:$0xff]
  %v36 = vld [vmem:[%s0 + $0xa8] sm:$0xff]
  %v37 = vld [vmem:[%s0 + $0xb0] sm:$0xff]
  %v38 = vld [vmem:[%s0 + $0xb8] sm:$0xff]
  %v39 = vld [vmem:[%s0 + $0xc0] sm:$0xff]
  %v40 = vld [vmem:[%s0 + $0xc8] sm:$0xff]
  %v41 = vld [vmem:[%s0 + $0xd0] sm:$0xff]
  %v42 = vld [vmem:[%s0 + $0xd8] sm:$0xff]
  %v43 = vld [vmem:[%s0 + $0xe0] sm:$0xff]
  %v44 = vld [vmem:[%s0 + $0xe8] sm:$0xff]
  %v45 = vld [vmem:[%s0 + $0xf0] sm:$0xff]
  %v46 = vld [vmem:[%s0 + $0xf8] sm:$0xff]
  %v47 = vld [vmem:[%s0 + $0x100] sm:$0xff]
  %v48 = vld [vmem:[%s0 + $0x108] sm:$0xff]
  %v49 = vld [vmem:[%s0 + $0x110] sm:$0xff]
  %v50 = vld [vmem:[%s0 + $0x118] sm:$0xff]
  %v51 = vld [vmem:[%s0 + $0x120] sm:$0xff]
  %v52 = vld [vmem:[%s0 + $0x128] sm:$0xff]
  %v53 = vld [vmem:[%s0 + $0x130] sm:$0xff]
  %v54 = vld [vmem:[%s0 + $0x138] sm:$0xff]
  %v55 = vld [vmem:[%s0 + $0x140] sm:$0xff]
  %v56 = vld [vmem:[%s0 + $0x148] sm:$0xff]
  %v57 = vld [vmem:[%s0 + $0x150] sm:$0xff]
  %v58 = vld [vmem:[%s0 + $0x158] sm:$0xff]
  %v59 = vld [vmem:[%s0 + $0x160] sm:$0xff]
  %v60 = vld [vmem:[%s0 + $0x168] sm:$0xff]
  %v61 = vld [vmem:[%s0 + $0x170] sm:$0xff]
  %v62 = vld [vmem:[%s0 + $0x178] sm:$0xff]
  %v63 = vld [vmem:[%s0 + $0x180] sm:$0xff]
  %v64 = vld [vmem:[%s0 + $0x188] sm:$0xff]
  %v65 = vld [vmem:[%s0 + $0x190] sm:$0xff]
  %v66 = vld [vmem:[%s0 + $0x198] sm:$0xff]
  %v67 = vld [vmem:[%s1] sm:$0xf]
  %v68 = vld [vmem:[%s1 + $0x4] sm:$0xf]
  %v69 = vld [vmem:[%s1 + $0x8] sm:$0xf]
  %v70 = vld [vmem:[%s1 + $0xc] sm:$0xf]
  %v71 = vld [vmem:[%s1 + $0x10] sm:$0xf]
  %v72 = vld [vmem:[%s1 + $0x14] sm:$0xf]
  %v73 = vld [vmem:[%s1 + $0x18] sm:$0xf]
  %v74 = vld [vmem:[%s1 + $0x1c] sm:$0xf]
  %v75 = vld [vmem:[%s1 + $0x20] sm:$0xf]
  %v76 = vld [vmem:[%s1 + $0x24] sm:$0xf]
  %v77 = vld [vmem:[%s1 + $0x28] sm:$0xf]
  %v78 = vld [vmem:[%s1 + $0x2c] sm:$0xf]
  %v79 = vld [vmem:[%s1 + $0x30] sm:$0xf]
  %v80 = vld [vmem:[%s1 + $0x34] sm:$0xf]
  %v81 = vld [vmem:[%s1 + $0x38] sm:$0xf]
  %v82 = vld [vmem:[%s1 + $0x3c] sm:$0xf]
  %v83 = vld [vmem:[%s1 + $0x40] sm:$0xf]
  %v84 = vld [vmem:[%s1 + $0x44] sm:$0xf]
  %v85 = vld [vmem:[%s1 + $0x48] sm:$0xf]
  %v86 = vld [vmem:[%s1 + $0x4c] sm:$0xf]
  %v87 = vld [vmem:[%s1 + $0x50] sm:$0xf]
  %v88 = vld [vmem:[%s1 + $0x54] sm:$0xf]
  %v89 = vld [vmem:[%s1 + $0x58] sm:$0xf]
  %v90 = vld [vmem:[%s1 + $0x5c] sm:$0xf]
  %v91 = vld [vmem:[%s1 + $0x60] sm:$0xf]
  %v92 = vld [vmem:[%s1 + $0x64] sm:$0xf]
  %v93 = vld [vmem:[%s1 + $0x68] sm:$0xf]
  %v94 = vld [vmem:[%s1 + $0x6c] sm:$0xf]
  %v95 = vld [vmem:[%s1 + $0x70] sm:$0xf]
  %v96 = vld [vmem:[%s1 + $0x74] sm:$0xf]
  %v97 = vld [vmem:[%s1 + $0x78] sm:$0xf]
  %v98 = vld [vmem:[%s1 + $0x7c] sm:$0xf]
  %v99 = vld [vmem:[%s1 + $0x80] sm:$0xf]
  %v100 = vld [vmem:[%s1 + $0x84] sm:$0xf]
  %v101 = vld [vmem:[%s1 + $0x88] sm:$0xf]
  %v102 = vld [vmem:[%s1 + $0x8c] sm:$0xf]
  %v103 = vld [vmem:[%s1 + $0x90] sm:$0xf]
  %v104 = vld [vmem:[%s1 + $0x94] sm:$0xf]
  %v105 = vld [vmem:[%s1 + $0x98] sm:$0xf]
  %v106 = vld [vmem:[%s1 + $0x9c] sm:$0xf]
  %v107 = vld [vmem:[%s1 + $0xa0] sm:$0xf]
  %v108 = vld [vmem:[%s1 + $0xa4] sm:$0xf]
  %v109 = vld [vmem:[%s1 + $0xa8] sm:$0xf]
  %v110 = vld [vmem:[%s1 + $0xac] sm:$0xf]
  %v111 = vld [vmem:[%s1 + $0xb0] sm:$0xf]
  %v112 = vld [vmem:[%s1 + $0xb4] sm:$0xf]
  %v113 = vld [vmem:[%s1 + $0xb8] sm:$0xf]
  %v114 = vld [vmem:[%s1 + $0xbc] sm:$0xf]
  %v115 = vld [vmem:[%s1 + $0xc0] sm:$0xf]
  %v116 = vld [vmem:[%s1 + $0xc4] sm:$0xf]
  %v117 = vld [vmem:[%s1 + $0xc8] sm:$0xf]
  %v118 = vld [vmem:[%s1 + $0xcc] sm:$0xf]
  %v119 = vld [vmem:[%s1 + $0xd0] sm:$0xf]
  %v120 = vld [vmem:[%s1 + $0xd4] sm:$0xf]
  %v121 = vld [vmem:[%s1 + $0xd8] sm:$0xf]
  %v122 = vld [vmem:[%s1 + $0xdc] sm:$0xf]
  %v123 = vld [vmem:[%s1 + $0xe0] sm:$0xf]
  %v124 = vld [vmem:[%s1 + $0xe4] sm:$0xf]
  %v125 = vld [vmem:[%s1 + $0xe8] sm:$0xf]
  %v126 = vld [vmem:[%s1 + $0xec] sm:$0xf]
  %v127 = vld [vmem:[%s1 + $0xf0] sm:$0xf]
  %v128 = vld [vmem:[%s1 + $0xf4] sm:$0xf]
  %v129 = vld [vmem:[%s1 + $0xf8] sm:$0xf]
  %v130 = vld [vmem:[%s1 + $0xfc] sm:$0xf]
  %v131 = vld [vmem:[%s1 + $0x100] sm:$0xf]
  %v132 = vld [vmem:[%s1 + $0x104] sm:$0xf]
  %v133 = vld [vmem:[%s1 + $0x108] sm:$0xf]
  %v134 = vld [vmem:[%s1 + $0x10c] sm:$0xf]
  %v135 = vld [vmem:[%s1 + $0x110] sm:$0xf]
  %v136 = vld [vmem:[%s1 + $0x114] sm:$0xf]
  %v137 = vld [vmem:[%s1 + $0x118] sm:$0xf]
  %v138 = vld [vmem:[%s1 + $0x11c] sm:$0xf]
  %v139 = vld [vmem:[%s1 + $0x120] sm:$0xf]
  %v140 = vld [vmem:[%s1 + $0x124] sm:$0xf]
  %v141 = vld [vmem:[%s1 + $0x128] sm:$0xf]
  %v142 = vld [vmem:[%s1 + $0x12c] sm:$0xf]
  %v143 = vld [vmem:[%s1 + $0x130] sm:$0xf]
  %v144 = vld [vmem:[%s1 + $0x134] sm:$0xf]
  %v145 = vld [vmem:[%s1 + $0x138] sm:$0xf]
  %v146 = vld [vmem:[%s1 + $0x13c] sm:$0xf]
  %v147 = vld [vmem:[%s1 + $0x140] sm:$0xf]
  %v148 = vld [vmem:[%s1 + $0x144] sm:$0xf]
  %v149 = vld [vmem:[%s1 + $0x148] sm:$0xf]
  %v150 = vld [vmem:[%s1 + $0x14c] sm:$0xf]
  %v151 = vld [vmem:[%s1 + $0x150] sm:$0xf]
  %v152 = vld [vmem:[%s1 + $0x154] sm:$0xf]
  %v153 = vld [vmem:[%s1 + $0x158] sm:$0xf]
  %v154 = vld [vmem:[%s1 + $0x15c] sm:$0xf]
  %v155 = vld [vmem:[%s1 + $0x160] sm:$0xf]
  %v156 = vld [vmem:[%s1 + $0x164] sm:$0xf]
  %v157 = vld [vmem:[%s1 + $0x168] sm:$0xf]
  %v158 = vld [vmem:[%s1 + $0x16c] sm:$0xf]
  %v159 = vld [vmem:[%s1 + $0x170] sm:$0xf]
  %v160 = vld [vmem:[%s1 + $0x174] sm:$0xf]
  %v161 = vld [vmem:[%s1 + $0x178] sm:$0xf]
  %v162 = vld [vmem:[%s1 + $0x17c] sm:$0xf]
  %v163 = vld [vmem:[%s1 + $0x180] sm:$0xf]
  %v164 = vld [vmem:[%s1 + $0x184] sm:$0xf]
  %v165 = vld [vmem:[%s1 + $0x188] sm:$0xf]
  %v166 = vld [vmem:[%s1 + $0x18c] sm:$0xf]
  %v167 = vld [vmem:[%s1 + $0x190] sm:$0xf]
  %v168 = vld [vmem:[%s1 + $0x194] sm:$0xf]
  %v169 = vld [vmem:[%s1 + $0x198] sm:$0xf]
  %v170 = vld [vmem:[%s1 + $0x19c] sm:$0xf]
  %v171 = vld [vmem:[%s1 + $0x1a0] sm:$0xf]
  %v172 = vld [vmem:[%s1 + $0x1a4] sm:$0xf]
  %v173 = vld [vmem:[%s1 + $0x1a8] sm:$0xf]
  %v174 = vld [vmem:[%s1 + $0x1ac] sm:$0xf]
  %v175 = vld [vmem:[%s1 + $0x1b0] sm:$0xf]
  %v176 = vld [vmem:[%s1 + $0x1b4] sm:$0xf]
  %v177 = vld [vmem:[%s1 + $0x1b8] sm:$0xf]
  %v178 = vld [vmem:[%s1 + $0x1bc] sm:$0xf]
  %v179 = vld [vmem:[%s1 + $0x1c0] sm:$0xf]
  %v180 = vld [vmem:[%s1 + $0x1c4] sm:$0xf]
  %v181 = vld [vmem:[%s1 + $0x1c8] sm:$0xf]
  %v182 = vld [vmem:[%s1 + $0x1cc] sm:$0xf]
  %v183 = vld [vmem:[%s1 + $0x1d0] sm:$0xf]
  %v184 = vld [vmem:[%s2] sm:$0x1]
  %v186 = vperm.slane %v184, 0
  %v240 = vunpack.c.l.b16 %v15
  %v241 = vunpack.c.h.b16 %v15
  %v242 = vunpack.c.l.b16 %v16
  %v243 = vunpack.c.h.b16 %v16
  %v244 = vunpack.c.l.b16 %v17
  %v245 = vunpack.c.h.b16 %v17
  %v246 = vunpack.c.l.b16 %v18
  %v247 = vunpack.c.h.b16 %v18
  %v248 = vunpack.c.l.b16 %v19
  %v249 = vunpack.c.h.b16 %v19
  %v250 = vunpack.c.l.b16 %v20
  %v251 = vunpack.c.h.b16 %v20
  %v252 = vunpack.c.l.b16 %v21
  %v253 = vunpack.c.h.b16 %v21
  %v254 = vunpack.c.l.b16 %v22
  %v255 = vunpack.c.h.b16 %v22
  %v256 = vunpack.c.l.b16 %v23
  %v257 = vunpack.c.h.b16 %v23
  %v258 = vunpack.c.l.b16 %v24
  %v259 = vunpack.c.h.b16 %v24
  %v260 = vunpack.c.l.b16 %v25
  %v261 = vunpack.c.h.b16 %v25
  %v262 = vunpack.c.l.b16 %v26
  %v263 = vunpack.c.h.b16 %v26
  %v264 = vunpack.c.l.b16 %v27
  %v265 = vunpack.c.h.b16 %v27
  %v266 = vunpack.c.l.b16 %v28
  %v267 = vunpack.c.h.b16 %v28
  %v268 = vunpack.c.l.b16 %v29
  %v269 = vunpack.c.h.b16 %v29
  %v270 = vunpack.c.l.b16 %v30
  %v271 = vunpack.c.h.b16 %v30
  %v272 = vunpack.c.l.b16 %v31
  %v273 = vunpack.c.h.b16 %v31
  %v274 = vunpack.c.l.b16 %v32
  %v275 = vunpack.c.h.b16 %v32
  %v276 = vunpack.c.l.b16 %v33
  %v277 = vunpack.c.h.b16 %v33
  %v278 = vunpack.c.l.b16 %v34
  %v279 = vunpack.c.h.b16 %v34
  %v280 = vunpack.c.l.b16 %v35
  %v281 = vunpack.c.h.b16 %v35
  %v282 = vunpack.c.l.b16 %v36
  %v283 = vunpack.c.h.b16 %v36
  %v284 = vunpack.c.l.b16 %v37
  %v285 = vunpack.c.h.b16 %v37
  %v286 = vunpack.c.l.b16 %v38
  %v287 = vunpack.c.h.b16 %v38
  %v288 = vunpack.c.l.b16 %v39
  %v289 = vunpack.c.h.b16 %v39
  %v290 = vunpack.c.l.b16 %v40
  %v291 = vunpack.c.h.b16 %v40
  %v292 = vunpack.c.l.b16 %v41
  %v293 = vunpack.c.h.b16 %v41
  %v294 = vunpack.c.l.b16 %v42
  %v295 = vunpack.c.h.b16 %v42
  %v296 = vunpack.c.l.b16 %v43
  %v297 = vunpack.c.h.b16 %v43
  %v298 = vunpack.c.l.b16 %v44
  %v299 = vunpack.c.h.b16 %v44
  %v300 = vunpack.c.l.b16 %v45
  %v301 = vunpack.c.h.b16 %v45
  %v302 = vunpack.c.l.b16 %v46
  %v303 = vunpack.c.h.b16 %v46
  %v304 = vunpack.c.l.b16 %v47
  %v305 = vunpack.c.h.b16 %v47
  %v306 = vunpack.c.l.b16 %v48
  %v307 = vunpack.c.h.b16 %v48
  %v308 = vunpack.c.l.b16 %v49
  %v309 = vunpack.c.h.b16 %v49
  %v310 = vunpack.c.l.b16 %v50
  %v311 = vunpack.c.h.b16 %v50
  %v312 = vunpack.c.l.b16 %v51
  %v313 = vunpack.c.h.b16 %v51
  %v314 = vunpack.c.l.b16 %v52
  %v315 = vunpack.c.h.b16 %v52
  %v316 = vunpack.c.l.b16 %v53
  %v317 = vunpack.c.h.b16 %v53
  %v318 = vunpack.c.l.b16 %v54
  %v319 = vunpack.c.h.b16 %v54
  %v320 = vunpack.c.l.b16 %v55
  %v321 = vunpack.c.h.b16 %v55
  %v322 = vunpack.c.l.b16 %v56
  %v323 = vunpack.c.h.b16 %v56
  %v324 = vunpack.c.l.b16 %v57
  %v325 = vunpack.c.h.b16 %v57
  %v326 = vunpack.c.l.b16 %v58
  %v327 = vunpack.c.h.b16 %v58
  %v328 = vunpack.c.l.b16 %v59
  %v329 = vunpack.c.h.b16 %v59
  %v330 = vunpack.c.l.b16 %v60
  %v331 = vunpack.c.h.b16 %v60
  %v332 = vunpack.c.l.b16 %v61
  %v333 = vunpack.c.h.b16 %v61
  %v334 = vunpack.c.l.b16 %v62
  %v335 = vunpack.c.h.b16 %v62
  %v336 = vunpack.c.l.b16 %v63
  %v337 = vunpack.c.h.b16 %v63
  %v338 = vunpack.c.l.b16 %v64
  %v339 = vunpack.c.h.b16 %v64
  %v340 = vunpack.c.l.b16 %v65
  %v341 = vunpack.c.h.b16 %v65
  %v342 = vunpack.c.l.b16 %v66
  %v343 = vunpack.c.h.b16 %v66
  %v344 = vpack.c.b16 %v248, %v240
  %v345 = vpack.c.b16 %v249, %v241
  %v346 = vpack.c.b16 %v250, %v242
  %v347 = vpack.c.b16 %v251, %v243
  %v348 = vpack.c.b16 %v252, %v244
  %v349 = vpack.c.b16 %v253, %v245
  %v350 = vpack.c.b16 %v254, %v246
  %v351 = vpack.c.b16 %v255, %v247
  %v352 = vpack.c.b16 %v264, %v256
  %v353 = vpack.c.b16 %v265, %v257
  %v354 = vpack.c.b16 %v266, %v258
  %v355 = vpack.c.b16 %v267, %v259
  %v356 = vpack.c.b16 %v268, %v260
  %v357 = vpack.c.b16 %v269, %v261
  %v358 = vpack.c.b16 %v270, %v262
  %v359 = vpack.c.b16 %v271, %v263
  %v360 = vpack.c.b16 %v280, %v272
  %v361 = vpack.c.b16 %v281, %v273
  %v362 = vpack.c.b16 %v282, %v274
  %v363 = vpack.c.b16 %v283, %v275
  %v364 = vpack.c.b16 %v284, %v276
  %v365 = vpack.c.b16 %v285, %v277
  %v366 = vpack.c.b16 %v286, %v278
  %v367 = vpack.c.b16 %v287, %v279
  %v368 = vpack.c.b16 %v296, %v288
  %v369 = vpack.c.b16 %v297, %v289
  %v370 = vpack.c.b16 %v298, %v290
  %v371 = vpack.c.b16 %v299, %v291
  %v372 = vpack.c.b16 %v300, %v292
  %v373 = vpack.c.b16 %v301, %v293
  %v374 = vpack.c.b16 %v302, %v294
  %v375 = vpack.c.b16 %v303, %v295
  %v376 = vpack.c.b16 %v312, %v304
  %v377 = vpack.c.b16 %v313, %v305
  %v378 = vpack.c.b16 %v314, %v306
  %v379 = vpack.c.b16 %v315, %v307
  %v380 = vpack.c.b16 %v316, %v308
  %v381 = vpack.c.b16 %v317, %v309
  %v382 = vpack.c.b16 %v318, %v310
  %v383 = vpack.c.b16 %v319, %v311
  %v384 = vpack.c.b16 %v328, %v320
  %v385 = vpack.c.b16 %v329, %v321
  %v386 = vpack.c.b16 %v330, %v322
  %v387 = vpack.c.b16 %v331, %v323
  %v388 = vpack.c.b16 %v332, %v324
  %v389 = vpack.c.b16 %v333, %v325
  %v390 = vpack.c.b16 %v334, %v326
  %v391 = vpack.c.b16 %v335, %v327
  %v392 = vpack.c.b16 %v336, %v336
  %v393 = vpack.c.b16 %v337, %v337
  %v394 = vpack.c.b16 %v338, %v338
  %v395 = vpack.c.b16 %v339, %v339
  %v396 = vpack.c.b16 %v340, %v340
  %v397 = vpack.c.b16 %v341, %v341
  %v398 = vpack.c.b16 %v342, %v342
  %v399 = vpack.c.b16 %v343, %v343
  %v566 = vunpack.c.l.b16 %v67
  %v567 = vunpack.c.l.b16 %v68
  %v568 = vunpack.c.l.b16 %v69
  %v569 = vunpack.c.l.b16 %v70
  %v570 = vunpack.c.l.b16 %v71
  %v571 = vunpack.c.l.b16 %v72
  %v572 = vunpack.c.l.b16 %v73
  %v573 = vunpack.c.l.b16 %v74
  %v574 = vunpack.c.l.b16 %v75
  %v575 = vunpack.c.l.b16 %v76
  %v576 = vunpack.c.l.b16 %v77
  %v577 = vunpack.c.l.b16 %v78
  %v578 = vunpack.c.l.b16 %v79
  %v579 = vunpack.c.l.b16 %v80
  %v580 = vunpack.c.l.b16 %v81
  %v581 = vunpack.c.l.b16 %v82
  %v582 = vunpack.c.l.b16 %v83
  %v583 = vunpack.c.l.b16 %v84
  %v584 = vunpack.c.l.b16 %v85
  %v585 = vunpack.c.l.b16 %v86
  %v586 = vunpack.c.l.b16 %v87
  %v587 = vunpack.c.l.b16 %v88
  %v588 = vunpack.c.l.b16 %v89
  %v589 = vunpack.c.l.b16 %v90
  %v590 = vunpack.c.l.b16 %v91
  %v591 = vunpack.c.l.b16 %v92
  %v592 = vunpack.c.l.b16 %v93
  %v593 = vunpack.c.l.b16 %v94
  %v594 = vunpack.c.l.b16 %v95
  %v595 = vunpack.c.l.b16 %v96
  %v596 = vunpack.c.l.b16 %v97
  %v597 = vunpack.c.l.b16 %v98
  %v598 = vunpack.c.l.b16 %v99
  %v599 = vunpack.c.l.b16 %v100
  %v600 = vunpack.c.l.b16 %v101
  %v601 = vunpack.c.l.b16 %v102
  %v602 = vunpack.c.l.b16 %v103
  %v603 = vunpack.c.l.b16 %v104
  %v604 = vunpack.c.l.b16 %v105
  %v605 = vunpack.c.l.b16 %v106
  %v606 = vunpack.c.l.b16 %v107
  %v607 = vunpack.c.l.b16 %v108
  %v608 = vunpack.c.l.b16 %v109
  %v609 = vunpack.c.l.b16 %v110
  %v610 = vunpack.c.l.b16 %v111
  %v611 = vunpack.c.l.b16 %v112
  %v612 = vunpack.c.l.b16 %v113
  %v613 = vunpack.c.l.b16 %v114
  %v614 = vunpack.c.l.b16 %v115
  %v615 = vunpack.c.l.b16 %v116
  %v616 = vunpack.c.l.b16 %v117
  %v617 = vunpack.c.l.b16 %v118
  %v618 = vunpack.c.l.b16 %v119
  %v619 = vunpack.c.l.b16 %v120
  %v620 = vunpack.c.l.b16 %v121
  %v621 = vunpack.c.l.b16 %v122
  %v622 = vunpack.c.l.b16 %v123
  %v623 = vunpack.c.l.b16 %v124
  %v624 = vunpack.c.l.b16 %v125
  %v625 = vunpack.c.l.b16 %v126
  %v626 = vunpack.c.l.b16 %v127
  %v627 = vunpack.c.l.b16 %v128
  %v628 = vunpack.c.l.b16 %v129
  %v629 = vunpack.c.l.b16 %v130
  %v630 = vunpack.c.l.b16 %v131
  %v631 = vunpack.c.l.b16 %v132
  %v632 = vunpack.c.l.b16 %v133
  %v633 = vunpack.c.l.b16 %v134
  %v634 = vunpack.c.l.b16 %v135
  %v635 = vunpack.c.l.b16 %v136
  %v636 = vunpack.c.l.b16 %v137
  %v637 = vunpack.c.l.b16 %v138
  %v638 = vunpack.c.l.b16 %v139
  %v639 = vunpack.c.l.b16 %v140
  %v640 = vunpack.c.l.b16 %v141
  %v641 = vunpack.c.l.b16 %v142
  %v642 = vunpack.c.l.b16 %v143
  %v643 = vunpack.c.l.b16 %v144
  %v644 = vunpack.c.l.b16 %v145
  %v645 = vunpack.c.l.b16 %v146
  %v646 = vunpack.c.l.b16 %v147
  %v647 = vunpack.c.l.b16 %v148
  %v648 = vunpack.c.l.b16 %v149
  %v649 = vunpack.c.l.b16 %v150
  %v650 = vunpack.c.l.b16 %v151
  %v651 = vunpack.c.l.b16 %v152
  %v652 = vunpack.c.l.b16 %v153
  %v653 = vunpack.c.l.b16 %v154
  %v654 = vunpack.c.l.b16 %v155
  %v655 = vunpack.c.l.b16 %v156
  %v656 = vunpack.c.l.b16 %v157
  %v657 = vunpack.c.l.b16 %v158
  %v658 = vunpack.c.l.b16 %v159
  %v659 = vunpack.c.l.b16 %v160
  %v660 = vunpack.c.l.b16 %v161
  %v661 = vunpack.c.l.b16 %v162
  %v662 = vunpack.c.l.b16 %v163
  %v663 = vunpack.c.l.b16 %v164
  %v664 = vunpack.c.l.b16 %v165
  %v665 = vunpack.c.l.b16 %v166
  %v666 = vunpack.c.l.b16 %v167
  %v667 = vunpack.c.l.b16 %v168
  %v668 = vunpack.c.l.b16 %v169
  %v669 = vunpack.c.l.b16 %v170
  %v670 = vunpack.c.l.b16 %v171
  %v671 = vunpack.c.l.b16 %v172
  %v672 = vunpack.c.l.b16 %v173
  %v673 = vunpack.c.l.b16 %v174
  %v674 = vunpack.c.l.b16 %v175
  %v675 = vunpack.c.l.b16 %v176
  %v676 = vunpack.c.l.b16 %v177
  %v677 = vunpack.c.l.b16 %v178
  %v678 = vunpack.c.l.b16 %v179
  %v679 = vunpack.c.l.b16 %v180
  %v680 = vunpack.c.l.b16 %v181
  %v681 = vunpack.c.l.b16 %v182
  %v682 = vunpack.c.l.b16 %v183
  %v683 = vpack.c.b16 %v567, %v566
  %v684 = vpack.c.b16 %v569, %v568
  %v685 = vpack.c.b16 %v571, %v570
  %v686 = vpack.c.b16 %v573, %v572
  %v687 = vpack.c.b16 %v575, %v574
  %v688 = vpack.c.b16 %v577, %v576
  %v689 = vpack.c.b16 %v579, %v578
  %v690 = vpack.c.b16 %v581, %v580
  %v691 = vpack.c.b16 %v583, %v582
  %v692 = vpack.c.b16 %v585, %v584
  %v693 = vpack.c.b16 %v587, %v586
  %v694 = vpack.c.b16 %v589, %v588
  %v695 = vpack.c.b16 %v591, %v590
  %v696 = vpack.c.b16 %v593, %v592
  %v697 = vpack.c.b16 %v595, %v594
  %v698 = vpack.c.b16 %v597, %v596
  %v699 = vpack.c.b16 %v599, %v598
  %v700 = vpack.c.b16 %v601, %v600
  %v701 = vpack.c.b16 %v603, %v602
  %v702 = vpack.c.b16 %v605, %v604
  %v703 = vpack.c.b16 %v607, %v606
  %v704 = vpack.c.b16 %v609, %v608
  %v705 = vpack.c.b16 %v611, %v610
  %v706 = vpack.c.b16 %v613, %v612
  %v707 = vpack.c.b16 %v615, %v614
  %v708 = vpack.c.b16 %v617, %v616
  %v709 = vpack.c.b16 %v619, %v618
  %v710 = vpack.c.b16 %v621, %v620
  %v711 = vpack.c.b16 %v623, %v622
  %v712 = vpack.c.b16 %v625, %v624
  %v713 = vpack.c.b16 %v627, %v626
  %v714 = vpack.c.b16 %v629, %v628
  %v715 = vpack.c.b16 %v631, %v630
  %v716 = vpack.c.b16 %v633, %v632
  %v717 = vpack.c.b16 %v635, %v634
  %v718 = vpack.c.b16 %v637, %v636
  %v719 = vpack.c.b16 %v639, %v638
  %v720 = vpack.c.b16 %v641, %v640
  %v721 = vpack.c.b16 %v643, %v642
  %v722 = vpack.c.b16 %v645, %v644
  %v723 = vpack.c.b16 %v647, %v646
  %v724 = vpack.c.b16 %v649, %v648
  %v725 = vpack.c.b16 %v651, %v650
  %v726 = vpack.c.b16 %v653, %v652
  %v727 = vpack.c.b16 %v655, %v654
  %v728 = vpack.c.b16 %v657, %v656
  %v729 = vpack.c.b16 %v659, %v658
  %v730 = vpack.c.b16 %v661, %v660
  %v731 = vpack.c.b16 %v663, %v662
  %v732 = vpack.c.b16 %v665, %v664
  %v733 = vpack.c.b16 %v667, %v666
  %v734 = vpack.c.b16 %v669, %v668
  %v735 = vpack.c.b16 %v671, %v670
  %v736 = vpack.c.b16 %v673, %v672
  %v737 = vpack.c.b16 %v675, %v674
  %v738 = vpack.c.b16 %v677, %v676
  %v739 = vpack.c.b16 %v679, %v678
  %v740 = vpack.c.b16 %v681, %v680
  %v741 = vpack.c.b16 %v682, %v682
  %vm800 = vcmask 326656
  %v802 = vsel %vm800, %v351, 0
  %v805 = vsel %vm800, %v359, 0
  %v808 = vsel %vm800, %v367, 0
  %v811 = vsel %vm800, %v375, 0
  %v814 = vsel %vm800, %v383, 0
  %v817 = vsel %vm800, %v391, 0
  %v820 = vsel %vm800, %v399, 0
  %vm822 = vcmask 1043456
  %v824 = vsel %vm822, %v741, 0
  %826 = vmatpush.bf16.msra.mxu0 %v690
  %827 = vmatpush.bf16.msra.mxu0 %v689
  %828 = vmatpush.bf16.msra.mxu0 %v688
  %829 = vmatpush.bf16.msra.mxu0 %v687
  %830 = vmatpush.bf16.msra.mxu0 %v686
  %831 = vmatpush.bf16.msra.mxu0 %v685
  %832 = vmatpush.bf16.msra.mxu0 %v684
  %833 = vmatpush.bf16.msra.mxu0 %v683
  %834 = vmatmul.bf16.gmra.mxu0 %v344
  %v835 = vpop.f32.mrf.mxu0
  %v836 = vadd.f32 %v186, %v835
  %v837 = vpop.f32.mrf.mxu0
  %v838 = vadd.f32 %v186, %v837
  %839 = vmatmul.bf16.gmra.mxu0 %v352
  %v840 = vpop.f32.mrf.mxu0
  %v841 = vadd.f32 %v186, %v840
  %v842 = vpop.f32.mrf.mxu0
  %v843 = vadd.f32 %v186, %v842
  %844 = vmatmul.bf16.gmra.mxu0 %v360
  %v845 = vpop.f32.mrf.mxu0
  %v846 = vadd.f32 %v186, %v845
  %v847 = vpop.f32.mrf.mxu0
  %v848 = vadd.f32 %v186, %v847
  %849 = vmatmul.bf16.gmra.mxu0 %v368
  %v850 = vpop.f32.mrf.mxu0
  %v851 = vadd.f32 %v186, %v850
  %v852 = vpop.f32.mrf.mxu0
  %v853 = vadd.f32 %v186, %v852
  %854 = vmatmul.bf16.gmra.mxu0 %v376
  %v855 = vpop.f32.mrf.mxu0
  %v856 = vadd.f32 %v186, %v855
  %v857 = vpop.f32.mrf.mxu0
  %v858 = vadd.f32 %v186, %v857
  %859 = vmatmul.bf16.gmra.mxu0 %v384
  %v860 = vpop.f32.mrf.mxu0
  %v861 = vadd.f32 %v186, %v860
  %v862 = vpop.f32.mrf.mxu0
  %v863 = vadd.f32 %v186, %v862
  %864 = vmatmul.bf16.gmra.mxu0 %v392
  %v865 = vpop.f32.mrf.mxu0
  %v866 = vadd.f32 %v186, %v865
  %v867 = vpop.f32.mrf.mxu0
  %868 = vdwg.mxu0
  %869 = vmatpush.bf16.msra.mxu0 %v698
  %870 = vmatpush.bf16.msra.mxu0 %v697
  %871 = vmatpush.bf16.msra.mxu0 %v696
  %872 = vmatpush.bf16.msra.mxu0 %v695
  %873 = vmatpush.bf16.msra.mxu0 %v694
  %874 = vmatpush.bf16.msra.mxu0 %v693
  %875 = vmatpush.bf16.msra.mxu0 %v692
  %876 = vmatpush.bf16.msra.mxu0 %v691
  %877 = vmatmul.bf16.gmra.mxu0 %v345
  %v878 = vpop.f32.mrf.mxu0
  %v879 = vadd.f32 %v836, %v878
  %v880 = vpop.f32.mrf.mxu0
  %v881 = vadd.f32 %v838, %v880
  %882 = vmatmul.bf16.gmra.mxu0 %v353
  %v883 = vpop.f32.mrf.mxu0
  %v884 = vadd.f32 %v841, %v883
  %v885 = vpop.f32.mrf.mxu0
  %v886 = vadd.f32 %v843, %v885
  %887 = vmatmul.bf16.gmra.mxu0 %v361
  %v888 = vpop.f32.mrf.mxu0
  %v889 = vadd.f32 %v846, %v888
  %v890 = vpop.f32.mrf.mxu0
  %v891 = vadd.f32 %v848, %v890
  %892 = vmatmul.bf16.gmra.mxu0 %v369
  %v893 = vpop.f32.mrf.mxu0
  %v894 = vadd.f32 %v851, %v893
  %v895 = vpop.f32.mrf.mxu0
  %v896 = vadd.f32 %v853, %v895
  %897 = vmatmul.bf16.gmra.mxu0 %v377
  %v898 = vpop.f32.mrf.mxu0
  %v899 = vadd.f32 %v856, %v898
  %v900 = vpop.f32.mrf.mxu0
  %v901 = vadd.f32 %v858, %v900
  %902 = vmatmul.bf16.gmra.mxu0 %v385
  %v903 = vpop.f32.mrf.mxu0
  %v904 = vadd.f32 %v861, %v903
  %v905 = vpop.f32.mrf.mxu0
  %v906 = vadd.f32 %v863, %v905
  %907 = vmatmul.bf16.gmra.mxu0 %v393
  %v908 = vpop.f32.mrf.mxu0
  %v909 = vadd.f32 %v866, %v908
  %v910 = vpop.f32.mrf.mxu0
  %911 = vdwg.mxu0
  %912 = vmatpush.bf16.msra.mxu0 %v706
  %913 = vmatpush.bf16.msra.mxu0 %v705
  %914 = vmatpush.bf16.msra.mxu0 %v704
  %915 = vmatpush.bf16.msra.mxu0 %v703
  %916 = vmatpush.bf16.msra.mxu0 %v702
  %917 = vmatpush.bf16.msra.mxu0 %v701
  %918 = vmatpush.bf16.msra.mxu0 %v700
  %919 = vmatpush.bf16.msra.mxu0 %v699
  %920 = vmatmul.bf16.gmra.mxu0 %v346
  %v921 = vpop.f32.mrf.mxu0
  %v922 = vadd.f32 %v879, %v921
  %v923 = vpop.f32.mrf.mxu0
  %v924 = vadd.f32 %v881, %v923
  %925 = vmatmul.bf16.gmra.mxu0 %v354
  %v926 = vpop.f32.mrf.mxu0
  %v927 = vadd.f32 %v884, %v926
  %v928 = vpop.f32.mrf.mxu0
  %v929 = vadd.f32 %v886, %v928
  %930 = vmatmul.bf16.gmra.mxu0 %v362
  %v931 = vpop.f32.mrf.mxu0
  %v932 = vadd.f32 %v889, %v931
  %v933 = vpop.f32.mrf.mxu0
  %v934 = vadd.f32 %v891, %v933
  %935 = vmatmul.bf16.gmra.mxu0 %v370
  %v936 = vpop.f32.mrf.mxu0
  %v937 = vadd.f32 %v894, %v936
  %v938 = vpop.f32.mrf.mxu0
  %v939 = vadd.f32 %v896, %v938
  %940 = vmatmul.bf16.gmra.mxu0 %v378
  %v941 = vpop.f32.mrf.mxu0
  %v942 = vadd.f32 %v899, %v941
  %v943 = vpop.f32.mrf.mxu0
  %v944 = vadd.f32 %v901, %v943
  %945 = vmatmul.bf16.gmra.mxu0 %v386
  %v946 = vpop.f32.mrf.mxu0
  %v947 = vadd.f32 %v904, %v946
  %v948 = vpop.f32.mrf.mxu0
  %v949 = vadd.f32 %v906, %v948
  %950 = vmatmul.bf16.gmra.mxu0 %v394
  %v951 = vpop.f32.mrf.mxu0
  %v952 = vadd.f32 %v909, %v951
  %v953 = vpop.f32.mrf.mxu0
  %954 = vdwg.mxu0
  %955 = vmatpush.bf16.msra.mxu0 %v714
  %956 = vmatpush.bf16.msra.mxu0 %v713
  %957 = vmatpush.bf16.msra.mxu0 %v712
  %958 = vmatpush.bf16.msra.mxu0 %v711
  %959 = vmatpush.bf16.msra.mxu0 %v710
  %960 = vmatpush.bf16.msra.mxu0 %v709
  %961 = vmatpush.bf16.msra.mxu0 %v708
  %962 = vmatpush.bf16.msra.mxu0 %v707
  %963 = vmatmul.bf16.gmra.mxu0 %v347
  %v964 = vpop.f32.mrf.mxu0
  %v965 = vadd.f32 %v922, %v964
  %v966 = vpop.f32.mrf.mxu0
  %v967 = vadd.f32 %v924, %v966
  %968 = vmatmul.bf16.gmra.mxu0 %v355
  %v969 = vpop.f32.mrf.mxu0
  %v970 = vadd.f32 %v927, %v969
  %v971 = vpop.f32.mrf.mxu0
  %v972 = vadd.f32 %v929, %v971
  %973 = vmatmul.bf16.gmra.mxu0 %v363
  %v974 = vpop.f32.mrf.mxu0
  %v975 = vadd.f32 %v932, %v974
  %v976 = vpop.f32.mrf.mxu0
  %v977 = vadd.f32 %v934, %v976
  %978 = vmatmul.bf16.gmra.mxu0 %v371
  %v979 = vpop.f32.mrf.mxu0
  %v980 = vadd.f32 %v937, %v979
  %v981 = vpop.f32.mrf.mxu0
  %v982 = vadd.f32 %v939, %v981
  %983 = vmatmul.bf16.gmra.mxu0 %v379
  %v984 = vpop.f32.mrf.mxu0
  %v985 = vadd.f32 %v942, %v984
  %v986 = vpop.f32.mrf.mxu0
  %v987 = vadd.f32 %v944, %v986
  %988 = vmatmul.bf16.gmra.mxu0 %v387
  %v989 = vpop.f32.mrf.mxu0
  %v990 = vadd.f32 %v947, %v989
  %v991 = vpop.f32.mrf.mxu0
  %v992 = vadd.f32 %v949, %v991
  %993 = vmatmul.bf16.gmra.mxu0 %v395
  %v994 = vpop.f32.mrf.mxu0
  %v995 = vadd.f32 %v952, %v994
  %v996 = vpop.f32.mrf.mxu0
  %997 = vdwg.mxu0
  %998 = vmatpush.bf16.msra.mxu0 %v722
  %999 = vmatpush.bf16.msra.mxu0 %v721
  %1000 = vmatpush.bf16.msra.mxu0 %v720
  %1001 = vmatpush.bf16.msra.mxu0 %v719
  %1002 = vmatpush.bf16.msra.mxu0 %v718
  %1003 = vmatpush.bf16.msra.mxu0 %v717
  %1004 = vmatpush.bf16.msra.mxu0 %v716
  %1005 = vmatpush.bf16.msra.mxu0 %v715
  %1006 = vmatmul.bf16.gmra.mxu0 %v348
  %v1007 = vpop.f32.mrf.mxu0
  %v1008 = vadd.f32 %v965, %v1007
  %v1009 = vpop.f32.mrf.mxu0
  %v1010 = vadd.f32 %v967, %v1009
  %1011 = vmatmul.bf16.gmra.mxu0 %v356
  %v1012 = vpop.f32.mrf.mxu0
  %v1013 = vadd.f32 %v970, %v1012
  %v1014 = vpop.f32.mrf.mxu0
  %v1015 = vadd.f32 %v972, %v1014
  %1016 = vmatmul.bf16.gmra.mxu0 %v364
  %v1017 = vpop.f32.mrf.mxu0
  %v1018 = vadd.f32 %v975, %v1017
  %v1019 = vpop.f32.mrf.mxu0
  %v1020 = vadd.f32 %v977, %v1019
  %1021 = vmatmul.bf16.gmra.mxu0 %v372
  %v1022 = vpop.f32.mrf.mxu0
  %v1023 = vadd.f32 %v980, %v1022
  %v1024 = vpop.f32.mrf.mxu0
  %v1025 = vadd.f32 %v982, %v1024
  %1026 = vmatmul.bf16.gmra.mxu0 %v380
  %v1027 = vpop.f32.mrf.mxu0
  %v1028 = vadd.f32 %v985, %v1027
  %v1029 = vpop.f32.mrf.mxu0
  %v1030 = vadd.f32 %v987, %v1029
  %1031 = vmatmul.bf16.gmra.mxu0 %v388
  %v1032 = vpop.f32.mrf.mxu0
  %v1033 = vadd.f32 %v990, %v1032
  %v1034 = vpop.f32.mrf.mxu0
  %v1035 = vadd.f32 %v992, %v1034
  %1036 = vmatmul.bf16.gmra.mxu0 %v396
  %v1037 = vpop.f32.mrf.mxu0
  %v1038 = vadd.f32 %v995, %v1037
  %v1039 = vpop.f32.mrf.mxu0
  %1040 = vdwg.mxu0
  %1041 = vmatpush.bf16.msra.mxu0 %v730
  %1042 = vmatpush.bf16.msra.mxu0 %v729
  %1043 = vmatpush.bf16.msra.mxu0 %v728
  %1044 = vmatpush.bf16.msra.mxu0 %v727
  %1045 = vmatpush.bf16.msra.mxu0 %v726
  %1046 = vmatpush.bf16.msra.mxu0 %v725
  %1047 = vmatpush.bf16.msra.mxu0 %v724
  %1048 = vmatpush.bf16.msra.mxu0 %v723
  %1049 = vmatmul.bf16.gmra.mxu0 %v349
  %v1050 = vpop.f32.mrf.mxu0
  %v1051 = vadd.f32 %v1008, %v1050
  %v1052 = vpop.f32.mrf.mxu0
  %v1053 = vadd.f32 %v1010, %v1052
  %1054 = vmatmul.bf16.gmra.mxu0 %v357
  %v1055 = vpop.f32.mrf.mxu0
  %v1056 = vadd.f32 %v1013, %v1055
  %v1057 = vpop.f32.mrf.mxu0
  %v1058 = vadd.f32 %v1015, %v1057
  %1059 = vmatmul.bf16.gmra.mxu0 %v365
  %v1060 = vpop.f32.mrf.mxu0
  %v1061 = vadd.f32 %v1018, %v1060
  %v1062 = vpop.f32.mrf.mxu0
  %v1063 = vadd.f32 %v1020, %v1062
  %1064 = vmatmul.bf16.gmra.mxu0 %v373
  %v1065 = vpop.f32.mrf.mxu0
  %v1066 = vadd.f32 %v1023, %v1065
  %v1067 = vpop.f32.mrf.mxu0
  %v1068 = vadd.f32 %v1025, %v1067
  %1069 = vmatmul.bf16.gmra.mxu0 %v381
  %v1070 = vpop.f32.mrf.mxu0
  %v1071 = vadd.f32 %v1028, %v1070
  %v1072 = vpop.f32.mrf.mxu0
  %v1073 = vadd.f32 %v1030, %v1072
  %1074 = vmatmul.bf16.gmra.mxu0 %v389
  %v1075 = vpop.f32.mrf.mxu0
  %v1076 = vadd.f32 %v1033, %v1075
  %v1077 = vpop.f32.mrf.mxu0
  %v1078 = vadd.f32 %v1035, %v1077
  %1079 = vmatmul.bf16.gmra.mxu0 %v397
  %v1080 = vpop.f32.mrf.mxu0
  %v1081 = vadd.f32 %v1038, %v1080
  %v1082 = vpop.f32.mrf.mxu0
  %1083 = vdwg.mxu0
  %1084 = vmatpush.bf16.msra.mxu0 %v738
  %1085 = vmatpush.bf16.msra.mxu0 %v737
  %1086 = vmatpush.bf16.msra.mxu0 %v736
  %1087 = vmatpush.bf16.msra.mxu0 %v735
  %1088 = vmatpush.bf16.msra.mxu0 %v734
  %1089 = vmatpush.bf16.msra.mxu0 %v733
  %1090 = vmatpush.bf16.msra.mxu0 %v732
  %1091 = vmatpush.bf16.msra.mxu0 %v731
  %1092 = vmatmul.bf16.gmra.mxu0 %v350
  %v1093 = vpop.f32.mrf.mxu0
  %v1094 = vadd.f32 %v1051, %v1093
  %v1095 = vpop.f32.mrf.mxu0
  %v1096 = vadd.f32 %v1053, %v1095
  %1097 = vmatmul.bf16.gmra.mxu0 %v358
  %v1098 = vpop.f32.mrf.mxu0
  %v1099 = vadd.f32 %v1056, %v1098
  %v1100 = vpop.f32.mrf.mxu0
  %v1101 = vadd.f32 %v1058, %v1100
  %1102 = vmatmul.bf16.gmra.mxu0 %v366
  %v1103 = vpop.f32.mrf.mxu0
  %v1104 = vadd.f32 %v1061, %v1103
  %v1105 = vpop.f32.mrf.mxu0
  %v1106 = vadd.f32 %v1063, %v1105
  %1107 = vmatmul.bf16.gmra.mxu0 %v374
  %v1108 = vpop.f32.mrf.mxu0
  %v1109 = vadd.f32 %v1066, %v1108
  %v1110 = vpop.f32.mrf.mxu0
  %v1111 = vadd.f32 %v1068, %v1110
  %1112 = vmatmul.bf16.gmra.mxu0 %v382
  %v1113 = vpop.f32.mrf.mxu0
  %v1114 = vadd.f32 %v1071, %v1113
  %v1115 = vpop.f32.mrf.mxu0
  %v1116 = vadd.f32 %v1073, %v1115
  %1117 = vmatmul.bf16.gmra.mxu0 %v390
  %v1118 = vpop.f32.mrf.mxu0
  %v1119 = vadd.f32 %v1076, %v1118
  %v1120 = vpop.f32.mrf.mxu0
  %v1121 = vadd.f32 %v1078, %v1120
  %1122 = vmatmul.bf16.gmra.mxu0 %v398
  %v1123 = vpop.f32.mrf.mxu0
  %v1124 = vadd.f32 %v1081, %v1123
  %v1125 = vpop.f32.mrf.mxu0
  %1126 = vdwg.mxu0
  %1127 = vmatpush.bf16.msra.mxu0 0
  %1128 = vmatpush.bf16.msra.mxu0 0
  %1129 = vmatpush.bf16.msra.mxu0 0
  %1130 = vmatpush.bf16.msra.mxu0 0
  %1131 = vmatpush.bf16.msra.mxu0 0
  %1132 = vmatpush.bf16.msra.mxu0 %v824
  %1133 = vmatpush.bf16.msra.mxu0 %v740
  %1134 = vmatpush.bf16.msra.mxu0 %v739
  %1135 = vmatmul.bf16.gmra.mxu0 %v802
  %v1136 = vpop.f32.mrf.mxu0
  %v1137 = vadd.f32 %v1094, %v1136
  %v1138 = vpop.f32.mrf.mxu0
  %v1139 = vadd.f32 %v1096, %v1138
  %1140 = vmatmul.bf16.gmra.mxu0 %v805
  %v1141 = vpop.f32.mrf.mxu0
  %v1142 = vadd.f32 %v1099, %v1141
  %v1143 = vpop.f32.mrf.mxu0
  %v1144 = vadd.f32 %v1101, %v1143
  %1145 = vmatmul.bf16.gmra.mxu0 %v808
  %v1146 = vpop.f32.mrf.mxu0
  %v1147 = vadd.f32 %v1104, %v1146
  %v1148 = vpop.f32.mrf.mxu0
  %v1149 = vadd.f32 %v1106, %v1148
  %1150 = vmatmul.bf16.gmra.mxu0 %v811
  %v1151 = vpop.f32.mrf.mxu0
  %v1152 = vadd.f32 %v1109, %v1151
  %v1153 = vpop.f32.mrf.mxu0
  %v1154 = vadd.f32 %v1111, %v1153
  %1155 = vmatmul.bf16.gmra.mxu0 %v814
  %v1156 = vpop.f32.mrf.mxu0
  %v1157 = vadd.f32 %v1114, %v1156
  %v1158 = vpop.f32.mrf.mxu0
  %v1159 = vadd.f32 %v1116, %v1158
  %1160 = vmatmul.bf16.gmra.mxu0 %v817
  %v1161 = vpop.f32.mrf.mxu0
  %v1162 = vadd.f32 %v1119, %v1161
  %v1163 = vpop.f32.mrf.mxu0
  %v1164 = vadd.f32 %v1121, %v1163
  %1165 = vmatmul.bf16.gmra.mxu0 %v820
  %v1166 = vpop.f32.mrf.mxu0
  %v1167 = vadd.f32 %v1124, %v1166
  %v1168 = vpop.f32.mrf.mxu0
  %1169 = vdwg.mxu0
  %v1170 = vmax.f32 %v1137, 0.0
  %v1171 = vmax.f32 %v1139, 0.0
  %v1172 = vmax.f32 %v1142, 0.0
  %v1173 = vmax.f32 %v1144, 0.0
  %v1174 = vmax.f32 %v1147, 0.0
  %v1175 = vmax.f32 %v1149, 0.0
  %v1176 = vmax.f32 %v1152, 0.0
  %v1177 = vmax.f32 %v1154, 0.0
  %v1178 = vmax.f32 %v1157, 0.0
  %v1179 = vmax.f32 %v1159, 0.0
  %v1180 = vmax.f32 %v1162, 0.0
  %v1181 = vmax.f32 %v1164, 0.0
  %v1182 = vmax.f32 %v1167, 0.0
  %vm1183 = vcmask 392192
  %1184 = vst.msk [vmem:[%s3] sm:$0xff] %vm1183, %v1170
  %1185 = vst.msk [vmem:[%s3 + $0x8] sm:$0xff] %vm1183, %v1171
  %1186 = vst.msk [vmem:[%s3 + $0x10] sm:$0xff] %vm1183, %v1172
  %1187 = vst.msk [vmem:[%s3 + $0x18] sm:$0xff] %vm1183, %v1173
  %1188 = vst.msk [vmem:[%s3 + $0x20] sm:$0xff] %vm1183, %v1174
  %1189 = vst.msk [vmem:[%s3 + $0x28] sm:$0xff] %vm1183, %v1175
  %1190 = vst.msk [vmem:[%s3 + $0x30] sm:$0xff] %vm1183, %v1176
  %1191 = vst.msk [vmem:[%s3 + $0x38] sm:$0xff] %vm1183, %v1177
  %1192 = vst.msk [vmem:[%s3 + $0x40] sm:$0xff] %vm1183, %v1178
  %1193 = vst.msk [vmem:[%s3 + $0x48] sm:$0xff] %vm1183, %v1179
  %1194 = vst.msk [vmem:[%s3 + $0x50] sm:$0xff] %vm1183, %v1180
  %1195 = vst.msk [vmem:[%s3 + $0x58] sm:$0xff] %vm1183, %v1181
  %1196 = vst.msk [vmem:[%s3 + $0x60] sm:$0xff] %vm1183, %v1182
  // Predicated region
  $region14: #{gcnet_forward.64} parent=0 // pred_check
    _
  $region15: #{gcnet_forward.64} parent=0 // pred_check_branch
    %1198 = sbr.rel (0) target = $region17
  $region16: #{gcnet_forward.64} parent=0 // pred_region
    _
  $region17: #{gcnet_forward.64} parent=0 // pred_fallthru
    _
  // Predicated region
  $region18: #{gcnet_forward.64} parent=0 // pred_check
    _
  $region19: #{gcnet_forward.64} parent=0 // pred_check_branch
    %1200 = sbr.rel (0) target = $region21
  $region20: #{gcnet_forward.64} parent=0 // pred_region
    _
  $region21: #{gcnet_forward.64} parent=0 // pred_fallthru
    _

// kernel: gcnet_forward.70
$region0: #{gcnet_forward.70}
  #allocation0 [shape = 'u32[]', space=smem, size = 0x4, offset = 0x4, fixed_abs, tag = 'smem constant byte address 0x4 - core index']
  #allocation1 [shape = 'u32[72,128]{1,0:T(1,128)}', space=vmem, size = 0x9000, scoped, tag = 'internal scratch']
  %s0 = inlined_call_operand.vmem [shape: f32[1,4], index: 0, kind: input, shape index: {}]
  %s1 = inlined_call_operand.vmem [shape: f32[2,4], index: 1, kind: input, shape index: {}]
  %s2 = inlined_call_operand.vmem [shape: f32[4,144], index: 2, kind: input, shape index: {}]
  %s3 = inlined_call_operand.vmem [shape: f32[2,144], index: 3, kind: output, shape index: {}]
  %s4 = sld [smem:[#allocation0]]
  $region22: #{gcnet_forward.70} parent=0
    _
  %s6 = ssub.s32 1, %s4
  %s7 = scalar_select 0, %s6, %s4
  // Predicated region
  $region2: #{gcnet_forward.70} parent=0 // pred_check
    _
  $region3: #{gcnet_forward.70} parent=0 // pred_check_branch
    %9 = sbr.rel (0) target = $region5
  $region4: #{gcnet_forward.70} parent=0 // pred_region
    _
  $region5: #{gcnet_forward.70} parent=0 // pred_fallthru
    _
  // Predicated region
  $region6: #{gcnet_forward.70} parent=0 // pred_check
    _
  $region7: #{gcnet_forward.70} parent=0 // pred_check_branch
    %11 = sbr.rel (0) target = $region9
  $region8: #{gcnet_forward.70} parent=0 // pred_region
    _
  $region9: #{gcnet_forward.70} parent=0 // pred_fallthru
    _
  // Predicated region
  $region10: #{gcnet_forward.70} parent=0 // pred_check
    _
  $region11: #{gcnet_forward.70} parent=0 // pred_check_branch
    %13 = sbr.rel (0) target = $region13
  $region12: #{gcnet_forward.70} parent=0 // pred_region
    _
  $region13: #{gcnet_forward.70} parent=0 // pred_fallthru
    _
  %v15 = vld [vmem:[%s0] sm:$0x1]
  %v17 = vperm.slane %v15, 0
  %v19 = vld [vmem:[%s1] sm:$0x3]
  %vm20 = vcmp.gt.f32.partialorder %v19, 0.5
  %v21 = vsel %vm20, %v17, -1e+30
  %vm22 = vcmask 25600
  %v23 = vsel %vm22, %v21, -inf
  %24 = vmax.xlane.f32.xlu0 %v23
  %v25 = vpop.xlane.xlu0 %24
  %v26 = vsub.f32 %v21, %v25
  %v27 = vmul.f32 %v26, 1.442695
  %v28 = vpow.pop %v27
  %v29 = vsel %vm22, %v28, 0.0
  %30 = vadd.xlane.f32.xlu0 %v29
  %v31 = vpop.xlane.xlu0 %30
  %v32 = vrcp.pop %v31
  %v33 = vmul.f32 %v28, %v32
  %v34 = vpack.c.bf16 %v33, %v33
  %v35 = vld [vmem:[%s2] sm:$0xff]
  %37 = vst [vmem:[#allocation1] ss:$2 sm:$0xff] %v35
  %v38 = vld.sshfl [vmem:[#allocation1] sm:$0xff pattern:$0x75316420]
  %v39 = vld.sshfl [vmem:[#allocation1 + $0x8] sm:$0xff pattern:$0x75316420]
  %v42 = vpack.c.bf16 %v38, %v38
  %v43 = vpack.c.bf16 %v39, %v39
  %vm44 = vcmask 31744
  %v46 = vsel %vm44, %v34, 0
  %vm48 = vcmask 1041408
  %v50 = vsel %vm48, %v42, 0
  %v53 = vsel %vm48, %v43, 0
  %55 = vmatpush.bf16.msra.mxu0 0
  %56 = vmatpush.bf16.msra.mxu0 0
  %57 = vmatpush.bf16.msra.mxu0 0
  %58 = vmatpush.bf16.msra.mxu0 0
  %59 = vmatpush.bf16.msra.mxu0 0
  %60 = vmatpush.bf16.msra.mxu0 0
  %61 = vmatpush.bf16.msra.mxu0 0
  %62 = vmatpush.bf16.msra.mxu0 %v50
  %63 = vmatmul.bf16.gmra.mxu0 %v46
  %v64 = vpop.f32.mrf.mxu0
  %v65 = vadd.f32 0.0, %v64
  %v66 = vpop.f32.mrf.mxu0
  %67 = vdwg.mxu0
  %68 = vmatpush.bf16.msra.mxu0 0
  %69 = vmatpush.bf16.msra.mxu0 0
  %70 = vmatpush.bf16.msra.mxu0 0
  %71 = vmatpush.bf16.msra.mxu0 0
  %72 = vmatpush.bf16.msra.mxu0 0
  %73 = vmatpush.bf16.msra.mxu0 0
  %74 = vmatpush.bf16.msra.mxu0 0
  %75 = vmatpush.bf16.msra.mxu0 %v53
  %76 = vmatmul.bf16.gmra.mxu0 %v46
  %v77 = vpop.f32.mrf.mxu0
  %v78 = vadd.f32 0.0, %v77
  %v79 = vpop.f32.mrf.mxu0
  %80 = vdwg.mxu0
  %v83 = vrot.slane %v78, 6
  %v84 = vsel %vm48, %v65, %v83
  %vm86 = vcmask 125954
  %vm87 = vmor %vm86, %vm48
  %88 = vst.msk [vmem:[%s3] sm:$0xf] %vm87, %v84
  // Predicated region
  $region14: #{gcnet_forward.70} parent=0 // pred_check
    _
  $region15: #{gcnet_forward.70} parent=0 // pred_check_branch
    %90 = sbr.rel (0) target = $region17
  $region16: #{gcnet_forward.70} parent=0 // pred_region
    _
  $region17: #{gcnet_forward.70} parent=0 // pred_fallthru
    _
  // Predicated region
  $region18: #{gcnet_forward.70} parent=0 // pred_check
    _
  $region19: #{gcnet_forward.70} parent=0 // pred_check_branch
    %92 = sbr.rel (0) target = $region21
  $region20: #{gcnet_forward.70} parent=0 // pred_region
    _
  $region21: #{gcnet_forward.70} parent=0 // pred_fallthru
    _

// kernel: gcnet_forward.69
$region0: #{gcnet_forward.69}
  #allocation0 [shape = 'u32[]', space=smem, size = 0x4, offset = 0x4, fixed_abs, tag = 'smem constant byte address 0x4 - core index']
  #allocation1 [shape = 'u32[72,128]{1,0:T(1,128)}', space=vmem, size = 0x9000, scoped, tag = 'internal scratch']
  #allocation2 [shape = 'f32[1,1]{1,0:T(1,128)S(1)}', space=vmem, size = 0x200, scoped, tag = 'scoped memory for gcnet_forward.69']
  %s0 = inlined_call_operand.vmem [shape: bf16[8,144], index: 0, kind: input, shape index: {}]
  %s1 = inlined_call_operand.vmem [shape: bf16[144,1], index: 1, kind: input, shape index: {}]
  %s2 = inlined_call_operand.<no memory space> [shape: f32[1,1], index: 2, kind: input, shape index: {}]
  %s3 = inlined_call_operand.vmem [shape: f32[8,1], index: 3, kind: output, shape index: {}]
  %s4 = sld [smem:[#allocation0]]
  $region22: #{gcnet_forward.69} parent=0
    _
  %s6 = ssub.s32 1, %s4
  %s7 = scalar_select 0, %s6, %s4
  %v8 = vstv %s2
  %9 = vst [vmem:[#allocation2] sm:$0x1] %v8
  // Predicated region
  $region2: #{gcnet_forward.69} parent=0 // pred_check
    _
  $region3: #{gcnet_forward.69} parent=0 // pred_check_branch
    %11 = sbr.rel (0) target = $region5
  $region4: #{gcnet_forward.69} parent=0 // pred_region
    _
  $region5: #{gcnet_forward.69} parent=0 // pred_fallthru
    _
  // Predicated region
  $region6: #{gcnet_forward.69} parent=0 // pred_check
    _
  $region7: #{gcnet_forward.69} parent=0 // pred_check_branch
    %13 = sbr.rel (0) target = $region9
  $region8: #{gcnet_forward.69} parent=0 // pred_region
    _
  $region9: #{gcnet_forward.69} parent=0 // pred_fallthru
    _
  // Predicated region
  $region10: #{gcnet_forward.69} parent=0 // pred_check
    _
  $region11: #{gcnet_forward.69} parent=0 // pred_check_branch
    %15 = sbr.rel (0) target = $region13
  $region12: #{gcnet_forward.69} parent=0 // pred_region
    _
  $region13: #{gcnet_forward.69} parent=0 // pred_fallthru
    _
  %v17 = vld [vmem:[%s0] sm:$0xff]
  %v18 = vld [vmem:[%s1] sm:$0xf]
  %v19 = vld [vmem:[%s1 + $0x4] sm:$0xf]
  %v20 = vld [vmem:[%s1 + $0x8] sm:$0xf]
  %v21 = vld [vmem:[%s1 + $0xc] sm:$0xf]
  %v22 = vld [vmem:[%s1 + $0x10] sm:$0xf]
  %v23 = vld [vmem:[%s1 + $0x14] sm:$0xf]
  %v24 = vld [vmem:[%s1 + $0x18] sm:$0xf]
  %v25 = vld [vmem:[%s1 + $0x1c] sm:$0xf]
  %v26 = vld [vmem:[%s1 + $0x20] sm:$0xf]
  %v27 = vld [vmem:[%s1 + $0x24] sm:$0xf]
  %v28 = vld [vmem:[%s1 + $0x28] sm:$0xf]
  %v29 = vld [vmem:[%s1 + $0x2c] sm:$0xf]
  %v30 = vld [vmem:[%s1 + $0x30] sm:$0xf]
  %v31 = vld [vmem:[%s1 + $0x34] sm:$0xf]
  %v32 = vld [vmem:[%s1 + $0x38] sm:$0xf]
  %v33 = vld [vmem:[%s1 + $0x3c] sm:$0xf]
  %v34 = vld [vmem:[%s1 + $0x40] sm:$0xf]
  %v35 = vld [vmem:[%s1 + $0x44] sm:$0xf]
  %v36 = vld [vmem:[#allocation2] sm:$0x1]
  %v38 = vperm.slane %v36, 0
  %v41 = vunpack.c.l.b16 %v17
  %v42 = vunpack.c.h.b16 %v17
  %v43 = vpack.c.b16 %v41, %v41
  %v44 = vpack.c.b16 %v42, %v42
  %v64 = vunpack.c.l.b16 %v18
  %v65 = vunpack.c.l.b16 %v19
  %v66 = vunpack.c.l.b16 %v20
  %v67 = vunpack.c.l.b16 %v21
  %v68 = vunpack.c.l.b16 %v22
  %v69 = vunpack.c.l.b16 %v23
  %v70 = vunpack.c.l.b16 %v24
  %v71 = vunpack.c.l.b16 %v25
  %v72 = vunpack.c.l.b16 %v26
  %v73 = vunpack.c.l.b16 %v27
  %v74 = vunpack.c.l.b16 %v28
  %v75 = vunpack.c.l.b16 %v29
  %v76 = vunpack.c.l.b16 %v30
  %v77 = vunpack.c.l.b16 %v31
  %v78 = vunpack.c.l.b16 %v32
  %v79 = vunpack.c.l.b16 %v33
  %v80 = vunpack.c.l.b16 %v34
  %v81 = vunpack.c.l.b16 %v35
  %v82 = vpack.c.b16 %v65, %v64
  %v83 = vpack.c.b16 %v67, %v66
  %v84 = vpack.c.b16 %v69, %v68
  %v85 = vpack.c.b16 %v71, %v70
  %v86 = vpack.c.b16 %v73, %v72
  %v87 = vpack.c.b16 %v75, %v74
  %v88 = vpack.c.b16 %v77, %v76
  %v89 = vpack.c.b16 %v79, %v78
  %v90 = vpack.c.b16 %v81, %v80
  %vm100 = vcmask 130048
  %v102 = vsel %vm100, %v44, 0
  %104 = vmatpush.bf16.msra.mxu0 %v89
  %105 = vmatpush.bf16.msra.mxu0 %v88
  %106 = vmatpush.bf16.msra.mxu0 %v87
  %107 = vmatpush.bf16.msra.mxu0 %v86
  %108 = vmatpush.bf16.msra.mxu0 %v85
  %109 = vmatpush.bf16.msra.mxu0 %v84
  %110 = vmatpush.bf16.msra.mxu0 %v83
  %111 = vmatpush.bf16.msra.mxu0 %v82
  %112 = vmatmul.bf16.gmra.mxu0 %v43
  %v113 = vpop.f32.mrf.mxu0
  %v114 = vadd.f32 %v38, %v113
  %v115 = vpop.f32.mrf.mxu0
  %116 = vdwg.mxu0
  %117 = vmatpush.bf16.msra.mxu0 0
  %118 = vmatpush.bf16.msra.mxu0 0
  %119 = vmatpush.bf16.msra.mxu0 0
  %120 = vmatpush.bf16.msra.mxu0 0
  %121 = vmatpush.bf16.msra.mxu0 0
  %122 = vmatpush.bf16.msra.mxu0 0
  %123 = vmatpush.bf16.msra.mxu0 0
  %124 = vmatpush.bf16.msra.mxu0 %v90
  %125 = vmatmul.bf16.gmra.mxu0 %v102
  %v126 = vpop.f32.mrf.mxu0
  %v127 = vadd.f32 %v114, %v126
  %v128 = vpop.f32.mrf.mxu0
  %129 = vdwg.mxu0
  %vm130 = vcmask 7168
  %131 = vst.msk [vmem:[%s3] sm:$0xff] %vm130, %v127
  // Predicated region
  $region14: #{gcnet_forward.69} parent=0 // pred_check
    _
  $region15: #{gcnet_forward.69} parent=0 // pred_check_branch
    %133 = sbr.rel (0) target = $region17
  $region16: #{gcnet_forward.69} parent=0 // pred_region
    _
  $region17: #{gcnet_forward.69} parent=0 // pred_fallthru
    _
  // Predicated region
  $region18: #{gcnet_forward.69} parent=0 // pred_check
    _
  $region19: #{gcnet_forward.69} parent=0 // pred_check_branch
    %135 = sbr.rel (0) target = $region21
  $region20: #{gcnet_forward.69} parent=0 // pred_region
    _
  $region21: #{gcnet_forward.69} parent=0 // pred_fallthru
    _

</llo_original>
